<compile_context>
chip_gen: v5e
topology: v5e:2x2
jax: 0.10.0
libtpu: 0.0.40
codegen_flags: <defaults>
</compile_context>

<pallas_src>
import functools
import math

import numpy as np
import jax
import jax.numpy as jnp
from jax import lax
from jax.experimental import pallas as pl
from jax.experimental.pallas import tpu as pltpu

LRELU_SLOPE = 0.2
BN_EPS = 1e-5


def _round_up(v, m):
    return -(-v // m) * m


@functools.lru_cache(maxsize=None)
def _vmem_limit_bytes():
    """~70% of physical VMEM (never the whole thing; v7x only has 64 MiB)."""
    phys = 128 * 1024 * 1024
    try:
        info = pltpu.get_tpu_info()
        phys = int(getattr(info, "vmem_capacity_bytes", phys) or phys)
    except Exception:
        pass
    return max(32 * 1024 * 1024, min(int(phys * 0.7), 96 * 1024 * 1024))


def _tile_budget_bytes():
    # Leave headroom below the scoped limit for Mosaic internal scratch.
    return min(_vmem_limit_bytes() - 8 * 1024 * 1024, 32 * 1024 * 1024)


def _largest_divisor_leq(n, cap):
    if n <= cap:
        return n
    best = 1
    for d in range(1, int(math.isqrt(n)) + 1):
        if n % d == 0:
            if d <= cap and d > best:
                best = d
            q = n // d
            if q <= cap and q > best:
                best = q
    return best


def _pick_tiles(M, K, CP, out_width, out_itemsize, compute_stats):
    TN = 256 if CP % 256 == 0 else 128
    TK = _largest_divisor_leq(K, 4096)
    multi_k = (K // TK) > 1
    budget = _tile_budget_bytes()
    TM = None
    for tm in (4096, 2048, 1024, 512, 256, 128, 64, 32, 16, 8):
        if tm > M or M % tm:
            continue
        need = (2 * tm * TK * 2                                   # patches (bf16, dbl-buf)
                + 2 * TK * TN * 2                                 # weights (bf16, dbl-buf)
                + 2 * tm * min(TN, out_width) * out_itemsize      # z out (dbl-buf)
                + (tm * TN * 4 if multi_k else 0)                 # f32 accumulator
                + (2 * 8 * TN * 4 if compute_stats else 0))       # stat slab
        if need <= budget:
            TM = tm
            break
    if TM is None:
        TM = 8 if M % 8 == 0 else M
    # v7x megacore: expose >=2 tiles along the parallel axes when possible.
    if (M // TM) * (CP // TN) < 2 and TM >= 16 and M % (TM // 2) == 0:
        TM //= 2
    return TM, TN, TK


# ---------------------------------------------------------------------------
# Fused Pallas kernel:  z = patches @ W + b  (+ leaky-relu) (+ BN stat partials)
# ---------------------------------------------------------------------------
def _mm_kernel(p_ref, w_ref, b_ref, *rest, apply_lrelu, compute_stats,
               multi_k, store_width):
    if multi_k:
        acc_ref = rest[-1]
        rest = rest[:-1]
    if compute_stats:
        z_ref, stat_ref = rest
    else:
        (z_ref,) = rest
        stat_ref = None

    def finalize(acc):
        z = acc + b_ref[...]                              # (TM, TN) f32
        if compute_stats:
            # Per-tile channel sums; row 0 = sum, row 1 = sum of squares.
            # (8, TN) slab keeps the output block (8, 128)-aligned; reduced
            # across tiles in plain JAX.
            stat_ref[...] = jnp.zeros_like(stat_ref)
            stat_ref[0:1, :] = jnp.sum(z, axis=0, keepdims=True)
            stat_ref[1:2, :] = jnp.sum(z * z, axis=0, keepdims=True)
        if apply_lrelu:
            z = jnp.where(z > 0, z, LRELU_SLOPE * z)
        # store_width < TN only when Cout < 128 (lane-masked store, but 2-4x
        # less HBM write traffic than a zero-padded 128-lane slab).
        z_ref[...] = z[:, :store_width].astype(z_ref.dtype)

    if not multi_k:
        finalize(jnp.dot(p_ref[...], w_ref[...],
                         preferred_element_type=jnp.float32))
    else:
        k = pl.program_id(2)

        @pl.when(k == 0)
        def _():
            acc_ref[...] = jnp.zeros_like(acc_ref)

        acc_ref[...] += jnp.dot(p_ref[...], w_ref[...],
                                preferred_element_type=jnp.float32)

        @pl.when(k == pl.num_programs(2) - 1)
        def _():
            finalize(acc_ref[...])


def _fused_conv_matmul(patches, w_mat, bias, *, out_width, out_dtype,
                       apply_lrelu, compute_stats):
    """patches: (M, K) bf16, w_mat: (K, CP) bf16, bias: (1, CP) f32."""
    M, K = patches.shape
    _, CP = w_mat.shape
    out_itemsize = jnp.dtype(out_dtype).itemsize

    TM, TN, TK = _pick_tiles(M, K, CP, out_width, out_itemsize, compute_stats)
    assert M % TM == 0 and CP % TN == 0 and K % TK == 0
    assert out_width == CP or (out_width < TN and CP == TN), (out_width, CP, TN)
    nM, nN, nK = M // TM, CP // TN, K // TK
    multi_k = nK > 1
    store_w = min(TN, out_width)

    out_shapes = [jax.ShapeDtypeStruct((M, out_width), out_dtype)]
    out_specs = [pl.BlockSpec((TM, store_w), lambda i, j, k: (i, j))]
    if compute_stats:
        out_shapes.append(jax.ShapeDtypeStruct((nM * 8, CP), jnp.float32))
        out_specs.append(pl.BlockSpec((8, TN), lambda i, j, k: (i, j)))

    kernel = functools.partial(_mm_kernel, apply_lrelu=apply_lrelu,
                               compute_stats=compute_stats, multi_k=multi_k,
                               store_width=store_w)

    res = pl.pallas_call(
        kernel,
        out_shape=tuple(out_shapes),
        grid_spec=pltpu.PrefetchScalarGridSpec(
            num_scalar_prefetch=0,
            grid=(nM, nN, nK),
            in_specs=[
                pl.BlockSpec((TM, TK), lambda i, j, k: (i, k)),
                pl.BlockSpec((TK, TN), lambda i, j, k: (k, j)),
                pl.BlockSpec((1, TN), lambda i, j, k: (0, j)),
            ],
            out_specs=tuple(out_specs),
            scratch_shapes=([pltpu.VMEM((TM, TN), jnp.float32)]
                            if multi_k else []),
        ),
        compiler_params=pltpu.CompilerParams(
            dimension_semantics=("parallel", "parallel", "arbitrary"),
            vmem_limit_bytes=_vmem_limit_bytes()),
    )(patches, w_mat, bias)

    if not isinstance(res, (tuple, list)):
        res = (res,)
    return (res[0], res[1]) if compute_stats else (res[0], None)


# ---------------------------------------------------------------------------
# Glue: im2col + layer assembly (parameter reshaping / BN stats math in JAX)
# ---------------------------------------------------------------------------
def _im2col3d(x, ksize, stride, pad):
    # x: (N, D, H, W, C) channels-last
    if pad:
        x = jnp.pad(x, ((0, 0), (pad, pad), (pad, pad), (pad, pad), (0, 0)))
    N, Dp, Hp, Wp, C = x.shape
    Do = (Dp - ksize) // stride + 1
    Ho = (Hp - ksize) // stride + 1
    Wo = (Wp - ksize) // stride + 1
    taps = []
    for kd in range(ksize):
        for kh in range(ksize):
            for kw in range(ksize):
                taps.append(
                    x[:, kd:kd + stride * Do:stride,
                         kh:kh + stride * Ho:stride,
                         kw:kw + stride * Wo:stride, :])
    p = jnp.stack(taps, axis=-2)                     # (N,Do,Ho,Wo,k^3,C)
    return p.reshape(N * Do * Ho * Wo, ksize ** 3 * C), (N, Do, Ho, Wo)


def _weight_as_matrix(w):
    # (Cout, Cin, k, k, k) -> (k^3*Cin, Cout); row order matches im2col taps.
    Cout, Cin, k, _, _ = w.shape
    return jnp.transpose(w, (2, 3, 4, 1, 0)).reshape(k ** 3 * Cin, Cout)


def _conv3d_layer(x, w, b, stride, pad, bn=None, fuse_lrelu=False,
                  out_dtype=jnp.bfloat16):
    Cout, Cin, k, _, _ = w.shape
    CP = _round_up(Cout, 128)
    K = k ** 3 * Cin

    w_mat = _weight_as_matrix(w)
    w_mat = jnp.pad(w_mat, ((0, 0), (0, CP - Cout))).astype(jnp.bfloat16)
    b_pad = jnp.pad(b, (0, CP - Cout)).astype(jnp.float32).reshape(1, CP)

    patches, (N, Do, Ho, Wo) = _im2col3d(x.astype(jnp.bfloat16), k, stride, pad)
    M = patches.shape[0]
    Mp = _round_up(M, 8)
    compute_stats = bn is not None
    if Mp != M:
        if compute_stats:
            raise ValueError("BatchNorm layers require M % 8 == 0")
        patches = jnp.pad(patches, ((0, Mp - M), (0, 0)))

    # De-padded output width whenever it stays BlockSpec-legal.
    if Cout % 128 == 0:
        out_width = Cout
    elif 8 <= Cout < 128:
        out_width = Cout
    else:
        out_width = CP

    z, stats = _fused_conv_matmul(
        patches, w_mat, b_pad, out_width=out_width,
        out_dtype=jnp.bfloat16 if compute_stats else out_dtype,
        apply_lrelu=fuse_lrelu, compute_stats=compute_stats)

    if not compute_stats:
        y = z[:M, :Cout].astype(out_dtype)
        return y.reshape(N, Do, Ho, Wo, Cout)

    gamma, beta = bn
    sum_c = jnp.sum(stats[0::8], axis=0)[:Cout]
    sq_c = jnp.sum(stats[1::8], axis=0)[:Cout]
    mean = sum_c / M
    var = jnp.maximum(sq_c / M - mean * mean, 0.0)    # biased (training) var
    inv = lax.rsqrt(var + BN_EPS)
    scale = gamma * inv
    shift = beta - mean * scale
    # BN affine + leaky-relu in plain JAX: XLA fuses it into the next layer's
    # im2col gather, so z is read exactly once.
    y = z[:, :Cout].astype(jnp.float32) * scale + shift
    y = jnp.where(y > 0, y, LRELU_SLOPE * y)
    return y.astype(out_dtype).reshape(N, Do, Ho, Wo, Cout)


def _conv3d_head(x, w, b, stride, pad):
    # conv6: Cout=1, M=batch — a (batch, K) x (K, 1) GEMV. Plain f32 dot per
    # perf review (avoids a 127/128-zero padded weight DMA + tiny MXU launch).
    Cout, Cin, k, _, _ = w.shape
    w_mat = _weight_as_matrix(w).astype(jnp.float32)
    patches, (N, Do, Ho, Wo) = _im2col3d(x, k, stride, pad)
    y = jnp.dot(patches.astype(jnp.float32), w_mat,
                precision=lax.Precision.HIGHEST) + b.astype(jnp.float32)
    return y.reshape(N, Do, Ho, Wo, Cout)


def discriminator_forward(x_ncdhw, params):
    x = jnp.transpose(x_ncdhw, (0, 2, 3, 4, 1))       # NCDHW -> NDHWC
    h = _conv3d_layer(x, params["conv1_w"], params["conv1_b"], 2, 1,
                      bn=None, fuse_lrelu=True)
    for i in (2, 3, 4, 5):
        h = _conv3d_layer(h, params[f"conv{i}_w"], params[f"conv{i}_b"], 2, 1,
                          bn=(params[f"bn{i}_g"], params[f"bn{i}_b"]))
    out = _conv3d_head(h, params["conv6_w"], params["conv6_b"], 1, 0)
    return jnp.transpose(out, (0, 4, 1, 2, 3))        # back to NCDHW


# ---------------------------------------------------------------------------
# Deterministic parameter initialization (shapes follow the PyTorch __init__)
# ---------------------------------------------------------------------------
def init_params(key, channel=32, out_class=1):
    ch = [1, channel // 16, channel // 8, channel // 4,
          channel // 2, channel, out_class]
    params = {}
    for i in range(1, 7):
        cin, cout = ch[i - 1], ch[i]
        key, kw, kb = jax.random.split(key, 3)
        bound = 1.0 / np.sqrt(cin * 4 ** 3)
        params[f"conv{i}_w"] = jax.random.uniform(
            kw, (cout, cin, 4, 4, 4), jnp.float32, -bound, bound)
        params[f"conv{i}_b"] = jax.random.uniform(
            kb, (cout,), jnp.float32, -bound, bound)
        if i in (2, 3, 4, 5):
            key, kg, kbe = jax.random.split(key, 3)
            params[f"bn{i}_g"] = 1.0 + 0.1 * jax.random.normal(kg, (cout,), jnp.float32)
            params[f"bn{i}_b"] = 0.1 * jax.random.normal(kbe, (cout,), jnp.float32)
    return params


# ---------------------------------------------------------------------------
# Pure-JAX references (numerical sanity checks)
# ---------------------------------------------------------------------------
def ref_forward(x, params):
    dn = ("NCDHW", "OIDHW", "NCDHW")

    def conv(h, w, b, stride, pad):
        y = lax.conv_general_dilated(h, w, (stride,) * 3, [(pad, pad)] * 3,
                                     dimension_numbers=dn,
                                     precision=lax.Precision.HIGHEST)
        return y + b.reshape(1, -1, 1, 1, 1)

    def bn(y, g, be):
        mean = jnp.mean(y, axis=(0, 2, 3, 4), keepdims=True)
        var = jnp.var(y, axis=(0, 2, 3, 4), keepdims=True)
        return ((y - mean) * lax.rsqrt(var + BN_EPS) * g.reshape(1, -1, 1, 1, 1)
                + be.reshape(1, -1, 1, 1, 1))

    lrelu = lambda v: jnp.where(v > 0, v, LRELU_SLOPE * v)
    h = lrelu(conv(x, params["conv1_w"], params["conv1_b"], 2, 1))
    for i in (2, 3, 4, 5):
        h = lrelu(bn(conv(h, params[f"conv{i}_w"], params[f"conv{i}_b"], 2, 1),
                     params[f"bn{i}_g"], params[f"bn{i}_b"]))
    return conv(h, params["conv6_w"], params["conv6_b"], 1, 0)


def _check_matmul_path():
    """Exercises the K-tiled (nK>1) + Cout-tiled (nN>1) + stats kernel path."""
    k1, k2, k3 = jax.random.split(jax.random.PRNGKey(1), 3)
    M, K, CP = 256, 8192, 384
    p = jax.random.normal(k1, (M, K), jnp.float32).astype(jnp.bfloat16)
    w = (0.02 * jax.random.normal(k2, (K, CP), jnp.float32)).astype(jnp.bfloat16)
    bias = jax.random.normal(k3, (CP,), jnp.float32)

    z, stats = _fused_conv_matmul(p, w, bias.reshape(1, CP), out_width=CP,
                                  out_dtype=jnp.float32,
                                  apply_lrelu=False, compute_stats=True)
    z = jax.block_until_ready(z)
    z_ref = jnp.dot(p.astype(jnp.float32), w.astype(jnp.float32),
                    precision=lax.Precision.HIGHEST) + bias
    np.testing.assert_allclose(np.asarray(z), np.asarray(z_ref),
                               rtol=2e-2, atol=5e-2)
    np.testing.assert_allclose(np.asarray(jnp.sum(stats[0::8], axis=0)),
                               np.asarray(jnp.sum(z_ref, axis=0)),
                               rtol=2e-2, atol=2.0)
    np.testing.assert_allclose(np.asarray(jnp.sum(stats[1::8], axis=0)),
                               np.asarray(jnp.sum(z_ref * z_ref, axis=0)),
                               rtol=2e-2, atol=2.0)


if __name__ == "__main__":
    _check_matmul_path()

    key = jax.random.PRNGKey(0)
    kx, kp = jax.random.split(key)

    # channel kept small (32 vs 512) for a quick synthetic run; spatial must be
    # 128 so conv6 (k=4, stride=1, pad=0) sees a 4^3 input -> 1^3 output.
    N, channel, S = 2, 32, 128
    x = jax.random.normal(kx, (N, 1, S, S, S), jnp.float32)
    params = init_params(kp, channel=channel, out_class=1)

    out = jax.block_until_ready(jax.jit(discriminator_forward)(x, params))
    assert out.shape == (N, 1, 1, 1, 1), out.shape

    ref = jax.block_until_ready(jax.jit(ref_forward)(x, params))
    np.testing.assert_allclose(np.asarray(out), np.asarray(ref),
                               rtol=5e-2, atol=5e-2)
    print("KERNEL_OK")
</pallas_src>

<mosaic_0001>
module attributes {stable_mosaic.version = 11 : i64} {
  func.func @_mm_kernel(%arg0: i32, %arg1: i32, %arg2: i32, %arg3: memref<256x4096xbf16, #tpu.memory_space<vmem>>, %arg4: memref<4096x128xbf16, #tpu.memory_space<vmem>>, %arg5: memref<1x128xf32, #tpu.memory_space<vmem>>, %arg6: memref<256x128xf32, #tpu.memory_space<vmem>>, %arg7: memref<8x128xf32, #tpu.memory_space<vmem>>, %arg8: memref<256x128xf32, #tpu.memory_space<vmem>>) attributes {dimension_semantics = [#tpu.dimension_semantics<parallel>, #tpu.dimension_semantics<parallel>, #tpu.dimension_semantics<arbitrary>], iteration_bounds = array<i64: 1, 3, 2>, scalar_prefetch = 0 : i64, scratch_operands = 1 : i64, tpu.core_type = #tpu.core_type<tc>, window_params = [{transform_indices = @transform_0, window_bounds = array<i64: 256, 4096>}, {transform_indices = @transform_1, window_bounds = array<i64: 4096, 128>}, {transform_indices = @transform_2, window_bounds = array<i64: 1, 128>}, {transform_indices = @transform_3, window_bounds = array<i64: 256, 128>}, {transform_indices = @transform_4, window_bounds = array<i64: 8, 128>}]} {
    %c0_i32 = arith.constant 0 : i32
    %0 = arith.cmpi eq, %arg2, %c0_i32 : i32
    %1 = arith.extui %0 : i1 to i32
    %c0_i32_0 = arith.constant 0 : i32
    %2 = arith.cmpi ne, %1, %c0_i32_0 : i32
    scf.if %2 {
      %cst_9 = arith.constant 0.000000e+00 : f32
      %12 = vector.broadcast %cst_9 : f32 to vector<256x128xf32>
      %c0_10 = arith.constant 0 : index
      %c0_11 = arith.constant 0 : index
      %13 = vector.load %arg8[%c0_10, %c0_11] : memref<256x128xf32, #tpu.memory_space<vmem>>, vector<256x128xf32>
      tpu.vector_store %arg8[%c0_10, %c0_11], %12 {strides = array<i32>} : memref<256x128xf32, #tpu.memory_space<vmem>>, vector<256x128xf32>,
    } else {
    }
    %c0 = arith.constant 0 : index
    %c0_1 = arith.constant 0 : index
    %3 = vector.load %arg8[%c0, %c0_1] : memref<256x128xf32, #tpu.memory_space<vmem>>, vector<256x128xf32>
    %c0_2 = arith.constant 0 : index
    %c0_3 = arith.constant 0 : index
    %4 = vector.load %arg3[%c0_2, %c0_3] : memref<256x4096xbf16, #tpu.memory_space<vmem>>, vector<256x4096xbf16>
    %c0_4 = arith.constant 0 : index
    %c0_5 = arith.constant 0 : index
    %5 = vector.load %arg4[%c0_4, %c0_5] : memref<4096x128xbf16, #tpu.memory_space<vmem>>, vector<4096x128xbf16>
    %cst = arith.constant dense<0.000000e+00> : vector<256x128xf32>
    %6 = tpu.matmul %4, %5, %cst {dimension_numbers = #tpu.dot_dimension_numbers<[1], [0], [0], [1], [0, 0, 1, 1], [], []>} : vector<256x4096xbf16>, vector<4096x128xbf16>, vector<256x128xf32> -> vector<256x128xf32>
    %7 = arith.addf %3, %6 : vector<256x128xf32>
    %c0_6 = arith.constant 0 : index
    %c0_7 = arith.constant 0 : index
    %8 = vector.load %arg8[%c0_6, %c0_7] : memref<256x128xf32, #tpu.memory_space<vmem>>, vector<256x128xf32>
    tpu.vector_store %arg8[%c0_6, %c0_7], %7 {strides = array<i32>} : memref<256x128xf32, #tpu.memory_space<vmem>>, vector<256x128xf32>,
    %c1_i32 = arith.constant 1 : i32
    %9 = arith.cmpi eq, %arg2, %c1_i32 : i32
    %10 = arith.extui %9 : i1 to i32
    %c0_i32_8 = arith.constant 0 : i32
    %11 = arith.cmpi ne, %10, %c0_i32_8 : i32
    scf.if %11 {
      %c0_9 = arith.constant 0 : index
      %c0_10 = arith.constant 0 : index
      %12 = vector.load %arg8[%c0_9, %c0_10] : memref<256x128xf32, #tpu.memory_space<vmem>>, vector<256x128xf32>
      %c0_11 = arith.constant 0 : index
      %c0_12 = arith.constant 0 : index
      %13 = vector.load %arg5[%c0_11, %c0_12] : memref<1x128xf32, #tpu.memory_space<vmem>>, vector<1x128xf32>
      %14 = vector.broadcast %13 : vector<1x128xf32> to vector<256x128xf32>
      %15 = arith.addf %12, %14 : vector<256x128xf32>
      %cst_13 = arith.constant 0.000000e+00 : f32
      %16 = vector.broadcast %cst_13 : f32 to vector<8x128xf32>
      %c0_14 = arith.constant 0 : index
      %c0_15 = arith.constant 0 : index
      %17 = vector.load %arg7[%c0_14, %c0_15] : memref<8x128xf32, #tpu.memory_space<vmem>>, vector<8x128xf32>
      tpu.vector_store %arg7[%c0_14, %c0_15], %16 {strides = array<i32>} : memref<8x128xf32, #tpu.memory_space<vmem>>, vector<8x128xf32>,
      %cst_16 = arith.constant dense<0.000000e+00> : vector<128xf32>
      %18 = vector.multi_reduction <add>, %15, %cst_16 [0] : vector<256x128xf32> to vector<128xf32>
      %19 = vector.shape_cast %18 : vector<128xf32> to vector<1x128xf32>
      %c0_17 = arith.constant 0 : index
      %c0_18 = arith.constant 0 : index
      %20 = vector.load %arg7[%c0_17, %c0_18] : memref<8x128xf32, #tpu.memory_space<vmem>>, vector<1x128xf32>
      tpu.vector_store %arg7[%c0_17, %c0_18], %19 {strides = array<i32>} : memref<8x128xf32, #tpu.memory_space<vmem>>, vector<1x128xf32>,
      %21 = arith.mulf %15, %15 : vector<256x128xf32>
      %cst_19 = arith.constant dense<0.000000e+00> : vector<128xf32>
      %22 = vector.multi_reduction <add>, %21, %cst_19 [0] : vector<256x128xf32> to vector<128xf32>
      %23 = vector.shape_cast %22 : vector<128xf32> to vector<1x128xf32>
      %c1 = arith.constant 1 : index
      %c0_20 = arith.constant 0 : index
      %24 = vector.load %arg7[%c1, %c0_20] : memref<8x128xf32, #tpu.memory_space<vmem>>, vector<1x128xf32>
      tpu.vector_store %arg7[%c1, %c0_20], %23 {strides = array<i32>} : memref<8x128xf32, #tpu.memory_space<vmem>>, vector<1x128xf32>,
      %c0_21 = arith.constant 0 : index
      %c0_22 = arith.constant 0 : index
      %25 = vector.load %arg6[%c0_21, %c0_22] : memref<256x128xf32, #tpu.memory_space<vmem>>, vector<256x128xf32>
      tpu.vector_store %arg6[%c0_21, %c0_22], %15 {strides = array<i32>} : memref<256x128xf32, #tpu.memory_space<vmem>>, vector<256x128xf32>,
    } else {
    }
    return
  }
  func.func @transform_0(%arg0: i32, %arg1: i32, %arg2: i32) -> (i32, i32) {
    %c0_i32 = arith.constant 0 : i32
    return %arg0, %arg2 : i32, i32
  }
  func.func @transform_1(%arg0: i32, %arg1: i32, %arg2: i32) -> (i32, i32) {
    %c0_i32 = arith.constant 0 : i32
    return %arg2, %arg1 : i32, i32
  }
  func.func @transform_2(%arg0: i32, %arg1: i32, %arg2: i32) -> (i32, i32) {
    %c0_i32 = arith.constant 0 : i32
    %c0_i32_0 = arith.constant 0 : i32
    return %c0_i32, %arg1 : i32, i32
  }
  func.func @transform_3(%arg0: i32, %arg1: i32, %arg2: i32) -> (i32, i32) {
    %c0_i32 = arith.constant 0 : i32
    return %arg0, %arg1 : i32, i32
  }
  func.func @transform_4(%arg0: i32, %arg1: i32, %arg2: i32) -> (i32, i32) {
    %c0_i32 = arith.constant 0 : i32
    return %arg0, %arg1 : i32, i32
  }
}

</mosaic_0001>

<llo_original>
// kernel: tpu_custom_call.1
$region0: #{tpu_custom_call.1}
  #allocation0 [shape = 'u32[]', space=smem, size = 0x4, offset = 0x4, fixed_abs, tag = 'smem constant byte address 0x4 - core index']
  #allocation1 [shape = 'u32[72,128]{1,0:T(1,128)}', space=vmem, size = 0x9000, scoped, tag = 'internal scratch']
  #allocation2 [shape = 'f32[256,128]{1,0:T(8,128)}', space=vmem, size = 0x20000, scoped, tag = 'scratch operand']
  %s0 = inlined_call_operand.hbm [shape: bf16[256,8192], index: 0, kind: input, shape index: {}]
  %s1 = inlined_call_operand.hbm [shape: bf16[8192,384], index: 1, kind: input, shape index: {}]
  %s2 = inlined_call_operand.hbm [shape: f32[1,384], index: 2, kind: input, shape index: {}]
  %s3 = inlined_call_operand.hbm [shape: f32[256,384], index: 3, kind: output, shape index: {0}]
  %s4 = inlined_call_operand.hbm [shape: f32[8,384], index: 4, kind: output, shape index: {1}]
  %5 = xla_tuple %s3, %s4
  %s6 = sld [smem:[#allocation0]]
  $region73: #{tpu_custom_call.1} parent=0
    _
  %s8 = ssub.s32 1, %s6
  %s9 = scalar_select 0, %s8, %s6
  $region1: #{tpu_custom_call.1} parent=0
    #allocation3 [shape = 'u8[4194304]{0}', space=vmem, size = 0x400000, scoped, tag = 'input window, operand 0']
    #allocation4 [shape = 's32[2]{0}', space=sflag, size = 0x8, scoped, tag = 'scoped memory for tpu_custom_call.1']
    #allocation5 [shape = 's32[2]{0}', space=sflag, size = 0x8, scoped, tag = 'scoped memory for tpu_custom_call.1']
    #allocation6 [shape = 'u8[2097152]{0}', space=vmem, size = 0x200000, scoped, tag = 'input window, operand 1']
    #allocation7 [shape = 's32[2]{0}', space=sflag, size = 0x8, scoped, tag = 'scoped memory for tpu_custom_call.1']
    #allocation8 [shape = 'u8[1024]{0}', space=vmem, size = 0x400, scoped, tag = 'input window, operand 2']
    #allocation9 [shape = 'u8[262144]{0}', space=vmem, size = 0x40000, scoped, tag = 'output window, operand 0']
    #allocation10 [shape = 'u8[8192]{0}', space=vmem, size = 0x2000, scoped, tag = 'output window, operand 1']
    #allocation11 [shape = 's32[2]{0}', space=sflag, size = 0x8, scoped, tag = 'scoped memory for tpu_custom_call.1']
    %10 = vsyncpa [#allocation4], 0
    %s11 = scalar_lea.sflag [#allocation4], 1
    %12 = vsyncpa %s11, 0
    %13 = vsyncpa [#allocation7], 0
    %s14 = scalar_lea.sflag [#allocation7], 1
    %15 = vsyncpa %s14, 0
    %16 = vsyncpa [#allocation5], 0
    %s17 = scalar_lea.sflag [#allocation5], 1
    %18 = vsyncpa %s17, 0
    %19 = vsyncpa [#allocation11], 0
    %s20 = scalar_lea.sflag [#allocation11], 1
    %21 = vsyncpa %s20, 0
    loop: start=0, step=1, limit=8
    $region2: #{tpu_custom_call.1} parent=1 // loop_pre_header
      _
    $region3: #{tpu_custom_call.1} parent=1 // loop_header
      %s23 = sphi 0, %s27
      %p24 = scmp.ge.s32.totalorder %s23, 8
      %s30 = sphi 0, %s49
      %s31 = sphi 0, %s45
      %s32 = sphi 0, %s41
      %s33 = sphi 0, %s30
      %s34 = sphi 0, %s31
      %s35 = sphi 0, %s32
      %s36 = sphi 0, %s33
      %s37 = sphi 0, %s34
      %s38 = sphi 0, %s35
      %s54 = sphi 0, %s56
      %s57 = sphi 0, %s54
      %s58 = sphi 0, %s57
      %s74 = sphi 0, %s58
      %s82 = sphi 0, %s84
      %s85 = sphi 0, %s82
      %s86 = sphi 0, %s85
      %s102 = sphi 0, %s86
      %s108 = sphi 0, %s110
      %s111 = sphi 0, %s108
      %s112 = sphi 0, %s111
      %s128 = sphi 0, %s112
      %s136 = sphi 0, %s138
      %s139 = sphi 0, %s136
      %s140 = sphi 0, %s139
      %s156 = sphi 0, %s140
      %s164 = sphi 0, %s166
      %s167 = sphi 0, %s164
      %s168 = sphi 0, %s167
      %s184 = sphi 0, %s168
    $region4: #{tpu_custom_call.1} parent=1 // loop_header_branch
      %26 = sbr.rel (%p24) target = $region8
    $region5: #{tpu_custom_call.1} parent=1 // loop_body
      %s28 = ssub.s32 %s23, 1
      %s29 = ssub.s32 %s23, 2
      %s39 = sadd.s32 1, %s32
      %p40 = scmp.ge.s32.totalorder %s39, 2
      %s41 = scalar_select %p40, 0, %s39
      %s42 = sadd.s32 1, %s31
      %s43 = scalar_select %p40, %s42, %s31
      %p44 = scmp.ge.s32.totalorder %s43, 3
      %s45 = scalar_select %p44, 0, %s43
      %s46 = sadd.s32 1, %s30
      %s47 = scalar_select %p44, %s46, %s30
      %p48 = scmp.ge.s32.totalorder %s47, 1
      %s49 = scalar_select %p48, 0, %s47
      %s50 = ssub.s32 %s30, %s49
      %s51 = ssub.s32 %s32, %s41
      %s52 = sor.u32 %s50, %s51
      %p53 = scmp.eq.s32.totalorder %s52, 0
      %s55 = sadd.s32 %s54, 1
      %s56 = scalar_select %p53, %s54, %s55
      %p59 = pneg %p53
      %p60 = scmp.eq.s32.totalorder %s23, 5
      %p61 = por %p59, %p60
      %p62 = scmp.ne.s32.totalorder %s54, %s57
      %p63 = scmp.eq.s32.totalorder %s23, 0
      %p64 = por %p62, %p63
      %p65 = scmp.ne.s32.totalorder %s54, %s57
      %p66 = scmp.eq.s32.totalorder %s28, 5
      %p67 = por %p65, %p66
      %p68 = scmp.ne.s32.totalorder %s57, %s58
      %p69 = scmp.eq.s32.totalorder %s28, 0
      %p70 = por %p68, %p69
      %p71 = scmp.ne.s32.totalorder %s57, %s58
      %p72 = scmp.eq.s32.totalorder %s29, 5
      %p73 = por %p71, %p72
      %p75 = scmp.ne.s32.totalorder %s58, %s74
      %p76 = scmp.eq.s32.totalorder %s29, 0
      %p77 = por %p75, %p76
      %s78 = ssub.s32 %s32, %s41
      %s79 = ssub.s32 %s31, %s45
      %s80 = sor.u32 %s78, %s79
      %p81 = scmp.eq.s32.totalorder %s80, 0
      %s83 = sadd.s32 %s82, 1
      %s84 = scalar_select %p81, %s82, %s83
      %p87 = pneg %p81
      %p88 = scmp.eq.s32.totalorder %s23, 5
      %p89 = por %p87, %p88
      %p90 = scmp.ne.s32.totalorder %s82, %s85
      %p91 = scmp.eq.s32.totalorder %s23, 0
      %p92 = por %p90, %p91
      %p93 = scmp.ne.s32.totalorder %s82, %s85
      %p94 = scmp.eq.s32.totalorder %s28, 5
      %p95 = por %p93, %p94
      %p96 = scmp.ne.s32.totalorder %s85, %s86
      %p97 = scmp.eq.s32.totalorder %s28, 0
      %p98 = por %p96, %p97
      %p99 = scmp.ne.s32.totalorder %s85, %s86
      %p100 = scmp.eq.s32.totalorder %s29, 5
      %p101 = por %p99, %p100
      %p103 = scmp.ne.s32.totalorder %s86, %s102
      %p104 = scmp.eq.s32.totalorder %s29, 0
      %p105 = por %p103, %p104
      %s106 = ssub.s32 %s31, %s45
      %p107 = scmp.eq.s32.totalorder %s106, 0
      %s109 = sadd.s32 %s108, 1
      %s110 = scalar_select %p107, %s108, %s109
      %p113 = pneg %p107
      %p114 = scmp.eq.s32.totalorder %s23, 5
      %p115 = por %p113, %p114
      %p116 = scmp.ne.s32.totalorder %s108, %s111
      %p117 = scmp.eq.s32.totalorder %s23, 0
      %p118 = por %p116, %p117
      %p119 = scmp.ne.s32.totalorder %s108, %s111
      %p120 = scmp.eq.s32.totalorder %s28, 5
      %p121 = por %p119, %p120
      %p122 = scmp.ne.s32.totalorder %s111, %s112
      %p123 = scmp.eq.s32.totalorder %s28, 0
      %p124 = por %p122, %p123
      %p125 = scmp.ne.s32.totalorder %s111, %s112
      %p126 = scmp.eq.s32.totalorder %s29, 5
      %p127 = por %p125, %p126
      %p129 = scmp.ne.s32.totalorder %s112, %s128
      %p130 = scmp.eq.s32.totalorder %s29, 0
      %p131 = por %p129, %p130
      %s132 = ssub.s32 %s30, %s49
      %s133 = ssub.s32 %s31, %s45
      %s134 = sor.u32 %s132, %s133
      %p135 = scmp.eq.s32.totalorder %s134, 0
      %s137 = sadd.s32 %s136, 1
      %s138 = scalar_select %p135, %s136, %s137
      %p141 = pneg %p135
      %p142 = scmp.eq.s32.totalorder %s23, 5
      %p143 = por %p141, %p142
      %p144 = scmp.ne.s32.totalorder %s136, %s139
      %p145 = scmp.eq.s32.totalorder %s23, 0
      %p146 = por %p144, %p145
      %p147 = scmp.ne.s32.totalorder %s136, %s139
      %p148 = scmp.eq.s32.totalorder %s28, 5
      %p149 = por %p147, %p148
      %p150 = scmp.ne.s32.totalorder %s139, %s140
      %p151 = scmp.eq.s32.totalorder %s28, 0
      %p152 = por %p150, %p151
      %p153 = scmp.ne.s32.totalorder %s139, %s140
      %p154 = scmp.eq.s32.totalorder %s29, 5
      %p155 = por %p153, %p154
      %p157 = scmp.ne.s32.totalorder %s140, %s156
      %p158 = scmp.eq.s32.totalorder %s29, 0
      %p159 = por %p157, %p158
      %s160 = ssub.s32 %s30, %s49
      %s161 = ssub.s32 %s31, %s45
      %s162 = sor.u32 %s160, %s161
      %p163 = scmp.eq.s32.totalorder %s162, 0
      %s165 = sadd.s32 %s164, 1
      %s166 = scalar_select %p163, %s164, %s165
      %p169 = pneg %p163
      %p170 = scmp.eq.s32.totalorder %s23, 5
      %p171 = por %p169, %p170
      %p172 = scmp.ne.s32.totalorder %s164, %s167
      %p173 = scmp.eq.s32.totalorder %s23, 0
      %p174 = por %p172, %p173
      %p175 = scmp.ne.s32.totalorder %s164, %s167
      %p176 = scmp.eq.s32.totalorder %s28, 5
      %p177 = por %p175, %p176
      %p178 = scmp.ne.s32.totalorder %s167, %s168
      %p179 = scmp.eq.s32.totalorder %s28, 0
      %p180 = por %p178, %p179
      %p181 = scmp.ne.s32.totalorder %s167, %s168
      %p182 = scmp.eq.s32.totalorder %s29, 5
      %p183 = por %p181, %p182
      %p185 = scmp.ne.s32.totalorder %s168, %s184
      %p186 = scmp.eq.s32.totalorder %s29, 0
      %p187 = por %p185, %p186
      %p188 = scmp.le.s32.totalorder 1, %s23
      %p189 = scmp.lt.s32.totalorder %s23, 7
      %p190 = pnand %p188, %p189
      %p191 = pneg %p190
      // Predicated region
      $region9: #{tpu_custom_call.1} parent=5 // pred_check
        _
      $region10: #{tpu_custom_call.1} parent=5 // pred_check_branch
        %193 = sbr.rel (%p190) target = $region12
      $region11: #{tpu_custom_call.1} parent=5 // pred_region
        %s194 = ssub.s32 %s23, 1
      $region12: #{tpu_custom_call.1} parent=5 // pred_fallthru
        _
      %p195 = scmp.lt.s32.totalorder %s23, 6
      // Predicated region
      $region13: #{tpu_custom_call.1} parent=5 // pred_check
        %p196 = pneg %p195
      $region14: #{tpu_custom_call.1} parent=5 // pred_check_branch
        %198 = sbr.rel (%p196) target = $region16
      $region15: #{tpu_custom_call.1} parent=5 // pred_region
        // Predicated region
        $region17: #{tpu_custom_call.1} parent=15 // pred_check
          %p199 = pneg %p64
        $region18: #{tpu_custom_call.1} parent=15 // pred_check_branch
          %201 = sbr.rel (%p199) target = $region20
        $region19: #{tpu_custom_call.1} parent=15 // pred_region
          %s202 = sand.u32 %s54, 1
          %s203 = scalar_lea.sflag [#allocation4], %s202
          %s204 = sand.u32 %s54, 1
          %s205 = smul.addr %s204, 4096
          %s206 = scalar_lea.vmem [#allocation3], %s205
          %s207 = smul.u32 32, %s30
          %s208 = smul.u32 32, %s32
          %210 = vsyncadd %s203, 0
          %s211 = smul.addr %s207, 64
          %s212 = sadd.s32 %s208, %s211
          %s213 = smul.addr %s212, 4
          %s214 = scalar_lea.hbm %s0, %s213
          %s215 = sshll.u32 %s214, 4
          %s216 = int_to_ptr.hbm [resolvable:$true] %s215
          %s217 = sshll.u32 %s206, 4
          %s218 = int_to_ptr.vmem [resolvable:$true] %s217
          %223 = dma.hbm_to_vmem [thread:$0]  %s216, 65536, %s218, %s203, 4096, 2048, 128
        $region20: #{tpu_custom_call.1} parent=15 // pred_fallthru
          _
        // Predicated region
        $region21: #{tpu_custom_call.1} parent=15 // pred_check
          %p224 = pneg %p92
        $region22: #{tpu_custom_call.1} parent=15 // pred_check_branch
          %226 = sbr.rel (%p224) target = $region24
        $region23: #{tpu_custom_call.1} parent=15 // pred_region
          %s227 = sand.u32 %s23, 1
          %s228 = scalar_lea.sflag [#allocation7], %s227
          %s229 = sand.u32 %s82, 1
          %s230 = smul.addr %s229, 2048
          %s231 = scalar_lea.vmem [#allocation6], %s230
          %s232 = smul.u32 512, %s32
          %234 = vsyncadd %s228, 0
          %s235 = smul.addr %s232, 3
          %s236 = sadd.s32 %s31, %s235
          %s237 = smul.addr %s236, 4
          %s238 = scalar_lea.hbm %s1, %s237
          %s239 = sshll.u32 %s238, 4
          %s240 = int_to_ptr.hbm [resolvable:$true] %s239
          %s241 = sshll.u32 %s231, 4
          %s242 = int_to_ptr.vmem [resolvable:$true] %s241
          %247 = dma.hbm_to_vmem [thread:$0]  %s240, 32768, %s242, %s228, 192, 64, 4
        $region24: #{tpu_custom_call.1} parent=15 // pred_fallthru
          _
        // Predicated region
        $region25: #{tpu_custom_call.1} parent=15 // pred_check
          %p248 = pneg %p118
        $region26: #{tpu_custom_call.1} parent=15 // pred_check_branch
          %250 = sbr.rel (%p248) target = $region28
        $region27: #{tpu_custom_call.1} parent=15 // pred_region
          %s251 = sand.u32 %s23, 1
          %s252 = scalar_lea.sflag [#allocation7], %s251
          %s253 = sand.u32 %s108, 1
          %s254 = scalar_lea.vmem [#allocation8], %s253
          %256 = vsyncadd %s252, 0
          %s257 = scalar_lea.hbm %s2, %s31
          %s259 = sshll.u32 %s257, 4
          %s260 = int_to_ptr.hbm [resolvable:$true] %s259
          %s261 = sshll.u32 %s254, 4
          %s262 = int_to_ptr.vmem [resolvable:$true] %s261
          %264 = dma.hbm_to_vmem [thread:$0]  %s260, 16, %s262, %s252
        $region28: #{tpu_custom_call.1} parent=15 // pred_fallthru
          _
      $region16: #{tpu_custom_call.1} parent=5 // pred_fallthru
        _
      %p265 = scmp.le.s32.totalorder 1, %s23
      %p266 = scmp.lt.s32.totalorder %s23, 7
      %p267 = pnand %p265, %p266
      %p268 = pneg %p267
      // Predicated region
      $region29: #{tpu_custom_call.1} parent=5 // pred_check
        _
      $region30: #{tpu_custom_call.1} parent=5 // pred_check_branch
        %270 = sbr.rel (%p267) target = $region32
      $region31: #{tpu_custom_call.1} parent=5 // pred_region
        %s271 = ssub.s32 %s23, 1
        %s272 = sand.u32 %s57, 1
        %s273 = scalar_lea.sflag [#allocation4], %s272
        %s274 = sand.u32 %s57, 1
        %s275 = smul.addr %s274, 4096
        %s276 = scalar_lea.vmem [#allocation3], %s275
        // Predicated region
        $region33: #{tpu_custom_call.1} parent=31 // pred_check
          %p277 = pneg %p70
        $region34: #{tpu_custom_call.1} parent=31 // pred_check_branch
          %279 = sbr.rel (%p277) target = $region36
        $region35: #{tpu_custom_call.1} parent=31 // pred_region
          %281 = dma.done %s273, 65536
        $region36: #{tpu_custom_call.1} parent=31 // pred_fallthru
          _
        %s282 = sand.u32 %s28, 1
        %s283 = scalar_lea.sflag [#allocation7], %s282
        %s284 = sand.u32 %s85, 1
        %s285 = smul.addr %s284, 2048
        %s286 = scalar_lea.vmem [#allocation6], %s285
        // Predicated region
        $region37: #{tpu_custom_call.1} parent=31 // pred_check
          %p287 = pneg %p98
        $region38: #{tpu_custom_call.1} parent=31 // pred_check_branch
          %289 = sbr.rel (%p287) target = $region40
        $region39: #{tpu_custom_call.1} parent=31 // pred_region
          %291 = dma.done %s283, 32768
        $region40: #{tpu_custom_call.1} parent=31 // pred_fallthru
          _
        %s292 = sand.u32 %s28, 1
        %s293 = scalar_lea.sflag [#allocation7], %s292
        %s294 = sand.u32 %s111, 1
        %s295 = scalar_lea.vmem [#allocation8], %s294
        // Predicated region
        $region41: #{tpu_custom_call.1} parent=31 // pred_check
          %p296 = pneg %p124
        $region42: #{tpu_custom_call.1} parent=31 // pred_check_branch
          %298 = sbr.rel (%p296) target = $region44
        $region43: #{tpu_custom_call.1} parent=31 // pred_region
          %300 = dma.done %s293, 16
        $region44: #{tpu_custom_call.1} parent=31 // pred_fallthru
          _
        %s301 = sand.u32 %s57, 1
        %s302 = scalar_lea.sflag [#allocation4], %s301
        %s303 = sand.u32 %s57, 1
        %s304 = smul.addr %s303, 4096
        %s305 = scalar_lea.vmem [#allocation3], %s304
        %p306 = pneg %p70
        %p307 = pneg %p67
        %s308 = sand.u32 %s28, 1
        %s309 = scalar_lea.sflag [#allocation7], %s308
        %s310 = sand.u32 %s85, 1
        %s311 = smul.addr %s310, 2048
        %s312 = scalar_lea.vmem [#allocation6], %s311
        %p313 = pneg %p98
        %p314 = pneg %p95
        %s315 = sand.u32 %s28, 1
        %s316 = scalar_lea.sflag [#allocation7], %s315
        %s317 = sand.u32 %s111, 1
        %s318 = scalar_lea.vmem [#allocation8], %s317
        %p319 = pneg %p124
        %p320 = pneg %p121
        %p321 = pneg %p152
        %p322 = pneg %p149
        %s323 = sand.u32 %s139, 1
        %s324 = scalar_lea.sflag [#allocation5], %s323
        %s325 = sand.u32 %s139, 1
        %s326 = smul.addr %s325, 256
        %s327 = scalar_lea.vmem [#allocation9], %s326
        %p328 = pneg %p180
        %p329 = pneg %p177
        %s330 = sand.u32 %s167, 1
        %s331 = scalar_lea.sflag [#allocation11], %s330
        %s332 = sand.u32 %s167, 1
        %s333 = smul.addr %s332, 8
        %s334 = scalar_lea.vmem [#allocation10], %s333
        %s335 = smul.u32 32, %s33
        %s336 = smul.u32 32, %s35
        %s337 = smul.u32 512, %s35
        %s338 = smul.u32 32, %s33
        %p339 = scmp.eq.s32.totalorder %s35, 0
        // Predicated region
        $region45: #{tpu_custom_call.1} parent=31 // pred_check
          %p340 = pneg %p339
        $region46: #{tpu_custom_call.1} parent=31 // pred_check_branch
          %342 = sbr.rel (%p340) target = $region48
        $region47: #{tpu_custom_call.1} parent=31 // pred_region
          %343 = vst [vmem:[#allocation2] sm:$0xff] 0.0
          %344 = vst [vmem:[#allocation2 + $0x8] sm:$0xff] 0.0
          %345 = vst [vmem:[#allocation2 + $0x10] sm:$0xff] 0.0
          %346 = vst [vmem:[#allocation2 + $0x18] sm:$0xff] 0.0
          %347 = vst [vmem:[#allocation2 + $0x20] sm:$0xff] 0.0
          %348 = vst [vmem:[#allocation2 + $0x28] sm:$0xff] 0.0
          %349 = vst [vmem:[#allocation2 + $0x30] sm:$0xff] 0.0
          %350 = vst [vmem:[#allocation2 + $0x38] sm:$0xff] 0.0
          %351 = vst [vmem:[#allocation2 + $0x40] sm:$0xff] 0.0
          %352 = vst [vmem:[#allocation2 + $0x48] sm:$0xff] 0.0
          %353 = vst [vmem:[#allocation2 + $0x50] sm:$0xff] 0.0
          %354 = vst [vmem:[#allocation2 + $0x58] sm:$0xff] 0.0
          %355 = vst [vmem:[#allocation2 + $0x60] sm:$0xff] 0.0
          %356 = vst [vmem:[#allocation2 + $0x68] sm:$0xff] 0.0
          %357 = vst [vmem:[#allocation2 + $0x70] sm:$0xff] 0.0
          %358 = vst [vmem:[#allocation2 + $0x78] sm:$0xff] 0.0
          %359 = vst [vmem:[#allocation2 + $0x80] sm:$0xff] 0.0
          %360 = vst [vmem:[#allocation2 + $0x88] sm:$0xff] 0.0
          %361 = vst [vmem:[#allocation2 + $0x90] sm:$0xff] 0.0
          %362 = vst [vmem:[#allocation2 + $0x98] sm:$0xff] 0.0
          %363 = vst [vmem:[#allocation2 + $0xa0] sm:$0xff] 0.0
          %364 = vst [vmem:[#allocation2 + $0xa8] sm:$0xff] 0.0
          %365 = vst [vmem:[#allocation2 + $0xb0] sm:$0xff] 0.0
          %366 = vst [vmem:[#allocation2 + $0xb8] sm:$0xff] 0.0
          %367 = vst [vmem:[#allocation2 + $0xc0] sm:$0xff] 0.0
          %368 = vst [vmem:[#allocation2 + $0xc8] sm:$0xff] 0.0
          %369 = vst [vmem:[#allocation2 + $0xd0] sm:$0xff] 0.0
          %370 = vst [vmem:[#allocation2 + $0xd8] sm:$0xff] 0.0
          %371 = vst [vmem:[#allocation2 + $0xe0] sm:$0xff] 0.0
          %372 = vst [vmem:[#allocation2 + $0xe8] sm:$0xff] 0.0
          %373 = vst [vmem:[#allocation2 + $0xf0] sm:$0xff] 0.0
          %374 = vst [vmem:[#allocation2 + $0xf8] sm:$0xff] 0.0
        $region48: #{tpu_custom_call.1} parent=31 // pred_fallthru
          _
        %v375 = vld [vmem:[#allocation2] sm:$0xff]
        %v376 = vld [vmem:[#allocation2 + $0x8] sm:$0xff]
        %v377 = vld [vmem:[#allocation2 + $0x10] sm:$0xff]
        %v378 = vld [vmem:[#allocation2 + $0x18] sm:$0xff]
        %v379 = vld [vmem:[#allocation2 + $0x20] sm:$0xff]
        %v380 = vld [vmem:[#allocation2 + $0x28] sm:$0xff]
        %v381 = vld [vmem:[#allocation2 + $0x30] sm:$0xff]
        %v382 = vld [vmem:[#allocation2 + $0x38] sm:$0xff]
        %v383 = vld [vmem:[#allocation2 + $0x40] sm:$0xff]
        %v384 = vld [vmem:[#allocation2 + $0x48] sm:$0xff]
        %v385 = vld [vmem:[#allocation2 + $0x50] sm:$0xff]
        %v386 = vld [vmem:[#allocation2 + $0x58] sm:$0xff]
        %v387 = vld [vmem:[#allocation2 + $0x60] sm:$0xff]
        %v388 = vld [vmem:[#allocation2 + $0x68] sm:$0xff]
        %v389 = vld [vmem:[#allocation2 + $0x70] sm:$0xff]
        %v390 = vld [vmem:[#allocation2 + $0x78] sm:$0xff]
        %v391 = vld [vmem:[#allocation2 + $0x80] sm:$0xff]
        %v392 = vld [vmem:[#allocation2 + $0x88] sm:$0xff]
        %v393 = vld [vmem:[#allocation2 + $0x90] sm:$0xff]
        %v394 = vld [vmem:[#allocation2 + $0x98] sm:$0xff]
        %v395 = vld [vmem:[#allocation2 + $0xa0] sm:$0xff]
        %v396 = vld [vmem:[#allocation2 + $0xa8] sm:$0xff]
        %v397 = vld [vmem:[#allocation2 + $0xb0] sm:$0xff]
        %v398 = vld [vmem:[#allocation2 + $0xb8] sm:$0xff]
        %v399 = vld [vmem:[#allocation2 + $0xc0] sm:$0xff]
        %v400 = vld [vmem:[#allocation2 + $0xc8] sm:$0xff]
        %v401 = vld [vmem:[#allocation2 + $0xd0] sm:$0xff]
        %v402 = vld [vmem:[#allocation2 + $0xd8] sm:$0xff]
        %v403 = vld [vmem:[#allocation2 + $0xe0] sm:$0xff]
        %v404 = vld [vmem:[#allocation2 + $0xe8] sm:$0xff]
        %v405 = vld [vmem:[#allocation2 + $0xf0] sm:$0xff]
        %v406 = vld [vmem:[#allocation2 + $0xf8] sm:$0xff]
        %v407 = vld [vmem:[%s276] sm:$0xff]
        %v408 = vld [vmem:[%s276 + $0x8] sm:$0xff]
        %v409 = vld [vmem:[%s276 + $0x10] sm:$0xff]
        %v410 = vld [vmem:[%s276 + $0x18] sm:$0xff]
        %v411 = vld [vmem:[%s276 + $0x20] sm:$0xff]
        %v412 = vld [vmem:[%s276 + $0x28] sm:$0xff]
        %v413 = vld [vmem:[%s276 + $0x30] sm:$0xff]
        %v414 = vld [vmem:[%s276 + $0x38] sm:$0xff]
        %v415 = vld [vmem:[%s276 + $0x40] sm:$0xff]
        %v416 = vld [vmem:[%s276 + $0x48] sm:$0xff]
        %v417 = vld [vmem:[%s276 + $0x50] sm:$0xff]
        %v418 = vld [vmem:[%s276 + $0x58] sm:$0xff]
        %v419 = vld [vmem:[%s276 + $0x60] sm:$0xff]
        %v420 = vld [vmem:[%s276 + $0x68] sm:$0xff]
        %v421 = vld [vmem:[%s276 + $0x70] sm:$0xff]
        %v422 = vld [vmem:[%s276 + $0x78] sm:$0xff]
        %v423 = vld [vmem:[%s276 + $0x80] sm:$0xff]
        %v424 = vld [vmem:[%s276 + $0x88] sm:$0xff]
        %v425 = vld [vmem:[%s276 + $0x90] sm:$0xff]
        %v426 = vld [vmem:[%s276 + $0x98] sm:$0xff]
        %v427 = vld [vmem:[%s276 + $0xa0] sm:$0xff]
        %v428 = vld [vmem:[%s276 + $0xa8] sm:$0xff]
        %v429 = vld [vmem:[%s276 + $0xb0] sm:$0xff]
        %v430 = vld [vmem:[%s276 + $0xb8] sm:$0xff]
        %v431 = vld [vmem:[%s276 + $0xc0] sm:$0xff]
        %v432 = vld [vmem:[%s276 + $0xc8] sm:$0xff]
        %v433 = vld [vmem:[%s276 + $0xd0] sm:$0xff]
        %v434 = vld [vmem:[%s276 + $0xd8] sm:$0xff]
        %v435 = vld [vmem:[%s276 + $0xe0] sm:$0xff]
        %v436 = vld [vmem:[%s276 + $0xe8] sm:$0xff]
        %v437 = vld [vmem:[%s276 + $0xf0] sm:$0xff]
        %v438 = vld [vmem:[%s276 + $0xf8] sm:$0xff]
        %v439 = vld [vmem:[%s276 + $0x100] sm:$0xff]
        %v440 = vld [vmem:[%s276 + $0x108] sm:$0xff]
        %v441 = vld [vmem:[%s276 + $0x110] sm:$0xff]
        %v442 = vld [vmem:[%s276 + $0x118] sm:$0xff]
        %v443 = vld [vmem:[%s276 + $0x120] sm:$0xff]
        %v444 = vld [vmem:[%s276 + $0x128] sm:$0xff]
        %v445 = vld [vmem:[%s276 + $0x130] sm:$0xff]
        %v446 = vld [vmem:[%s276 + $0x138] sm:$0xff]
        %v447 = vld [vmem:[%s276 + $0x140] sm:$0xff]
        %v448 = vld [vmem:[%s276 + $0x148] sm:$0xff]
        %v449 = vld [vmem:[%s276 + $0x150] sm:$0xff]
        %v450 = vld [vmem:[%s276 + $0x158] sm:$0xff]
        %v451 = vld [vmem:[%s276 + $0x160] sm:$0xff]
        %v452 = vld [vmem:[%s276 + $0x168] sm:$0xff]
        %v453 = vld [vmem:[%s276 + $0x170] sm:$0xff]
        %v454 = vld [vmem:[%s276 + $0x178] sm:$0xff]
        %v455 = vld [vmem:[%s276 + $0x180] sm:$0xff]
        %v456 = vld [vmem:[%s276 + $0x188] sm:$0xff]
        %v457 = vld [vmem:[%s276 + $0x190] sm:$0xff]
        %v458 = vld [vmem:[%s276 + $0x198] sm:$0xff]
        %v459 = vld [vmem:[%s276 + $0x1a0] sm:$0xff]
        %v460 = vld [vmem:[%s276 + $0x1a8] sm:$0xff]
        %v461 = vld [vmem:[%s276 + $0x1b0] sm:$0xff]
        %v462 = vld [vmem:[%s276 + $0x1b8] sm:$0xff]
        %v463 = vld [vmem:[%s276 + $0x1c0] sm:$0xff]
        %v464 = vld [vmem:[%s276 + $0x1c8] sm:$0xff]
        %v465 = vld [vmem:[%s276 + $0x1d0] sm:$0xff]
        %v466 = vld [vmem:[%s276 + $0x1d8] sm:$0xff]
        %v467 = vld [vmem:[%s276 + $0x1e0] sm:$0xff]
        %v468 = vld [vmem:[%s276 + $0x1e8] sm:$0xff]
        %v469 = vld [vmem:[%s276 + $0x1f0] sm:$0xff]
        %v470 = vld [vmem:[%s276 + $0x1f8] sm:$0xff]
        %v471 = vld [vmem:[%s276 + $0x200] sm:$0xff]
        %v472 = vld [vmem:[%s276 + $0x208] sm:$0xff]
        %v473 = vld [vmem:[%s276 + $0x210] sm:$0xff]
        %v474 = vld [vmem:[%s276 + $0x218] sm:$0xff]
        %v475 = vld [vmem:[%s276 + $0x220] sm:$0xff]
        %v476 = vld [vmem:[%s276 + $0x228] sm:$0xff]
        %v477 = vld [vmem:[%s276 + $0x230] sm:$0xff]
        %v478 = vld [vmem:[%s276 + $0x238] sm:$0xff]
        %v479 = vld [vmem:[%s276 + $0x240] sm:$0xff]
        %v480 = vld [vmem:[%s276 + $0x248] sm:$0xff]
        %v481 = vld [vmem:[%s276 + $0x250] sm:$0xff]
        %v482 = vld [vmem:[%s276 + $0x258] sm:$0xff]
        %v483 = vld [vmem:[%s276 + $0x260] sm:$0xff]
        %v484 = vld [vmem:[%s276 + $0x268] sm:$0xff]
        %v485 = vld [vmem:[%s276 + $0x270] sm:$0xff]
        %v486 = vld [vmem:[%s276 + $0x278] sm:$0xff]
        %v487 = vld [vmem:[%s276 + $0x280] sm:$0xff]
        %v488 = vld [vmem:[%s276 + $0x288] sm:$0xff]
        %v489 = vld [vmem:[%s276 + $0x290] sm:$0xff]
        %v490 = vld [vmem:[%s276 + $0x298] sm:$0xff]
        %v491 = vld [vmem:[%s276 + $0x2a0] sm:$0xff]
        %v492 = vld [vmem:[%s276 + $0x2a8] sm:$0xff]
        %v493 = vld [vmem:[%s276 + $0x2b0] sm:$0xff]
        %v494 = vld [vmem:[%s276 + $0x2b8] sm:$0xff]
        %v495 = vld [vmem:[%s276 + $0x2c0] sm:$0xff]
        %v496 = vld [vmem:[%s276 + $0x2c8] sm:$0xff]
        %v497 = vld [vmem:[%s276 + $0x2d0] sm:$0xff]
        %v498 = vld [vmem:[%s276 + $0x2d8] sm:$0xff]
        %v499 = vld [vmem:[%s276 + $0x2e0] sm:$0xff]
        %v500 = vld [vmem:[%s276 + $0x2e8] sm:$0xff]
        %v501 = vld [vmem:[%s276 + $0x2f0] sm:$0xff]
        %v502 = vld [vmem:[%s276 + $0x2f8] sm:$0xff]
        %v503 = vld [vmem:[%s276 + $0x300] sm:$0xff]
        %v504 = vld [vmem:[%s276 + $0x308] sm:$0xff]
        %v505 = vld [vmem:[%s276 + $0x310] sm:$0xff]
        %v506 = vld [vmem:[%s276 + $0x318] sm:$0xff]
        %v507 = vld [vmem:[%s276 + $0x320] sm:$0xff]
        %v508 = vld [vmem:[%s276 + $0x328] sm:$0xff]
        %v509 = vld [vmem:[%s276 + $0x330] sm:$0xff]
        %v510 = vld [vmem:[%s276 + $0x338] sm:$0xff]
        %v511 = vld [vmem:[%s276 + $0x340] sm:$0xff]
        %v512 = vld [vmem:[%s276 + $0x348] sm:$0xff]
        %v513 = vld [vmem:[%s276 + $0x350] sm:$0xff]
        %v514 = vld [vmem:[%s276 + $0x358] sm:$0xff]
        %v515 = vld [vmem:[%s276 + $0x360] sm:$0xff]
        %v516 = vld [vmem:[%s276 + $0x368] sm:$0xff]
        %v517 = vld [vmem:[%s276 + $0x370] sm:$0xff]
        %v518 = vld [vmem:[%s276 + $0x378] sm:$0xff]
        %v519 = vld [vmem:[%s276 + $0x380] sm:$0xff]
        %v520 = vld [vmem:[%s276 + $0x388] sm:$0xff]
        %v521 = vld [vmem:[%s276 + $0x390] sm:$0xff]
        %v522 = vld [vmem:[%s276 + $0x398] sm:$0xff]
        %v523 = vld [vmem:[%s276 + $0x3a0] sm:$0xff]
        %v524 = vld [vmem:[%s276 + $0x3a8] sm:$0xff]
        %v525 = vld [vmem:[%s276 + $0x3b0] sm:$0xff]
        %v526 = vld [vmem:[%s276 + $0x3b8] sm:$0xff]
        %v527 = vld [vmem:[%s276 + $0x3c0] sm:$0xff]
        %v528 = vld [vmem:[%s276 + $0x3c8] sm:$0xff]
        %v529 = vld [vmem:[%s276 + $0x3d0] sm:$0xff]
        %v530 = vld [vmem:[%s276 + $0x3d8] sm:$0xff]
        %v531 = vld [vmem:[%s276 + $0x3e0] sm:$0xff]
        %v532 = vld [vmem:[%s276 + $0x3e8] sm:$0xff]
        %v533 = vld [vmem:[%s276 + $0x3f0] sm:$0xff]
        %v534 = vld [vmem:[%s276 + $0x3f8] sm:$0xff]
        %v535 = vld [vmem:[%s276 + $0x400] sm:$0xff]
        %v536 = vld [vmem:[%s276 + $0x408] sm:$0xff]
        %v537 = vld [vmem:[%s276 + $0x410] sm:$0xff]
        %v538 = vld [vmem:[%s276 + $0x418] sm:$0xff]
        %v539 = vld [vmem:[%s276 + $0x420] sm:$0xff]
        %v540 = vld [vmem:[%s276 + $0x428] sm:$0xff]
        %v541 = vld [vmem:[%s276 + $0x430] sm:$0xff]
        %v542 = vld [vmem:[%s276 + $0x438] sm:$0xff]
        %v543 = vld [vmem:[%s276 + $0x440] sm:$0xff]
        %v544 = vld [vmem:[%s276 + $0x448] sm:$0xff]
        %v545 = vld [vmem:[%s276 + $0x450] sm:$0xff]
        %v546 = vld [vmem:[%s276 + $0x458] sm:$0xff]
        %v547 = vld [vmem:[%s276 + $0x460] sm:$0xff]
        %v548 = vld [vmem:[%s276 + $0x468] sm:$0xff]
        %v549 = vld [vmem:[%s276 + $0x470] sm:$0xff]
        %v550 = vld [vmem:[%s276 + $0x478] sm:$0xff]
        %v551 = vld [vmem:[%s276 + $0x480] sm:$0xff]
        %v552 = vld [vmem:[%s276 + $0x488] sm:$0xff]
        %v553 = vld [vmem:[%s276 + $0x490] sm:$0xff]
        %v554 = vld [vmem:[%s276 + $0x498] sm:$0xff]
        %v555 = vld [vmem:[%s276 + $0x4a0] sm:$0xff]
        %v556 = vld [vmem:[%s276 + $0x4a8] sm:$0xff]
        %v557 = vld [vmem:[%s276 + $0x4b0] sm:$0xff]
        %v558 = vld [vmem:[%s276 + $0x4b8] sm:$0xff]
        %v559 = vld [vmem:[%s276 + $0x4c0] sm:$0xff]
        %v560 = vld [vmem:[%s276 + $0x4c8] sm:$0xff]
        %v561 = vld [vmem:[%s276 + $0x4d0] sm:$0xff]
        %v562 = vld [vmem:[%s276 + $0x4d8] sm:$0xff]
        %v563 = vld [vmem:[%s276 + $0x4e0] sm:$0xff]
        %v564 = vld [vmem:[%s276 + $0x4e8] sm:$0xff]
        %v565 = vld [vmem:[%s276 + $0x4f0] sm:$0xff]
        %v566 = vld [vmem:[%s276 + $0x4f8] sm:$0xff]
        %v567 = vld [vmem:[%s276 + $0x500] sm:$0xff]
        %v568 = vld [vmem:[%s276 + $0x508] sm:$0xff]
        %v569 = vld [vmem:[%s276 + $0x510] sm:$0xff]
        %v570 = vld [vmem:[%s276 + $0x518] sm:$0xff]
        %v571 = vld [vmem:[%s276 + $0x520] sm:$0xff]
        %v572 = vld [vmem:[%s276 + $0x528] sm:$0xff]
        %v573 = vld [vmem:[%s276 + $0x530] sm:$0xff]
        %v574 = vld [vmem:[%s276 + $0x538] sm:$0xff]
        %v575 = vld [vmem:[%s276 + $0x540] sm:$0xff]
        %v576 = vld [vmem:[%s276 + $0x548] sm:$0xff]
        %v577 = vld [vmem:[%s276 + $0x550] sm:$0xff]
        %v578 = vld [vmem:[%s276 + $0x558] sm:$0xff]
        %v579 = vld [vmem:[%s276 + $0x560] sm:$0xff]
        %v580 = vld [vmem:[%s276 + $0x568] sm:$0xff]
        %v581 = vld [vmem:[%s276 + $0x570] sm:$0xff]
        %v582 = vld [vmem:[%s276 + $0x578] sm:$0xff]
        %v583 = vld [vmem:[%s276 + $0x580] sm:$0xff]
        %v584 = vld [vmem:[%s276 + $0x588] sm:$0xff]
        %v585 = vld [vmem:[%s276 + $0x590] sm:$0xff]
        %v586 = vld [vmem:[%s276 + $0x598] sm:$0xff]
        %v587 = vld [vmem:[%s276 + $0x5a0] sm:$0xff]
        %v588 = vld [vmem:[%s276 + $0x5a8] sm:$0xff]
        %v589 = vld [vmem:[%s276 + $0x5b0] sm:$0xff]
        %v590 = vld [vmem:[%s276 + $0x5b8] sm:$0xff]
        %v591 = vld [vmem:[%s276 + $0x5c0] sm:$0xff]
        %v592 = vld [vmem:[%s276 + $0x5c8] sm:$0xff]
        %v593 = vld [vmem:[%s276 + $0x5d0] sm:$0xff]
        %v594 = vld [vmem:[%s276 + $0x5d8] sm:$0xff]
        %v595 = vld [vmem:[%s276 + $0x5e0] sm:$0xff]
        %v596 = vld [vmem:[%s276 + $0x5e8] sm:$0xff]
        %v597 = vld [vmem:[%s276 + $0x5f0] sm:$0xff]
        %v598 = vld [vmem:[%s276 + $0x5f8] sm:$0xff]
        %v599 = vld [vmem:[%s276 + $0x600] sm:$0xff]
        %v600 = vld [vmem:[%s276 + $0x608] sm:$0xff]
        %v601 = vld [vmem:[%s276 + $0x610] sm:$0xff]
        %v602 = vld [vmem:[%s276 + $0x618] sm:$0xff]
        %v603 = vld [vmem:[%s276 + $0x620] sm:$0xff]
        %v604 = vld [vmem:[%s276 + $0x628] sm:$0xff]
        %v605 = vld [vmem:[%s276 + $0x630] sm:$0xff]
        %v606 = vld [vmem:[%s276 + $0x638] sm:$0xff]
        %v607 = vld [vmem:[%s276 + $0x640] sm:$0xff]
        %v608 = vld [vmem:[%s276 + $0x648] sm:$0xff]
        %v609 = vld [vmem:[%s276 + $0x650] sm:$0xff]
        %v610 = vld [vmem:[%s276 + $0x658] sm:$0xff]
        %v611 = vld [vmem:[%s276 + $0x660] sm:$0xff]
        %v612 = vld [vmem:[%s276 + $0x668] sm:$0xff]
        %v613 = vld [vmem:[%s276 + $0x670] sm:$0xff]
        %v614 = vld [vmem:[%s276 + $0x678] sm:$0xff]
        %v615 = vld [vmem:[%s276 + $0x680] sm:$0xff]
        %v616 = vld [vmem:[%s276 + $0x688] sm:$0xff]
        %v617 = vld [vmem:[%s276 + $0x690] sm:$0xff]
        %v618 = vld [vmem:[%s276 + $0x698] sm:$0xff]
        %v619 = vld [vmem:[%s276 + $0x6a0] sm:$0xff]
        %v620 = vld [vmem:[%s276 + $0x6a8] sm:$0xff]
        %v621 = vld [vmem:[%s276 + $0x6b0] sm:$0xff]
        %v622 = vld [vmem:[%s276 + $0x6b8] sm:$0xff]
        %v623 = vld [vmem:[%s276 + $0x6c0] sm:$0xff]
        %v624 = vld [vmem:[%s276 + $0x6c8] sm:$0xff]
        %v625 = vld [vmem:[%s276 + $0x6d0] sm:$0xff]
        %v626 = vld [vmem:[%s276 + $0x6d8] sm:$0xff]
        %v627 = vld [vmem:[%s276 + $0x6e0] sm:$0xff]
        %v628 = vld [vmem:[%s276 + $0x6e8] sm:$0xff]
        %v629 = vld [vmem:[%s276 + $0x6f0] sm:$0xff]
        %v630 = vld [vmem:[%s276 + $0x6f8] sm:$0xff]
        %v631 = vld [vmem:[%s276 + $0x700] sm:$0xff]
        %v632 = vld [vmem:[%s276 + $0x708] sm:$0xff]
        %v633 = vld [vmem:[%s276 + $0x710] sm:$0xff]
        %v634 = vld [vmem:[%s276 + $0x718] sm:$0xff]
        %v635 = vld [vmem:[%s276 + $0x720] sm:$0xff]
        %v636 = vld [vmem:[%s276 + $0x728] sm:$0xff]
        %v637 = vld [vmem:[%s276 + $0x730] sm:$0xff]
        %v638 = vld [vmem:[%s276 + $0x738] sm:$0xff]
        %v639 = vld [vmem:[%s276 + $0x740] sm:$0xff]
        %v640 = vld [vmem:[%s276 + $0x748] sm:$0xff]
        %v641 = vld [vmem:[%s276 + $0x750] sm:$0xff]
        %v642 = vld [vmem:[%s276 + $0x758] sm:$0xff]
        %v643 = vld [vmem:[%s276 + $0x760] sm:$0xff]
        %v644 = vld [vmem:[%s276 + $0x768] sm:$0xff]
        %v645 = vld [vmem:[%s276 + $0x770] sm:$0xff]
        %v646 = vld [vmem:[%s276 + $0x778] sm:$0xff]
        %v647 = vld [vmem:[%s276 + $0x780] sm:$0xff]
        %v648 = vld [vmem:[%s276 + $0x788] sm:$0xff]
        %v649 = vld [vmem:[%s276 + $0x790] sm:$0xff]
        %v650 = vld [vmem:[%s276 + $0x798] sm:$0xff]
        %v651 = vld [vmem:[%s276 + $0x7a0] sm:$0xff]
        %v652 = vld [vmem:[%s276 + $0x7a8] sm:$0xff]
        %v653 = vld [vmem:[%s276 + $0x7b0] sm:$0xff]
        %v654 = vld [vmem:[%s276 + $0x7b8] sm:$0xff]
        %v655 = vld [vmem:[%s276 + $0x7c0] sm:$0xff]
        %v656 = vld [vmem:[%s276 + $0x7c8] sm:$0xff]
        %v657 = vld [vmem:[%s276 + $0x7d0] sm:$0xff]
        %v658 = vld [vmem:[%s276 + $0x7d8] sm:$0xff]
        %v659 = vld [vmem:[%s276 + $0x7e0] sm:$0xff]
        %v660 = vld [vmem:[%s276 + $0x7e8] sm:$0xff]
        %v661 = vld [vmem:[%s276 + $0x7f0] sm:$0xff]
        %v662 = vld [vmem:[%s276 + $0x7f8] sm:$0xff]
        %v663 = vld [vmem:[%s276 + $0x800] sm:$0xff]
        %v664 = vld [vmem:[%s276 + $0x808] sm:$0xff]
        %v665 = vld [vmem:[%s276 + $0x810] sm:$0xff]
        %v666 = vld [vmem:[%s276 + $0x818] sm:$0xff]
        %v667 = vld [vmem:[%s276 + $0x820] sm:$0xff]
        %v668 = vld [vmem:[%s276 + $0x828] sm:$0xff]
        %v669 = vld [vmem:[%s276 + $0x830] sm:$0xff]
        %v670 = vld [vmem:[%s276 + $0x838] sm:$0xff]
        %v671 = vld [vmem:[%s276 + $0x840] sm:$0xff]
        %v672 = vld [vmem:[%s276 + $0x848] sm:$0xff]
        %v673 = vld [vmem:[%s276 + $0x850] sm:$0xff]
        %v674 = vld [vmem:[%s276 + $0x858] sm:$0xff]
        %v675 = vld [vmem:[%s276 + $0x860] sm:$0xff]
        %v676 = vld [vmem:[%s276 + $0x868] sm:$0xff]
        %v677 = vld [vmem:[%s276 + $0x870] sm:$0xff]
        %v678 = vld [vmem:[%s276 + $0x878] sm:$0xff]
        %v679 = vld [vmem:[%s276 + $0x880] sm:$0xff]
        %v680 = vld [vmem:[%s276 + $0x888] sm:$0xff]
        %v681 = vld [vmem:[%s276 + $0x890] sm:$0xff]
        %v682 = vld [vmem:[%s276 + $0x898] sm:$0xff]
        %v683 = vld [vmem:[%s276 + $0x8a0] sm:$0xff]
        %v684 = vld [vmem:[%s276 + $0x8a8] sm:$0xff]
        %v685 = vld [vmem:[%s276 + $0x8b0] sm:$0xff]
        %v686 = vld [vmem:[%s276 + $0x8b8] sm:$0xff]
        %v687 = vld [vmem:[%s276 + $0x8c0] sm:$0xff]
        %v688 = vld [vmem:[%s276 + $0x8c8] sm:$0xff]
        %v689 = vld [vmem:[%s276 + $0x8d0] sm:$0xff]
        %v690 = vld [vmem:[%s276 + $0x8d8] sm:$0xff]
        %v691 = vld [vmem:[%s276 + $0x8e0] sm:$0xff]
        %v692 = vld [vmem:[%s276 + $0x8e8] sm:$0xff]
        %v693 = vld [vmem:[%s276 + $0x8f0] sm:$0xff]
        %v694 = vld [vmem:[%s276 + $0x8f8] sm:$0xff]
        %v695 = vld [vmem:[%s276 + $0x900] sm:$0xff]
        %v696 = vld [vmem:[%s276 + $0x908] sm:$0xff]
        %v697 = vld [vmem:[%s276 + $0x910] sm:$0xff]
        %v698 = vld [vmem:[%s276 + $0x918] sm:$0xff]
        %v699 = vld [vmem:[%s276 + $0x920] sm:$0xff]
        %v700 = vld [vmem:[%s276 + $0x928] sm:$0xff]
        %v701 = vld [vmem:[%s276 + $0x930] sm:$0xff]
        %v702 = vld [vmem:[%s276 + $0x938] sm:$0xff]
        %v703 = vld [vmem:[%s276 + $0x940] sm:$0xff]
        %v704 = vld [vmem:[%s276 + $0x948] sm:$0xff]
        %v705 = vld [vmem:[%s276 + $0x950] sm:$0xff]
        %v706 = vld [vmem:[%s276 + $0x958] sm:$0xff]
        %v707 = vld [vmem:[%s276 + $0x960] sm:$0xff]
        %v708 = vld [vmem:[%s276 + $0x968] sm:$0xff]
        %v709 = vld [vmem:[%s276 + $0x970] sm:$0xff]
        %v710 = vld [vmem:[%s276 + $0x978] sm:$0xff]
        %v711 = vld [vmem:[%s276 + $0x980] sm:$0xff]
        %v712 = vld [vmem:[%s276 + $0x988] sm:$0xff]
        %v713 = vld [vmem:[%s276 + $0x990] sm:$0xff]
        %v714 = vld [vmem:[%s276 + $0x998] sm:$0xff]
        %v715 = vld [vmem:[%s276 + $0x9a0] sm:$0xff]
        %v716 = vld [vmem:[%s276 + $0x9a8] sm:$0xff]
        %v717 = vld [vmem:[%s276 + $0x9b0] sm:$0xff]
        %v718 = vld [vmem:[%s276 + $0x9b8] sm:$0xff]
        %v719 = vld [vmem:[%s276 + $0x9c0] sm:$0xff]
        %v720 = vld [vmem:[%s276 + $0x9c8] sm:$0xff]
        %v721 = vld [vmem:[%s276 + $0x9d0] sm:$0xff]
        %v722 = vld [vmem:[%s276 + $0x9d8] sm:$0xff]
        %v723 = vld [vmem:[%s276 + $0x9e0] sm:$0xff]
        %v724 = vld [vmem:[%s276 + $0x9e8] sm:$0xff]
        %v725 = vld [vmem:[%s276 + $0x9f0] sm:$0xff]
        %v726 = vld [vmem:[%s276 + $0x9f8] sm:$0xff]
        %v727 = vld [vmem:[%s276 + $0xa00] sm:$0xff]
        %v728 = vld [vmem:[%s276 + $0xa08] sm:$0xff]
        %v729 = vld [vmem:[%s276 + $0xa10] sm:$0xff]
        %v730 = vld [vmem:[%s276 + $0xa18] sm:$0xff]
        %v731 = vld [vmem:[%s276 + $0xa20] sm:$0xff]
        %v732 = vld [vmem:[%s276 + $0xa28] sm:$0xff]
        %v733 = vld [vmem:[%s276 + $0xa30] sm:$0xff]
        %v734 = vld [vmem:[%s276 + $0xa38] sm:$0xff]
        %v735 = vld [vmem:[%s276 + $0xa40] sm:$0xff]
        %v736 = vld [vmem:[%s276 + $0xa48] sm:$0xff]
        %v737 = vld [vmem:[%s276 + $0xa50] sm:$0xff]
        %v738 = vld [vmem:[%s276 + $0xa58] sm:$0xff]
        %v739 = vld [vmem:[%s276 + $0xa60] sm:$0xff]
        %v740 = vld [vmem:[%s276 + $0xa68] sm:$0xff]
        %v741 = vld [vmem:[%s276 + $0xa70] sm:$0xff]
        %v742 = vld [vmem:[%s276 + $0xa78] sm:$0xff]
        %v743 = vld [vmem:[%s276 + $0xa80] sm:$0xff]
        %v744 = vld [vmem:[%s276 + $0xa88] sm:$0xff]
        %v745 = vld [vmem:[%s276 + $0xa90] sm:$0xff]
        %v746 = vld [vmem:[%s276 + $0xa98] sm:$0xff]
        %v747 = vld [vmem:[%s276 + $0xaa0] sm:$0xff]
        %v748 = vld [vmem:[%s276 + $0xaa8] sm:$0xff]
        %v749 = vld [vmem:[%s276 + $0xab0] sm:$0xff]
        %v750 = vld [vmem:[%s276 + $0xab8] sm:$0xff]
        %v751 = vld [vmem:[%s276 + $0xac0] sm:$0xff]
        %v752 = vld [vmem:[%s276 + $0xac8] sm:$0xff]
        %v753 = vld [vmem:[%s276 + $0xad0] sm:$0xff]
        %v754 = vld [vmem:[%s276 + $0xad8] sm:$0xff]
        %v755 = vld [vmem:[%s276 + $0xae0] sm:$0xff]
        %v756 = vld [vmem:[%s276 + $0xae8] sm:$0xff]
        %v757 = vld [vmem:[%s276 + $0xaf0] sm:$0xff]
        %v758 = vld [vmem:[%s276 + $0xaf8] sm:$0xff]
        %v759 = vld [vmem:[%s276 + $0xb00] sm:$0xff]
        %v760 = vld [vmem:[%s276 + $0xb08] sm:$0xff]
        %v761 = vld [vmem:[%s276 + $0xb10] sm:$0xff]
        %v762 = vld [vmem:[%s276 + $0xb18] sm:$0xff]
        %v763 = vld [vmem:[%s276 + $0xb20] sm:$0xff]
        %v764 = vld [vmem:[%s276 + $0xb28] sm:$0xff]
        %v765 = vld [vmem:[%s276 + $0xb30] sm:$0xff]
        %v766 = vld [vmem:[%s276 + $0xb38] sm:$0xff]
        %v767 = vld [vmem:[%s276 + $0xb40] sm:$0xff]
        %v768 = vld [vmem:[%s276 + $0xb48] sm:$0xff]
        %v769 = vld [vmem:[%s276 + $0xb50] sm:$0xff]
        %v770 = vld [vmem:[%s276 + $0xb58] sm:$0xff]
        %v771 = vld [vmem:[%s276 + $0xb60] sm:$0xff]
        %v772 = vld [vmem:[%s276 + $0xb68] sm:$0xff]
        %v773 = vld [vmem:[%s276 + $0xb70] sm:$0xff]
        %v774 = vld [vmem:[%s276 + $0xb78] sm:$0xff]
        %v775 = vld [vmem:[%s276 + $0xb80] sm:$0xff]
        %v776 = vld [vmem:[%s276 + $0xb88] sm:$0xff]
        %v777 = vld [vmem:[%s276 + $0xb90] sm:$0xff]
        %v778 = vld [vmem:[%s276 + $0xb98] sm:$0xff]
        %v779 = vld [vmem:[%s276 + $0xba0] sm:$0xff]
        %v780 = vld [vmem:[%s276 + $0xba8] sm:$0xff]
        %v781 = vld [vmem:[%s276 + $0xbb0] sm:$0xff]
        %v782 = vld [vmem:[%s276 + $0xbb8] sm:$0xff]
        %v783 = vld [vmem:[%s276 + $0xbc0] sm:$0xff]
        %v784 = vld [vmem:[%s276 + $0xbc8] sm:$0xff]
        %v785 = vld [vmem:[%s276 + $0xbd0] sm:$0xff]
        %v786 = vld [vmem:[%s276 + $0xbd8] sm:$0xff]
        %v787 = vld [vmem:[%s276 + $0xbe0] sm:$0xff]
        %v788 = vld [vmem:[%s276 + $0xbe8] sm:$0xff]
        %v789 = vld [vmem:[%s276 + $0xbf0] sm:$0xff]
        %v790 = vld [vmem:[%s276 + $0xbf8] sm:$0xff]
        %v791 = vld [vmem:[%s276 + $0xc00] sm:$0xff]
        %v792 = vld [vmem:[%s276 + $0xc08] sm:$0xff]
        %v793 = vld [vmem:[%s276 + $0xc10] sm:$0xff]
        %v794 = vld [vmem:[%s276 + $0xc18] sm:$0xff]
        %v795 = vld [vmem:[%s276 + $0xc20] sm:$0xff]
        %v796 = vld [vmem:[%s276 + $0xc28] sm:$0xff]
        %v797 = vld [vmem:[%s276 + $0xc30] sm:$0xff]
        %v798 = vld [vmem:[%s276 + $0xc38] sm:$0xff]
        %v799 = vld [vmem:[%s276 + $0xc40] sm:$0xff]
        %v800 = vld [vmem:[%s276 + $0xc48] sm:$0xff]
        %v801 = vld [vmem:[%s276 + $0xc50] sm:$0xff]
        %v802 = vld [vmem:[%s276 + $0xc58] sm:$0xff]
        %v803 = vld [vmem:[%s276 + $0xc60] sm:$0xff]
        %v804 = vld [vmem:[%s276 + $0xc68] sm:$0xff]
        %v805 = vld [vmem:[%s276 + $0xc70] sm:$0xff]
        %v806 = vld [vmem:[%s276 + $0xc78] sm:$0xff]
        %v807 = vld [vmem:[%s276 + $0xc80] sm:$0xff]
        %v808 = vld [vmem:[%s276 + $0xc88] sm:$0xff]
        %v809 = vld [vmem:[%s276 + $0xc90] sm:$0xff]
        %v810 = vld [vmem:[%s276 + $0xc98] sm:$0xff]
        %v811 = vld [vmem:[%s276 + $0xca0] sm:$0xff]
        %v812 = vld [vmem:[%s276 + $0xca8] sm:$0xff]
        %v813 = vld [vmem:[%s276 + $0xcb0] sm:$0xff]
        %v814 = vld [vmem:[%s276 + $0xcb8] sm:$0xff]
        %v815 = vld [vmem:[%s276 + $0xcc0] sm:$0xff]
        %v816 = vld [vmem:[%s276 + $0xcc8] sm:$0xff]
        %v817 = vld [vmem:[%s276 + $0xcd0] sm:$0xff]
        %v818 = vld [vmem:[%s276 + $0xcd8] sm:$0xff]
        %v819 = vld [vmem:[%s276 + $0xce0] sm:$0xff]
        %v820 = vld [vmem:[%s276 + $0xce8] sm:$0xff]
        %v821 = vld [vmem:[%s276 + $0xcf0] sm:$0xff]
        %v822 = vld [vmem:[%s276 + $0xcf8] sm:$0xff]
        %v823 = vld [vmem:[%s276 + $0xd00] sm:$0xff]
        %v824 = vld [vmem:[%s276 + $0xd08] sm:$0xff]
        %v825 = vld [vmem:[%s276 + $0xd10] sm:$0xff]
        %v826 = vld [vmem:[%s276 + $0xd18] sm:$0xff]
        %v827 = vld [vmem:[%s276 + $0xd20] sm:$0xff]
        %v828 = vld [vmem:[%s276 + $0xd28] sm:$0xff]
        %v829 = vld [vmem:[%s276 + $0xd30] sm:$0xff]
        %v830 = vld [vmem:[%s276 + $0xd38] sm:$0xff]
        %v831 = vld [vmem:[%s276 + $0xd40] sm:$0xff]
        %v832 = vld [vmem:[%s276 + $0xd48] sm:$0xff]
        %v833 = vld [vmem:[%s276 + $0xd50] sm:$0xff]
        %v834 = vld [vmem:[%s276 + $0xd58] sm:$0xff]
        %v835 = vld [vmem:[%s276 + $0xd60] sm:$0xff]
        %v836 = vld [vmem:[%s276 + $0xd68] sm:$0xff]
        %v837 = vld [vmem:[%s276 + $0xd70] sm:$0xff]
        %v838 = vld [vmem:[%s276 + $0xd78] sm:$0xff]
        %v839 = vld [vmem:[%s276 + $0xd80] sm:$0xff]
        %v840 = vld [vmem:[%s276 + $0xd88] sm:$0xff]
        %v841 = vld [vmem:[%s276 + $0xd90] sm:$0xff]
        %v842 = vld [vmem:[%s276 + $0xd98] sm:$0xff]
        %v843 = vld [vmem:[%s276 + $0xda0] sm:$0xff]
        %v844 = vld [vmem:[%s276 + $0xda8] sm:$0xff]
        %v845 = vld [vmem:[%s276 + $0xdb0] sm:$0xff]
        %v846 = vld [vmem:[%s276 + $0xdb8] sm:$0xff]
        %v847 = vld [vmem:[%s276 + $0xdc0] sm:$0xff]
        %v848 = vld [vmem:[%s276 + $0xdc8] sm:$0xff]
        %v849 = vld [vmem:[%s276 + $0xdd0] sm:$0xff]
        %v850 = vld [vmem:[%s276 + $0xdd8] sm:$0xff]
        %v851 = vld [vmem:[%s276 + $0xde0] sm:$0xff]
        %v852 = vld [vmem:[%s276 + $0xde8] sm:$0xff]
        %v853 = vld [vmem:[%s276 + $0xdf0] sm:$0xff]
        %v854 = vld [vmem:[%s276 + $0xdf8] sm:$0xff]
        %v855 = vld [vmem:[%s276 + $0xe00] sm:$0xff]
        %v856 = vld [vmem:[%s276 + $0xe08] sm:$0xff]
        %v857 = vld [vmem:[%s276 + $0xe10] sm:$0xff]
        %v858 = vld [vmem:[%s276 + $0xe18] sm:$0xff]
        %v859 = vld [vmem:[%s276 + $0xe20] sm:$0xff]
        %v860 = vld [vmem:[%s276 + $0xe28] sm:$0xff]
        %v861 = vld [vmem:[%s276 + $0xe30] sm:$0xff]
        %v862 = vld [vmem:[%s276 + $0xe38] sm:$0xff]
        %v863 = vld [vmem:[%s276 + $0xe40] sm:$0xff]
        %v864 = vld [vmem:[%s276 + $0xe48] sm:$0xff]
        %v865 = vld [vmem:[%s276 + $0xe50] sm:$0xff]
        %v866 = vld [vmem:[%s276 + $0xe58] sm:$0xff]
        %v867 = vld [vmem:[%s276 + $0xe60] sm:$0xff]
        %v868 = vld [vmem:[%s276 + $0xe68] sm:$0xff]
        %v869 = vld [vmem:[%s276 + $0xe70] sm:$0xff]
        %v870 = vld [vmem:[%s276 + $0xe78] sm:$0xff]
        %v871 = vld [vmem:[%s276 + $0xe80] sm:$0xff]
        %v872 = vld [vmem:[%s276 + $0xe88] sm:$0xff]
        %v873 = vld [vmem:[%s276 + $0xe90] sm:$0xff]
        %v874 = vld [vmem:[%s276 + $0xe98] sm:$0xff]
        %v875 = vld [vmem:[%s276 + $0xea0] sm:$0xff]
        %v876 = vld [vmem:[%s276 + $0xea8] sm:$0xff]
        %v877 = vld [vmem:[%s276 + $0xeb0] sm:$0xff]
        %v878 = vld [vmem:[%s276 + $0xeb8] sm:$0xff]
        %v879 = vld [vmem:[%s276 + $0xec0] sm:$0xff]
        %v880 = vld [vmem:[%s276 + $0xec8] sm:$0xff]
        %v881 = vld [vmem:[%s276 + $0xed0] sm:$0xff]
        %v882 = vld [vmem:[%s276 + $0xed8] sm:$0xff]
        %v883 = vld [vmem:[%s276 + $0xee0] sm:$0xff]
        %v884 = vld [vmem:[%s276 + $0xee8] sm:$0xff]
        %v885 = vld [vmem:[%s276 + $0xef0] sm:$0xff]
        %v886 = vld [vmem:[%s276 + $0xef8] sm:$0xff]
        %v887 = vld [vmem:[%s276 + $0xf00] sm:$0xff]
        %v888 = vld [vmem:[%s276 + $0xf08] sm:$0xff]
        %v889 = vld [vmem:[%s276 + $0xf10] sm:$0xff]
        %v890 = vld [vmem:[%s276 + $0xf18] sm:$0xff]
        %v891 = vld [vmem:[%s276 + $0xf20] sm:$0xff]
        %v892 = vld [vmem:[%s276 + $0xf28] sm:$0xff]
        %v893 = vld [vmem:[%s276 + $0xf30] sm:$0xff]
        %v894 = vld [vmem:[%s276 + $0xf38] sm:$0xff]
        %v895 = vld [vmem:[%s276 + $0xf40] sm:$0xff]
        %v896 = vld [vmem:[%s276 + $0xf48] sm:$0xff]
        %v897 = vld [vmem:[%s276 + $0xf50] sm:$0xff]
        %v898 = vld [vmem:[%s276 + $0xf58] sm:$0xff]
        %v899 = vld [vmem:[%s276 + $0xf60] sm:$0xff]
        %v900 = vld [vmem:[%s276 + $0xf68] sm:$0xff]
        %v901 = vld [vmem:[%s276 + $0xf70] sm:$0xff]
        %v902 = vld [vmem:[%s276 + $0xf78] sm:$0xff]
        %v903 = vld [vmem:[%s276 + $0xf80] sm:$0xff]
        %v904 = vld [vmem:[%s276 + $0xf88] sm:$0xff]
        %v905 = vld [vmem:[%s276 + $0xf90] sm:$0xff]
        %v906 = vld [vmem:[%s276 + $0xf98] sm:$0xff]
        %v907 = vld [vmem:[%s276 + $0xfa0] sm:$0xff]
        %v908 = vld [vmem:[%s276 + $0xfa8] sm:$0xff]
        %v909 = vld [vmem:[%s276 + $0xfb0] sm:$0xff]
        %v910 = vld [vmem:[%s276 + $0xfb8] sm:$0xff]
        %v911 = vld [vmem:[%s276 + $0xfc0] sm:$0xff]
        %v912 = vld [vmem:[%s276 + $0xfc8] sm:$0xff]
        %v913 = vld [vmem:[%s276 + $0xfd0] sm:$0xff]
        %v914 = vld [vmem:[%s276 + $0xfd8] sm:$0xff]
        %v915 = vld [vmem:[%s276 + $0xfe0] sm:$0xff]
        %v916 = vld [vmem:[%s276 + $0xfe8] sm:$0xff]
        %v917 = vld [vmem:[%s276 + $0xff0] sm:$0xff]
        %v918 = vld [vmem:[%s276 + $0xff8] sm:$0xff]
        %v919 = vld [vmem:[%s286] sm:$0xf]
        %v920 = vld [vmem:[%s286 + $0x4] sm:$0xf]
        %v921 = vld [vmem:[%s286 + $0x8] sm:$0xf]
        %v922 = vld [vmem:[%s286 + $0xc] sm:$0xf]
        %v923 = vld [vmem:[%s286 + $0x10] sm:$0xf]
        %v924 = vld [vmem:[%s286 + $0x14] sm:$0xf]
        %v925 = vld [vmem:[%s286 + $0x18] sm:$0xf]
        %v926 = vld [vmem:[%s286 + $0x1c] sm:$0xf]
        %v927 = vld [vmem:[%s286 + $0x20] sm:$0xf]
        %v928 = vld [vmem:[%s286 + $0x24] sm:$0xf]
        %v929 = vld [vmem:[%s286 + $0x28] sm:$0xf]
        %v930 = vld [vmem:[%s286 + $0x2c] sm:$0xf]
        %v931 = vld [vmem:[%s286 + $0x30] sm:$0xf]
        %v932 = vld [vmem:[%s286 + $0x34] sm:$0xf]
        %v933 = vld [vmem:[%s286 + $0x38] sm:$0xf]
        %v934 = vld [vmem:[%s286 + $0x3c] sm:$0xf]
        %v935 = vld [vmem:[%s286 + $0x40] sm:$0xf]
        %v936 = vld [vmem:[%s286 + $0x44] sm:$0xf]
        %v937 = vld [vmem:[%s286 + $0x48] sm:$0xf]
        %v938 = vld [vmem:[%s286 + $0x4c] sm:$0xf]
        %v939 = vld [vmem:[%s286 + $0x50] sm:$0xf]
        %v940 = vld [vmem:[%s286 + $0x54] sm:$0xf]
        %v941 = vld [vmem:[%s286 + $0x58] sm:$0xf]
        %v942 = vld [vmem:[%s286 + $0x5c] sm:$0xf]
        %v943 = vld [vmem:[%s286 + $0x60] sm:$0xf]
        %v944 = vld [vmem:[%s286 + $0x64] sm:$0xf]
        %v945 = vld [vmem:[%s286 + $0x68] sm:$0xf]
        %v946 = vld [vmem:[%s286 + $0x6c] sm:$0xf]
        %v947 = vld [vmem:[%s286 + $0x70] sm:$0xf]
        %v948 = vld [vmem:[%s286 + $0x74] sm:$0xf]
        %v949 = vld [vmem:[%s286 + $0x78] sm:$0xf]
        %v950 = vld [vmem:[%s286 + $0x7c] sm:$0xf]
        %v951 = vld [vmem:[%s286 + $0x80] sm:$0xf]
        %v952 = vld [vmem:[%s286 + $0x84] sm:$0xf]
        %v953 = vld [vmem:[%s286 + $0x88] sm:$0xf]
        %v954 = vld [vmem:[%s286 + $0x8c] sm:$0xf]
        %v955 = vld [vmem:[%s286 + $0x90] sm:$0xf]
        %v956 = vld [vmem:[%s286 + $0x94] sm:$0xf]
        %v957 = vld [vmem:[%s286 + $0x98] sm:$0xf]
        %v958 = vld [vmem:[%s286 + $0x9c] sm:$0xf]
        %v959 = vld [vmem:[%s286 + $0xa0] sm:$0xf]
        %v960 = vld [vmem:[%s286 + $0xa4] sm:$0xf]
        %v961 = vld [vmem:[%s286 + $0xa8] sm:$0xf]
        %v962 = vld [vmem:[%s286 + $0xac] sm:$0xf]
        %v963 = vld [vmem:[%s286 + $0xb0] sm:$0xf]
        %v964 = vld [vmem:[%s286 + $0xb4] sm:$0xf]
        %v965 = vld [vmem:[%s286 + $0xb8] sm:$0xf]
        %v966 = vld [vmem:[%s286 + $0xbc] sm:$0xf]
        %v967 = vld [vmem:[%s286 + $0xc0] sm:$0xf]
        %v968 = vld [vmem:[%s286 + $0xc4] sm:$0xf]
        %v969 = vld [vmem:[%s286 + $0xc8] sm:$0xf]
        %v970 = vld [vmem:[%s286 + $0xcc] sm:$0xf]
        %v971 = vld [vmem:[%s286 + $0xd0] sm:$0xf]
        %v972 = vld [vmem:[%s286 + $0xd4] sm:$0xf]
        %v973 = vld [vmem:[%s286 + $0xd8] sm:$0xf]
        %v974 = vld [vmem:[%s286 + $0xdc] sm:$0xf]
        %v975 = vld [vmem:[%s286 + $0xe0] sm:$0xf]
        %v976 = vld [vmem:[%s286 + $0xe4] sm:$0xf]
        %v977 = vld [vmem:[%s286 + $0xe8] sm:$0xf]
        %v978 = vld [vmem:[%s286 + $0xec] sm:$0xf]
        %v979 = vld [vmem:[%s286 + $0xf0] sm:$0xf]
        %v980 = vld [vmem:[%s286 + $0xf4] sm:$0xf]
        %v981 = vld [vmem:[%s286 + $0xf8] sm:$0xf]
        %v982 = vld [vmem:[%s286 + $0xfc] sm:$0xf]
        %v983 = vld [vmem:[%s286 + $0x100] sm:$0xf]
        %v984 = vld [vmem:[%s286 + $0x104] sm:$0xf]
        %v985 = vld [vmem:[%s286 + $0x108] sm:$0xf]
        %v986 = vld [vmem:[%s286 + $0x10c] sm:$0xf]
        %v987 = vld [vmem:[%s286 + $0x110] sm:$0xf]
        %v988 = vld [vmem:[%s286 + $0x114] sm:$0xf]
        %v989 = vld [vmem:[%s286 + $0x118] sm:$0xf]
        %v990 = vld [vmem:[%s286 + $0x11c] sm:$0xf]
        %v991 = vld [vmem:[%s286 + $0x120] sm:$0xf]
        %v992 = vld [vmem:[%s286 + $0x124] sm:$0xf]
        %v993 = vld [vmem:[%s286 + $0x128] sm:$0xf]
        %v994 = vld [vmem:[%s286 + $0x12c] sm:$0xf]
        %v995 = vld [vmem:[%s286 + $0x130] sm:$0xf]
        %v996 = vld [vmem:[%s286 + $0x134] sm:$0xf]
        %v997 = vld [vmem:[%s286 + $0x138] sm:$0xf]
        %v998 = vld [vmem:[%s286 + $0x13c] sm:$0xf]
        %v999 = vld [vmem:[%s286 + $0x140] sm:$0xf]
        %v1000 = vld [vmem:[%s286 + $0x144] sm:$0xf]
        %v1001 = vld [vmem:[%s286 + $0x148] sm:$0xf]
        %v1002 = vld [vmem:[%s286 + $0x14c] sm:$0xf]
        %v1003 = vld [vmem:[%s286 + $0x150] sm:$0xf]
        %v1004 = vld [vmem:[%s286 + $0x154] sm:$0xf]
        %v1005 = vld [vmem:[%s286 + $0x158] sm:$0xf]
        %v1006 = vld [vmem:[%s286 + $0x15c] sm:$0xf]
        %v1007 = vld [vmem:[%s286 + $0x160] sm:$0xf]
        %v1008 = vld [vmem:[%s286 + $0x164] sm:$0xf]
        %v1009 = vld [vmem:[%s286 + $0x168] sm:$0xf]
        %v1010 = vld [vmem:[%s286 + $0x16c] sm:$0xf]
        %v1011 = vld [vmem:[%s286 + $0x170] sm:$0xf]
        %v1012 = vld [vmem:[%s286 + $0x174] sm:$0xf]
        %v1013 = vld [vmem:[%s286 + $0x178] sm:$0xf]
        %v1014 = vld [vmem:[%s286 + $0x17c] sm:$0xf]
        %v1015 = vld [vmem:[%s286 + $0x180] sm:$0xf]
        %v1016 = vld [vmem:[%s286 + $0x184] sm:$0xf]
        %v1017 = vld [vmem:[%s286 + $0x188] sm:$0xf]
        %v1018 = vld [vmem:[%s286 + $0x18c] sm:$0xf]
        %v1019 = vld [vmem:[%s286 + $0x190] sm:$0xf]
        %v1020 = vld [vmem:[%s286 + $0x194] sm:$0xf]
        %v1021 = vld [vmem:[%s286 + $0x198] sm:$0xf]
        %v1022 = vld [vmem:[%s286 + $0x19c] sm:$0xf]
        %v1023 = vld [vmem:[%s286 + $0x1a0] sm:$0xf]
        %v1024 = vld [vmem:[%s286 + $0x1a4] sm:$0xf]
        %v1025 = vld [vmem:[%s286 + $0x1a8] sm:$0xf]
        %v1026 = vld [vmem:[%s286 + $0x1ac] sm:$0xf]
        %v1027 = vld [vmem:[%s286 + $0x1b0] sm:$0xf]
        %v1028 = vld [vmem:[%s286 + $0x1b4] sm:$0xf]
        %v1029 = vld [vmem:[%s286 + $0x1b8] sm:$0xf]
        %v1030 = vld [vmem:[%s286 + $0x1bc] sm:$0xf]
        %v1031 = vld [vmem:[%s286 + $0x1c0] sm:$0xf]
        %v1032 = vld [vmem:[%s286 + $0x1c4] sm:$0xf]
        %v1033 = vld [vmem:[%s286 + $0x1c8] sm:$0xf]
        %v1034 = vld [vmem:[%s286 + $0x1cc] sm:$0xf]
        %v1035 = vld [vmem:[%s286 + $0x1d0] sm:$0xf]
        %v1036 = vld [vmem:[%s286 + $0x1d4] sm:$0xf]
        %v1037 = vld [vmem:[%s286 + $0x1d8] sm:$0xf]
        %v1038 = vld [vmem:[%s286 + $0x1dc] sm:$0xf]
        %v1039 = vld [vmem:[%s286 + $0x1e0] sm:$0xf]
        %v1040 = vld [vmem:[%s286 + $0x1e4] sm:$0xf]
        %v1041 = vld [vmem:[%s286 + $0x1e8] sm:$0xf]
        %v1042 = vld [vmem:[%s286 + $0x1ec] sm:$0xf]
        %v1043 = vld [vmem:[%s286 + $0x1f0] sm:$0xf]
        %v1044 = vld [vmem:[%s286 + $0x1f4] sm:$0xf]
        %v1045 = vld [vmem:[%s286 + $0x1f8] sm:$0xf]
        %v1046 = vld [vmem:[%s286 + $0x1fc] sm:$0xf]
        %v1047 = vld [vmem:[%s286 + $0x200] sm:$0xf]
        %v1048 = vld [vmem:[%s286 + $0x204] sm:$0xf]
        %v1049 = vld [vmem:[%s286 + $0x208] sm:$0xf]
        %v1050 = vld [vmem:[%s286 + $0x20c] sm:$0xf]
        %v1051 = vld [vmem:[%s286 + $0x210] sm:$0xf]
        %v1052 = vld [vmem:[%s286 + $0x214] sm:$0xf]
        %v1053 = vld [vmem:[%s286 + $0x218] sm:$0xf]
        %v1054 = vld [vmem:[%s286 + $0x21c] sm:$0xf]
        %v1055 = vld [vmem:[%s286 + $0x220] sm:$0xf]
        %v1056 = vld [vmem:[%s286 + $0x224] sm:$0xf]
        %v1057 = vld [vmem:[%s286 + $0x228] sm:$0xf]
        %v1058 = vld [vmem:[%s286 + $0x22c] sm:$0xf]
        %v1059 = vld [vmem:[%s286 + $0x230] sm:$0xf]
        %v1060 = vld [vmem:[%s286 + $0x234] sm:$0xf]
        %v1061 = vld [vmem:[%s286 + $0x238] sm:$0xf]
        %v1062 = vld [vmem:[%s286 + $0x23c] sm:$0xf]
        %v1063 = vld [vmem:[%s286 + $0x240] sm:$0xf]
        %v1064 = vld [vmem:[%s286 + $0x244] sm:$0xf]
        %v1065 = vld [vmem:[%s286 + $0x248] sm:$0xf]
        %v1066 = vld [vmem:[%s286 + $0x24c] sm:$0xf]
        %v1067 = vld [vmem:[%s286 + $0x250] sm:$0xf]
        %v1068 = vld [vmem:[%s286 + $0x254] sm:$0xf]
        %v1069 = vld [vmem:[%s286 + $0x258] sm:$0xf]
        %v1070 = vld [vmem:[%s286 + $0x25c] sm:$0xf]
        %v1071 = vld [vmem:[%s286 + $0x260] sm:$0xf]
        %v1072 = vld [vmem:[%s286 + $0x264] sm:$0xf]
        %v1073 = vld [vmem:[%s286 + $0x268] sm:$0xf]
        %v1074 = vld [vmem:[%s286 + $0x26c] sm:$0xf]
        %v1075 = vld [vmem:[%s286 + $0x270] sm:$0xf]
        %v1076 = vld [vmem:[%s286 + $0x274] sm:$0xf]
        %v1077 = vld [vmem:[%s286 + $0x278] sm:$0xf]
        %v1078 = vld [vmem:[%s286 + $0x27c] sm:$0xf]
        %v1079 = vld [vmem:[%s286 + $0x280] sm:$0xf]
        %v1080 = vld [vmem:[%s286 + $0x284] sm:$0xf]
        %v1081 = vld [vmem:[%s286 + $0x288] sm:$0xf]
        %v1082 = vld [vmem:[%s286 + $0x28c] sm:$0xf]
        %v1083 = vld [vmem:[%s286 + $0x290] sm:$0xf]
        %v1084 = vld [vmem:[%s286 + $0x294] sm:$0xf]
        %v1085 = vld [vmem:[%s286 + $0x298] sm:$0xf]
        %v1086 = vld [vmem:[%s286 + $0x29c] sm:$0xf]
        %v1087 = vld [vmem:[%s286 + $0x2a0] sm:$0xf]
        %v1088 = vld [vmem:[%s286 + $0x2a4] sm:$0xf]
        %v1089 = vld [vmem:[%s286 + $0x2a8] sm:$0xf]
        %v1090 = vld [vmem:[%s286 + $0x2ac] sm:$0xf]
        %v1091 = vld [vmem:[%s286 + $0x2b0] sm:$0xf]
        %v1092 = vld [vmem:[%s286 + $0x2b4] sm:$0xf]
        %v1093 = vld [vmem:[%s286 + $0x2b8] sm:$0xf]
        %v1094 = vld [vmem:[%s286 + $0x2bc] sm:$0xf]
        %v1095 = vld [vmem:[%s286 + $0x2c0] sm:$0xf]
        %v1096 = vld [vmem:[%s286 + $0x2c4] sm:$0xf]
        %v1097 = vld [vmem:[%s286 + $0x2c8] sm:$0xf]
        %v1098 = vld [vmem:[%s286 + $0x2cc] sm:$0xf]
        %v1099 = vld [vmem:[%s286 + $0x2d0] sm:$0xf]
        %v1100 = vld [vmem:[%s286 + $0x2d4] sm:$0xf]
        %v1101 = vld [vmem:[%s286 + $0x2d8] sm:$0xf]
        %v1102 = vld [vmem:[%s286 + $0x2dc] sm:$0xf]
        %v1103 = vld [vmem:[%s286 + $0x2e0] sm:$0xf]
        %v1104 = vld [vmem:[%s286 + $0x2e4] sm:$0xf]
        %v1105 = vld [vmem:[%s286 + $0x2e8] sm:$0xf]
        %v1106 = vld [vmem:[%s286 + $0x2ec] sm:$0xf]
        %v1107 = vld [vmem:[%s286 + $0x2f0] sm:$0xf]
        %v1108 = vld [vmem:[%s286 + $0x2f4] sm:$0xf]
        %v1109 = vld [vmem:[%s286 + $0x2f8] sm:$0xf]
        %v1110 = vld [vmem:[%s286 + $0x2fc] sm:$0xf]
        %v1111 = vld [vmem:[%s286 + $0x300] sm:$0xf]
        %v1112 = vld [vmem:[%s286 + $0x304] sm:$0xf]
        %v1113 = vld [vmem:[%s286 + $0x308] sm:$0xf]
        %v1114 = vld [vmem:[%s286 + $0x30c] sm:$0xf]
        %v1115 = vld [vmem:[%s286 + $0x310] sm:$0xf]
        %v1116 = vld [vmem:[%s286 + $0x314] sm:$0xf]
        %v1117 = vld [vmem:[%s286 + $0x318] sm:$0xf]
        %v1118 = vld [vmem:[%s286 + $0x31c] sm:$0xf]
        %v1119 = vld [vmem:[%s286 + $0x320] sm:$0xf]
        %v1120 = vld [vmem:[%s286 + $0x324] sm:$0xf]
        %v1121 = vld [vmem:[%s286 + $0x328] sm:$0xf]
        %v1122 = vld [vmem:[%s286 + $0x32c] sm:$0xf]
        %v1123 = vld [vmem:[%s286 + $0x330] sm:$0xf]
        %v1124 = vld [vmem:[%s286 + $0x334] sm:$0xf]
        %v1125 = vld [vmem:[%s286 + $0x338] sm:$0xf]
        %v1126 = vld [vmem:[%s286 + $0x33c] sm:$0xf]
        %v1127 = vld [vmem:[%s286 + $0x340] sm:$0xf]
        %v1128 = vld [vmem:[%s286 + $0x344] sm:$0xf]
        %v1129 = vld [vmem:[%s286 + $0x348] sm:$0xf]
        %v1130 = vld [vmem:[%s286 + $0x34c] sm:$0xf]
        %v1131 = vld [vmem:[%s286 + $0x350] sm:$0xf]
        %v1132 = vld [vmem:[%s286 + $0x354] sm:$0xf]
        %v1133 = vld [vmem:[%s286 + $0x358] sm:$0xf]
        %v1134 = vld [vmem:[%s286 + $0x35c] sm:$0xf]
        %v1135 = vld [vmem:[%s286 + $0x360] sm:$0xf]
        %v1136 = vld [vmem:[%s286 + $0x364] sm:$0xf]
        %v1137 = vld [vmem:[%s286 + $0x368] sm:$0xf]
        %v1138 = vld [vmem:[%s286 + $0x36c] sm:$0xf]
        %v1139 = vld [vmem:[%s286 + $0x370] sm:$0xf]
        %v1140 = vld [vmem:[%s286 + $0x374] sm:$0xf]
        %v1141 = vld [vmem:[%s286 + $0x378] sm:$0xf]
        %v1142 = vld [vmem:[%s286 + $0x37c] sm:$0xf]
        %v1143 = vld [vmem:[%s286 + $0x380] sm:$0xf]
        %v1144 = vld [vmem:[%s286 + $0x384] sm:$0xf]
        %v1145 = vld [vmem:[%s286 + $0x388] sm:$0xf]
        %v1146 = vld [vmem:[%s286 + $0x38c] sm:$0xf]
        %v1147 = vld [vmem:[%s286 + $0x390] sm:$0xf]
        %v1148 = vld [vmem:[%s286 + $0x394] sm:$0xf]
        %v1149 = vld [vmem:[%s286 + $0x398] sm:$0xf]
        %v1150 = vld [vmem:[%s286 + $0x39c] sm:$0xf]
        %v1151 = vld [vmem:[%s286 + $0x3a0] sm:$0xf]
        %v1152 = vld [vmem:[%s286 + $0x3a4] sm:$0xf]
        %v1153 = vld [vmem:[%s286 + $0x3a8] sm:$0xf]
        %v1154 = vld [vmem:[%s286 + $0x3ac] sm:$0xf]
        %v1155 = vld [vmem:[%s286 + $0x3b0] sm:$0xf]
        %v1156 = vld [vmem:[%s286 + $0x3b4] sm:$0xf]
        %v1157 = vld [vmem:[%s286 + $0x3b8] sm:$0xf]
        %v1158 = vld [vmem:[%s286 + $0x3bc] sm:$0xf]
        %v1159 = vld [vmem:[%s286 + $0x3c0] sm:$0xf]
        %v1160 = vld [vmem:[%s286 + $0x3c4] sm:$0xf]
        %v1161 = vld [vmem:[%s286 + $0x3c8] sm:$0xf]
        %v1162 = vld [vmem:[%s286 + $0x3cc] sm:$0xf]
        %v1163 = vld [vmem:[%s286 + $0x3d0] sm:$0xf]
        %v1164 = vld [vmem:[%s286 + $0x3d4] sm:$0xf]
        %v1165 = vld [vmem:[%s286 + $0x3d8] sm:$0xf]
        %v1166 = vld [vmem:[%s286 + $0x3dc] sm:$0xf]
        %v1167 = vld [vmem:[%s286 + $0x3e0] sm:$0xf]
        %v1168 = vld [vmem:[%s286 + $0x3e4] sm:$0xf]
        %v1169 = vld [vmem:[%s286 + $0x3e8] sm:$0xf]
        %v1170 = vld [vmem:[%s286 + $0x3ec] sm:$0xf]
        %v1171 = vld [vmem:[%s286 + $0x3f0] sm:$0xf]
        %v1172 = vld [vmem:[%s286 + $0x3f4] sm:$0xf]
        %v1173 = vld [vmem:[%s286 + $0x3f8] sm:$0xf]
        %v1174 = vld [vmem:[%s286 + $0x3fc] sm:$0xf]
        %v1175 = vld [vmem:[%s286 + $0x400] sm:$0xf]
        %v1176 = vld [vmem:[%s286 + $0x404] sm:$0xf]
        %v1177 = vld [vmem:[%s286 + $0x408] sm:$0xf]
        %v1178 = vld [vmem:[%s286 + $0x40c] sm:$0xf]
        %v1179 = vld [vmem:[%s286 + $0x410] sm:$0xf]
        %v1180 = vld [vmem:[%s286 + $0x414] sm:$0xf]
        %v1181 = vld [vmem:[%s286 + $0x418] sm:$0xf]
        %v1182 = vld [vmem:[%s286 + $0x41c] sm:$0xf]
        %v1183 = vld [vmem:[%s286 + $0x420] sm:$0xf]
        %v1184 = vld [vmem:[%s286 + $0x424] sm:$0xf]
        %v1185 = vld [vmem:[%s286 + $0x428] sm:$0xf]
        %v1186 = vld [vmem:[%s286 + $0x42c] sm:$0xf]
        %v1187 = vld [vmem:[%s286 + $0x430] sm:$0xf]
        %v1188 = vld [vmem:[%s286 + $0x434] sm:$0xf]
        %v1189 = vld [vmem:[%s286 + $0x438] sm:$0xf]
        %v1190 = vld [vmem:[%s286 + $0x43c] sm:$0xf]
        %v1191 = vld [vmem:[%s286 + $0x440] sm:$0xf]
        %v1192 = vld [vmem:[%s286 + $0x444] sm:$0xf]
        %v1193 = vld [vmem:[%s286 + $0x448] sm:$0xf]
        %v1194 = vld [vmem:[%s286 + $0x44c] sm:$0xf]
        %v1195 = vld [vmem:[%s286 + $0x450] sm:$0xf]
        %v1196 = vld [vmem:[%s286 + $0x454] sm:$0xf]
        %v1197 = vld [vmem:[%s286 + $0x458] sm:$0xf]
        %v1198 = vld [vmem:[%s286 + $0x45c] sm:$0xf]
        %v1199 = vld [vmem:[%s286 + $0x460] sm:$0xf]
        %v1200 = vld [vmem:[%s286 + $0x464] sm:$0xf]
        %v1201 = vld [vmem:[%s286 + $0x468] sm:$0xf]
        %v1202 = vld [vmem:[%s286 + $0x46c] sm:$0xf]
        %v1203 = vld [vmem:[%s286 + $0x470] sm:$0xf]
        %v1204 = vld [vmem:[%s286 + $0x474] sm:$0xf]
        %v1205 = vld [vmem:[%s286 + $0x478] sm:$0xf]
        %v1206 = vld [vmem:[%s286 + $0x47c] sm:$0xf]
        %v1207 = vld [vmem:[%s286 + $0x480] sm:$0xf]
        %v1208 = vld [vmem:[%s286 + $0x484] sm:$0xf]
        %v1209 = vld [vmem:[%s286 + $0x488] sm:$0xf]
        %v1210 = vld [vmem:[%s286 + $0x48c] sm:$0xf]
        %v1211 = vld [vmem:[%s286 + $0x490] sm:$0xf]
        %v1212 = vld [vmem:[%s286 + $0x494] sm:$0xf]
        %v1213 = vld [vmem:[%s286 + $0x498] sm:$0xf]
        %v1214 = vld [vmem:[%s286 + $0x49c] sm:$0xf]
        %v1215 = vld [vmem:[%s286 + $0x4a0] sm:$0xf]
        %v1216 = vld [vmem:[%s286 + $0x4a4] sm:$0xf]
        %v1217 = vld [vmem:[%s286 + $0x4a8] sm:$0xf]
        %v1218 = vld [vmem:[%s286 + $0x4ac] sm:$0xf]
        %v1219 = vld [vmem:[%s286 + $0x4b0] sm:$0xf]
        %v1220 = vld [vmem:[%s286 + $0x4b4] sm:$0xf]
        %v1221 = vld [vmem:[%s286 + $0x4b8] sm:$0xf]
        %v1222 = vld [vmem:[%s286 + $0x4bc] sm:$0xf]
        %v1223 = vld [vmem:[%s286 + $0x4c0] sm:$0xf]
        %v1224 = vld [vmem:[%s286 + $0x4c4] sm:$0xf]
        %v1225 = vld [vmem:[%s286 + $0x4c8] sm:$0xf]
        %v1226 = vld [vmem:[%s286 + $0x4cc] sm:$0xf]
        %v1227 = vld [vmem:[%s286 + $0x4d0] sm:$0xf]
        %v1228 = vld [vmem:[%s286 + $0x4d4] sm:$0xf]
        %v1229 = vld [vmem:[%s286 + $0x4d8] sm:$0xf]
        %v1230 = vld [vmem:[%s286 + $0x4dc] sm:$0xf]
        %v1231 = vld [vmem:[%s286 + $0x4e0] sm:$0xf]
        %v1232 = vld [vmem:[%s286 + $0x4e4] sm:$0xf]
        %v1233 = vld [vmem:[%s286 + $0x4e8] sm:$0xf]
        %v1234 = vld [vmem:[%s286 + $0x4ec] sm:$0xf]
        %v1235 = vld [vmem:[%s286 + $0x4f0] sm:$0xf]
        %v1236 = vld [vmem:[%s286 + $0x4f4] sm:$0xf]
        %v1237 = vld [vmem:[%s286 + $0x4f8] sm:$0xf]
        %v1238 = vld [vmem:[%s286 + $0x4fc] sm:$0xf]
        %v1239 = vld [vmem:[%s286 + $0x500] sm:$0xf]
        %v1240 = vld [vmem:[%s286 + $0x504] sm:$0xf]
        %v1241 = vld [vmem:[%s286 + $0x508] sm:$0xf]
        %v1242 = vld [vmem:[%s286 + $0x50c] sm:$0xf]
        %v1243 = vld [vmem:[%s286 + $0x510] sm:$0xf]
        %v1244 = vld [vmem:[%s286 + $0x514] sm:$0xf]
        %v1245 = vld [vmem:[%s286 + $0x518] sm:$0xf]
        %v1246 = vld [vmem:[%s286 + $0x51c] sm:$0xf]
        %v1247 = vld [vmem:[%s286 + $0x520] sm:$0xf]
        %v1248 = vld [vmem:[%s286 + $0x524] sm:$0xf]
        %v1249 = vld [vmem:[%s286 + $0x528] sm:$0xf]
        %v1250 = vld [vmem:[%s286 + $0x52c] sm:$0xf]
        %v1251 = vld [vmem:[%s286 + $0x530] sm:$0xf]
        %v1252 = vld [vmem:[%s286 + $0x534] sm:$0xf]
        %v1253 = vld [vmem:[%s286 + $0x538] sm:$0xf]
        %v1254 = vld [vmem:[%s286 + $0x53c] sm:$0xf]
        %v1255 = vld [vmem:[%s286 + $0x540] sm:$0xf]
        %v1256 = vld [vmem:[%s286 + $0x544] sm:$0xf]
        %v1257 = vld [vmem:[%s286 + $0x548] sm:$0xf]
        %v1258 = vld [vmem:[%s286 + $0x54c] sm:$0xf]
        %v1259 = vld [vmem:[%s286 + $0x550] sm:$0xf]
        %v1260 = vld [vmem:[%s286 + $0x554] sm:$0xf]
        %v1261 = vld [vmem:[%s286 + $0x558] sm:$0xf]
        %v1262 = vld [vmem:[%s286 + $0x55c] sm:$0xf]
        %v1263 = vld [vmem:[%s286 + $0x560] sm:$0xf]
        %v1264 = vld [vmem:[%s286 + $0x564] sm:$0xf]
        %v1265 = vld [vmem:[%s286 + $0x568] sm:$0xf]
        %v1266 = vld [vmem:[%s286 + $0x56c] sm:$0xf]
        %v1267 = vld [vmem:[%s286 + $0x570] sm:$0xf]
        %v1268 = vld [vmem:[%s286 + $0x574] sm:$0xf]
        %v1269 = vld [vmem:[%s286 + $0x578] sm:$0xf]
        %v1270 = vld [vmem:[%s286 + $0x57c] sm:$0xf]
        %v1271 = vld [vmem:[%s286 + $0x580] sm:$0xf]
        %v1272 = vld [vmem:[%s286 + $0x584] sm:$0xf]
        %v1273 = vld [vmem:[%s286 + $0x588] sm:$0xf]
        %v1274 = vld [vmem:[%s286 + $0x58c] sm:$0xf]
        %v1275 = vld [vmem:[%s286 + $0x590] sm:$0xf]
        %v1276 = vld [vmem:[%s286 + $0x594] sm:$0xf]
        %v1277 = vld [vmem:[%s286 + $0x598] sm:$0xf]
        %v1278 = vld [vmem:[%s286 + $0x59c] sm:$0xf]
        %v1279 = vld [vmem:[%s286 + $0x5a0] sm:$0xf]
        %v1280 = vld [vmem:[%s286 + $0x5a4] sm:$0xf]
        %v1281 = vld [vmem:[%s286 + $0x5a8] sm:$0xf]
        %v1282 = vld [vmem:[%s286 + $0x5ac] sm:$0xf]
        %v1283 = vld [vmem:[%s286 + $0x5b0] sm:$0xf]
        %v1284 = vld [vmem:[%s286 + $0x5b4] sm:$0xf]
        %v1285 = vld [vmem:[%s286 + $0x5b8] sm:$0xf]
        %v1286 = vld [vmem:[%s286 + $0x5bc] sm:$0xf]
        %v1287 = vld [vmem:[%s286 + $0x5c0] sm:$0xf]
        %v1288 = vld [vmem:[%s286 + $0x5c4] sm:$0xf]
        %v1289 = vld [vmem:[%s286 + $0x5c8] sm:$0xf]
        %v1290 = vld [vmem:[%s286 + $0x5cc] sm:$0xf]
        %v1291 = vld [vmem:[%s286 + $0x5d0] sm:$0xf]
        %v1292 = vld [vmem:[%s286 + $0x5d4] sm:$0xf]
        %v1293 = vld [vmem:[%s286 + $0x5d8] sm:$0xf]
        %v1294 = vld [vmem:[%s286 + $0x5dc] sm:$0xf]
        %v1295 = vld [vmem:[%s286 + $0x5e0] sm:$0xf]
        %v1296 = vld [vmem:[%s286 + $0x5e4] sm:$0xf]
        %v1297 = vld [vmem:[%s286 + $0x5e8] sm:$0xf]
        %v1298 = vld [vmem:[%s286 + $0x5ec] sm:$0xf]
        %v1299 = vld [vmem:[%s286 + $0x5f0] sm:$0xf]
        %v1300 = vld [vmem:[%s286 + $0x5f4] sm:$0xf]
        %v1301 = vld [vmem:[%s286 + $0x5f8] sm:$0xf]
        %v1302 = vld [vmem:[%s286 + $0x5fc] sm:$0xf]
        %v1303 = vld [vmem:[%s286 + $0x600] sm:$0xf]
        %v1304 = vld [vmem:[%s286 + $0x604] sm:$0xf]
        %v1305 = vld [vmem:[%s286 + $0x608] sm:$0xf]
        %v1306 = vld [vmem:[%s286 + $0x60c] sm:$0xf]
        %v1307 = vld [vmem:[%s286 + $0x610] sm:$0xf]
        %v1308 = vld [vmem:[%s286 + $0x614] sm:$0xf]
        %v1309 = vld [vmem:[%s286 + $0x618] sm:$0xf]
        %v1310 = vld [vmem:[%s286 + $0x61c] sm:$0xf]
        %v1311 = vld [vmem:[%s286 + $0x620] sm:$0xf]
        %v1312 = vld [vmem:[%s286 + $0x624] sm:$0xf]
        %v1313 = vld [vmem:[%s286 + $0x628] sm:$0xf]
        %v1314 = vld [vmem:[%s286 + $0x62c] sm:$0xf]
        %v1315 = vld [vmem:[%s286 + $0x630] sm:$0xf]
        %v1316 = vld [vmem:[%s286 + $0x634] sm:$0xf]
        %v1317 = vld [vmem:[%s286 + $0x638] sm:$0xf]
        %v1318 = vld [vmem:[%s286 + $0x63c] sm:$0xf]
        %v1319 = vld [vmem:[%s286 + $0x640] sm:$0xf]
        %v1320 = vld [vmem:[%s286 + $0x644] sm:$0xf]
        %v1321 = vld [vmem:[%s286 + $0x648] sm:$0xf]
        %v1322 = vld [vmem:[%s286 + $0x64c] sm:$0xf]
        %v1323 = vld [vmem:[%s286 + $0x650] sm:$0xf]
        %v1324 = vld [vmem:[%s286 + $0x654] sm:$0xf]
        %v1325 = vld [vmem:[%s286 + $0x658] sm:$0xf]
        %v1326 = vld [vmem:[%s286 + $0x65c] sm:$0xf]
        %v1327 = vld [vmem:[%s286 + $0x660] sm:$0xf]
        %v1328 = vld [vmem:[%s286 + $0x664] sm:$0xf]
        %v1329 = vld [vmem:[%s286 + $0x668] sm:$0xf]
        %v1330 = vld [vmem:[%s286 + $0x66c] sm:$0xf]
        %v1331 = vld [vmem:[%s286 + $0x670] sm:$0xf]
        %v1332 = vld [vmem:[%s286 + $0x674] sm:$0xf]
        %v1333 = vld [vmem:[%s286 + $0x678] sm:$0xf]
        %v1334 = vld [vmem:[%s286 + $0x67c] sm:$0xf]
        %v1335 = vld [vmem:[%s286 + $0x680] sm:$0xf]
        %v1336 = vld [vmem:[%s286 + $0x684] sm:$0xf]
        %v1337 = vld [vmem:[%s286 + $0x688] sm:$0xf]
        %v1338 = vld [vmem:[%s286 + $0x68c] sm:$0xf]
        %v1339 = vld [vmem:[%s286 + $0x690] sm:$0xf]
        %v1340 = vld [vmem:[%s286 + $0x694] sm:$0xf]
        %v1341 = vld [vmem:[%s286 + $0x698] sm:$0xf]
        %v1342 = vld [vmem:[%s286 + $0x69c] sm:$0xf]
        %v1343 = vld [vmem:[%s286 + $0x6a0] sm:$0xf]
        %v1344 = vld [vmem:[%s286 + $0x6a4] sm:$0xf]
        %v1345 = vld [vmem:[%s286 + $0x6a8] sm:$0xf]
        %v1346 = vld [vmem:[%s286 + $0x6ac] sm:$0xf]
        %v1347 = vld [vmem:[%s286 + $0x6b0] sm:$0xf]
        %v1348 = vld [vmem:[%s286 + $0x6b4] sm:$0xf]
        %v1349 = vld [vmem:[%s286 + $0x6b8] sm:$0xf]
        %v1350 = vld [vmem:[%s286 + $0x6bc] sm:$0xf]
        %v1351 = vld [vmem:[%s286 + $0x6c0] sm:$0xf]
        %v1352 = vld [vmem:[%s286 + $0x6c4] sm:$0xf]
        %v1353 = vld [vmem:[%s286 + $0x6c8] sm:$0xf]
        %v1354 = vld [vmem:[%s286 + $0x6cc] sm:$0xf]
        %v1355 = vld [vmem:[%s286 + $0x6d0] sm:$0xf]
        %v1356 = vld [vmem:[%s286 + $0x6d4] sm:$0xf]
        %v1357 = vld [vmem:[%s286 + $0x6d8] sm:$0xf]
        %v1358 = vld [vmem:[%s286 + $0x6dc] sm:$0xf]
        %v1359 = vld [vmem:[%s286 + $0x6e0] sm:$0xf]
        %v1360 = vld [vmem:[%s286 + $0x6e4] sm:$0xf]
        %v1361 = vld [vmem:[%s286 + $0x6e8] sm:$0xf]
        %v1362 = vld [vmem:[%s286 + $0x6ec] sm:$0xf]
        %v1363 = vld [vmem:[%s286 + $0x6f0] sm:$0xf]
        %v1364 = vld [vmem:[%s286 + $0x6f4] sm:$0xf]
        %v1365 = vld [vmem:[%s286 + $0x6f8] sm:$0xf]
        %v1366 = vld [vmem:[%s286 + $0x6fc] sm:$0xf]
        %v1367 = vld [vmem:[%s286 + $0x700] sm:$0xf]
        %v1368 = vld [vmem:[%s286 + $0x704] sm:$0xf]
        %v1369 = vld [vmem:[%s286 + $0x708] sm:$0xf]
        %v1370 = vld [vmem:[%s286 + $0x70c] sm:$0xf]
        %v1371 = vld [vmem:[%s286 + $0x710] sm:$0xf]
        %v1372 = vld [vmem:[%s286 + $0x714] sm:$0xf]
        %v1373 = vld [vmem:[%s286 + $0x718] sm:$0xf]
        %v1374 = vld [vmem:[%s286 + $0x71c] sm:$0xf]
        %v1375 = vld [vmem:[%s286 + $0x720] sm:$0xf]
        %v1376 = vld [vmem:[%s286 + $0x724] sm:$0xf]
        %v1377 = vld [vmem:[%s286 + $0x728] sm:$0xf]
        %v1378 = vld [vmem:[%s286 + $0x72c] sm:$0xf]
        %v1379 = vld [vmem:[%s286 + $0x730] sm:$0xf]
        %v1380 = vld [vmem:[%s286 + $0x734] sm:$0xf]
        %v1381 = vld [vmem:[%s286 + $0x738] sm:$0xf]
        %v1382 = vld [vmem:[%s286 + $0x73c] sm:$0xf]
        %v1383 = vld [vmem:[%s286 + $0x740] sm:$0xf]
        %v1384 = vld [vmem:[%s286 + $0x744] sm:$0xf]
        %v1385 = vld [vmem:[%s286 + $0x748] sm:$0xf]
        %v1386 = vld [vmem:[%s286 + $0x74c] sm:$0xf]
        %v1387 = vld [vmem:[%s286 + $0x750] sm:$0xf]
        %v1388 = vld [vmem:[%s286 + $0x754] sm:$0xf]
        %v1389 = vld [vmem:[%s286 + $0x758] sm:$0xf]
        %v1390 = vld [vmem:[%s286 + $0x75c] sm:$0xf]
        %v1391 = vld [vmem:[%s286 + $0x760] sm:$0xf]
        %v1392 = vld [vmem:[%s286 + $0x764] sm:$0xf]
        %v1393 = vld [vmem:[%s286 + $0x768] sm:$0xf]
        %v1394 = vld [vmem:[%s286 + $0x76c] sm:$0xf]
        %v1395 = vld [vmem:[%s286 + $0x770] sm:$0xf]
        %v1396 = vld [vmem:[%s286 + $0x774] sm:$0xf]
        %v1397 = vld [vmem:[%s286 + $0x778] sm:$0xf]
        %v1398 = vld [vmem:[%s286 + $0x77c] sm:$0xf]
        %v1399 = vld [vmem:[%s286 + $0x780] sm:$0xf]
        %v1400 = vld [vmem:[%s286 + $0x784] sm:$0xf]
        %v1401 = vld [vmem:[%s286 + $0x788] sm:$0xf]
        %v1402 = vld [vmem:[%s286 + $0x78c] sm:$0xf]
        %v1403 = vld [vmem:[%s286 + $0x790] sm:$0xf]
        %v1404 = vld [vmem:[%s286 + $0x794] sm:$0xf]
        %v1405 = vld [vmem:[%s286 + $0x798] sm:$0xf]
        %v1406 = vld [vmem:[%s286 + $0x79c] sm:$0xf]
        %v1407 = vld [vmem:[%s286 + $0x7a0] sm:$0xf]
        %v1408 = vld [vmem:[%s286 + $0x7a4] sm:$0xf]
        %v1409 = vld [vmem:[%s286 + $0x7a8] sm:$0xf]
        %v1410 = vld [vmem:[%s286 + $0x7ac] sm:$0xf]
        %v1411 = vld [vmem:[%s286 + $0x7b0] sm:$0xf]
        %v1412 = vld [vmem:[%s286 + $0x7b4] sm:$0xf]
        %v1413 = vld [vmem:[%s286 + $0x7b8] sm:$0xf]
        %v1414 = vld [vmem:[%s286 + $0x7bc] sm:$0xf]
        %v1415 = vld [vmem:[%s286 + $0x7c0] sm:$0xf]
        %v1416 = vld [vmem:[%s286 + $0x7c4] sm:$0xf]
        %v1417 = vld [vmem:[%s286 + $0x7c8] sm:$0xf]
        %v1418 = vld [vmem:[%s286 + $0x7cc] sm:$0xf]
        %v1419 = vld [vmem:[%s286 + $0x7d0] sm:$0xf]
        %v1420 = vld [vmem:[%s286 + $0x7d4] sm:$0xf]
        %v1421 = vld [vmem:[%s286 + $0x7d8] sm:$0xf]
        %v1422 = vld [vmem:[%s286 + $0x7dc] sm:$0xf]
        %v1423 = vld [vmem:[%s286 + $0x7e0] sm:$0xf]
        %v1424 = vld [vmem:[%s286 + $0x7e4] sm:$0xf]
        %v1425 = vld [vmem:[%s286 + $0x7e8] sm:$0xf]
        %v1426 = vld [vmem:[%s286 + $0x7ec] sm:$0xf]
        %v1427 = vld [vmem:[%s286 + $0x7f0] sm:$0xf]
        %v1428 = vld [vmem:[%s286 + $0x7f4] sm:$0xf]
        %v1429 = vld [vmem:[%s286 + $0x7f8] sm:$0xf]
        %v1430 = vld [vmem:[%s286 + $0x7fc] sm:$0xf]
        %v1943 = vunpack.c.l.b16 %v407
        %v1944 = vunpack.c.h.b16 %v407
        %v1945 = vunpack.c.l.b16 %v408
        %v1946 = vunpack.c.h.b16 %v408
        %v1947 = vunpack.c.l.b16 %v409
        %v1948 = vunpack.c.h.b16 %v409
        %v1949 = vunpack.c.l.b16 %v410
        %v1950 = vunpack.c.h.b16 %v410
        %v1951 = vunpack.c.l.b16 %v411
        %v1952 = vunpack.c.h.b16 %v411
        %v1953 = vunpack.c.l.b16 %v412
        %v1954 = vunpack.c.h.b16 %v412
        %v1955 = vunpack.c.l.b16 %v413
        %v1956 = vunpack.c.h.b16 %v413
        %v1957 = vunpack.c.l.b16 %v414
        %v1958 = vunpack.c.h.b16 %v414
        %v1959 = vunpack.c.l.b16 %v415
        %v1960 = vunpack.c.h.b16 %v415
        %v1961 = vunpack.c.l.b16 %v416
        %v1962 = vunpack.c.h.b16 %v416
        %v1963 = vunpack.c.l.b16 %v417
        %v1964 = vunpack.c.h.b16 %v417
        %v1965 = vunpack.c.l.b16 %v418
        %v1966 = vunpack.c.h.b16 %v418
        %v1967 = vunpack.c.l.b16 %v419
        %v1968 = vunpack.c.h.b16 %v419
        %v1969 = vunpack.c.l.b16 %v420
        %v1970 = vunpack.c.h.b16 %v420
        %v1971 = vunpack.c.l.b16 %v421
        %v1972 = vunpack.c.h.b16 %v421
        %v1973 = vunpack.c.l.b16 %v422
        %v1974 = vunpack.c.h.b16 %v422
        %v1975 = vunpack.c.l.b16 %v423
        %v1976 = vunpack.c.h.b16 %v423
        %v1977 = vunpack.c.l.b16 %v424
        %v1978 = vunpack.c.h.b16 %v424
        %v1979 = vunpack.c.l.b16 %v425
        %v1980 = vunpack.c.h.b16 %v425
        %v1981 = vunpack.c.l.b16 %v426
        %v1982 = vunpack.c.h.b16 %v426
        %v1983 = vunpack.c.l.b16 %v427
        %v1984 = vunpack.c.h.b16 %v427
        %v1985 = vunpack.c.l.b16 %v428
        %v1986 = vunpack.c.h.b16 %v428
        %v1987 = vunpack.c.l.b16 %v429
        %v1988 = vunpack.c.h.b16 %v429
        %v1989 = vunpack.c.l.b16 %v430
        %v1990 = vunpack.c.h.b16 %v430
        %v1991 = vunpack.c.l.b16 %v431
        %v1992 = vunpack.c.h.b16 %v431
        %v1993 = vunpack.c.l.b16 %v432
        %v1994 = vunpack.c.h.b16 %v432
        %v1995 = vunpack.c.l.b16 %v433
        %v1996 = vunpack.c.h.b16 %v433
        %v1997 = vunpack.c.l.b16 %v434
        %v1998 = vunpack.c.h.b16 %v434
        %v1999 = vunpack.c.l.b16 %v435
        %v2000 = vunpack.c.h.b16 %v435
        %v2001 = vunpack.c.l.b16 %v436
        %v2002 = vunpack.c.h.b16 %v436
        %v2003 = vunpack.c.l.b16 %v437
        %v2004 = vunpack.c.h.b16 %v437
        %v2005 = vunpack.c.l.b16 %v438
        %v2006 = vunpack.c.h.b16 %v438
        %v2007 = vunpack.c.l.b16 %v439
        %v2008 = vunpack.c.h.b16 %v439
        %v2009 = vunpack.c.l.b16 %v440
        %v2010 = vunpack.c.h.b16 %v440
        %v2011 = vunpack.c.l.b16 %v441
        %v2012 = vunpack.c.h.b16 %v441
        %v2013 = vunpack.c.l.b16 %v442
        %v2014 = vunpack.c.h.b16 %v442
        %v2015 = vunpack.c.l.b16 %v443
        %v2016 = vunpack.c.h.b16 %v443
        %v2017 = vunpack.c.l.b16 %v444
        %v2018 = vunpack.c.h.b16 %v444
        %v2019 = vunpack.c.l.b16 %v445
        %v2020 = vunpack.c.h.b16 %v445
        %v2021 = vunpack.c.l.b16 %v446
        %v2022 = vunpack.c.h.b16 %v446
        %v2023 = vunpack.c.l.b16 %v447
        %v2024 = vunpack.c.h.b16 %v447
        %v2025 = vunpack.c.l.b16 %v448
        %v2026 = vunpack.c.h.b16 %v448
        %v2027 = vunpack.c.l.b16 %v449
        %v2028 = vunpack.c.h.b16 %v449
        %v2029 = vunpack.c.l.b16 %v450
        %v2030 = vunpack.c.h.b16 %v450
        %v2031 = vunpack.c.l.b16 %v451
        %v2032 = vunpack.c.h.b16 %v451
        %v2033 = vunpack.c.l.b16 %v452
        %v2034 = vunpack.c.h.b16 %v452
        %v2035 = vunpack.c.l.b16 %v453
        %v2036 = vunpack.c.h.b16 %v453
        %v2037 = vunpack.c.l.b16 %v454
        %v2038 = vunpack.c.h.b16 %v454
        %v2039 = vunpack.c.l.b16 %v455
        %v2040 = vunpack.c.h.b16 %v455
        %v2041 = vunpack.c.l.b16 %v456
        %v2042 = vunpack.c.h.b16 %v456
        %v2043 = vunpack.c.l.b16 %v457
        %v2044 = vunpack.c.h.b16 %v457
        %v2045 = vunpack.c.l.b16 %v458
        %v2046 = vunpack.c.h.b16 %v458
        %v2047 = vunpack.c.l.b16 %v459
        %v2048 = vunpack.c.h.b16 %v459
        %v2049 = vunpack.c.l.b16 %v460
        %v2050 = vunpack.c.h.b16 %v460
        %v2051 = vunpack.c.l.b16 %v461
        %v2052 = vunpack.c.h.b16 %v461
        %v2053 = vunpack.c.l.b16 %v462
        %v2054 = vunpack.c.h.b16 %v462
        %v2055 = vunpack.c.l.b16 %v463
        %v2056 = vunpack.c.h.b16 %v463
        %v2057 = vunpack.c.l.b16 %v464
        %v2058 = vunpack.c.h.b16 %v464
        %v2059 = vunpack.c.l.b16 %v465
        %v2060 = vunpack.c.h.b16 %v465
        %v2061 = vunpack.c.l.b16 %v466
        %v2062 = vunpack.c.h.b16 %v466
        %v2063 = vunpack.c.l.b16 %v467
        %v2064 = vunpack.c.h.b16 %v467
        %v2065 = vunpack.c.l.b16 %v468
        %v2066 = vunpack.c.h.b16 %v468
        %v2067 = vunpack.c.l.b16 %v469
        %v2068 = vunpack.c.h.b16 %v469
        %v2069 = vunpack.c.l.b16 %v470
        %v2070 = vunpack.c.h.b16 %v470
        %v2071 = vunpack.c.l.b16 %v471
        %v2072 = vunpack.c.h.b16 %v471
        %v2073 = vunpack.c.l.b16 %v472
        %v2074 = vunpack.c.h.b16 %v472
        %v2075 = vunpack.c.l.b16 %v473
        %v2076 = vunpack.c.h.b16 %v473
        %v2077 = vunpack.c.l.b16 %v474
        %v2078 = vunpack.c.h.b16 %v474
        %v2079 = vunpack.c.l.b16 %v475
        %v2080 = vunpack.c.h.b16 %v475
        %v2081 = vunpack.c.l.b16 %v476
        %v2082 = vunpack.c.h.b16 %v476
        %v2083 = vunpack.c.l.b16 %v477
        %v2084 = vunpack.c.h.b16 %v477
        %v2085 = vunpack.c.l.b16 %v478
        %v2086 = vunpack.c.h.b16 %v478
        %v2087 = vunpack.c.l.b16 %v479
        %v2088 = vunpack.c.h.b16 %v479
        %v2089 = vunpack.c.l.b16 %v480
        %v2090 = vunpack.c.h.b16 %v480
        %v2091 = vunpack.c.l.b16 %v481
        %v2092 = vunpack.c.h.b16 %v481
        %v2093 = vunpack.c.l.b16 %v482
        %v2094 = vunpack.c.h.b16 %v482
        %v2095 = vunpack.c.l.b16 %v483
        %v2096 = vunpack.c.h.b16 %v483
        %v2097 = vunpack.c.l.b16 %v484
        %v2098 = vunpack.c.h.b16 %v484
        %v2099 = vunpack.c.l.b16 %v485
        %v2100 = vunpack.c.h.b16 %v485
        %v2101 = vunpack.c.l.b16 %v486
        %v2102 = vunpack.c.h.b16 %v486
        %v2103 = vunpack.c.l.b16 %v487
        %v2104 = vunpack.c.h.b16 %v487
        %v2105 = vunpack.c.l.b16 %v488
        %v2106 = vunpack.c.h.b16 %v488
        %v2107 = vunpack.c.l.b16 %v489
        %v2108 = vunpack.c.h.b16 %v489
        %v2109 = vunpack.c.l.b16 %v490
        %v2110 = vunpack.c.h.b16 %v490
        %v2111 = vunpack.c.l.b16 %v491
        %v2112 = vunpack.c.h.b16 %v491
        %v2113 = vunpack.c.l.b16 %v492
        %v2114 = vunpack.c.h.b16 %v492
        %v2115 = vunpack.c.l.b16 %v493
        %v2116 = vunpack.c.h.b16 %v493
        %v2117 = vunpack.c.l.b16 %v494
        %v2118 = vunpack.c.h.b16 %v494
        %v2119 = vunpack.c.l.b16 %v495
        %v2120 = vunpack.c.h.b16 %v495
        %v2121 = vunpack.c.l.b16 %v496
        %v2122 = vunpack.c.h.b16 %v496
        %v2123 = vunpack.c.l.b16 %v497
        %v2124 = vunpack.c.h.b16 %v497
        %v2125 = vunpack.c.l.b16 %v498
        %v2126 = vunpack.c.h.b16 %v498
        %v2127 = vunpack.c.l.b16 %v499
        %v2128 = vunpack.c.h.b16 %v499
        %v2129 = vunpack.c.l.b16 %v500
        %v2130 = vunpack.c.h.b16 %v500
        %v2131 = vunpack.c.l.b16 %v501
        %v2132 = vunpack.c.h.b16 %v501
        %v2133 = vunpack.c.l.b16 %v502
        %v2134 = vunpack.c.h.b16 %v502
        %v2135 = vunpack.c.l.b16 %v503
        %v2136 = vunpack.c.h.b16 %v503
        %v2137 = vunpack.c.l.b16 %v504
        %v2138 = vunpack.c.h.b16 %v504
        %v2139 = vunpack.c.l.b16 %v505
        %v2140 = vunpack.c.h.b16 %v505
        %v2141 = vunpack.c.l.b16 %v506
        %v2142 = vunpack.c.h.b16 %v506
        %v2143 = vunpack.c.l.b16 %v507
        %v2144 = vunpack.c.h.b16 %v507
        %v2145 = vunpack.c.l.b16 %v508
        %v2146 = vunpack.c.h.b16 %v508
        %v2147 = vunpack.c.l.b16 %v509
        %v2148 = vunpack.c.h.b16 %v509
        %v2149 = vunpack.c.l.b16 %v510
        %v2150 = vunpack.c.h.b16 %v510
        %v2151 = vunpack.c.l.b16 %v511
        %v2152 = vunpack.c.h.b16 %v511
        %v2153 = vunpack.c.l.b16 %v512
        %v2154 = vunpack.c.h.b16 %v512
        %v2155 = vunpack.c.l.b16 %v513
        %v2156 = vunpack.c.h.b16 %v513
        %v2157 = vunpack.c.l.b16 %v514
        %v2158 = vunpack.c.h.b16 %v514
        %v2159 = vunpack.c.l.b16 %v515
        %v2160 = vunpack.c.h.b16 %v515
        %v2161 = vunpack.c.l.b16 %v516
        %v2162 = vunpack.c.h.b16 %v516
        %v2163 = vunpack.c.l.b16 %v517
        %v2164 = vunpack.c.h.b16 %v517
        %v2165 = vunpack.c.l.b16 %v518
        %v2166 = vunpack.c.h.b16 %v518
        %v2167 = vunpack.c.l.b16 %v519
        %v2168 = vunpack.c.h.b16 %v519
        %v2169 = vunpack.c.l.b16 %v520
        %v2170 = vunpack.c.h.b16 %v520
        %v2171 = vunpack.c.l.b16 %v521
        %v2172 = vunpack.c.h.b16 %v521
        %v2173 = vunpack.c.l.b16 %v522
        %v2174 = vunpack.c.h.b16 %v522
        %v2175 = vunpack.c.l.b16 %v523
        %v2176 = vunpack.c.h.b16 %v523
        %v2177 = vunpack.c.l.b16 %v524
        %v2178 = vunpack.c.h.b16 %v524
        %v2179 = vunpack.c.l.b16 %v525
        %v2180 = vunpack.c.h.b16 %v525
        %v2181 = vunpack.c.l.b16 %v526
        %v2182 = vunpack.c.h.b16 %v526
        %v2183 = vunpack.c.l.b16 %v527
        %v2184 = vunpack.c.h.b16 %v527
        %v2185 = vunpack.c.l.b16 %v528
        %v2186 = vunpack.c.h.b16 %v528
        %v2187 = vunpack.c.l.b16 %v529
        %v2188 = vunpack.c.h.b16 %v529
        %v2189 = vunpack.c.l.b16 %v530
        %v2190 = vunpack.c.h.b16 %v530
        %v2191 = vunpack.c.l.b16 %v531
        %v2192 = vunpack.c.h.b16 %v531
        %v2193 = vunpack.c.l.b16 %v532
        %v2194 = vunpack.c.h.b16 %v532
        %v2195 = vunpack.c.l.b16 %v533
        %v2196 = vunpack.c.h.b16 %v533
        %v2197 = vunpack.c.l.b16 %v534
        %v2198 = vunpack.c.h.b16 %v534
        %v2199 = vunpack.c.l.b16 %v535
        %v2200 = vunpack.c.h.b16 %v535
        %v2201 = vunpack.c.l.b16 %v536
        %v2202 = vunpack.c.h.b16 %v536
        %v2203 = vunpack.c.l.b16 %v537
        %v2204 = vunpack.c.h.b16 %v537
        %v2205 = vunpack.c.l.b16 %v538
        %v2206 = vunpack.c.h.b16 %v538
        %v2207 = vunpack.c.l.b16 %v539
        %v2208 = vunpack.c.h.b16 %v539
        %v2209 = vunpack.c.l.b16 %v540
        %v2210 = vunpack.c.h.b16 %v540
        %v2211 = vunpack.c.l.b16 %v541
        %v2212 = vunpack.c.h.b16 %v541
        %v2213 = vunpack.c.l.b16 %v542
        %v2214 = vunpack.c.h.b16 %v542
        %v2215 = vunpack.c.l.b16 %v543
        %v2216 = vunpack.c.h.b16 %v543
        %v2217 = vunpack.c.l.b16 %v544
        %v2218 = vunpack.c.h.b16 %v544
        %v2219 = vunpack.c.l.b16 %v545
        %v2220 = vunpack.c.h.b16 %v545
        %v2221 = vunpack.c.l.b16 %v546
        %v2222 = vunpack.c.h.b16 %v546
        %v2223 = vunpack.c.l.b16 %v547
        %v2224 = vunpack.c.h.b16 %v547
        %v2225 = vunpack.c.l.b16 %v548
        %v2226 = vunpack.c.h.b16 %v548
        %v2227 = vunpack.c.l.b16 %v549
        %v2228 = vunpack.c.h.b16 %v549
        %v2229 = vunpack.c.l.b16 %v550
        %v2230 = vunpack.c.h.b16 %v550
        %v2231 = vunpack.c.l.b16 %v551
        %v2232 = vunpack.c.h.b16 %v551
        %v2233 = vunpack.c.l.b16 %v552
        %v2234 = vunpack.c.h.b16 %v552
        %v2235 = vunpack.c.l.b16 %v553
        %v2236 = vunpack.c.h.b16 %v553
        %v2237 = vunpack.c.l.b16 %v554
        %v2238 = vunpack.c.h.b16 %v554
        %v2239 = vunpack.c.l.b16 %v555
        %v2240 = vunpack.c.h.b16 %v555
        %v2241 = vunpack.c.l.b16 %v556
        %v2242 = vunpack.c.h.b16 %v556
        %v2243 = vunpack.c.l.b16 %v557
        %v2244 = vunpack.c.h.b16 %v557
        %v2245 = vunpack.c.l.b16 %v558
        %v2246 = vunpack.c.h.b16 %v558
        %v2247 = vunpack.c.l.b16 %v559
        %v2248 = vunpack.c.h.b16 %v559
        %v2249 = vunpack.c.l.b16 %v560
        %v2250 = vunpack.c.h.b16 %v560
        %v2251 = vunpack.c.l.b16 %v561
        %v2252 = vunpack.c.h.b16 %v561
        %v2253 = vunpack.c.l.b16 %v562
        %v2254 = vunpack.c.h.b16 %v562
        %v2255 = vunpack.c.l.b16 %v563
        %v2256 = vunpack.c.h.b16 %v563
        %v2257 = vunpack.c.l.b16 %v564
        %v2258 = vunpack.c.h.b16 %v564
        %v2259 = vunpack.c.l.b16 %v565
        %v2260 = vunpack.c.h.b16 %v565
        %v2261 = vunpack.c.l.b16 %v566
        %v2262 = vunpack.c.h.b16 %v566
        %v2263 = vunpack.c.l.b16 %v567
        %v2264 = vunpack.c.h.b16 %v567
        %v2265 = vunpack.c.l.b16 %v568
        %v2266 = vunpack.c.h.b16 %v568
        %v2267 = vunpack.c.l.b16 %v569
        %v2268 = vunpack.c.h.b16 %v569
        %v2269 = vunpack.c.l.b16 %v570
        %v2270 = vunpack.c.h.b16 %v570
        %v2271 = vunpack.c.l.b16 %v571
        %v2272 = vunpack.c.h.b16 %v571
        %v2273 = vunpack.c.l.b16 %v572
        %v2274 = vunpack.c.h.b16 %v572
        %v2275 = vunpack.c.l.b16 %v573
        %v2276 = vunpack.c.h.b16 %v573
        %v2277 = vunpack.c.l.b16 %v574
        %v2278 = vunpack.c.h.b16 %v574
        %v2279 = vunpack.c.l.b16 %v575
        %v2280 = vunpack.c.h.b16 %v575
        %v2281 = vunpack.c.l.b16 %v576
        %v2282 = vunpack.c.h.b16 %v576
        %v2283 = vunpack.c.l.b16 %v577
        %v2284 = vunpack.c.h.b16 %v577
        %v2285 = vunpack.c.l.b16 %v578
        %v2286 = vunpack.c.h.b16 %v578
        %v2287 = vunpack.c.l.b16 %v579
        %v2288 = vunpack.c.h.b16 %v579
        %v2289 = vunpack.c.l.b16 %v580
        %v2290 = vunpack.c.h.b16 %v580
        %v2291 = vunpack.c.l.b16 %v581
        %v2292 = vunpack.c.h.b16 %v581
        %v2293 = vunpack.c.l.b16 %v582
        %v2294 = vunpack.c.h.b16 %v582
        %v2295 = vunpack.c.l.b16 %v583
        %v2296 = vunpack.c.h.b16 %v583
        %v2297 = vunpack.c.l.b16 %v584
        %v2298 = vunpack.c.h.b16 %v584
        %v2299 = vunpack.c.l.b16 %v585
        %v2300 = vunpack.c.h.b16 %v585
        %v2301 = vunpack.c.l.b16 %v586
        %v2302 = vunpack.c.h.b16 %v586
        %v2303 = vunpack.c.l.b16 %v587
        %v2304 = vunpack.c.h.b16 %v587
        %v2305 = vunpack.c.l.b16 %v588
        %v2306 = vunpack.c.h.b16 %v588
        %v2307 = vunpack.c.l.b16 %v589
        %v2308 = vunpack.c.h.b16 %v589
        %v2309 = vunpack.c.l.b16 %v590
        %v2310 = vunpack.c.h.b16 %v590
        %v2311 = vunpack.c.l.b16 %v591
        %v2312 = vunpack.c.h.b16 %v591
        %v2313 = vunpack.c.l.b16 %v592
        %v2314 = vunpack.c.h.b16 %v592
        %v2315 = vunpack.c.l.b16 %v593
        %v2316 = vunpack.c.h.b16 %v593
        %v2317 = vunpack.c.l.b16 %v594
        %v2318 = vunpack.c.h.b16 %v594
        %v2319 = vunpack.c.l.b16 %v595
        %v2320 = vunpack.c.h.b16 %v595
        %v2321 = vunpack.c.l.b16 %v596
        %v2322 = vunpack.c.h.b16 %v596
        %v2323 = vunpack.c.l.b16 %v597
        %v2324 = vunpack.c.h.b16 %v597
        %v2325 = vunpack.c.l.b16 %v598
        %v2326 = vunpack.c.h.b16 %v598
        %v2327 = vunpack.c.l.b16 %v599
        %v2328 = vunpack.c.h.b16 %v599
        %v2329 = vunpack.c.l.b16 %v600
        %v2330 = vunpack.c.h.b16 %v600
        %v2331 = vunpack.c.l.b16 %v601
        %v2332 = vunpack.c.h.b16 %v601
        %v2333 = vunpack.c.l.b16 %v602
        %v2334 = vunpack.c.h.b16 %v602
        %v2335 = vunpack.c.l.b16 %v603
        %v2336 = vunpack.c.h.b16 %v603
        %v2337 = vunpack.c.l.b16 %v604
        %v2338 = vunpack.c.h.b16 %v604
        %v2339 = vunpack.c.l.b16 %v605
        %v2340 = vunpack.c.h.b16 %v605
        %v2341 = vunpack.c.l.b16 %v606
        %v2342 = vunpack.c.h.b16 %v606
        %v2343 = vunpack.c.l.b16 %v607
        %v2344 = vunpack.c.h.b16 %v607
        %v2345 = vunpack.c.l.b16 %v608
        %v2346 = vunpack.c.h.b16 %v608
        %v2347 = vunpack.c.l.b16 %v609
        %v2348 = vunpack.c.h.b16 %v609
        %v2349 = vunpack.c.l.b16 %v610
        %v2350 = vunpack.c.h.b16 %v610
        %v2351 = vunpack.c.l.b16 %v611
        %v2352 = vunpack.c.h.b16 %v611
        %v2353 = vunpack.c.l.b16 %v612
        %v2354 = vunpack.c.h.b16 %v612
        %v2355 = vunpack.c.l.b16 %v613
        %v2356 = vunpack.c.h.b16 %v613
        %v2357 = vunpack.c.l.b16 %v614
        %v2358 = vunpack.c.h.b16 %v614
        %v2359 = vunpack.c.l.b16 %v615
        %v2360 = vunpack.c.h.b16 %v615
        %v2361 = vunpack.c.l.b16 %v616
        %v2362 = vunpack.c.h.b16 %v616
        %v2363 = vunpack.c.l.b16 %v617
        %v2364 = vunpack.c.h.b16 %v617
        %v2365 = vunpack.c.l.b16 %v618
        %v2366 = vunpack.c.h.b16 %v618
        %v2367 = vunpack.c.l.b16 %v619
        %v2368 = vunpack.c.h.b16 %v619
        %v2369 = vunpack.c.l.b16 %v620
        %v2370 = vunpack.c.h.b16 %v620
        %v2371 = vunpack.c.l.b16 %v621
        %v2372 = vunpack.c.h.b16 %v621
        %v2373 = vunpack.c.l.b16 %v622
        %v2374 = vunpack.c.h.b16 %v622
        %v2375 = vunpack.c.l.b16 %v623
        %v2376 = vunpack.c.h.b16 %v623
        %v2377 = vunpack.c.l.b16 %v624
        %v2378 = vunpack.c.h.b16 %v624
        %v2379 = vunpack.c.l.b16 %v625
        %v2380 = vunpack.c.h.b16 %v625
        %v2381 = vunpack.c.l.b16 %v626
        %v2382 = vunpack.c.h.b16 %v626
        %v2383 = vunpack.c.l.b16 %v627
        %v2384 = vunpack.c.h.b16 %v627
        %v2385 = vunpack.c.l.b16 %v628
        %v2386 = vunpack.c.h.b16 %v628
        %v2387 = vunpack.c.l.b16 %v629
        %v2388 = vunpack.c.h.b16 %v629
        %v2389 = vunpack.c.l.b16 %v630
        %v2390 = vunpack.c.h.b16 %v630
        %v2391 = vunpack.c.l.b16 %v631
        %v2392 = vunpack.c.h.b16 %v631
        %v2393 = vunpack.c.l.b16 %v632
        %v2394 = vunpack.c.h.b16 %v632
        %v2395 = vunpack.c.l.b16 %v633
        %v2396 = vunpack.c.h.b16 %v633
        %v2397 = vunpack.c.l.b16 %v634
        %v2398 = vunpack.c.h.b16 %v634
        %v2399 = vunpack.c.l.b16 %v635
        %v2400 = vunpack.c.h.b16 %v635
        %v2401 = vunpack.c.l.b16 %v636
        %v2402 = vunpack.c.h.b16 %v636
        %v2403 = vunpack.c.l.b16 %v637
        %v2404 = vunpack.c.h.b16 %v637
        %v2405 = vunpack.c.l.b16 %v638
        %v2406 = vunpack.c.h.b16 %v638
        %v2407 = vunpack.c.l.b16 %v639
        %v2408 = vunpack.c.h.b16 %v639
        %v2409 = vunpack.c.l.b16 %v640
        %v2410 = vunpack.c.h.b16 %v640
        %v2411 = vunpack.c.l.b16 %v641
        %v2412 = vunpack.c.h.b16 %v641
        %v2413 = vunpack.c.l.b16 %v642
        %v2414 = vunpack.c.h.b16 %v642
        %v2415 = vunpack.c.l.b16 %v643
        %v2416 = vunpack.c.h.b16 %v643
        %v2417 = vunpack.c.l.b16 %v644
        %v2418 = vunpack.c.h.b16 %v644
        %v2419 = vunpack.c.l.b16 %v645
        %v2420 = vunpack.c.h.b16 %v645
        %v2421 = vunpack.c.l.b16 %v646
        %v2422 = vunpack.c.h.b16 %v646
        %v2423 = vunpack.c.l.b16 %v647
        %v2424 = vunpack.c.h.b16 %v647
        %v2425 = vunpack.c.l.b16 %v648
        %v2426 = vunpack.c.h.b16 %v648
        %v2427 = vunpack.c.l.b16 %v649
        %v2428 = vunpack.c.h.b16 %v649
        %v2429 = vunpack.c.l.b16 %v650
        %v2430 = vunpack.c.h.b16 %v650
        %v2431 = vunpack.c.l.b16 %v651
        %v2432 = vunpack.c.h.b16 %v651
        %v2433 = vunpack.c.l.b16 %v652
        %v2434 = vunpack.c.h.b16 %v652
        %v2435 = vunpack.c.l.b16 %v653
        %v2436 = vunpack.c.h.b16 %v653
        %v2437 = vunpack.c.l.b16 %v654
        %v2438 = vunpack.c.h.b16 %v654
        %v2439 = vunpack.c.l.b16 %v655
        %v2440 = vunpack.c.h.b16 %v655
        %v2441 = vunpack.c.l.b16 %v656
        %v2442 = vunpack.c.h.b16 %v656
        %v2443 = vunpack.c.l.b16 %v657
        %v2444 = vunpack.c.h.b16 %v657
        %v2445 = vunpack.c.l.b16 %v658
        %v2446 = vunpack.c.h.b16 %v658
        %v2447 = vunpack.c.l.b16 %v659
        %v2448 = vunpack.c.h.b16 %v659
        %v2449 = vunpack.c.l.b16 %v660
        %v2450 = vunpack.c.h.b16 %v660
        %v2451 = vunpack.c.l.b16 %v661
        %v2452 = vunpack.c.h.b16 %v661
        %v2453 = vunpack.c.l.b16 %v662
        %v2454 = vunpack.c.h.b16 %v662
        %v2455 = vunpack.c.l.b16 %v663
        %v2456 = vunpack.c.h.b16 %v663
        %v2457 = vunpack.c.l.b16 %v664
        %v2458 = vunpack.c.h.b16 %v664
        %v2459 = vunpack.c.l.b16 %v665
        %v2460 = vunpack.c.h.b16 %v665
        %v2461 = vunpack.c.l.b16 %v666
        %v2462 = vunpack.c.h.b16 %v666
        %v2463 = vunpack.c.l.b16 %v667
        %v2464 = vunpack.c.h.b16 %v667
        %v2465 = vunpack.c.l.b16 %v668
        %v2466 = vunpack.c.h.b16 %v668
        %v2467 = vunpack.c.l.b16 %v669
        %v2468 = vunpack.c.h.b16 %v669
        %v2469 = vunpack.c.l.b16 %v670
        %v2470 = vunpack.c.h.b16 %v670
        %v2471 = vunpack.c.l.b16 %v671
        %v2472 = vunpack.c.h.b16 %v671
        %v2473 = vunpack.c.l.b16 %v672
        %v2474 = vunpack.c.h.b16 %v672
        %v2475 = vunpack.c.l.b16 %v673
        %v2476 = vunpack.c.h.b16 %v673
        %v2477 = vunpack.c.l.b16 %v674
        %v2478 = vunpack.c.h.b16 %v674
        %v2479 = vunpack.c.l.b16 %v675
        %v2480 = vunpack.c.h.b16 %v675
        %v2481 = vunpack.c.l.b16 %v676
        %v2482 = vunpack.c.h.b16 %v676
        %v2483 = vunpack.c.l.b16 %v677
        %v2484 = vunpack.c.h.b16 %v677
        %v2485 = vunpack.c.l.b16 %v678
        %v2486 = vunpack.c.h.b16 %v678
        %v2487 = vunpack.c.l.b16 %v679
        %v2488 = vunpack.c.h.b16 %v679
        %v2489 = vunpack.c.l.b16 %v680
        %v2490 = vunpack.c.h.b16 %v680
        %v2491 = vunpack.c.l.b16 %v681
        %v2492 = vunpack.c.h.b16 %v681
        %v2493 = vunpack.c.l.b16 %v682
        %v2494 = vunpack.c.h.b16 %v682
        %v2495 = vunpack.c.l.b16 %v683
        %v2496 = vunpack.c.h.b16 %v683
        %v2497 = vunpack.c.l.b16 %v684
        %v2498 = vunpack.c.h.b16 %v684
        %v2499 = vunpack.c.l.b16 %v685
        %v2500 = vunpack.c.h.b16 %v685
        %v2501 = vunpack.c.l.b16 %v686
        %v2502 = vunpack.c.h.b16 %v686
        %v2503 = vunpack.c.l.b16 %v687
        %v2504 = vunpack.c.h.b16 %v687
        %v2505 = vunpack.c.l.b16 %v688
        %v2506 = vunpack.c.h.b16 %v688
        %v2507 = vunpack.c.l.b16 %v689
        %v2508 = vunpack.c.h.b16 %v689
        %v2509 = vunpack.c.l.b16 %v690
        %v2510 = vunpack.c.h.b16 %v690
        %v2511 = vunpack.c.l.b16 %v691
        %v2512 = vunpack.c.h.b16 %v691
        %v2513 = vunpack.c.l.b16 %v692
        %v2514 = vunpack.c.h.b16 %v692
        %v2515 = vunpack.c.l.b16 %v693
        %v2516 = vunpack.c.h.b16 %v693
        %v2517 = vunpack.c.l.b16 %v694
        %v2518 = vunpack.c.h.b16 %v694
        %v2519 = vunpack.c.l.b16 %v695
        %v2520 = vunpack.c.h.b16 %v695
        %v2521 = vunpack.c.l.b16 %v696
        %v2522 = vunpack.c.h.b16 %v696
        %v2523 = vunpack.c.l.b16 %v697
        %v2524 = vunpack.c.h.b16 %v697
        %v2525 = vunpack.c.l.b16 %v698
        %v2526 = vunpack.c.h.b16 %v698
        %v2527 = vunpack.c.l.b16 %v699
        %v2528 = vunpack.c.h.b16 %v699
        %v2529 = vunpack.c.l.b16 %v700
        %v2530 = vunpack.c.h.b16 %v700
        %v2531 = vunpack.c.l.b16 %v701
        %v2532 = vunpack.c.h.b16 %v701
        %v2533 = vunpack.c.l.b16 %v702
        %v2534 = vunpack.c.h.b16 %v702
        %v2535 = vunpack.c.l.b16 %v703
        %v2536 = vunpack.c.h.b16 %v703
        %v2537 = vunpack.c.l.b16 %v704
        %v2538 = vunpack.c.h.b16 %v704
        %v2539 = vunpack.c.l.b16 %v705
        %v2540 = vunpack.c.h.b16 %v705
        %v2541 = vunpack.c.l.b16 %v706
        %v2542 = vunpack.c.h.b16 %v706
        %v2543 = vunpack.c.l.b16 %v707
        %v2544 = vunpack.c.h.b16 %v707
        %v2545 = vunpack.c.l.b16 %v708
        %v2546 = vunpack.c.h.b16 %v708
        %v2547 = vunpack.c.l.b16 %v709
        %v2548 = vunpack.c.h.b16 %v709
        %v2549 = vunpack.c.l.b16 %v710
        %v2550 = vunpack.c.h.b16 %v710
        %v2551 = vunpack.c.l.b16 %v711
        %v2552 = vunpack.c.h.b16 %v711
        %v2553 = vunpack.c.l.b16 %v712
        %v2554 = vunpack.c.h.b16 %v712
        %v2555 = vunpack.c.l.b16 %v713
        %v2556 = vunpack.c.h.b16 %v713
        %v2557 = vunpack.c.l.b16 %v714
        %v2558 = vunpack.c.h.b16 %v714
        %v2559 = vunpack.c.l.b16 %v715
        %v2560 = vunpack.c.h.b16 %v715
        %v2561 = vunpack.c.l.b16 %v716
        %v2562 = vunpack.c.h.b16 %v716
        %v2563 = vunpack.c.l.b16 %v717
        %v2564 = vunpack.c.h.b16 %v717
        %v2565 = vunpack.c.l.b16 %v718
        %v2566 = vunpack.c.h.b16 %v718
        %v2567 = vunpack.c.l.b16 %v719
        %v2568 = vunpack.c.h.b16 %v719
        %v2569 = vunpack.c.l.b16 %v720
        %v2570 = vunpack.c.h.b16 %v720
        %v2571 = vunpack.c.l.b16 %v721
        %v2572 = vunpack.c.h.b16 %v721
        %v2573 = vunpack.c.l.b16 %v722
        %v2574 = vunpack.c.h.b16 %v722
        %v2575 = vunpack.c.l.b16 %v723
        %v2576 = vunpack.c.h.b16 %v723
        %v2577 = vunpack.c.l.b16 %v724
        %v2578 = vunpack.c.h.b16 %v724
        %v2579 = vunpack.c.l.b16 %v725
        %v2580 = vunpack.c.h.b16 %v725
        %v2581 = vunpack.c.l.b16 %v726
        %v2582 = vunpack.c.h.b16 %v726
        %v2583 = vunpack.c.l.b16 %v727
        %v2584 = vunpack.c.h.b16 %v727
        %v2585 = vunpack.c.l.b16 %v728
        %v2586 = vunpack.c.h.b16 %v728
        %v2587 = vunpack.c.l.b16 %v729
        %v2588 = vunpack.c.h.b16 %v729
        %v2589 = vunpack.c.l.b16 %v730
        %v2590 = vunpack.c.h.b16 %v730
        %v2591 = vunpack.c.l.b16 %v731
        %v2592 = vunpack.c.h.b16 %v731
        %v2593 = vunpack.c.l.b16 %v732
        %v2594 = vunpack.c.h.b16 %v732
        %v2595 = vunpack.c.l.b16 %v733
        %v2596 = vunpack.c.h.b16 %v733
        %v2597 = vunpack.c.l.b16 %v734
        %v2598 = vunpack.c.h.b16 %v734
        %v2599 = vunpack.c.l.b16 %v735
        %v2600 = vunpack.c.h.b16 %v735
        %v2601 = vunpack.c.l.b16 %v736
        %v2602 = vunpack.c.h.b16 %v736
        %v2603 = vunpack.c.l.b16 %v737
        %v2604 = vunpack.c.h.b16 %v737
        %v2605 = vunpack.c.l.b16 %v738
        %v2606 = vunpack.c.h.b16 %v738
        %v2607 = vunpack.c.l.b16 %v739
        %v2608 = vunpack.c.h.b16 %v739
        %v2609 = vunpack.c.l.b16 %v740
        %v2610 = vunpack.c.h.b16 %v740
        %v2611 = vunpack.c.l.b16 %v741
        %v2612 = vunpack.c.h.b16 %v741
        %v2613 = vunpack.c.l.b16 %v742
        %v2614 = vunpack.c.h.b16 %v742
        %v2615 = vunpack.c.l.b16 %v743
        %v2616 = vunpack.c.h.b16 %v743
        %v2617 = vunpack.c.l.b16 %v744
        %v2618 = vunpack.c.h.b16 %v744
        %v2619 = vunpack.c.l.b16 %v745
        %v2620 = vunpack.c.h.b16 %v745
        %v2621 = vunpack.c.l.b16 %v746
        %v2622 = vunpack.c.h.b16 %v746
        %v2623 = vunpack.c.l.b16 %v747
        %v2624 = vunpack.c.h.b16 %v747
        %v2625 = vunpack.c.l.b16 %v748
        %v2626 = vunpack.c.h.b16 %v748
        %v2627 = vunpack.c.l.b16 %v749
        %v2628 = vunpack.c.h.b16 %v749
        %v2629 = vunpack.c.l.b16 %v750
        %v2630 = vunpack.c.h.b16 %v750
        %v2631 = vunpack.c.l.b16 %v751
        %v2632 = vunpack.c.h.b16 %v751
        %v2633 = vunpack.c.l.b16 %v752
        %v2634 = vunpack.c.h.b16 %v752
        %v2635 = vunpack.c.l.b16 %v753
        %v2636 = vunpack.c.h.b16 %v753
        %v2637 = vunpack.c.l.b16 %v754
        %v2638 = vunpack.c.h.b16 %v754
        %v2639 = vunpack.c.l.b16 %v755
        %v2640 = vunpack.c.h.b16 %v755
        %v2641 = vunpack.c.l.b16 %v756
        %v2642 = vunpack.c.h.b16 %v756
        %v2643 = vunpack.c.l.b16 %v757
        %v2644 = vunpack.c.h.b16 %v757
        %v2645 = vunpack.c.l.b16 %v758
        %v2646 = vunpack.c.h.b16 %v758
        %v2647 = vunpack.c.l.b16 %v759
        %v2648 = vunpack.c.h.b16 %v759
        %v2649 = vunpack.c.l.b16 %v760
        %v2650 = vunpack.c.h.b16 %v760
        %v2651 = vunpack.c.l.b16 %v761
        %v2652 = vunpack.c.h.b16 %v761
        %v2653 = vunpack.c.l.b16 %v762
        %v2654 = vunpack.c.h.b16 %v762
        %v2655 = vunpack.c.l.b16 %v763
        %v2656 = vunpack.c.h.b16 %v763
        %v2657 = vunpack.c.l.b16 %v764
        %v2658 = vunpack.c.h.b16 %v764
        %v2659 = vunpack.c.l.b16 %v765
        %v2660 = vunpack.c.h.b16 %v765
        %v2661 = vunpack.c.l.b16 %v766
        %v2662 = vunpack.c.h.b16 %v766
        %v2663 = vunpack.c.l.b16 %v767
        %v2664 = vunpack.c.h.b16 %v767
        %v2665 = vunpack.c.l.b16 %v768
        %v2666 = vunpack.c.h.b16 %v768
        %v2667 = vunpack.c.l.b16 %v769
        %v2668 = vunpack.c.h.b16 %v769
        %v2669 = vunpack.c.l.b16 %v770
        %v2670 = vunpack.c.h.b16 %v770
        %v2671 = vunpack.c.l.b16 %v771
        %v2672 = vunpack.c.h.b16 %v771
        %v2673 = vunpack.c.l.b16 %v772
        %v2674 = vunpack.c.h.b16 %v772
        %v2675 = vunpack.c.l.b16 %v773
        %v2676 = vunpack.c.h.b16 %v773
        %v2677 = vunpack.c.l.b16 %v774
        %v2678 = vunpack.c.h.b16 %v774
        %v2679 = vunpack.c.l.b16 %v775
        %v2680 = vunpack.c.h.b16 %v775
        %v2681 = vunpack.c.l.b16 %v776
        %v2682 = vunpack.c.h.b16 %v776
        %v2683 = vunpack.c.l.b16 %v777
        %v2684 = vunpack.c.h.b16 %v777
        %v2685 = vunpack.c.l.b16 %v778
        %v2686 = vunpack.c.h.b16 %v778
        %v2687 = vunpack.c.l.b16 %v779
        %v2688 = vunpack.c.h.b16 %v779
        %v2689 = vunpack.c.l.b16 %v780
        %v2690 = vunpack.c.h.b16 %v780
        %v2691 = vunpack.c.l.b16 %v781
        %v2692 = vunpack.c.h.b16 %v781
        %v2693 = vunpack.c.l.b16 %v782
        %v2694 = vunpack.c.h.b16 %v782
        %v2695 = vunpack.c.l.b16 %v783
        %v2696 = vunpack.c.h.b16 %v783
        %v2697 = vunpack.c.l.b16 %v784
        %v2698 = vunpack.c.h.b16 %v784
        %v2699 = vunpack.c.l.b16 %v785
        %v2700 = vunpack.c.h.b16 %v785
        %v2701 = vunpack.c.l.b16 %v786
        %v2702 = vunpack.c.h.b16 %v786
        %v2703 = vunpack.c.l.b16 %v787
        %v2704 = vunpack.c.h.b16 %v787
        %v2705 = vunpack.c.l.b16 %v788
        %v2706 = vunpack.c.h.b16 %v788
        %v2707 = vunpack.c.l.b16 %v789
        %v2708 = vunpack.c.h.b16 %v789
        %v2709 = vunpack.c.l.b16 %v790
        %v2710 = vunpack.c.h.b16 %v790
        %v2711 = vunpack.c.l.b16 %v791
        %v2712 = vunpack.c.h.b16 %v791
        %v2713 = vunpack.c.l.b16 %v792
        %v2714 = vunpack.c.h.b16 %v792
        %v2715 = vunpack.c.l.b16 %v793
        %v2716 = vunpack.c.h.b16 %v793
        %v2717 = vunpack.c.l.b16 %v794
        %v2718 = vunpack.c.h.b16 %v794
        %v2719 = vunpack.c.l.b16 %v795
        %v2720 = vunpack.c.h.b16 %v795
        %v2721 = vunpack.c.l.b16 %v796
        %v2722 = vunpack.c.h.b16 %v796
        %v2723 = vunpack.c.l.b16 %v797
        %v2724 = vunpack.c.h.b16 %v797
        %v2725 = vunpack.c.l.b16 %v798
        %v2726 = vunpack.c.h.b16 %v798
        %v2727 = vunpack.c.l.b16 %v799
        %v2728 = vunpack.c.h.b16 %v799
        %v2729 = vunpack.c.l.b16 %v800
        %v2730 = vunpack.c.h.b16 %v800
        %v2731 = vunpack.c.l.b16 %v801
        %v2732 = vunpack.c.h.b16 %v801
        %v2733 = vunpack.c.l.b16 %v802
        %v2734 = vunpack.c.h.b16 %v802
        %v2735 = vunpack.c.l.b16 %v803
        %v2736 = vunpack.c.h.b16 %v803
        %v2737 = vunpack.c.l.b16 %v804
        %v2738 = vunpack.c.h.b16 %v804
        %v2739 = vunpack.c.l.b16 %v805
        %v2740 = vunpack.c.h.b16 %v805
        %v2741 = vunpack.c.l.b16 %v806
        %v2742 = vunpack.c.h.b16 %v806
        %v2743 = vunpack.c.l.b16 %v807
        %v2744 = vunpack.c.h.b16 %v807
        %v2745 = vunpack.c.l.b16 %v808
        %v2746 = vunpack.c.h.b16 %v808
        %v2747 = vunpack.c.l.b16 %v809
        %v2748 = vunpack.c.h.b16 %v809
        %v2749 = vunpack.c.l.b16 %v810
        %v2750 = vunpack.c.h.b16 %v810
        %v2751 = vunpack.c.l.b16 %v811
        %v2752 = vunpack.c.h.b16 %v811
        %v2753 = vunpack.c.l.b16 %v812
        %v2754 = vunpack.c.h.b16 %v812
        %v2755 = vunpack.c.l.b16 %v813
        %v2756 = vunpack.c.h.b16 %v813
        %v2757 = vunpack.c.l.b16 %v814
        %v2758 = vunpack.c.h.b16 %v814
        %v2759 = vunpack.c.l.b16 %v815
        %v2760 = vunpack.c.h.b16 %v815
        %v2761 = vunpack.c.l.b16 %v816
        %v2762 = vunpack.c.h.b16 %v816
        %v2763 = vunpack.c.l.b16 %v817
        %v2764 = vunpack.c.h.b16 %v817
        %v2765 = vunpack.c.l.b16 %v818
        %v2766 = vunpack.c.h.b16 %v818
        %v2767 = vunpack.c.l.b16 %v819
        %v2768 = vunpack.c.h.b16 %v819
        %v2769 = vunpack.c.l.b16 %v820
        %v2770 = vunpack.c.h.b16 %v820
        %v2771 = vunpack.c.l.b16 %v821
        %v2772 = vunpack.c.h.b16 %v821
        %v2773 = vunpack.c.l.b16 %v822
        %v2774 = vunpack.c.h.b16 %v822
        %v2775 = vunpack.c.l.b16 %v823
        %v2776 = vunpack.c.h.b16 %v823
        %v2777 = vunpack.c.l.b16 %v824
        %v2778 = vunpack.c.h.b16 %v824
        %v2779 = vunpack.c.l.b16 %v825
        %v2780 = vunpack.c.h.b16 %v825
        %v2781 = vunpack.c.l.b16 %v826
        %v2782 = vunpack.c.h.b16 %v826
        %v2783 = vunpack.c.l.b16 %v827
        %v2784 = vunpack.c.h.b16 %v827
        %v2785 = vunpack.c.l.b16 %v828
        %v2786 = vunpack.c.h.b16 %v828
        %v2787 = vunpack.c.l.b16 %v829
        %v2788 = vunpack.c.h.b16 %v829
        %v2789 = vunpack.c.l.b16 %v830
        %v2790 = vunpack.c.h.b16 %v830
        %v2791 = vunpack.c.l.b16 %v831
        %v2792 = vunpack.c.h.b16 %v831
        %v2793 = vunpack.c.l.b16 %v832
        %v2794 = vunpack.c.h.b16 %v832
        %v2795 = vunpack.c.l.b16 %v833
        %v2796 = vunpack.c.h.b16 %v833
        %v2797 = vunpack.c.l.b16 %v834
        %v2798 = vunpack.c.h.b16 %v834
        %v2799 = vunpack.c.l.b16 %v835
        %v2800 = vunpack.c.h.b16 %v835
        %v2801 = vunpack.c.l.b16 %v836
        %v2802 = vunpack.c.h.b16 %v836
        %v2803 = vunpack.c.l.b16 %v837
        %v2804 = vunpack.c.h.b16 %v837
        %v2805 = vunpack.c.l.b16 %v838
        %v2806 = vunpack.c.h.b16 %v838
        %v2807 = vunpack.c.l.b16 %v839
        %v2808 = vunpack.c.h.b16 %v839
        %v2809 = vunpack.c.l.b16 %v840
        %v2810 = vunpack.c.h.b16 %v840
        %v2811 = vunpack.c.l.b16 %v841
        %v2812 = vunpack.c.h.b16 %v841
        %v2813 = vunpack.c.l.b16 %v842
        %v2814 = vunpack.c.h.b16 %v842
        %v2815 = vunpack.c.l.b16 %v843
        %v2816 = vunpack.c.h.b16 %v843
        %v2817 = vunpack.c.l.b16 %v844
        %v2818 = vunpack.c.h.b16 %v844
        %v2819 = vunpack.c.l.b16 %v845
        %v2820 = vunpack.c.h.b16 %v845
        %v2821 = vunpack.c.l.b16 %v846
        %v2822 = vunpack.c.h.b16 %v846
        %v2823 = vunpack.c.l.b16 %v847
        %v2824 = vunpack.c.h.b16 %v847
        %v2825 = vunpack.c.l.b16 %v848
        %v2826 = vunpack.c.h.b16 %v848
        %v2827 = vunpack.c.l.b16 %v849
        %v2828 = vunpack.c.h.b16 %v849
        %v2829 = vunpack.c.l.b16 %v850
        %v2830 = vunpack.c.h.b16 %v850
        %v2831 = vunpack.c.l.b16 %v851
        %v2832 = vunpack.c.h.b16 %v851
        %v2833 = vunpack.c.l.b16 %v852
        %v2834 = vunpack.c.h.b16 %v852
        %v2835 = vunpack.c.l.b16 %v853
        %v2836 = vunpack.c.h.b16 %v853
        %v2837 = vunpack.c.l.b16 %v854
        %v2838 = vunpack.c.h.b16 %v854
        %v2839 = vunpack.c.l.b16 %v855
        %v2840 = vunpack.c.h.b16 %v855
        %v2841 = vunpack.c.l.b16 %v856
        %v2842 = vunpack.c.h.b16 %v856
        %v2843 = vunpack.c.l.b16 %v857
        %v2844 = vunpack.c.h.b16 %v857
        %v2845 = vunpack.c.l.b16 %v858
        %v2846 = vunpack.c.h.b16 %v858
        %v2847 = vunpack.c.l.b16 %v859
        %v2848 = vunpack.c.h.b16 %v859
        %v2849 = vunpack.c.l.b16 %v860
        %v2850 = vunpack.c.h.b16 %v860
        %v2851 = vunpack.c.l.b16 %v861
        %v2852 = vunpack.c.h.b16 %v861
        %v2853 = vunpack.c.l.b16 %v862
        %v2854 = vunpack.c.h.b16 %v862
        %v2855 = vunpack.c.l.b16 %v863
        %v2856 = vunpack.c.h.b16 %v863
        %v2857 = vunpack.c.l.b16 %v864
        %v2858 = vunpack.c.h.b16 %v864
        %v2859 = vunpack.c.l.b16 %v865
        %v2860 = vunpack.c.h.b16 %v865
        %v2861 = vunpack.c.l.b16 %v866
        %v2862 = vunpack.c.h.b16 %v866
        %v2863 = vunpack.c.l.b16 %v867
        %v2864 = vunpack.c.h.b16 %v867
        %v2865 = vunpack.c.l.b16 %v868
        %v2866 = vunpack.c.h.b16 %v868
        %v2867 = vunpack.c.l.b16 %v869
        %v2868 = vunpack.c.h.b16 %v869
        %v2869 = vunpack.c.l.b16 %v870
        %v2870 = vunpack.c.h.b16 %v870
        %v2871 = vunpack.c.l.b16 %v871
        %v2872 = vunpack.c.h.b16 %v871
        %v2873 = vunpack.c.l.b16 %v872
        %v2874 = vunpack.c.h.b16 %v872
        %v2875 = vunpack.c.l.b16 %v873
        %v2876 = vunpack.c.h.b16 %v873
        %v2877 = vunpack.c.l.b16 %v874
        %v2878 = vunpack.c.h.b16 %v874
        %v2879 = vunpack.c.l.b16 %v875
        %v2880 = vunpack.c.h.b16 %v875
        %v2881 = vunpack.c.l.b16 %v876
        %v2882 = vunpack.c.h.b16 %v876
        %v2883 = vunpack.c.l.b16 %v877
        %v2884 = vunpack.c.h.b16 %v877
        %v2885 = vunpack.c.l.b16 %v878
        %v2886 = vunpack.c.h.b16 %v878
        %v2887 = vunpack.c.l.b16 %v879
        %v2888 = vunpack.c.h.b16 %v879
        %v2889 = vunpack.c.l.b16 %v880
        %v2890 = vunpack.c.h.b16 %v880
        %v2891 = vunpack.c.l.b16 %v881
        %v2892 = vunpack.c.h.b16 %v881
        %v2893 = vunpack.c.l.b16 %v882
        %v2894 = vunpack.c.h.b16 %v882
        %v2895 = vunpack.c.l.b16 %v883
        %v2896 = vunpack.c.h.b16 %v883
        %v2897 = vunpack.c.l.b16 %v884
        %v2898 = vunpack.c.h.b16 %v884
        %v2899 = vunpack.c.l.b16 %v885
        %v2900 = vunpack.c.h.b16 %v885
        %v2901 = vunpack.c.l.b16 %v886
        %v2902 = vunpack.c.h.b16 %v886
        %v2903 = vunpack.c.l.b16 %v887
        %v2904 = vunpack.c.h.b16 %v887
        %v2905 = vunpack.c.l.b16 %v888
        %v2906 = vunpack.c.h.b16 %v888
        %v2907 = vunpack.c.l.b16 %v889
        %v2908 = vunpack.c.h.b16 %v889
        %v2909 = vunpack.c.l.b16 %v890
        %v2910 = vunpack.c.h.b16 %v890
        %v2911 = vunpack.c.l.b16 %v891
        %v2912 = vunpack.c.h.b16 %v891
        %v2913 = vunpack.c.l.b16 %v892
        %v2914 = vunpack.c.h.b16 %v892
        %v2915 = vunpack.c.l.b16 %v893
        %v2916 = vunpack.c.h.b16 %v893
        %v2917 = vunpack.c.l.b16 %v894
        %v2918 = vunpack.c.h.b16 %v894
        %v2919 = vunpack.c.l.b16 %v895
        %v2920 = vunpack.c.h.b16 %v895
        %v2921 = vunpack.c.l.b16 %v896
        %v2922 = vunpack.c.h.b16 %v896
        %v2923 = vunpack.c.l.b16 %v897
        %v2924 = vunpack.c.h.b16 %v897
        %v2925 = vunpack.c.l.b16 %v898
        %v2926 = vunpack.c.h.b16 %v898
        %v2927 = vunpack.c.l.b16 %v899
        %v2928 = vunpack.c.h.b16 %v899
        %v2929 = vunpack.c.l.b16 %v900
        %v2930 = vunpack.c.h.b16 %v900
        %v2931 = vunpack.c.l.b16 %v901
        %v2932 = vunpack.c.h.b16 %v901
        %v2933 = vunpack.c.l.b16 %v902
        %v2934 = vunpack.c.h.b16 %v902
        %v2935 = vunpack.c.l.b16 %v903
        %v2936 = vunpack.c.h.b16 %v903
        %v2937 = vunpack.c.l.b16 %v904
        %v2938 = vunpack.c.h.b16 %v904
        %v2939 = vunpack.c.l.b16 %v905
        %v2940 = vunpack.c.h.b16 %v905
        %v2941 = vunpack.c.l.b16 %v906
        %v2942 = vunpack.c.h.b16 %v906
        %v2943 = vunpack.c.l.b16 %v907
        %v2944 = vunpack.c.h.b16 %v907
        %v2945 = vunpack.c.l.b16 %v908
        %v2946 = vunpack.c.h.b16 %v908
        %v2947 = vunpack.c.l.b16 %v909
        %v2948 = vunpack.c.h.b16 %v909
        %v2949 = vunpack.c.l.b16 %v910
        %v2950 = vunpack.c.h.b16 %v910
        %v2951 = vunpack.c.l.b16 %v911
        %v2952 = vunpack.c.h.b16 %v911
        %v2953 = vunpack.c.l.b16 %v912
        %v2954 = vunpack.c.h.b16 %v912
        %v2955 = vunpack.c.l.b16 %v913
        %v2956 = vunpack.c.h.b16 %v913
        %v2957 = vunpack.c.l.b16 %v914
        %v2958 = vunpack.c.h.b16 %v914
        %v2959 = vunpack.c.l.b16 %v915
        %v2960 = vunpack.c.h.b16 %v915
        %v2961 = vunpack.c.l.b16 %v916
        %v2962 = vunpack.c.h.b16 %v916
        %v2963 = vunpack.c.l.b16 %v917
        %v2964 = vunpack.c.h.b16 %v917
        %v2965 = vunpack.c.l.b16 %v918
        %v2966 = vunpack.c.h.b16 %v918
        %v2967 = vpack.c.b16 %v1975, %v1943
        %v2968 = vpack.c.b16 %v1976, %v1944
        %v2969 = vpack.c.b16 %v1977, %v1945
        %v2970 = vpack.c.b16 %v1978, %v1946
        %v2971 = vpack.c.b16 %v1979, %v1947
        %v2972 = vpack.c.b16 %v1980, %v1948
        %v2973 = vpack.c.b16 %v1981, %v1949
        %v2974 = vpack.c.b16 %v1982, %v1950
        %v2975 = vpack.c.b16 %v1983, %v1951
        %v2976 = vpack.c.b16 %v1984, %v1952
        %v2977 = vpack.c.b16 %v1985, %v1953
        %v2978 = vpack.c.b16 %v1986, %v1954
        %v2979 = vpack.c.b16 %v1987, %v1955
        %v2980 = vpack.c.b16 %v1988, %v1956
        %v2981 = vpack.c.b16 %v1989, %v1957
        %v2982 = vpack.c.b16 %v1990, %v1958
        %v2983 = vpack.c.b16 %v1991, %v1959
        %v2984 = vpack.c.b16 %v1992, %v1960
        %v2985 = vpack.c.b16 %v1993, %v1961
        %v2986 = vpack.c.b16 %v1994, %v1962
        %v2987 = vpack.c.b16 %v1995, %v1963
        %v2988 = vpack.c.b16 %v1996, %v1964
        %v2989 = vpack.c.b16 %v1997, %v1965
        %v2990 = vpack.c.b16 %v1998, %v1966
        %v2991 = vpack.c.b16 %v1999, %v1967
        %v2992 = vpack.c.b16 %v2000, %v1968
        %v2993 = vpack.c.b16 %v2001, %v1969
        %v2994 = vpack.c.b16 %v2002, %v1970
        %v2995 = vpack.c.b16 %v2003, %v1971
        %v2996 = vpack.c.b16 %v2004, %v1972
        %v2997 = vpack.c.b16 %v2005, %v1973
        %v2998 = vpack.c.b16 %v2006, %v1974
        %v2999 = vpack.c.b16 %v2039, %v2007
        %v3000 = vpack.c.b16 %v2040, %v2008
        %v3001 = vpack.c.b16 %v2041, %v2009
        %v3002 = vpack.c.b16 %v2042, %v2010
        %v3003 = vpack.c.b16 %v2043, %v2011
        %v3004 = vpack.c.b16 %v2044, %v2012
        %v3005 = vpack.c.b16 %v2045, %v2013
        %v3006 = vpack.c.b16 %v2046, %v2014
        %v3007 = vpack.c.b16 %v2047, %v2015
        %v3008 = vpack.c.b16 %v2048, %v2016
        %v3009 = vpack.c.b16 %v2049, %v2017
        %v3010 = vpack.c.b16 %v2050, %v2018
        %v3011 = vpack.c.b16 %v2051, %v2019
        %v3012 = vpack.c.b16 %v2052, %v2020
        %v3013 = vpack.c.b16 %v2053, %v2021
        %v3014 = vpack.c.b16 %v2054, %v2022
        %v3015 = vpack.c.b16 %v2055, %v2023
        %v3016 = vpack.c.b16 %v2056, %v2024
        %v3017 = vpack.c.b16 %v2057, %v2025
        %v3018 = vpack.c.b16 %v2058, %v2026
        %v3019 = vpack.c.b16 %v2059, %v2027
        %v3020 = vpack.c.b16 %v2060, %v2028
        %v3021 = vpack.c.b16 %v2061, %v2029
        %v3022 = vpack.c.b16 %v2062, %v2030
        %v3023 = vpack.c.b16 %v2063, %v2031
        %v3024 = vpack.c.b16 %v2064, %v2032
        %v3025 = vpack.c.b16 %v2065, %v2033
        %v3026 = vpack.c.b16 %v2066, %v2034
        %v3027 = vpack.c.b16 %v2067, %v2035
        %v3028 = vpack.c.b16 %v2068, %v2036
        %v3029 = vpack.c.b16 %v2069, %v2037
        %v3030 = vpack.c.b16 %v2070, %v2038
        %v3031 = vpack.c.b16 %v2103, %v2071
        %v3032 = vpack.c.b16 %v2104, %v2072
        %v3033 = vpack.c.b16 %v2105, %v2073
        %v3034 = vpack.c.b16 %v2106, %v2074
        %v3035 = vpack.c.b16 %v2107, %v2075
        %v3036 = vpack.c.b16 %v2108, %v2076
        %v3037 = vpack.c.b16 %v2109, %v2077
        %v3038 = vpack.c.b16 %v2110, %v2078
        %v3039 = vpack.c.b16 %v2111, %v2079
        %v3040 = vpack.c.b16 %v2112, %v2080
        %v3041 = vpack.c.b16 %v2113, %v2081
        %v3042 = vpack.c.b16 %v2114, %v2082
        %v3043 = vpack.c.b16 %v2115, %v2083
        %v3044 = vpack.c.b16 %v2116, %v2084
        %v3045 = vpack.c.b16 %v2117, %v2085
        %v3046 = vpack.c.b16 %v2118, %v2086
        %v3047 = vpack.c.b16 %v2119, %v2087
        %v3048 = vpack.c.b16 %v2120, %v2088
        %v3049 = vpack.c.b16 %v2121, %v2089
        %v3050 = vpack.c.b16 %v2122, %v2090
        %v3051 = vpack.c.b16 %v2123, %v2091
        %v3052 = vpack.c.b16 %v2124, %v2092
        %v3053 = vpack.c.b16 %v2125, %v2093
        %v3054 = vpack.c.b16 %v2126, %v2094
        %v3055 = vpack.c.b16 %v2127, %v2095
        %v3056 = vpack.c.b16 %v2128, %v2096
        %v3057 = vpack.c.b16 %v2129, %v2097
        %v3058 = vpack.c.b16 %v2130, %v2098
        %v3059 = vpack.c.b16 %v2131, %v2099
        %v3060 = vpack.c.b16 %v2132, %v2100
        %v3061 = vpack.c.b16 %v2133, %v2101
        %v3062 = vpack.c.b16 %v2134, %v2102
        %v3063 = vpack.c.b16 %v2167, %v2135
        %v3064 = vpack.c.b16 %v2168, %v2136
        %v3065 = vpack.c.b16 %v2169, %v2137
        %v3066 = vpack.c.b16 %v2170, %v2138
        %v3067 = vpack.c.b16 %v2171, %v2139
        %v3068 = vpack.c.b16 %v2172, %v2140
        %v3069 = vpack.c.b16 %v2173, %v2141
        %v3070 = vpack.c.b16 %v2174, %v2142
        %v3071 = vpack.c.b16 %v2175, %v2143
        %v3072 = vpack.c.b16 %v2176, %v2144
        %v3073 = vpack.c.b16 %v2177, %v2145
        %v3074 = vpack.c.b16 %v2178, %v2146
        %v3075 = vpack.c.b16 %v2179, %v2147
        %v3076 = vpack.c.b16 %v2180, %v2148
        %v3077 = vpack.c.b16 %v2181, %v2149
        %v3078 = vpack.c.b16 %v2182, %v2150
        %v3079 = vpack.c.b16 %v2183, %v2151
        %v3080 = vpack.c.b16 %v2184, %v2152
        %v3081 = vpack.c.b16 %v2185, %v2153
        %v3082 = vpack.c.b16 %v2186, %v2154
        %v3083 = vpack.c.b16 %v2187, %v2155
        %v3084 = vpack.c.b16 %v2188, %v2156
        %v3085 = vpack.c.b16 %v2189, %v2157
        %v3086 = vpack.c.b16 %v2190, %v2158
        %v3087 = vpack.c.b16 %v2191, %v2159
        %v3088 = vpack.c.b16 %v2192, %v2160
        %v3089 = vpack.c.b16 %v2193, %v2161
        %v3090 = vpack.c.b16 %v2194, %v2162
        %v3091 = vpack.c.b16 %v2195, %v2163
        %v3092 = vpack.c.b16 %v2196, %v2164
        %v3093 = vpack.c.b16 %v2197, %v2165
        %v3094 = vpack.c.b16 %v2198, %v2166
        %v3095 = vpack.c.b16 %v2231, %v2199
        %v3096 = vpack.c.b16 %v2232, %v2200
        %v3097 = vpack.c.b16 %v2233, %v2201
        %v3098 = vpack.c.b16 %v2234, %v2202
        %v3099 = vpack.c.b16 %v2235, %v2203
        %v3100 = vpack.c.b16 %v2236, %v2204
        %v3101 = vpack.c.b16 %v2237, %v2205
        %v3102 = vpack.c.b16 %v2238, %v2206
        %v3103 = vpack.c.b16 %v2239, %v2207
        %v3104 = vpack.c.b16 %v2240, %v2208
        %v3105 = vpack.c.b16 %v2241, %v2209
        %v3106 = vpack.c.b16 %v2242, %v2210
        %v3107 = vpack.c.b16 %v2243, %v2211
        %v3108 = vpack.c.b16 %v2244, %v2212
        %v3109 = vpack.c.b16 %v2245, %v2213
        %v3110 = vpack.c.b16 %v2246, %v2214
        %v3111 = vpack.c.b16 %v2247, %v2215
        %v3112 = vpack.c.b16 %v2248, %v2216
        %v3113 = vpack.c.b16 %v2249, %v2217
        %v3114 = vpack.c.b16 %v2250, %v2218
        %v3115 = vpack.c.b16 %v2251, %v2219
        %v3116 = vpack.c.b16 %v2252, %v2220
        %v3117 = vpack.c.b16 %v2253, %v2221
        %v3118 = vpack.c.b16 %v2254, %v2222
        %v3119 = vpack.c.b16 %v2255, %v2223
        %v3120 = vpack.c.b16 %v2256, %v2224
        %v3121 = vpack.c.b16 %v2257, %v2225
        %v3122 = vpack.c.b16 %v2258, %v2226
        %v3123 = vpack.c.b16 %v2259, %v2227
        %v3124 = vpack.c.b16 %v2260, %v2228
        %v3125 = vpack.c.b16 %v2261, %v2229
        %v3126 = vpack.c.b16 %v2262, %v2230
        %v3127 = vpack.c.b16 %v2295, %v2263
        %v3128 = vpack.c.b16 %v2296, %v2264
        %v3129 = vpack.c.b16 %v2297, %v2265
        %v3130 = vpack.c.b16 %v2298, %v2266
        %v3131 = vpack.c.b16 %v2299, %v2267
        %v3132 = vpack.c.b16 %v2300, %v2268
        %v3133 = vpack.c.b16 %v2301, %v2269
        %v3134 = vpack.c.b16 %v2302, %v2270
        %v3135 = vpack.c.b16 %v2303, %v2271
        %v3136 = vpack.c.b16 %v2304, %v2272
        %v3137 = vpack.c.b16 %v2305, %v2273
        %v3138 = vpack.c.b16 %v2306, %v2274
        %v3139 = vpack.c.b16 %v2307, %v2275
        %v3140 = vpack.c.b16 %v2308, %v2276
        %v3141 = vpack.c.b16 %v2309, %v2277
        %v3142 = vpack.c.b16 %v2310, %v2278
        %v3143 = vpack.c.b16 %v2311, %v2279
        %v3144 = vpack.c.b16 %v2312, %v2280
        %v3145 = vpack.c.b16 %v2313, %v2281
        %v3146 = vpack.c.b16 %v2314, %v2282
        %v3147 = vpack.c.b16 %v2315, %v2283
        %v3148 = vpack.c.b16 %v2316, %v2284
        %v3149 = vpack.c.b16 %v2317, %v2285
        %v3150 = vpack.c.b16 %v2318, %v2286
        %v3151 = vpack.c.b16 %v2319, %v2287
        %v3152 = vpack.c.b16 %v2320, %v2288
        %v3153 = vpack.c.b16 %v2321, %v2289
        %v3154 = vpack.c.b16 %v2322, %v2290
        %v3155 = vpack.c.b16 %v2323, %v2291
        %v3156 = vpack.c.b16 %v2324, %v2292
        %v3157 = vpack.c.b16 %v2325, %v2293
        %v3158 = vpack.c.b16 %v2326, %v2294
        %v3159 = vpack.c.b16 %v2359, %v2327
        %v3160 = vpack.c.b16 %v2360, %v2328
        %v3161 = vpack.c.b16 %v2361, %v2329
        %v3162 = vpack.c.b16 %v2362, %v2330
        %v3163 = vpack.c.b16 %v2363, %v2331
        %v3164 = vpack.c.b16 %v2364, %v2332
        %v3165 = vpack.c.b16 %v2365, %v2333
        %v3166 = vpack.c.b16 %v2366, %v2334
        %v3167 = vpack.c.b16 %v2367, %v2335
        %v3168 = vpack.c.b16 %v2368, %v2336
        %v3169 = vpack.c.b16 %v2369, %v2337
        %v3170 = vpack.c.b16 %v2370, %v2338
        %v3171 = vpack.c.b16 %v2371, %v2339
        %v3172 = vpack.c.b16 %v2372, %v2340
        %v3173 = vpack.c.b16 %v2373, %v2341
        %v3174 = vpack.c.b16 %v2374, %v2342
        %v3175 = vpack.c.b16 %v2375, %v2343
        %v3176 = vpack.c.b16 %v2376, %v2344
        %v3177 = vpack.c.b16 %v2377, %v2345
        %v3178 = vpack.c.b16 %v2378, %v2346
        %v3179 = vpack.c.b16 %v2379, %v2347
        %v3180 = vpack.c.b16 %v2380, %v2348
        %v3181 = vpack.c.b16 %v2381, %v2349
        %v3182 = vpack.c.b16 %v2382, %v2350
        %v3183 = vpack.c.b16 %v2383, %v2351
        %v3184 = vpack.c.b16 %v2384, %v2352
        %v3185 = vpack.c.b16 %v2385, %v2353
        %v3186 = vpack.c.b16 %v2386, %v2354
        %v3187 = vpack.c.b16 %v2387, %v2355
        %v3188 = vpack.c.b16 %v2388, %v2356
        %v3189 = vpack.c.b16 %v2389, %v2357
        %v3190 = vpack.c.b16 %v2390, %v2358
        %v3191 = vpack.c.b16 %v2423, %v2391
        %v3192 = vpack.c.b16 %v2424, %v2392
        %v3193 = vpack.c.b16 %v2425, %v2393
        %v3194 = vpack.c.b16 %v2426, %v2394
        %v3195 = vpack.c.b16 %v2427, %v2395
        %v3196 = vpack.c.b16 %v2428, %v2396
        %v3197 = vpack.c.b16 %v2429, %v2397
        %v3198 = vpack.c.b16 %v2430, %v2398
        %v3199 = vpack.c.b16 %v2431, %v2399
        %v3200 = vpack.c.b16 %v2432, %v2400
        %v3201 = vpack.c.b16 %v2433, %v2401
        %v3202 = vpack.c.b16 %v2434, %v2402
        %v3203 = vpack.c.b16 %v2435, %v2403
        %v3204 = vpack.c.b16 %v2436, %v2404
        %v3205 = vpack.c.b16 %v2437, %v2405
        %v3206 = vpack.c.b16 %v2438, %v2406
        %v3207 = vpack.c.b16 %v2439, %v2407
        %v3208 = vpack.c.b16 %v2440, %v2408
        %v3209 = vpack.c.b16 %v2441, %v2409
        %v3210 = vpack.c.b16 %v2442, %v2410
        %v3211 = vpack.c.b16 %v2443, %v2411
        %v3212 = vpack.c.b16 %v2444, %v2412
        %v3213 = vpack.c.b16 %v2445, %v2413
        %v3214 = vpack.c.b16 %v2446, %v2414
        %v3215 = vpack.c.b16 %v2447, %v2415
        %v3216 = vpack.c.b16 %v2448, %v2416
        %v3217 = vpack.c.b16 %v2449, %v2417
        %v3218 = vpack.c.b16 %v2450, %v2418
        %v3219 = vpack.c.b16 %v2451, %v2419
        %v3220 = vpack.c.b16 %v2452, %v2420
        %v3221 = vpack.c.b16 %v2453, %v2421
        %v3222 = vpack.c.b16 %v2454, %v2422
        %v3223 = vpack.c.b16 %v2487, %v2455
        %v3224 = vpack.c.b16 %v2488, %v2456
        %v3225 = vpack.c.b16 %v2489, %v2457
        %v3226 = vpack.c.b16 %v2490, %v2458
        %v3227 = vpack.c.b16 %v2491, %v2459
        %v3228 = vpack.c.b16 %v2492, %v2460
        %v3229 = vpack.c.b16 %v2493, %v2461
        %v3230 = vpack.c.b16 %v2494, %v2462
        %v3231 = vpack.c.b16 %v2495, %v2463
        %v3232 = vpack.c.b16 %v2496, %v2464
        %v3233 = vpack.c.b16 %v2497, %v2465
        %v3234 = vpack.c.b16 %v2498, %v2466
        %v3235 = vpack.c.b16 %v2499, %v2467
        %v3236 = vpack.c.b16 %v2500, %v2468
        %v3237 = vpack.c.b16 %v2501, %v2469
        %v3238 = vpack.c.b16 %v2502, %v2470
        %v3239 = vpack.c.b16 %v2503, %v2471
        %v3240 = vpack.c.b16 %v2504, %v2472
        %v3241 = vpack.c.b16 %v2505, %v2473
        %v3242 = vpack.c.b16 %v2506, %v2474
        %v3243 = vpack.c.b16 %v2507, %v2475
        %v3244 = vpack.c.b16 %v2508, %v2476
        %v3245 = vpack.c.b16 %v2509, %v2477
        %v3246 = vpack.c.b16 %v2510, %v2478
        %v3247 = vpack.c.b16 %v2511, %v2479
        %v3248 = vpack.c.b16 %v2512, %v2480
        %v3249 = vpack.c.b16 %v2513, %v2481
        %v3250 = vpack.c.b16 %v2514, %v2482
        %v3251 = vpack.c.b16 %v2515, %v2483
        %v3252 = vpack.c.b16 %v2516, %v2484
        %v3253 = vpack.c.b16 %v2517, %v2485
        %v3254 = vpack.c.b16 %v2518, %v2486
        %v3255 = vpack.c.b16 %v2551, %v2519
        %v3256 = vpack.c.b16 %v2552, %v2520
        %v3257 = vpack.c.b16 %v2553, %v2521
        %v3258 = vpack.c.b16 %v2554, %v2522
        %v3259 = vpack.c.b16 %v2555, %v2523
        %v3260 = vpack.c.b16 %v2556, %v2524
        %v3261 = vpack.c.b16 %v2557, %v2525
        %v3262 = vpack.c.b16 %v2558, %v2526
        %v3263 = vpack.c.b16 %v2559, %v2527
        %v3264 = vpack.c.b16 %v2560, %v2528
        %v3265 = vpack.c.b16 %v2561, %v2529
        %v3266 = vpack.c.b16 %v2562, %v2530
        %v3267 = vpack.c.b16 %v2563, %v2531
        %v3268 = vpack.c.b16 %v2564, %v2532
        %v3269 = vpack.c.b16 %v2565, %v2533
        %v3270 = vpack.c.b16 %v2566, %v2534
        %v3271 = vpack.c.b16 %v2567, %v2535
        %v3272 = vpack.c.b16 %v2568, %v2536
        %v3273 = vpack.c.b16 %v2569, %v2537
        %v3274 = vpack.c.b16 %v2570, %v2538
        %v3275 = vpack.c.b16 %v2571, %v2539
        %v3276 = vpack.c.b16 %v2572, %v2540
        %v3277 = vpack.c.b16 %v2573, %v2541
        %v3278 = vpack.c.b16 %v2574, %v2542
        %v3279 = vpack.c.b16 %v2575, %v2543
        %v3280 = vpack.c.b16 %v2576, %v2544
        %v3281 = vpack.c.b16 %v2577, %v2545
        %v3282 = vpack.c.b16 %v2578, %v2546
        %v3283 = vpack.c.b16 %v2579, %v2547
        %v3284 = vpack.c.b16 %v2580, %v2548
        %v3285 = vpack.c.b16 %v2581, %v2549
        %v3286 = vpack.c.b16 %v2582, %v2550
        %v3287 = vpack.c.b16 %v2615, %v2583
        %v3288 = vpack.c.b16 %v2616, %v2584
        %v3289 = vpack.c.b16 %v2617, %v2585
        %v3290 = vpack.c.b16 %v2618, %v2586
        %v3291 = vpack.c.b16 %v2619, %v2587
        %v3292 = vpack.c.b16 %v2620, %v2588
        %v3293 = vpack.c.b16 %v2621, %v2589
        %v3294 = vpack.c.b16 %v2622, %v2590
        %v3295 = vpack.c.b16 %v2623, %v2591
        %v3296 = vpack.c.b16 %v2624, %v2592
        %v3297 = vpack.c.b16 %v2625, %v2593
        %v3298 = vpack.c.b16 %v2626, %v2594
        %v3299 = vpack.c.b16 %v2627, %v2595
        %v3300 = vpack.c.b16 %v2628, %v2596
        %v3301 = vpack.c.b16 %v2629, %v2597
        %v3302 = vpack.c.b16 %v2630, %v2598
        %v3303 = vpack.c.b16 %v2631, %v2599
        %v3304 = vpack.c.b16 %v2632, %v2600
        %v3305 = vpack.c.b16 %v2633, %v2601
        %v3306 = vpack.c.b16 %v2634, %v2602
        %v3307 = vpack.c.b16 %v2635, %v2603
        %v3308 = vpack.c.b16 %v2636, %v2604
        %v3309 = vpack.c.b16 %v2637, %v2605
        %v3310 = vpack.c.b16 %v2638, %v2606
        %v3311 = vpack.c.b16 %v2639, %v2607
        %v3312 = vpack.c.b16 %v2640, %v2608
        %v3313 = vpack.c.b16 %v2641, %v2609
        %v3314 = vpack.c.b16 %v2642, %v2610
        %v3315 = vpack.c.b16 %v2643, %v2611
        %v3316 = vpack.c.b16 %v2644, %v2612
        %v3317 = vpack.c.b16 %v2645, %v2613
        %v3318 = vpack.c.b16 %v2646, %v2614
        %v3319 = vpack.c.b16 %v2679, %v2647
        %v3320 = vpack.c.b16 %v2680, %v2648
        %v3321 = vpack.c.b16 %v2681, %v2649
        %v3322 = vpack.c.b16 %v2682, %v2650
        %v3323 = vpack.c.b16 %v2683, %v2651
        %v3324 = vpack.c.b16 %v2684, %v2652
        %v3325 = vpack.c.b16 %v2685, %v2653
        %v3326 = vpack.c.b16 %v2686, %v2654
        %v3327 = vpack.c.b16 %v2687, %v2655
        %v3328 = vpack.c.b16 %v2688, %v2656
        %v3329 = vpack.c.b16 %v2689, %v2657
        %v3330 = vpack.c.b16 %v2690, %v2658
        %v3331 = vpack.c.b16 %v2691, %v2659
        %v3332 = vpack.c.b16 %v2692, %v2660
        %v3333 = vpack.c.b16 %v2693, %v2661
        %v3334 = vpack.c.b16 %v2694, %v2662
        %v3335 = vpack.c.b16 %v2695, %v2663
        %v3336 = vpack.c.b16 %v2696, %v2664
        %v3337 = vpack.c.b16 %v2697, %v2665
        %v3338 = vpack.c.b16 %v2698, %v2666
        %v3339 = vpack.c.b16 %v2699, %v2667
        %v3340 = vpack.c.b16 %v2700, %v2668
        %v3341 = vpack.c.b16 %v2701, %v2669
        %v3342 = vpack.c.b16 %v2702, %v2670
        %v3343 = vpack.c.b16 %v2703, %v2671
        %v3344 = vpack.c.b16 %v2704, %v2672
        %v3345 = vpack.c.b16 %v2705, %v2673
        %v3346 = vpack.c.b16 %v2706, %v2674
        %v3347 = vpack.c.b16 %v2707, %v2675
        %v3348 = vpack.c.b16 %v2708, %v2676
        %v3349 = vpack.c.b16 %v2709, %v2677
        %v3350 = vpack.c.b16 %v2710, %v2678
        %v3351 = vpack.c.b16 %v2743, %v2711
        %v3352 = vpack.c.b16 %v2744, %v2712
        %v3353 = vpack.c.b16 %v2745, %v2713
        %v3354 = vpack.c.b16 %v2746, %v2714
        %v3355 = vpack.c.b16 %v2747, %v2715
        %v3356 = vpack.c.b16 %v2748, %v2716
        %v3357 = vpack.c.b16 %v2749, %v2717
        %v3358 = vpack.c.b16 %v2750, %v2718
        %v3359 = vpack.c.b16 %v2751, %v2719
        %v3360 = vpack.c.b16 %v2752, %v2720
        %v3361 = vpack.c.b16 %v2753, %v2721
        %v3362 = vpack.c.b16 %v2754, %v2722
        %v3363 = vpack.c.b16 %v2755, %v2723
        %v3364 = vpack.c.b16 %v2756, %v2724
        %v3365 = vpack.c.b16 %v2757, %v2725
        %v3366 = vpack.c.b16 %v2758, %v2726
        %v3367 = vpack.c.b16 %v2759, %v2727
        %v3368 = vpack.c.b16 %v2760, %v2728
        %v3369 = vpack.c.b16 %v2761, %v2729
        %v3370 = vpack.c.b16 %v2762, %v2730
        %v3371 = vpack.c.b16 %v2763, %v2731
        %v3372 = vpack.c.b16 %v2764, %v2732
        %v3373 = vpack.c.b16 %v2765, %v2733
        %v3374 = vpack.c.b16 %v2766, %v2734
        %v3375 = vpack.c.b16 %v2767, %v2735
        %v3376 = vpack.c.b16 %v2768, %v2736
        %v3377 = vpack.c.b16 %v2769, %v2737
        %v3378 = vpack.c.b16 %v2770, %v2738
        %v3379 = vpack.c.b16 %v2771, %v2739
        %v3380 = vpack.c.b16 %v2772, %v2740
        %v3381 = vpack.c.b16 %v2773, %v2741
        %v3382 = vpack.c.b16 %v2774, %v2742
        %v3383 = vpack.c.b16 %v2807, %v2775
        %v3384 = vpack.c.b16 %v2808, %v2776
        %v3385 = vpack.c.b16 %v2809, %v2777
        %v3386 = vpack.c.b16 %v2810, %v2778
        %v3387 = vpack.c.b16 %v2811, %v2779
        %v3388 = vpack.c.b16 %v2812, %v2780
        %v3389 = vpack.c.b16 %v2813, %v2781
        %v3390 = vpack.c.b16 %v2814, %v2782
        %v3391 = vpack.c.b16 %v2815, %v2783
        %v3392 = vpack.c.b16 %v2816, %v2784
        %v3393 = vpack.c.b16 %v2817, %v2785
        %v3394 = vpack.c.b16 %v2818, %v2786
        %v3395 = vpack.c.b16 %v2819, %v2787
        %v3396 = vpack.c.b16 %v2820, %v2788
        %v3397 = vpack.c.b16 %v2821, %v2789
        %v3398 = vpack.c.b16 %v2822, %v2790
        %v3399 = vpack.c.b16 %v2823, %v2791
        %v3400 = vpack.c.b16 %v2824, %v2792
        %v3401 = vpack.c.b16 %v2825, %v2793
        %v3402 = vpack.c.b16 %v2826, %v2794
        %v3403 = vpack.c.b16 %v2827, %v2795
        %v3404 = vpack.c.b16 %v2828, %v2796
        %v3405 = vpack.c.b16 %v2829, %v2797
        %v3406 = vpack.c.b16 %v2830, %v2798
        %v3407 = vpack.c.b16 %v2831, %v2799
        %v3408 = vpack.c.b16 %v2832, %v2800
        %v3409 = vpack.c.b16 %v2833, %v2801
        %v3410 = vpack.c.b16 %v2834, %v2802
        %v3411 = vpack.c.b16 %v2835, %v2803
        %v3412 = vpack.c.b16 %v2836, %v2804
        %v3413 = vpack.c.b16 %v2837, %v2805
        %v3414 = vpack.c.b16 %v2838, %v2806
        %v3415 = vpack.c.b16 %v2871, %v2839
        %v3416 = vpack.c.b16 %v2872, %v2840
        %v3417 = vpack.c.b16 %v2873, %v2841
        %v3418 = vpack.c.b16 %v2874, %v2842
        %v3419 = vpack.c.b16 %v2875, %v2843
        %v3420 = vpack.c.b16 %v2876, %v2844
        %v3421 = vpack.c.b16 %v2877, %v2845
        %v3422 = vpack.c.b16 %v2878, %v2846
        %v3423 = vpack.c.b16 %v2879, %v2847
        %v3424 = vpack.c.b16 %v2880, %v2848
        %v3425 = vpack.c.b16 %v2881, %v2849
        %v3426 = vpack.c.b16 %v2882, %v2850
        %v3427 = vpack.c.b16 %v2883, %v2851
        %v3428 = vpack.c.b16 %v2884, %v2852
        %v3429 = vpack.c.b16 %v2885, %v2853
        %v3430 = vpack.c.b16 %v2886, %v2854
        %v3431 = vpack.c.b16 %v2887, %v2855
        %v3432 = vpack.c.b16 %v2888, %v2856
        %v3433 = vpack.c.b16 %v2889, %v2857
        %v3434 = vpack.c.b16 %v2890, %v2858
        %v3435 = vpack.c.b16 %v2891, %v2859
        %v3436 = vpack.c.b16 %v2892, %v2860
        %v3437 = vpack.c.b16 %v2893, %v2861
        %v3438 = vpack.c.b16 %v2894, %v2862
        %v3439 = vpack.c.b16 %v2895, %v2863
        %v3440 = vpack.c.b16 %v2896, %v2864
        %v3441 = vpack.c.b16 %v2897, %v2865
        %v3442 = vpack.c.b16 %v2898, %v2866
        %v3443 = vpack.c.b16 %v2899, %v2867
        %v3444 = vpack.c.b16 %v2900, %v2868
        %v3445 = vpack.c.b16 %v2901, %v2869
        %v3446 = vpack.c.b16 %v2902, %v2870
        %v3447 = vpack.c.b16 %v2935, %v2903
        %v3448 = vpack.c.b16 %v2936, %v2904
        %v3449 = vpack.c.b16 %v2937, %v2905
        %v3450 = vpack.c.b16 %v2938, %v2906
        %v3451 = vpack.c.b16 %v2939, %v2907
        %v3452 = vpack.c.b16 %v2940, %v2908
        %v3453 = vpack.c.b16 %v2941, %v2909
        %v3454 = vpack.c.b16 %v2942, %v2910
        %v3455 = vpack.c.b16 %v2943, %v2911
        %v3456 = vpack.c.b16 %v2944, %v2912
        %v3457 = vpack.c.b16 %v2945, %v2913
        %v3458 = vpack.c.b16 %v2946, %v2914
        %v3459 = vpack.c.b16 %v2947, %v2915
        %v3460 = vpack.c.b16 %v2948, %v2916
        %v3461 = vpack.c.b16 %v2949, %v2917
        %v3462 = vpack.c.b16 %v2950, %v2918
        %v3463 = vpack.c.b16 %v2951, %v2919
        %v3464 = vpack.c.b16 %v2952, %v2920
        %v3465 = vpack.c.b16 %v2953, %v2921
        %v3466 = vpack.c.b16 %v2954, %v2922
        %v3467 = vpack.c.b16 %v2955, %v2923
        %v3468 = vpack.c.b16 %v2956, %v2924
        %v3469 = vpack.c.b16 %v2957, %v2925
        %v3470 = vpack.c.b16 %v2958, %v2926
        %v3471 = vpack.c.b16 %v2959, %v2927
        %v3472 = vpack.c.b16 %v2960, %v2928
        %v3473 = vpack.c.b16 %v2961, %v2929
        %v3474 = vpack.c.b16 %v2962, %v2930
        %v3475 = vpack.c.b16 %v2963, %v2931
        %v3476 = vpack.c.b16 %v2964, %v2932
        %v3477 = vpack.c.b16 %v2965, %v2933
        %v3478 = vpack.c.b16 %v2966, %v2934
        %v4503 = vunpack.c.l.b16 %v919
        %v4504 = vunpack.c.l.b16 %v920
        %v4505 = vunpack.c.l.b16 %v921
        %v4506 = vunpack.c.l.b16 %v922
        %v4507 = vunpack.c.l.b16 %v923
        %v4508 = vunpack.c.l.b16 %v924
        %v4509 = vunpack.c.l.b16 %v925
        %v4510 = vunpack.c.l.b16 %v926
        %v4511 = vunpack.c.l.b16 %v927
        %v4512 = vunpack.c.l.b16 %v928
        %v4513 = vunpack.c.l.b16 %v929
        %v4514 = vunpack.c.l.b16 %v930
        %v4515 = vunpack.c.l.b16 %v931
        %v4516 = vunpack.c.l.b16 %v932
        %v4517 = vunpack.c.l.b16 %v933
        %v4518 = vunpack.c.l.b16 %v934
        %v4519 = vunpack.c.l.b16 %v935
        %v4520 = vunpack.c.l.b16 %v936
        %v4521 = vunpack.c.l.b16 %v937
        %v4522 = vunpack.c.l.b16 %v938
        %v4523 = vunpack.c.l.b16 %v939
        %v4524 = vunpack.c.l.b16 %v940
        %v4525 = vunpack.c.l.b16 %v941
        %v4526 = vunpack.c.l.b16 %v942
        %v4527 = vunpack.c.l.b16 %v943
        %v4528 = vunpack.c.l.b16 %v944
        %v4529 = vunpack.c.l.b16 %v945
        %v4530 = vunpack.c.l.b16 %v946
        %v4531 = vunpack.c.l.b16 %v947
        %v4532 = vunpack.c.l.b16 %v948
        %v4533 = vunpack.c.l.b16 %v949
        %v4534 = vunpack.c.l.b16 %v950
        %v4535 = vunpack.c.l.b16 %v951
        %v4536 = vunpack.c.l.b16 %v952
        %v4537 = vunpack.c.l.b16 %v953
        %v4538 = vunpack.c.l.b16 %v954
        %v4539 = vunpack.c.l.b16 %v955
        %v4540 = vunpack.c.l.b16 %v956
        %v4541 = vunpack.c.l.b16 %v957
        %v4542 = vunpack.c.l.b16 %v958
        %v4543 = vunpack.c.l.b16 %v959
        %v4544 = vunpack.c.l.b16 %v960
        %v4545 = vunpack.c.l.b16 %v961
        %v4546 = vunpack.c.l.b16 %v962
        %v4547 = vunpack.c.l.b16 %v963
        %v4548 = vunpack.c.l.b16 %v964
        %v4549 = vunpack.c.l.b16 %v965
        %v4550 = vunpack.c.l.b16 %v966
        %v4551 = vunpack.c.l.b16 %v967
        %v4552 = vunpack.c.l.b16 %v968
        %v4553 = vunpack.c.l.b16 %v969
        %v4554 = vunpack.c.l.b16 %v970
        %v4555 = vunpack.c.l.b16 %v971
        %v4556 = vunpack.c.l.b16 %v972
        %v4557 = vunpack.c.l.b16 %v973
        %v4558 = vunpack.c.l.b16 %v974
        %v4559 = vunpack.c.l.b16 %v975
        %v4560 = vunpack.c.l.b16 %v976
        %v4561 = vunpack.c.l.b16 %v977
        %v4562 = vunpack.c.l.b16 %v978
        %v4563 = vunpack.c.l.b16 %v979
        %v4564 = vunpack.c.l.b16 %v980
        %v4565 = vunpack.c.l.b16 %v981
        %v4566 = vunpack.c.l.b16 %v982
        %v4567 = vunpack.c.l.b16 %v983
        %v4568 = vunpack.c.l.b16 %v984
        %v4569 = vunpack.c.l.b16 %v985
        %v4570 = vunpack.c.l.b16 %v986
        %v4571 = vunpack.c.l.b16 %v987
        %v4572 = vunpack.c.l.b16 %v988
        %v4573 = vunpack.c.l.b16 %v989
        %v4574 = vunpack.c.l.b16 %v990
        %v4575 = vunpack.c.l.b16 %v991
        %v4576 = vunpack.c.l.b16 %v992
        %v4577 = vunpack.c.l.b16 %v993
        %v4578 = vunpack.c.l.b16 %v994
        %v4579 = vunpack.c.l.b16 %v995
        %v4580 = vunpack.c.l.b16 %v996
        %v4581 = vunpack.c.l.b16 %v997
        %v4582 = vunpack.c.l.b16 %v998
        %v4583 = vunpack.c.l.b16 %v999
        %v4584 = vunpack.c.l.b16 %v1000
        %v4585 = vunpack.c.l.b16 %v1001
        %v4586 = vunpack.c.l.b16 %v1002
        %v4587 = vunpack.c.l.b16 %v1003
        %v4588 = vunpack.c.l.b16 %v1004
        %v4589 = vunpack.c.l.b16 %v1005
        %v4590 = vunpack.c.l.b16 %v1006
        %v4591 = vunpack.c.l.b16 %v1007
        %v4592 = vunpack.c.l.b16 %v1008
        %v4593 = vunpack.c.l.b16 %v1009
        %v4594 = vunpack.c.l.b16 %v1010
        %v4595 = vunpack.c.l.b16 %v1011
        %v4596 = vunpack.c.l.b16 %v1012
        %v4597 = vunpack.c.l.b16 %v1013
        %v4598 = vunpack.c.l.b16 %v1014
        %v4599 = vunpack.c.l.b16 %v1015
        %v4600 = vunpack.c.l.b16 %v1016
        %v4601 = vunpack.c.l.b16 %v1017
        %v4602 = vunpack.c.l.b16 %v1018
        %v4603 = vunpack.c.l.b16 %v1019
        %v4604 = vunpack.c.l.b16 %v1020
        %v4605 = vunpack.c.l.b16 %v1021
        %v4606 = vunpack.c.l.b16 %v1022
        %v4607 = vunpack.c.l.b16 %v1023
        %v4608 = vunpack.c.l.b16 %v1024
        %v4609 = vunpack.c.l.b16 %v1025
        %v4610 = vunpack.c.l.b16 %v1026
        %v4611 = vunpack.c.l.b16 %v1027
        %v4612 = vunpack.c.l.b16 %v1028
        %v4613 = vunpack.c.l.b16 %v1029
        %v4614 = vunpack.c.l.b16 %v1030
        %v4615 = vunpack.c.l.b16 %v1031
        %v4616 = vunpack.c.l.b16 %v1032
        %v4617 = vunpack.c.l.b16 %v1033
        %v4618 = vunpack.c.l.b16 %v1034
        %v4619 = vunpack.c.l.b16 %v1035
        %v4620 = vunpack.c.l.b16 %v1036
        %v4621 = vunpack.c.l.b16 %v1037
        %v4622 = vunpack.c.l.b16 %v1038
        %v4623 = vunpack.c.l.b16 %v1039
        %v4624 = vunpack.c.l.b16 %v1040
        %v4625 = vunpack.c.l.b16 %v1041
        %v4626 = vunpack.c.l.b16 %v1042
        %v4627 = vunpack.c.l.b16 %v1043
        %v4628 = vunpack.c.l.b16 %v1044
        %v4629 = vunpack.c.l.b16 %v1045
        %v4630 = vunpack.c.l.b16 %v1046
        %v4631 = vunpack.c.l.b16 %v1047
        %v4632 = vunpack.c.l.b16 %v1048
        %v4633 = vunpack.c.l.b16 %v1049
        %v4634 = vunpack.c.l.b16 %v1050
        %v4635 = vunpack.c.l.b16 %v1051
        %v4636 = vunpack.c.l.b16 %v1052
        %v4637 = vunpack.c.l.b16 %v1053
        %v4638 = vunpack.c.l.b16 %v1054
        %v4639 = vunpack.c.l.b16 %v1055
        %v4640 = vunpack.c.l.b16 %v1056
        %v4641 = vunpack.c.l.b16 %v1057
        %v4642 = vunpack.c.l.b16 %v1058
        %v4643 = vunpack.c.l.b16 %v1059
        %v4644 = vunpack.c.l.b16 %v1060
        %v4645 = vunpack.c.l.b16 %v1061
        %v4646 = vunpack.c.l.b16 %v1062
        %v4647 = vunpack.c.l.b16 %v1063
        %v4648 = vunpack.c.l.b16 %v1064
        %v4649 = vunpack.c.l.b16 %v1065
        %v4650 = vunpack.c.l.b16 %v1066
        %v4651 = vunpack.c.l.b16 %v1067
        %v4652 = vunpack.c.l.b16 %v1068
        %v4653 = vunpack.c.l.b16 %v1069
        %v4654 = vunpack.c.l.b16 %v1070
        %v4655 = vunpack.c.l.b16 %v1071
        %v4656 = vunpack.c.l.b16 %v1072
        %v4657 = vunpack.c.l.b16 %v1073
        %v4658 = vunpack.c.l.b16 %v1074
        %v4659 = vunpack.c.l.b16 %v1075
        %v4660 = vunpack.c.l.b16 %v1076
        %v4661 = vunpack.c.l.b16 %v1077
        %v4662 = vunpack.c.l.b16 %v1078
        %v4663 = vunpack.c.l.b16 %v1079
        %v4664 = vunpack.c.l.b16 %v1080
        %v4665 = vunpack.c.l.b16 %v1081
        %v4666 = vunpack.c.l.b16 %v1082
        %v4667 = vunpack.c.l.b16 %v1083
        %v4668 = vunpack.c.l.b16 %v1084
        %v4669 = vunpack.c.l.b16 %v1085
        %v4670 = vunpack.c.l.b16 %v1086
        %v4671 = vunpack.c.l.b16 %v1087
        %v4672 = vunpack.c.l.b16 %v1088
        %v4673 = vunpack.c.l.b16 %v1089
        %v4674 = vunpack.c.l.b16 %v1090
        %v4675 = vunpack.c.l.b16 %v1091
        %v4676 = vunpack.c.l.b16 %v1092
        %v4677 = vunpack.c.l.b16 %v1093
        %v4678 = vunpack.c.l.b16 %v1094
        %v4679 = vunpack.c.l.b16 %v1095
        %v4680 = vunpack.c.l.b16 %v1096
        %v4681 = vunpack.c.l.b16 %v1097
        %v4682 = vunpack.c.l.b16 %v1098
        %v4683 = vunpack.c.l.b16 %v1099
        %v4684 = vunpack.c.l.b16 %v1100
        %v4685 = vunpack.c.l.b16 %v1101
        %v4686 = vunpack.c.l.b16 %v1102
        %v4687 = vunpack.c.l.b16 %v1103
        %v4688 = vunpack.c.l.b16 %v1104
        %v4689 = vunpack.c.l.b16 %v1105
        %v4690 = vunpack.c.l.b16 %v1106
        %v4691 = vunpack.c.l.b16 %v1107
        %v4692 = vunpack.c.l.b16 %v1108
        %v4693 = vunpack.c.l.b16 %v1109
        %v4694 = vunpack.c.l.b16 %v1110
        %v4695 = vunpack.c.l.b16 %v1111
        %v4696 = vunpack.c.l.b16 %v1112
        %v4697 = vunpack.c.l.b16 %v1113
        %v4698 = vunpack.c.l.b16 %v1114
        %v4699 = vunpack.c.l.b16 %v1115
        %v4700 = vunpack.c.l.b16 %v1116
        %v4701 = vunpack.c.l.b16 %v1117
        %v4702 = vunpack.c.l.b16 %v1118
        %v4703 = vunpack.c.l.b16 %v1119
        %v4704 = vunpack.c.l.b16 %v1120
        %v4705 = vunpack.c.l.b16 %v1121
        %v4706 = vunpack.c.l.b16 %v1122
        %v4707 = vunpack.c.l.b16 %v1123
        %v4708 = vunpack.c.l.b16 %v1124
        %v4709 = vunpack.c.l.b16 %v1125
        %v4710 = vunpack.c.l.b16 %v1126
        %v4711 = vunpack.c.l.b16 %v1127
        %v4712 = vunpack.c.l.b16 %v1128
        %v4713 = vunpack.c.l.b16 %v1129
        %v4714 = vunpack.c.l.b16 %v1130
        %v4715 = vunpack.c.l.b16 %v1131
        %v4716 = vunpack.c.l.b16 %v1132
        %v4717 = vunpack.c.l.b16 %v1133
        %v4718 = vunpack.c.l.b16 %v1134
        %v4719 = vunpack.c.l.b16 %v1135
        %v4720 = vunpack.c.l.b16 %v1136
        %v4721 = vunpack.c.l.b16 %v1137
        %v4722 = vunpack.c.l.b16 %v1138
        %v4723 = vunpack.c.l.b16 %v1139
        %v4724 = vunpack.c.l.b16 %v1140
        %v4725 = vunpack.c.l.b16 %v1141
        %v4726 = vunpack.c.l.b16 %v1142
        %v4727 = vunpack.c.l.b16 %v1143
        %v4728 = vunpack.c.l.b16 %v1144
        %v4729 = vunpack.c.l.b16 %v1145
        %v4730 = vunpack.c.l.b16 %v1146
        %v4731 = vunpack.c.l.b16 %v1147
        %v4732 = vunpack.c.l.b16 %v1148
        %v4733 = vunpack.c.l.b16 %v1149
        %v4734 = vunpack.c.l.b16 %v1150
        %v4735 = vunpack.c.l.b16 %v1151
        %v4736 = vunpack.c.l.b16 %v1152
        %v4737 = vunpack.c.l.b16 %v1153
        %v4738 = vunpack.c.l.b16 %v1154
        %v4739 = vunpack.c.l.b16 %v1155
        %v4740 = vunpack.c.l.b16 %v1156
        %v4741 = vunpack.c.l.b16 %v1157
        %v4742 = vunpack.c.l.b16 %v1158
        %v4743 = vunpack.c.l.b16 %v1159
        %v4744 = vunpack.c.l.b16 %v1160
        %v4745 = vunpack.c.l.b16 %v1161
        %v4746 = vunpack.c.l.b16 %v1162
        %v4747 = vunpack.c.l.b16 %v1163
        %v4748 = vunpack.c.l.b16 %v1164
        %v4749 = vunpack.c.l.b16 %v1165
        %v4750 = vunpack.c.l.b16 %v1166
        %v4751 = vunpack.c.l.b16 %v1167
        %v4752 = vunpack.c.l.b16 %v1168
        %v4753 = vunpack.c.l.b16 %v1169
        %v4754 = vunpack.c.l.b16 %v1170
        %v4755 = vunpack.c.l.b16 %v1171
        %v4756 = vunpack.c.l.b16 %v1172
        %v4757 = vunpack.c.l.b16 %v1173
        %v4758 = vunpack.c.l.b16 %v1174
        %v4759 = vunpack.c.l.b16 %v1175
        %v4760 = vunpack.c.l.b16 %v1176
        %v4761 = vunpack.c.l.b16 %v1177
        %v4762 = vunpack.c.l.b16 %v1178
        %v4763 = vunpack.c.l.b16 %v1179
        %v4764 = vunpack.c.l.b16 %v1180
        %v4765 = vunpack.c.l.b16 %v1181
        %v4766 = vunpack.c.l.b16 %v1182
        %v4767 = vunpack.c.l.b16 %v1183
        %v4768 = vunpack.c.l.b16 %v1184
        %v4769 = vunpack.c.l.b16 %v1185
        %v4770 = vunpack.c.l.b16 %v1186
        %v4771 = vunpack.c.l.b16 %v1187
        %v4772 = vunpack.c.l.b16 %v1188
        %v4773 = vunpack.c.l.b16 %v1189
        %v4774 = vunpack.c.l.b16 %v1190
        %v4775 = vunpack.c.l.b16 %v1191
        %v4776 = vunpack.c.l.b16 %v1192
        %v4777 = vunpack.c.l.b16 %v1193
        %v4778 = vunpack.c.l.b16 %v1194
        %v4779 = vunpack.c.l.b16 %v1195
        %v4780 = vunpack.c.l.b16 %v1196
        %v4781 = vunpack.c.l.b16 %v1197
        %v4782 = vunpack.c.l.b16 %v1198
        %v4783 = vunpack.c.l.b16 %v1199
        %v4784 = vunpack.c.l.b16 %v1200
        %v4785 = vunpack.c.l.b16 %v1201
        %v4786 = vunpack.c.l.b16 %v1202
        %v4787 = vunpack.c.l.b16 %v1203
        %v4788 = vunpack.c.l.b16 %v1204
        %v4789 = vunpack.c.l.b16 %v1205
        %v4790 = vunpack.c.l.b16 %v1206
        %v4791 = vunpack.c.l.b16 %v1207
        %v4792 = vunpack.c.l.b16 %v1208
        %v4793 = vunpack.c.l.b16 %v1209
        %v4794 = vunpack.c.l.b16 %v1210
        %v4795 = vunpack.c.l.b16 %v1211
        %v4796 = vunpack.c.l.b16 %v1212
        %v4797 = vunpack.c.l.b16 %v1213
        %v4798 = vunpack.c.l.b16 %v1214
        %v4799 = vunpack.c.l.b16 %v1215
        %v4800 = vunpack.c.l.b16 %v1216
        %v4801 = vunpack.c.l.b16 %v1217
        %v4802 = vunpack.c.l.b16 %v1218
        %v4803 = vunpack.c.l.b16 %v1219
        %v4804 = vunpack.c.l.b16 %v1220
        %v4805 = vunpack.c.l.b16 %v1221
        %v4806 = vunpack.c.l.b16 %v1222
        %v4807 = vunpack.c.l.b16 %v1223
        %v4808 = vunpack.c.l.b16 %v1224
        %v4809 = vunpack.c.l.b16 %v1225
        %v4810 = vunpack.c.l.b16 %v1226
        %v4811 = vunpack.c.l.b16 %v1227
        %v4812 = vunpack.c.l.b16 %v1228
        %v4813 = vunpack.c.l.b16 %v1229
        %v4814 = vunpack.c.l.b16 %v1230
        %v4815 = vunpack.c.l.b16 %v1231
        %v4816 = vunpack.c.l.b16 %v1232
        %v4817 = vunpack.c.l.b16 %v1233
        %v4818 = vunpack.c.l.b16 %v1234
        %v4819 = vunpack.c.l.b16 %v1235
        %v4820 = vunpack.c.l.b16 %v1236
        %v4821 = vunpack.c.l.b16 %v1237
        %v4822 = vunpack.c.l.b16 %v1238
        %v4823 = vunpack.c.l.b16 %v1239
        %v4824 = vunpack.c.l.b16 %v1240
        %v4825 = vunpack.c.l.b16 %v1241
        %v4826 = vunpack.c.l.b16 %v1242
        %v4827 = vunpack.c.l.b16 %v1243
        %v4828 = vunpack.c.l.b16 %v1244
        %v4829 = vunpack.c.l.b16 %v1245
        %v4830 = vunpack.c.l.b16 %v1246
        %v4831 = vunpack.c.l.b16 %v1247
        %v4832 = vunpack.c.l.b16 %v1248
        %v4833 = vunpack.c.l.b16 %v1249
        %v4834 = vunpack.c.l.b16 %v1250
        %v4835 = vunpack.c.l.b16 %v1251
        %v4836 = vunpack.c.l.b16 %v1252
        %v4837 = vunpack.c.l.b16 %v1253
        %v4838 = vunpack.c.l.b16 %v1254
        %v4839 = vunpack.c.l.b16 %v1255
        %v4840 = vunpack.c.l.b16 %v1256
        %v4841 = vunpack.c.l.b16 %v1257
        %v4842 = vunpack.c.l.b16 %v1258
        %v4843 = vunpack.c.l.b16 %v1259
        %v4844 = vunpack.c.l.b16 %v1260
        %v4845 = vunpack.c.l.b16 %v1261
        %v4846 = vunpack.c.l.b16 %v1262
        %v4847 = vunpack.c.l.b16 %v1263
        %v4848 = vunpack.c.l.b16 %v1264
        %v4849 = vunpack.c.l.b16 %v1265
        %v4850 = vunpack.c.l.b16 %v1266
        %v4851 = vunpack.c.l.b16 %v1267
        %v4852 = vunpack.c.l.b16 %v1268
        %v4853 = vunpack.c.l.b16 %v1269
        %v4854 = vunpack.c.l.b16 %v1270
        %v4855 = vunpack.c.l.b16 %v1271
        %v4856 = vunpack.c.l.b16 %v1272
        %v4857 = vunpack.c.l.b16 %v1273
        %v4858 = vunpack.c.l.b16 %v1274
        %v4859 = vunpack.c.l.b16 %v1275
        %v4860 = vunpack.c.l.b16 %v1276
        %v4861 = vunpack.c.l.b16 %v1277
        %v4862 = vunpack.c.l.b16 %v1278
        %v4863 = vunpack.c.l.b16 %v1279
        %v4864 = vunpack.c.l.b16 %v1280
        %v4865 = vunpack.c.l.b16 %v1281
        %v4866 = vunpack.c.l.b16 %v1282
        %v4867 = vunpack.c.l.b16 %v1283
        %v4868 = vunpack.c.l.b16 %v1284
        %v4869 = vunpack.c.l.b16 %v1285
        %v4870 = vunpack.c.l.b16 %v1286
        %v4871 = vunpack.c.l.b16 %v1287
        %v4872 = vunpack.c.l.b16 %v1288
        %v4873 = vunpack.c.l.b16 %v1289
        %v4874 = vunpack.c.l.b16 %v1290
        %v4875 = vunpack.c.l.b16 %v1291
        %v4876 = vunpack.c.l.b16 %v1292
        %v4877 = vunpack.c.l.b16 %v1293
        %v4878 = vunpack.c.l.b16 %v1294
        %v4879 = vunpack.c.l.b16 %v1295
        %v4880 = vunpack.c.l.b16 %v1296
        %v4881 = vunpack.c.l.b16 %v1297
        %v4882 = vunpack.c.l.b16 %v1298
        %v4883 = vunpack.c.l.b16 %v1299
        %v4884 = vunpack.c.l.b16 %v1300
        %v4885 = vunpack.c.l.b16 %v1301
        %v4886 = vunpack.c.l.b16 %v1302
        %v4887 = vunpack.c.l.b16 %v1303
        %v4888 = vunpack.c.l.b16 %v1304
        %v4889 = vunpack.c.l.b16 %v1305
        %v4890 = vunpack.c.l.b16 %v1306
        %v4891 = vunpack.c.l.b16 %v1307
        %v4892 = vunpack.c.l.b16 %v1308
        %v4893 = vunpack.c.l.b16 %v1309
        %v4894 = vunpack.c.l.b16 %v1310
        %v4895 = vunpack.c.l.b16 %v1311
        %v4896 = vunpack.c.l.b16 %v1312
        %v4897 = vunpack.c.l.b16 %v1313
        %v4898 = vunpack.c.l.b16 %v1314
        %v4899 = vunpack.c.l.b16 %v1315
        %v4900 = vunpack.c.l.b16 %v1316
        %v4901 = vunpack.c.l.b16 %v1317
        %v4902 = vunpack.c.l.b16 %v1318
        %v4903 = vunpack.c.l.b16 %v1319
        %v4904 = vunpack.c.l.b16 %v1320
        %v4905 = vunpack.c.l.b16 %v1321
        %v4906 = vunpack.c.l.b16 %v1322
        %v4907 = vunpack.c.l.b16 %v1323
        %v4908 = vunpack.c.l.b16 %v1324
        %v4909 = vunpack.c.l.b16 %v1325
        %v4910 = vunpack.c.l.b16 %v1326
        %v4911 = vunpack.c.l.b16 %v1327
        %v4912 = vunpack.c.l.b16 %v1328
        %v4913 = vunpack.c.l.b16 %v1329
        %v4914 = vunpack.c.l.b16 %v1330
        %v4915 = vunpack.c.l.b16 %v1331
        %v4916 = vunpack.c.l.b16 %v1332
        %v4917 = vunpack.c.l.b16 %v1333
        %v4918 = vunpack.c.l.b16 %v1334
        %v4919 = vunpack.c.l.b16 %v1335
        %v4920 = vunpack.c.l.b16 %v1336
        %v4921 = vunpack.c.l.b16 %v1337
        %v4922 = vunpack.c.l.b16 %v1338
        %v4923 = vunpack.c.l.b16 %v1339
        %v4924 = vunpack.c.l.b16 %v1340
        %v4925 = vunpack.c.l.b16 %v1341
        %v4926 = vunpack.c.l.b16 %v1342
        %v4927 = vunpack.c.l.b16 %v1343
        %v4928 = vunpack.c.l.b16 %v1344
        %v4929 = vunpack.c.l.b16 %v1345
        %v4930 = vunpack.c.l.b16 %v1346
        %v4931 = vunpack.c.l.b16 %v1347
        %v4932 = vunpack.c.l.b16 %v1348
        %v4933 = vunpack.c.l.b16 %v1349
        %v4934 = vunpack.c.l.b16 %v1350
        %v4935 = vunpack.c.l.b16 %v1351
        %v4936 = vunpack.c.l.b16 %v1352
        %v4937 = vunpack.c.l.b16 %v1353
        %v4938 = vunpack.c.l.b16 %v1354
        %v4939 = vunpack.c.l.b16 %v1355
        %v4940 = vunpack.c.l.b16 %v1356
        %v4941 = vunpack.c.l.b16 %v1357
        %v4942 = vunpack.c.l.b16 %v1358
        %v4943 = vunpack.c.l.b16 %v1359
        %v4944 = vunpack.c.l.b16 %v1360
        %v4945 = vunpack.c.l.b16 %v1361
        %v4946 = vunpack.c.l.b16 %v1362
        %v4947 = vunpack.c.l.b16 %v1363
        %v4948 = vunpack.c.l.b16 %v1364
        %v4949 = vunpack.c.l.b16 %v1365
        %v4950 = vunpack.c.l.b16 %v1366
        %v4951 = vunpack.c.l.b16 %v1367
        %v4952 = vunpack.c.l.b16 %v1368
        %v4953 = vunpack.c.l.b16 %v1369
        %v4954 = vunpack.c.l.b16 %v1370
        %v4955 = vunpack.c.l.b16 %v1371
        %v4956 = vunpack.c.l.b16 %v1372
        %v4957 = vunpack.c.l.b16 %v1373
        %v4958 = vunpack.c.l.b16 %v1374
        %v4959 = vunpack.c.l.b16 %v1375
        %v4960 = vunpack.c.l.b16 %v1376
        %v4961 = vunpack.c.l.b16 %v1377
        %v4962 = vunpack.c.l.b16 %v1378
        %v4963 = vunpack.c.l.b16 %v1379
        %v4964 = vunpack.c.l.b16 %v1380
        %v4965 = vunpack.c.l.b16 %v1381
        %v4966 = vunpack.c.l.b16 %v1382
        %v4967 = vunpack.c.l.b16 %v1383
        %v4968 = vunpack.c.l.b16 %v1384
        %v4969 = vunpack.c.l.b16 %v1385
        %v4970 = vunpack.c.l.b16 %v1386
        %v4971 = vunpack.c.l.b16 %v1387
        %v4972 = vunpack.c.l.b16 %v1388
        %v4973 = vunpack.c.l.b16 %v1389
        %v4974 = vunpack.c.l.b16 %v1390
        %v4975 = vunpack.c.l.b16 %v1391
        %v4976 = vunpack.c.l.b16 %v1392
        %v4977 = vunpack.c.l.b16 %v1393
        %v4978 = vunpack.c.l.b16 %v1394
        %v4979 = vunpack.c.l.b16 %v1395
        %v4980 = vunpack.c.l.b16 %v1396
        %v4981 = vunpack.c.l.b16 %v1397
        %v4982 = vunpack.c.l.b16 %v1398
        %v4983 = vunpack.c.l.b16 %v1399
        %v4984 = vunpack.c.l.b16 %v1400
        %v4985 = vunpack.c.l.b16 %v1401
        %v4986 = vunpack.c.l.b16 %v1402
        %v4987 = vunpack.c.l.b16 %v1403
        %v4988 = vunpack.c.l.b16 %v1404
        %v4989 = vunpack.c.l.b16 %v1405
        %v4990 = vunpack.c.l.b16 %v1406
        %v4991 = vunpack.c.l.b16 %v1407
        %v4992 = vunpack.c.l.b16 %v1408
        %v4993 = vunpack.c.l.b16 %v1409
        %v4994 = vunpack.c.l.b16 %v1410
        %v4995 = vunpack.c.l.b16 %v1411
        %v4996 = vunpack.c.l.b16 %v1412
        %v4997 = vunpack.c.l.b16 %v1413
        %v4998 = vunpack.c.l.b16 %v1414
        %v4999 = vunpack.c.l.b16 %v1415
        %v5000 = vunpack.c.l.b16 %v1416
        %v5001 = vunpack.c.l.b16 %v1417
        %v5002 = vunpack.c.l.b16 %v1418
        %v5003 = vunpack.c.l.b16 %v1419
        %v5004 = vunpack.c.l.b16 %v1420
        %v5005 = vunpack.c.l.b16 %v1421
        %v5006 = vunpack.c.l.b16 %v1422
        %v5007 = vunpack.c.l.b16 %v1423
        %v5008 = vunpack.c.l.b16 %v1424
        %v5009 = vunpack.c.l.b16 %v1425
        %v5010 = vunpack.c.l.b16 %v1426
        %v5011 = vunpack.c.l.b16 %v1427
        %v5012 = vunpack.c.l.b16 %v1428
        %v5013 = vunpack.c.l.b16 %v1429
        %v5014 = vunpack.c.l.b16 %v1430
        %v5015 = vpack.c.b16 %v4504, %v4503
        %v5016 = vpack.c.b16 %v4506, %v4505
        %v5017 = vpack.c.b16 %v4508, %v4507
        %v5018 = vpack.c.b16 %v4510, %v4509
        %v5019 = vpack.c.b16 %v4512, %v4511
        %v5020 = vpack.c.b16 %v4514, %v4513
        %v5021 = vpack.c.b16 %v4516, %v4515
        %v5022 = vpack.c.b16 %v4518, %v4517
        %v5023 = vpack.c.b16 %v4520, %v4519
        %v5024 = vpack.c.b16 %v4522, %v4521
        %v5025 = vpack.c.b16 %v4524, %v4523
        %v5026 = vpack.c.b16 %v4526, %v4525
        %v5027 = vpack.c.b16 %v4528, %v4527
        %v5028 = vpack.c.b16 %v4530, %v4529
        %v5029 = vpack.c.b16 %v4532, %v4531
        %v5030 = vpack.c.b16 %v4534, %v4533
        %v5031 = vpack.c.b16 %v4536, %v4535
        %v5032 = vpack.c.b16 %v4538, %v4537
        %v5033 = vpack.c.b16 %v4540, %v4539
        %v5034 = vpack.c.b16 %v4542, %v4541
        %v5035 = vpack.c.b16 %v4544, %v4543
        %v5036 = vpack.c.b16 %v4546, %v4545
        %v5037 = vpack.c.b16 %v4548, %v4547
        %v5038 = vpack.c.b16 %v4550, %v4549
        %v5039 = vpack.c.b16 %v4552, %v4551
        %v5040 = vpack.c.b16 %v4554, %v4553
        %v5041 = vpack.c.b16 %v4556, %v4555
        %v5042 = vpack.c.b16 %v4558, %v4557
        %v5043 = vpack.c.b16 %v4560, %v4559
        %v5044 = vpack.c.b16 %v4562, %v4561
        %v5045 = vpack.c.b16 %v4564, %v4563
        %v5046 = vpack.c.b16 %v4566, %v4565
        %v5047 = vpack.c.b16 %v4568, %v4567
        %v5048 = vpack.c.b16 %v4570, %v4569
        %v5049 = vpack.c.b16 %v4572, %v4571
        %v5050 = vpack.c.b16 %v4574, %v4573
        %v5051 = vpack.c.b16 %v4576, %v4575
        %v5052 = vpack.c.b16 %v4578, %v4577
        %v5053 = vpack.c.b16 %v4580, %v4579
        %v5054 = vpack.c.b16 %v4582, %v4581
        %v5055 = vpack.c.b16 %v4584, %v4583
        %v5056 = vpack.c.b16 %v4586, %v4585
        %v5057 = vpack.c.b16 %v4588, %v4587
        %v5058 = vpack.c.b16 %v4590, %v4589
        %v5059 = vpack.c.b16 %v4592, %v4591
        %v5060 = vpack.c.b16 %v4594, %v4593
        %v5061 = vpack.c.b16 %v4596, %v4595
        %v5062 = vpack.c.b16 %v4598, %v4597
        %v5063 = vpack.c.b16 %v4600, %v4599
        %v5064 = vpack.c.b16 %v4602, %v4601
        %v5065 = vpack.c.b16 %v4604, %v4603
        %v5066 = vpack.c.b16 %v4606, %v4605
        %v5067 = vpack.c.b16 %v4608, %v4607
        %v5068 = vpack.c.b16 %v4610, %v4609
        %v5069 = vpack.c.b16 %v4612, %v4611
        %v5070 = vpack.c.b16 %v4614, %v4613
        %v5071 = vpack.c.b16 %v4616, %v4615
        %v5072 = vpack.c.b16 %v4618, %v4617
        %v5073 = vpack.c.b16 %v4620, %v4619
        %v5074 = vpack.c.b16 %v4622, %v4621
        %v5075 = vpack.c.b16 %v4624, %v4623
        %v5076 = vpack.c.b16 %v4626, %v4625
        %v5077 = vpack.c.b16 %v4628, %v4627
        %v5078 = vpack.c.b16 %v4630, %v4629
        %v5079 = vpack.c.b16 %v4632, %v4631
        %v5080 = vpack.c.b16 %v4634, %v4633
        %v5081 = vpack.c.b16 %v4636, %v4635
        %v5082 = vpack.c.b16 %v4638, %v4637
        %v5083 = vpack.c.b16 %v4640, %v4639
        %v5084 = vpack.c.b16 %v4642, %v4641
        %v5085 = vpack.c.b16 %v4644, %v4643
        %v5086 = vpack.c.b16 %v4646, %v4645
        %v5087 = vpack.c.b16 %v4648, %v4647
        %v5088 = vpack.c.b16 %v4650, %v4649
        %v5089 = vpack.c.b16 %v4652, %v4651
        %v5090 = vpack.c.b16 %v4654, %v4653
        %v5091 = vpack.c.b16 %v4656, %v4655
        %v5092 = vpack.c.b16 %v4658, %v4657
        %v5093 = vpack.c.b16 %v4660, %v4659
        %v5094 = vpack.c.b16 %v4662, %v4661
        %v5095 = vpack.c.b16 %v4664, %v4663
        %v5096 = vpack.c.b16 %v4666, %v4665
        %v5097 = vpack.c.b16 %v4668, %v4667
        %v5098 = vpack.c.b16 %v4670, %v4669
        %v5099 = vpack.c.b16 %v4672, %v4671
        %v5100 = vpack.c.b16 %v4674, %v4673
        %v5101 = vpack.c.b16 %v4676, %v4675
        %v5102 = vpack.c.b16 %v4678, %v4677
        %v5103 = vpack.c.b16 %v4680, %v4679
        %v5104 = vpack.c.b16 %v4682, %v4681
        %v5105 = vpack.c.b16 %v4684, %v4683
        %v5106 = vpack.c.b16 %v4686, %v4685
        %v5107 = vpack.c.b16 %v4688, %v4687
        %v5108 = vpack.c.b16 %v4690, %v4689
        %v5109 = vpack.c.b16 %v4692, %v4691
        %v5110 = vpack.c.b16 %v4694, %v4693
        %v5111 = vpack.c.b16 %v4696, %v4695
        %v5112 = vpack.c.b16 %v4698, %v4697
        %v5113 = vpack.c.b16 %v4700, %v4699
        %v5114 = vpack.c.b16 %v4702, %v4701
        %v5115 = vpack.c.b16 %v4704, %v4703
        %v5116 = vpack.c.b16 %v4706, %v4705
        %v5117 = vpack.c.b16 %v4708, %v4707
        %v5118 = vpack.c.b16 %v4710, %v4709
        %v5119 = vpack.c.b16 %v4712, %v4711
        %v5120 = vpack.c.b16 %v4714, %v4713
        %v5121 = vpack.c.b16 %v4716, %v4715
        %v5122 = vpack.c.b16 %v4718, %v4717
        %v5123 = vpack.c.b16 %v4720, %v4719
        %v5124 = vpack.c.b16 %v4722, %v4721
        %v5125 = vpack.c.b16 %v4724, %v4723
        %v5126 = vpack.c.b16 %v4726, %v4725
        %v5127 = vpack.c.b16 %v4728, %v4727
        %v5128 = vpack.c.b16 %v4730, %v4729
        %v5129 = vpack.c.b16 %v4732, %v4731
        %v5130 = vpack.c.b16 %v4734, %v4733
        %v5131 = vpack.c.b16 %v4736, %v4735
        %v5132 = vpack.c.b16 %v4738, %v4737
        %v5133 = vpack.c.b16 %v4740, %v4739
        %v5134 = vpack.c.b16 %v4742, %v4741
        %v5135 = vpack.c.b16 %v4744, %v4743
        %v5136 = vpack.c.b16 %v4746, %v4745
        %v5137 = vpack.c.b16 %v4748, %v4747
        %v5138 = vpack.c.b16 %v4750, %v4749
        %v5139 = vpack.c.b16 %v4752, %v4751
        %v5140 = vpack.c.b16 %v4754, %v4753
        %v5141 = vpack.c.b16 %v4756, %v4755
        %v5142 = vpack.c.b16 %v4758, %v4757
        %v5143 = vpack.c.b16 %v4760, %v4759
        %v5144 = vpack.c.b16 %v4762, %v4761
        %v5145 = vpack.c.b16 %v4764, %v4763
        %v5146 = vpack.c.b16 %v4766, %v4765
        %v5147 = vpack.c.b16 %v4768, %v4767
        %v5148 = vpack.c.b16 %v4770, %v4769
        %v5149 = vpack.c.b16 %v4772, %v4771
        %v5150 = vpack.c.b16 %v4774, %v4773
        %v5151 = vpack.c.b16 %v4776, %v4775
        %v5152 = vpack.c.b16 %v4778, %v4777
        %v5153 = vpack.c.b16 %v4780, %v4779
        %v5154 = vpack.c.b16 %v4782, %v4781
        %v5155 = vpack.c.b16 %v4784, %v4783
        %v5156 = vpack.c.b16 %v4786, %v4785
        %v5157 = vpack.c.b16 %v4788, %v4787
        %v5158 = vpack.c.b16 %v4790, %v4789
        %v5159 = vpack.c.b16 %v4792, %v4791
        %v5160 = vpack.c.b16 %v4794, %v4793
        %v5161 = vpack.c.b16 %v4796, %v4795
        %v5162 = vpack.c.b16 %v4798, %v4797
        %v5163 = vpack.c.b16 %v4800, %v4799
        %v5164 = vpack.c.b16 %v4802, %v4801
        %v5165 = vpack.c.b16 %v4804, %v4803
        %v5166 = vpack.c.b16 %v4806, %v4805
        %v5167 = vpack.c.b16 %v4808, %v4807
        %v5168 = vpack.c.b16 %v4810, %v4809
        %v5169 = vpack.c.b16 %v4812, %v4811
        %v5170 = vpack.c.b16 %v4814, %v4813
        %v5171 = vpack.c.b16 %v4816, %v4815
        %v5172 = vpack.c.b16 %v4818, %v4817
        %v5173 = vpack.c.b16 %v4820, %v4819
        %v5174 = vpack.c.b16 %v4822, %v4821
        %v5175 = vpack.c.b16 %v4824, %v4823
        %v5176 = vpack.c.b16 %v4826, %v4825
        %v5177 = vpack.c.b16 %v4828, %v4827
        %v5178 = vpack.c.b16 %v4830, %v4829
        %v5179 = vpack.c.b16 %v4832, %v4831
        %v5180 = vpack.c.b16 %v4834, %v4833
        %v5181 = vpack.c.b16 %v4836, %v4835
        %v5182 = vpack.c.b16 %v4838, %v4837
        %v5183 = vpack.c.b16 %v4840, %v4839
        %v5184 = vpack.c.b16 %v4842, %v4841
        %v5185 = vpack.c.b16 %v4844, %v4843
        %v5186 = vpack.c.b16 %v4846, %v4845
        %v5187 = vpack.c.b16 %v4848, %v4847
        %v5188 = vpack.c.b16 %v4850, %v4849
        %v5189 = vpack.c.b16 %v4852, %v4851
        %v5190 = vpack.c.b16 %v4854, %v4853
        %v5191 = vpack.c.b16 %v4856, %v4855
        %v5192 = vpack.c.b16 %v4858, %v4857
        %v5193 = vpack.c.b16 %v4860, %v4859
        %v5194 = vpack.c.b16 %v4862, %v4861
        %v5195 = vpack.c.b16 %v4864, %v4863
        %v5196 = vpack.c.b16 %v4866, %v4865
        %v5197 = vpack.c.b16 %v4868, %v4867
        %v5198 = vpack.c.b16 %v4870, %v4869
        %v5199 = vpack.c.b16 %v4872, %v4871
        %v5200 = vpack.c.b16 %v4874, %v4873
        %v5201 = vpack.c.b16 %v4876, %v4875
        %v5202 = vpack.c.b16 %v4878, %v4877
        %v5203 = vpack.c.b16 %v4880, %v4879
        %v5204 = vpack.c.b16 %v4882, %v4881
        %v5205 = vpack.c.b16 %v4884, %v4883
        %v5206 = vpack.c.b16 %v4886, %v4885
        %v5207 = vpack.c.b16 %v4888, %v4887
        %v5208 = vpack.c.b16 %v4890, %v4889
        %v5209 = vpack.c.b16 %v4892, %v4891
        %v5210 = vpack.c.b16 %v4894, %v4893
        %v5211 = vpack.c.b16 %v4896, %v4895
        %v5212 = vpack.c.b16 %v4898, %v4897
        %v5213 = vpack.c.b16 %v4900, %v4899
        %v5214 = vpack.c.b16 %v4902, %v4901
        %v5215 = vpack.c.b16 %v4904, %v4903
        %v5216 = vpack.c.b16 %v4906, %v4905
        %v5217 = vpack.c.b16 %v4908, %v4907
        %v5218 = vpack.c.b16 %v4910, %v4909
        %v5219 = vpack.c.b16 %v4912, %v4911
        %v5220 = vpack.c.b16 %v4914, %v4913
        %v5221 = vpack.c.b16 %v4916, %v4915
        %v5222 = vpack.c.b16 %v4918, %v4917
        %v5223 = vpack.c.b16 %v4920, %v4919
        %v5224 = vpack.c.b16 %v4922, %v4921
        %v5225 = vpack.c.b16 %v4924, %v4923
        %v5226 = vpack.c.b16 %v4926, %v4925
        %v5227 = vpack.c.b16 %v4928, %v4927
        %v5228 = vpack.c.b16 %v4930, %v4929
        %v5229 = vpack.c.b16 %v4932, %v4931
        %v5230 = vpack.c.b16 %v4934, %v4933
        %v5231 = vpack.c.b16 %v4936, %v4935
        %v5232 = vpack.c.b16 %v4938, %v4937
        %v5233 = vpack.c.b16 %v4940, %v4939
        %v5234 = vpack.c.b16 %v4942, %v4941
        %v5235 = vpack.c.b16 %v4944, %v4943
        %v5236 = vpack.c.b16 %v4946, %v4945
        %v5237 = vpack.c.b16 %v4948, %v4947
        %v5238 = vpack.c.b16 %v4950, %v4949
        %v5239 = vpack.c.b16 %v4952, %v4951
        %v5240 = vpack.c.b16 %v4954, %v4953
        %v5241 = vpack.c.b16 %v4956, %v4955
        %v5242 = vpack.c.b16 %v4958, %v4957
        %v5243 = vpack.c.b16 %v4960, %v4959
        %v5244 = vpack.c.b16 %v4962, %v4961
        %v5245 = vpack.c.b16 %v4964, %v4963
        %v5246 = vpack.c.b16 %v4966, %v4965
        %v5247 = vpack.c.b16 %v4968, %v4967
        %v5248 = vpack.c.b16 %v4970, %v4969
        %v5249 = vpack.c.b16 %v4972, %v4971
        %v5250 = vpack.c.b16 %v4974, %v4973
        %v5251 = vpack.c.b16 %v4976, %v4975
        %v5252 = vpack.c.b16 %v4978, %v4977
        %v5253 = vpack.c.b16 %v4980, %v4979
        %v5254 = vpack.c.b16 %v4982, %v4981
        %v5255 = vpack.c.b16 %v4984, %v4983
        %v5256 = vpack.c.b16 %v4986, %v4985
        %v5257 = vpack.c.b16 %v4988, %v4987
        %v5258 = vpack.c.b16 %v4990, %v4989
        %v5259 = vpack.c.b16 %v4992, %v4991
        %v5260 = vpack.c.b16 %v4994, %v4993
        %v5261 = vpack.c.b16 %v4996, %v4995
        %v5262 = vpack.c.b16 %v4998, %v4997
        %v5263 = vpack.c.b16 %v5000, %v4999
        %v5264 = vpack.c.b16 %v5002, %v5001
        %v5265 = vpack.c.b16 %v5004, %v5003
        %v5266 = vpack.c.b16 %v5006, %v5005
        %v5267 = vpack.c.b16 %v5008, %v5007
        %v5268 = vpack.c.b16 %v5010, %v5009
        %v5269 = vpack.c.b16 %v5012, %v5011
        %v5270 = vpack.c.b16 %v5014, %v5013
        %5527 = vmatpush.bf16.msra.mxu0 %v5022
        %5528 = vmatpush.bf16.msra.mxu0 %v5021
        %5529 = vmatpush.bf16.msra.mxu0 %v5020
        %5530 = vmatpush.bf16.msra.mxu0 %v5019
        %5531 = vmatpush.bf16.msra.mxu0 %v5018
        %5532 = vmatpush.bf16.msra.mxu0 %v5017
        %5533 = vmatpush.bf16.msra.mxu0 %v5016
        %5534 = vmatpush.bf16.msra.mxu0 %v5015
        %5535 = vmatmul.bf16.gmra.mxu0 %v2967
        %v5536 = vpop.f32.mrf.mxu0
        %v5537 = vadd.f32 0.0, %v5536
        %v5538 = vpop.f32.mrf.mxu0
        %v5539 = vadd.f32 0.0, %v5538
        %5540 = vmatmul.bf16.gmra.mxu0 %v2999
        %v5541 = vpop.f32.mrf.mxu0
        %v5542 = vadd.f32 0.0, %v5541
        %v5543 = vpop.f32.mrf.mxu0
        %v5544 = vadd.f32 0.0, %v5543
        %5545 = vmatmul.bf16.gmra.mxu0 %v3031
        %v5546 = vpop.f32.mrf.mxu0
        %v5547 = vadd.f32 0.0, %v5546
        %v5548 = vpop.f32.mrf.mxu0
        %v5549 = vadd.f32 0.0, %v5548
        %5550 = vmatmul.bf16.gmra.mxu0 %v3063
        %v5551 = vpop.f32.mrf.mxu0
        %v5552 = vadd.f32 0.0, %v5551
        %v5553 = vpop.f32.mrf.mxu0
        %v5554 = vadd.f32 0.0, %v5553
        %5555 = vmatmul.bf16.gmra.mxu0 %v3095
        %v5556 = vpop.f32.mrf.mxu0
        %v5557 = vadd.f32 0.0, %v5556
        %v5558 = vpop.f32.mrf.mxu0
        %v5559 = vadd.f32 0.0, %v5558
        %5560 = vmatmul.bf16.gmra.mxu0 %v3127
        %v5561 = vpop.f32.mrf.mxu0
        %v5562 = vadd.f32 0.0, %v5561
        %v5563 = vpop.f32.mrf.mxu0
        %v5564 = vadd.f32 0.0, %v5563
        %5565 = vmatmul.bf16.gmra.mxu0 %v3159
        %v5566 = vpop.f32.mrf.mxu0
        %v5567 = vadd.f32 0.0, %v5566
        %v5568 = vpop.f32.mrf.mxu0
        %v5569 = vadd.f32 0.0, %v5568
        %5570 = vmatmul.bf16.gmra.mxu0 %v3191
        %v5571 = vpop.f32.mrf.mxu0
        %v5572 = vadd.f32 0.0, %v5571
        %v5573 = vpop.f32.mrf.mxu0
        %v5574 = vadd.f32 0.0, %v5573
        %5575 = vmatmul.bf16.gmra.mxu0 %v3223
        %v5576 = vpop.f32.mrf.mxu0
        %v5577 = vadd.f32 0.0, %v5576
        %v5578 = vpop.f32.mrf.mxu0
        %v5579 = vadd.f32 0.0, %v5578
        %5580 = vmatmul.bf16.gmra.mxu0 %v3255
        %v5581 = vpop.f32.mrf.mxu0
        %v5582 = vadd.f32 0.0, %v5581
        %v5583 = vpop.f32.mrf.mxu0
        %v5584 = vadd.f32 0.0, %v5583
        %5585 = vmatmul.bf16.gmra.mxu0 %v3287
        %v5586 = vpop.f32.mrf.mxu0
        %v5587 = vadd.f32 0.0, %v5586
        %v5588 = vpop.f32.mrf.mxu0
        %v5589 = vadd.f32 0.0, %v5588
        %5590 = vmatmul.bf16.gmra.mxu0 %v3319
        %v5591 = vpop.f32.mrf.mxu0
        %v5592 = vadd.f32 0.0, %v5591
        %v5593 = vpop.f32.mrf.mxu0
        %v5594 = vadd.f32 0.0, %v5593
        %5595 = vmatmul.bf16.gmra.mxu0 %v3351
        %v5596 = vpop.f32.mrf.mxu0
        %v5597 = vadd.f32 0.0, %v5596
        %v5598 = vpop.f32.mrf.mxu0
        %v5599 = vadd.f32 0.0, %v5598
        %5600 = vmatmul.bf16.gmra.mxu0 %v3383
        %v5601 = vpop.f32.mrf.mxu0
        %v5602 = vadd.f32 0.0, %v5601
        %v5603 = vpop.f32.mrf.mxu0
        %v5604 = vadd.f32 0.0, %v5603
        %5605 = vmatmul.bf16.gmra.mxu0 %v3415
        %v5606 = vpop.f32.mrf.mxu0
        %v5607 = vadd.f32 0.0, %v5606
        %v5608 = vpop.f32.mrf.mxu0
        %v5609 = vadd.f32 0.0, %v5608
        %5610 = vmatmul.bf16.gmra.mxu0 %v3447
        %v5611 = vpop.f32.mrf.mxu0
        %v5612 = vadd.f32 0.0, %v5611
        %v5613 = vpop.f32.mrf.mxu0
        %v5614 = vadd.f32 0.0, %v5613
        %5615 = vdwg.mxu0
        %5616 = vmatpush.bf16.msra.mxu0 %v5030
        %5617 = vmatpush.bf16.msra.mxu0 %v5029
        %5618 = vmatpush.bf16.msra.mxu0 %v5028
        %5619 = vmatpush.bf16.msra.mxu0 %v5027
        %5620 = vmatpush.bf16.msra.mxu0 %v5026
        %5621 = vmatpush.bf16.msra.mxu0 %v5025
        %5622 = vmatpush.bf16.msra.mxu0 %v5024
        %5623 = vmatpush.bf16.msra.mxu0 %v5023
        %5624 = vmatmul.bf16.gmra.mxu0 %v2968
        %v5625 = vpop.f32.mrf.mxu0
        %v5626 = vadd.f32 %v5537, %v5625
        %v5627 = vpop.f32.mrf.mxu0
        %v5628 = vadd.f32 %v5539, %v5627
        %5629 = vmatmul.bf16.gmra.mxu0 %v3000
        %v5630 = vpop.f32.mrf.mxu0
        %v5631 = vadd.f32 %v5542, %v5630
        %v5632 = vpop.f32.mrf.mxu0
        %v5633 = vadd.f32 %v5544, %v5632
        %5634 = vmatmul.bf16.gmra.mxu0 %v3032
        %v5635 = vpop.f32.mrf.mxu0
        %v5636 = vadd.f32 %v5547, %v5635
        %v5637 = vpop.f32.mrf.mxu0
        %v5638 = vadd.f32 %v5549, %v5637
        %5639 = vmatmul.bf16.gmra.mxu0 %v3064
        %v5640 = vpop.f32.mrf.mxu0
        %v5641 = vadd.f32 %v5552, %v5640
        %v5642 = vpop.f32.mrf.mxu0
        %v5643 = vadd.f32 %v5554, %v5642
        %5644 = vmatmul.bf16.gmra.mxu0 %v3096
        %v5645 = vpop.f32.mrf.mxu0
        %v5646 = vadd.f32 %v5557, %v5645
        %v5647 = vpop.f32.mrf.mxu0
        %v5648 = vadd.f32 %v5559, %v5647
        %5649 = vmatmul.bf16.gmra.mxu0 %v3128
        %v5650 = vpop.f32.mrf.mxu0
        %v5651 = vadd.f32 %v5562, %v5650
        %v5652 = vpop.f32.mrf.mxu0
        %v5653 = vadd.f32 %v5564, %v5652
        %5654 = vmatmul.bf16.gmra.mxu0 %v3160
        %v5655 = vpop.f32.mrf.mxu0
        %v5656 = vadd.f32 %v5567, %v5655
        %v5657 = vpop.f32.mrf.mxu0
        %v5658 = vadd.f32 %v5569, %v5657
        %5659 = vmatmul.bf16.gmra.mxu0 %v3192
        %v5660 = vpop.f32.mrf.mxu0
        %v5661 = vadd.f32 %v5572, %v5660
        %v5662 = vpop.f32.mrf.mxu0
        %v5663 = vadd.f32 %v5574, %v5662
        %5664 = vmatmul.bf16.gmra.mxu0 %v3224
        %v5665 = vpop.f32.mrf.mxu0
        %v5666 = vadd.f32 %v5577, %v5665
        %v5667 = vpop.f32.mrf.mxu0
        %v5668 = vadd.f32 %v5579, %v5667
        %5669 = vmatmul.bf16.gmra.mxu0 %v3256
        %v5670 = vpop.f32.mrf.mxu0
        %v5671 = vadd.f32 %v5582, %v5670
        %v5672 = vpop.f32.mrf.mxu0
        %v5673 = vadd.f32 %v5584, %v5672
        %5674 = vmatmul.bf16.gmra.mxu0 %v3288
        %v5675 = vpop.f32.mrf.mxu0
        %v5676 = vadd.f32 %v5587, %v5675
        %v5677 = vpop.f32.mrf.mxu0
        %v5678 = vadd.f32 %v5589, %v5677
        %5679 = vmatmul.bf16.gmra.mxu0 %v3320
        %v5680 = vpop.f32.mrf.mxu0
        %v5681 = vadd.f32 %v5592, %v5680
        %v5682 = vpop.f32.mrf.mxu0
        %v5683 = vadd.f32 %v5594, %v5682
        %5684 = vmatmul.bf16.gmra.mxu0 %v3352
        %v5685 = vpop.f32.mrf.mxu0
        %v5686 = vadd.f32 %v5597, %v5685
        %v5687 = vpop.f32.mrf.mxu0
        %v5688 = vadd.f32 %v5599, %v5687
        %5689 = vmatmul.bf16.gmra.mxu0 %v3384
        %v5690 = vpop.f32.mrf.mxu0
        %v5691 = vadd.f32 %v5602, %v5690
        %v5692 = vpop.f32.mrf.mxu0
        %v5693 = vadd.f32 %v5604, %v5692
        %5694 = vmatmul.bf16.gmra.mxu0 %v3416
        %v5695 = vpop.f32.mrf.mxu0
        %v5696 = vadd.f32 %v5607, %v5695
        %v5697 = vpop.f32.mrf.mxu0
        %v5698 = vadd.f32 %v5609, %v5697
        %5699 = vmatmul.bf16.gmra.mxu0 %v3448
        %v5700 = vpop.f32.mrf.mxu0
        %v5701 = vadd.f32 %v5612, %v5700
        %v5702 = vpop.f32.mrf.mxu0
        %v5703 = vadd.f32 %v5614, %v5702
        %5704 = vdwg.mxu0
        %5705 = vmatpush.bf16.msra.mxu0 %v5038
        %5706 = vmatpush.bf16.msra.mxu0 %v5037
        %5707 = vmatpush.bf16.msra.mxu0 %v5036
        %5708 = vmatpush.bf16.msra.mxu0 %v5035
        %5709 = vmatpush.bf16.msra.mxu0 %v5034
        %5710 = vmatpush.bf16.msra.mxu0 %v5033
        %5711 = vmatpush.bf16.msra.mxu0 %v5032
        %5712 = vmatpush.bf16.msra.mxu0 %v5031
        %5713 = vmatmul.bf16.gmra.mxu0 %v2969
        %v5714 = vpop.f32.mrf.mxu0
        %v5715 = vadd.f32 %v5626, %v5714
        %v5716 = vpop.f32.mrf.mxu0
        %v5717 = vadd.f32 %v5628, %v5716
        %5718 = vmatmul.bf16.gmra.mxu0 %v3001
        %v5719 = vpop.f32.mrf.mxu0
        %v5720 = vadd.f32 %v5631, %v5719
        %v5721 = vpop.f32.mrf.mxu0
        %v5722 = vadd.f32 %v5633, %v5721
        %5723 = vmatmul.bf16.gmra.mxu0 %v3033
        %v5724 = vpop.f32.mrf.mxu0
        %v5725 = vadd.f32 %v5636, %v5724
        %v5726 = vpop.f32.mrf.mxu0
        %v5727 = vadd.f32 %v5638, %v5726
        %5728 = vmatmul.bf16.gmra.mxu0 %v3065
        %v5729 = vpop.f32.mrf.mxu0
        %v5730 = vadd.f32 %v5641, %v5729
        %v5731 = vpop.f32.mrf.mxu0
        %v5732 = vadd.f32 %v5643, %v5731
        %5733 = vmatmul.bf16.gmra.mxu0 %v3097
        %v5734 = vpop.f32.mrf.mxu0
        %v5735 = vadd.f32 %v5646, %v5734
        %v5736 = vpop.f32.mrf.mxu0
        %v5737 = vadd.f32 %v5648, %v5736
        %5738 = vmatmul.bf16.gmra.mxu0 %v3129
        %v5739 = vpop.f32.mrf.mxu0
        %v5740 = vadd.f32 %v5651, %v5739
        %v5741 = vpop.f32.mrf.mxu0
        %v5742 = vadd.f32 %v5653, %v5741
        %5743 = vmatmul.bf16.gmra.mxu0 %v3161
        %v5744 = vpop.f32.mrf.mxu0
        %v5745 = vadd.f32 %v5656, %v5744
        %v5746 = vpop.f32.mrf.mxu0
        %v5747 = vadd.f32 %v5658, %v5746
        %5748 = vmatmul.bf16.gmra.mxu0 %v3193
        %v5749 = vpop.f32.mrf.mxu0
        %v5750 = vadd.f32 %v5661, %v5749
        %v5751 = vpop.f32.mrf.mxu0
        %v5752 = vadd.f32 %v5663, %v5751
        %5753 = vmatmul.bf16.gmra.mxu0 %v3225
        %v5754 = vpop.f32.mrf.mxu0
        %v5755 = vadd.f32 %v5666, %v5754
        %v5756 = vpop.f32.mrf.mxu0
        %v5757 = vadd.f32 %v5668, %v5756
        %5758 = vmatmul.bf16.gmra.mxu0 %v3257
        %v5759 = vpop.f32.mrf.mxu0
        %v5760 = vadd.f32 %v5671, %v5759
        %v5761 = vpop.f32.mrf.mxu0
        %v5762 = vadd.f32 %v5673, %v5761
        %5763 = vmatmul.bf16.gmra.mxu0 %v3289
        %v5764 = vpop.f32.mrf.mxu0
        %v5765 = vadd.f32 %v5676, %v5764
        %v5766 = vpop.f32.mrf.mxu0
        %v5767 = vadd.f32 %v5678, %v5766
        %5768 = vmatmul.bf16.gmra.mxu0 %v3321
        %v5769 = vpop.f32.mrf.mxu0
        %v5770 = vadd.f32 %v5681, %v5769
        %v5771 = vpop.f32.mrf.mxu0
        %v5772 = vadd.f32 %v5683, %v5771
        %5773 = vmatmul.bf16.gmra.mxu0 %v3353
        %v5774 = vpop.f32.mrf.mxu0
        %v5775 = vadd.f32 %v5686, %v5774
        %v5776 = vpop.f32.mrf.mxu0
        %v5777 = vadd.f32 %v5688, %v5776
        %5778 = vmatmul.bf16.gmra.mxu0 %v3385
        %v5779 = vpop.f32.mrf.mxu0
        %v5780 = vadd.f32 %v5691, %v5779
        %v5781 = vpop.f32.mrf.mxu0
        %v5782 = vadd.f32 %v5693, %v5781
        %5783 = vmatmul.bf16.gmra.mxu0 %v3417
        %v5784 = vpop.f32.mrf.mxu0
        %v5785 = vadd.f32 %v5696, %v5784
        %v5786 = vpop.f32.mrf.mxu0
        %v5787 = vadd.f32 %v5698, %v5786
        %5788 = vmatmul.bf16.gmra.mxu0 %v3449
        %v5789 = vpop.f32.mrf.mxu0
        %v5790 = vadd.f32 %v5701, %v5789
        %v5791 = vpop.f32.mrf.mxu0
        %v5792 = vadd.f32 %v5703, %v5791
        %5793 = vdwg.mxu0
        %5794 = vmatpush.bf16.msra.mxu0 %v5046
        %5795 = vmatpush.bf16.msra.mxu0 %v5045
        %5796 = vmatpush.bf16.msra.mxu0 %v5044
        %5797 = vmatpush.bf16.msra.mxu0 %v5043
        %5798 = vmatpush.bf16.msra.mxu0 %v5042
        %5799 = vmatpush.bf16.msra.mxu0 %v5041
        %5800 = vmatpush.bf16.msra.mxu0 %v5040
        %5801 = vmatpush.bf16.msra.mxu0 %v5039
        %5802 = vmatmul.bf16.gmra.mxu0 %v2970
        %v5803 = vpop.f32.mrf.mxu0
        %v5804 = vadd.f32 %v5715, %v5803
        %v5805 = vpop.f32.mrf.mxu0
        %v5806 = vadd.f32 %v5717, %v5805
        %5807 = vmatmul.bf16.gmra.mxu0 %v3002
        %v5808 = vpop.f32.mrf.mxu0
        %v5809 = vadd.f32 %v5720, %v5808
        %v5810 = vpop.f32.mrf.mxu0
        %v5811 = vadd.f32 %v5722, %v5810
        %5812 = vmatmul.bf16.gmra.mxu0 %v3034
        %v5813 = vpop.f32.mrf.mxu0
        %v5814 = vadd.f32 %v5725, %v5813
        %v5815 = vpop.f32.mrf.mxu0
        %v5816 = vadd.f32 %v5727, %v5815
        %5817 = vmatmul.bf16.gmra.mxu0 %v3066
        %v5818 = vpop.f32.mrf.mxu0
        %v5819 = vadd.f32 %v5730, %v5818
        %v5820 = vpop.f32.mrf.mxu0
        %v5821 = vadd.f32 %v5732, %v5820
        %5822 = vmatmul.bf16.gmra.mxu0 %v3098
        %v5823 = vpop.f32.mrf.mxu0
        %v5824 = vadd.f32 %v5735, %v5823
        %v5825 = vpop.f32.mrf.mxu0
        %v5826 = vadd.f32 %v5737, %v5825
        %5827 = vmatmul.bf16.gmra.mxu0 %v3130
        %v5828 = vpop.f32.mrf.mxu0
        %v5829 = vadd.f32 %v5740, %v5828
        %v5830 = vpop.f32.mrf.mxu0
        %v5831 = vadd.f32 %v5742, %v5830
        %5832 = vmatmul.bf16.gmra.mxu0 %v3162
        %v5833 = vpop.f32.mrf.mxu0
        %v5834 = vadd.f32 %v5745, %v5833
        %v5835 = vpop.f32.mrf.mxu0
        %v5836 = vadd.f32 %v5747, %v5835
        %5837 = vmatmul.bf16.gmra.mxu0 %v3194
        %v5838 = vpop.f32.mrf.mxu0
        %v5839 = vadd.f32 %v5750, %v5838
        %v5840 = vpop.f32.mrf.mxu0
        %v5841 = vadd.f32 %v5752, %v5840
        %5842 = vmatmul.bf16.gmra.mxu0 %v3226
        %v5843 = vpop.f32.mrf.mxu0
        %v5844 = vadd.f32 %v5755, %v5843
        %v5845 = vpop.f32.mrf.mxu0
        %v5846 = vadd.f32 %v5757, %v5845
        %5847 = vmatmul.bf16.gmra.mxu0 %v3258
        %v5848 = vpop.f32.mrf.mxu0
        %v5849 = vadd.f32 %v5760, %v5848
        %v5850 = vpop.f32.mrf.mxu0
        %v5851 = vadd.f32 %v5762, %v5850
        %5852 = vmatmul.bf16.gmra.mxu0 %v3290
        %v5853 = vpop.f32.mrf.mxu0
        %v5854 = vadd.f32 %v5765, %v5853
        %v5855 = vpop.f32.mrf.mxu0
        %v5856 = vadd.f32 %v5767, %v5855
        %5857 = vmatmul.bf16.gmra.mxu0 %v3322
        %v5858 = vpop.f32.mrf.mxu0
        %v5859 = vadd.f32 %v5770, %v5858
        %v5860 = vpop.f32.mrf.mxu0
        %v5861 = vadd.f32 %v5772, %v5860
        %5862 = vmatmul.bf16.gmra.mxu0 %v3354
        %v5863 = vpop.f32.mrf.mxu0
        %v5864 = vadd.f32 %v5775, %v5863
        %v5865 = vpop.f32.mrf.mxu0
        %v5866 = vadd.f32 %v5777, %v5865
        %5867 = vmatmul.bf16.gmra.mxu0 %v3386
        %v5868 = vpop.f32.mrf.mxu0
        %v5869 = vadd.f32 %v5780, %v5868
        %v5870 = vpop.f32.mrf.mxu0
        %v5871 = vadd.f32 %v5782, %v5870
        %5872 = vmatmul.bf16.gmra.mxu0 %v3418
        %v5873 = vpop.f32.mrf.mxu0
        %v5874 = vadd.f32 %v5785, %v5873
        %v5875 = vpop.f32.mrf.mxu0
        %v5876 = vadd.f32 %v5787, %v5875
        %5877 = vmatmul.bf16.gmra.mxu0 %v3450
        %v5878 = vpop.f32.mrf.mxu0
        %v5879 = vadd.f32 %v5790, %v5878
        %v5880 = vpop.f32.mrf.mxu0
        %v5881 = vadd.f32 %v5792, %v5880
        %5882 = vdwg.mxu0
        %5883 = vmatpush.bf16.msra.mxu0 %v5054
        %5884 = vmatpush.bf16.msra.mxu0 %v5053
        %5885 = vmatpush.bf16.msra.mxu0 %v5052
        %5886 = vmatpush.bf16.msra.mxu0 %v5051
        %5887 = vmatpush.bf16.msra.mxu0 %v5050
        %5888 = vmatpush.bf16.msra.mxu0 %v5049
        %5889 = vmatpush.bf16.msra.mxu0 %v5048
        %5890 = vmatpush.bf16.msra.mxu0 %v5047
        %5891 = vmatmul.bf16.gmra.mxu0 %v2971
        %v5892 = vpop.f32.mrf.mxu0
        %v5893 = vadd.f32 %v5804, %v5892
        %v5894 = vpop.f32.mrf.mxu0
        %v5895 = vadd.f32 %v5806, %v5894
        %5896 = vmatmul.bf16.gmra.mxu0 %v3003
        %v5897 = vpop.f32.mrf.mxu0
        %v5898 = vadd.f32 %v5809, %v5897
        %v5899 = vpop.f32.mrf.mxu0
        %v5900 = vadd.f32 %v5811, %v5899
        %5901 = vmatmul.bf16.gmra.mxu0 %v3035
        %v5902 = vpop.f32.mrf.mxu0
        %v5903 = vadd.f32 %v5814, %v5902
        %v5904 = vpop.f32.mrf.mxu0
        %v5905 = vadd.f32 %v5816, %v5904
        %5906 = vmatmul.bf16.gmra.mxu0 %v3067
        %v5907 = vpop.f32.mrf.mxu0
        %v5908 = vadd.f32 %v5819, %v5907
        %v5909 = vpop.f32.mrf.mxu0
        %v5910 = vadd.f32 %v5821, %v5909
        %5911 = vmatmul.bf16.gmra.mxu0 %v3099
        %v5912 = vpop.f32.mrf.mxu0
        %v5913 = vadd.f32 %v5824, %v5912
        %v5914 = vpop.f32.mrf.mxu0
        %v5915 = vadd.f32 %v5826, %v5914
        %5916 = vmatmul.bf16.gmra.mxu0 %v3131
        %v5917 = vpop.f32.mrf.mxu0
        %v5918 = vadd.f32 %v5829, %v5917
        %v5919 = vpop.f32.mrf.mxu0
        %v5920 = vadd.f32 %v5831, %v5919
        %5921 = vmatmul.bf16.gmra.mxu0 %v3163
        %v5922 = vpop.f32.mrf.mxu0
        %v5923 = vadd.f32 %v5834, %v5922
        %v5924 = vpop.f32.mrf.mxu0
        %v5925 = vadd.f32 %v5836, %v5924
        %5926 = vmatmul.bf16.gmra.mxu0 %v3195
        %v5927 = vpop.f32.mrf.mxu0
        %v5928 = vadd.f32 %v5839, %v5927
        %v5929 = vpop.f32.mrf.mxu0
        %v5930 = vadd.f32 %v5841, %v5929
        %5931 = vmatmul.bf16.gmra.mxu0 %v3227
        %v5932 = vpop.f32.mrf.mxu0
        %v5933 = vadd.f32 %v5844, %v5932
        %v5934 = vpop.f32.mrf.mxu0
        %v5935 = vadd.f32 %v5846, %v5934
        %5936 = vmatmul.bf16.gmra.mxu0 %v3259
        %v5937 = vpop.f32.mrf.mxu0
        %v5938 = vadd.f32 %v5849, %v5937
        %v5939 = vpop.f32.mrf.mxu0
        %v5940 = vadd.f32 %v5851, %v5939
        %5941 = vmatmul.bf16.gmra.mxu0 %v3291
        %v5942 = vpop.f32.mrf.mxu0
        %v5943 = vadd.f32 %v5854, %v5942
        %v5944 = vpop.f32.mrf.mxu0
        %v5945 = vadd.f32 %v5856, %v5944
        %5946 = vmatmul.bf16.gmra.mxu0 %v3323
        %v5947 = vpop.f32.mrf.mxu0
        %v5948 = vadd.f32 %v5859, %v5947
        %v5949 = vpop.f32.mrf.mxu0
        %v5950 = vadd.f32 %v5861, %v5949
        %5951 = vmatmul.bf16.gmra.mxu0 %v3355
        %v5952 = vpop.f32.mrf.mxu0
        %v5953 = vadd.f32 %v5864, %v5952
        %v5954 = vpop.f32.mrf.mxu0
        %v5955 = vadd.f32 %v5866, %v5954
        %5956 = vmatmul.bf16.gmra.mxu0 %v3387
        %v5957 = vpop.f32.mrf.mxu0
        %v5958 = vadd.f32 %v5869, %v5957
        %v5959 = vpop.f32.mrf.mxu0
        %v5960 = vadd.f32 %v5871, %v5959
        %5961 = vmatmul.bf16.gmra.mxu0 %v3419
        %v5962 = vpop.f32.mrf.mxu0
        %v5963 = vadd.f32 %v5874, %v5962
        %v5964 = vpop.f32.mrf.mxu0
        %v5965 = vadd.f32 %v5876, %v5964
        %5966 = vmatmul.bf16.gmra.mxu0 %v3451
        %v5967 = vpop.f32.mrf.mxu0
        %v5968 = vadd.f32 %v5879, %v5967
        %v5969 = vpop.f32.mrf.mxu0
        %v5970 = vadd.f32 %v5881, %v5969
        %5971 = vdwg.mxu0
        %5972 = vmatpush.bf16.msra.mxu0 %v5062
        %5973 = vmatpush.bf16.msra.mxu0 %v5061
        %5974 = vmatpush.bf16.msra.mxu0 %v5060
        %5975 = vmatpush.bf16.msra.mxu0 %v5059
        %5976 = vmatpush.bf16.msra.mxu0 %v5058
        %5977 = vmatpush.bf16.msra.mxu0 %v5057
        %5978 = vmatpush.bf16.msra.mxu0 %v5056
        %5979 = vmatpush.bf16.msra.mxu0 %v5055
        %5980 = vmatmul.bf16.gmra.mxu0 %v2972
        %v5981 = vpop.f32.mrf.mxu0
        %v5982 = vadd.f32 %v5893, %v5981
        %v5983 = vpop.f32.mrf.mxu0
        %v5984 = vadd.f32 %v5895, %v5983
        %5985 = vmatmul.bf16.gmra.mxu0 %v3004
        %v5986 = vpop.f32.mrf.mxu0
        %v5987 = vadd.f32 %v5898, %v5986
        %v5988 = vpop.f32.mrf.mxu0
        %v5989 = vadd.f32 %v5900, %v5988
        %5990 = vmatmul.bf16.gmra.mxu0 %v3036
        %v5991 = vpop.f32.mrf.mxu0
        %v5992 = vadd.f32 %v5903, %v5991
        %v5993 = vpop.f32.mrf.mxu0
        %v5994 = vadd.f32 %v5905, %v5993
        %5995 = vmatmul.bf16.gmra.mxu0 %v3068
        %v5996 = vpop.f32.mrf.mxu0
        %v5997 = vadd.f32 %v5908, %v5996
        %v5998 = vpop.f32.mrf.mxu0
        %v5999 = vadd.f32 %v5910, %v5998
        %6000 = vmatmul.bf16.gmra.mxu0 %v3100
        %v6001 = vpop.f32.mrf.mxu0
        %v6002 = vadd.f32 %v5913, %v6001
        %v6003 = vpop.f32.mrf.mxu0
        %v6004 = vadd.f32 %v5915, %v6003
        %6005 = vmatmul.bf16.gmra.mxu0 %v3132
        %v6006 = vpop.f32.mrf.mxu0
        %v6007 = vadd.f32 %v5918, %v6006
        %v6008 = vpop.f32.mrf.mxu0
        %v6009 = vadd.f32 %v5920, %v6008
        %6010 = vmatmul.bf16.gmra.mxu0 %v3164
        %v6011 = vpop.f32.mrf.mxu0
        %v6012 = vadd.f32 %v5923, %v6011
        %v6013 = vpop.f32.mrf.mxu0
        %v6014 = vadd.f32 %v5925, %v6013
        %6015 = vmatmul.bf16.gmra.mxu0 %v3196
        %v6016 = vpop.f32.mrf.mxu0
        %v6017 = vadd.f32 %v5928, %v6016
        %v6018 = vpop.f32.mrf.mxu0
        %v6019 = vadd.f32 %v5930, %v6018
        %6020 = vmatmul.bf16.gmra.mxu0 %v3228
        %v6021 = vpop.f32.mrf.mxu0
        %v6022 = vadd.f32 %v5933, %v6021
        %v6023 = vpop.f32.mrf.mxu0
        %v6024 = vadd.f32 %v5935, %v6023
        %6025 = vmatmul.bf16.gmra.mxu0 %v3260
        %v6026 = vpop.f32.mrf.mxu0
        %v6027 = vadd.f32 %v5938, %v6026
        %v6028 = vpop.f32.mrf.mxu0
        %v6029 = vadd.f32 %v5940, %v6028
        %6030 = vmatmul.bf16.gmra.mxu0 %v3292
        %v6031 = vpop.f32.mrf.mxu0
        %v6032 = vadd.f32 %v5943, %v6031
        %v6033 = vpop.f32.mrf.mxu0
        %v6034 = vadd.f32 %v5945, %v6033
        %6035 = vmatmul.bf16.gmra.mxu0 %v3324
        %v6036 = vpop.f32.mrf.mxu0
        %v6037 = vadd.f32 %v5948, %v6036
        %v6038 = vpop.f32.mrf.mxu0
        %v6039 = vadd.f32 %v5950, %v6038
        %6040 = vmatmul.bf16.gmra.mxu0 %v3356
        %v6041 = vpop.f32.mrf.mxu0
        %v6042 = vadd.f32 %v5953, %v6041
        %v6043 = vpop.f32.mrf.mxu0
        %v6044 = vadd.f32 %v5955, %v6043
        %6045 = vmatmul.bf16.gmra.mxu0 %v3388
        %v6046 = vpop.f32.mrf.mxu0
        %v6047 = vadd.f32 %v5958, %v6046
        %v6048 = vpop.f32.mrf.mxu0
        %v6049 = vadd.f32 %v5960, %v6048
        %6050 = vmatmul.bf16.gmra.mxu0 %v3420
        %v6051 = vpop.f32.mrf.mxu0
        %v6052 = vadd.f32 %v5963, %v6051
        %v6053 = vpop.f32.mrf.mxu0
        %v6054 = vadd.f32 %v5965, %v6053
        %6055 = vmatmul.bf16.gmra.mxu0 %v3452
        %v6056 = vpop.f32.mrf.mxu0
        %v6057 = vadd.f32 %v5968, %v6056
        %v6058 = vpop.f32.mrf.mxu0
        %v6059 = vadd.f32 %v5970, %v6058
        %6060 = vdwg.mxu0
        %6061 = vmatpush.bf16.msra.mxu0 %v5070
        %6062 = vmatpush.bf16.msra.mxu0 %v5069
        %6063 = vmatpush.bf16.msra.mxu0 %v5068
        %6064 = vmatpush.bf16.msra.mxu0 %v5067
        %6065 = vmatpush.bf16.msra.mxu0 %v5066
        %6066 = vmatpush.bf16.msra.mxu0 %v5065
        %6067 = vmatpush.bf16.msra.mxu0 %v5064
        %6068 = vmatpush.bf16.msra.mxu0 %v5063
        %6069 = vmatmul.bf16.gmra.mxu0 %v2973
        %v6070 = vpop.f32.mrf.mxu0
        %v6071 = vadd.f32 %v5982, %v6070
        %v6072 = vpop.f32.mrf.mxu0
        %v6073 = vadd.f32 %v5984, %v6072
        %6074 = vmatmul.bf16.gmra.mxu0 %v3005
        %v6075 = vpop.f32.mrf.mxu0
        %v6076 = vadd.f32 %v5987, %v6075
        %v6077 = vpop.f32.mrf.mxu0
        %v6078 = vadd.f32 %v5989, %v6077
        %6079 = vmatmul.bf16.gmra.mxu0 %v3037
        %v6080 = vpop.f32.mrf.mxu0
        %v6081 = vadd.f32 %v5992, %v6080
        %v6082 = vpop.f32.mrf.mxu0
        %v6083 = vadd.f32 %v5994, %v6082
        %6084 = vmatmul.bf16.gmra.mxu0 %v3069
        %v6085 = vpop.f32.mrf.mxu0
        %v6086 = vadd.f32 %v5997, %v6085
        %v6087 = vpop.f32.mrf.mxu0
        %v6088 = vadd.f32 %v5999, %v6087
        %6089 = vmatmul.bf16.gmra.mxu0 %v3101
        %v6090 = vpop.f32.mrf.mxu0
        %v6091 = vadd.f32 %v6002, %v6090
        %v6092 = vpop.f32.mrf.mxu0
        %v6093 = vadd.f32 %v6004, %v6092
        %6094 = vmatmul.bf16.gmra.mxu0 %v3133
        %v6095 = vpop.f32.mrf.mxu0
        %v6096 = vadd.f32 %v6007, %v6095
        %v6097 = vpop.f32.mrf.mxu0
        %v6098 = vadd.f32 %v6009, %v6097
        %6099 = vmatmul.bf16.gmra.mxu0 %v3165
        %v6100 = vpop.f32.mrf.mxu0
        %v6101 = vadd.f32 %v6012, %v6100
        %v6102 = vpop.f32.mrf.mxu0
        %v6103 = vadd.f32 %v6014, %v6102
        %6104 = vmatmul.bf16.gmra.mxu0 %v3197
        %v6105 = vpop.f32.mrf.mxu0
        %v6106 = vadd.f32 %v6017, %v6105
        %v6107 = vpop.f32.mrf.mxu0
        %v6108 = vadd.f32 %v6019, %v6107
        %6109 = vmatmul.bf16.gmra.mxu0 %v3229
        %v6110 = vpop.f32.mrf.mxu0
        %v6111 = vadd.f32 %v6022, %v6110
        %v6112 = vpop.f32.mrf.mxu0
        %v6113 = vadd.f32 %v6024, %v6112
        %6114 = vmatmul.bf16.gmra.mxu0 %v3261
        %v6115 = vpop.f32.mrf.mxu0
        %v6116 = vadd.f32 %v6027, %v6115
        %v6117 = vpop.f32.mrf.mxu0
        %v6118 = vadd.f32 %v6029, %v6117
        %6119 = vmatmul.bf16.gmra.mxu0 %v3293
        %v6120 = vpop.f32.mrf.mxu0
        %v6121 = vadd.f32 %v6032, %v6120
        %v6122 = vpop.f32.mrf.mxu0
        %v6123 = vadd.f32 %v6034, %v6122
        %6124 = vmatmul.bf16.gmra.mxu0 %v3325
        %v6125 = vpop.f32.mrf.mxu0
        %v6126 = vadd.f32 %v6037, %v6125
        %v6127 = vpop.f32.mrf.mxu0
        %v6128 = vadd.f32 %v6039, %v6127
        %6129 = vmatmul.bf16.gmra.mxu0 %v3357
        %v6130 = vpop.f32.mrf.mxu0
        %v6131 = vadd.f32 %v6042, %v6130
        %v6132 = vpop.f32.mrf.mxu0
        %v6133 = vadd.f32 %v6044, %v6132
        %6134 = vmatmul.bf16.gmra.mxu0 %v3389
        %v6135 = vpop.f32.mrf.mxu0
        %v6136 = vadd.f32 %v6047, %v6135
        %v6137 = vpop.f32.mrf.mxu0
        %v6138 = vadd.f32 %v6049, %v6137
        %6139 = vmatmul.bf16.gmra.mxu0 %v3421
        %v6140 = vpop.f32.mrf.mxu0
        %v6141 = vadd.f32 %v6052, %v6140
        %v6142 = vpop.f32.mrf.mxu0
        %v6143 = vadd.f32 %v6054, %v6142
        %6144 = vmatmul.bf16.gmra.mxu0 %v3453
        %v6145 = vpop.f32.mrf.mxu0
        %v6146 = vadd.f32 %v6057, %v6145
        %v6147 = vpop.f32.mrf.mxu0
        %v6148 = vadd.f32 %v6059, %v6147
        %6149 = vdwg.mxu0
        %6150 = vmatpush.bf16.msra.mxu0 %v5078
        %6151 = vmatpush.bf16.msra.mxu0 %v5077
        %6152 = vmatpush.bf16.msra.mxu0 %v5076
        %6153 = vmatpush.bf16.msra.mxu0 %v5075
        %6154 = vmatpush.bf16.msra.mxu0 %v5074
        %6155 = vmatpush.bf16.msra.mxu0 %v5073
        %6156 = vmatpush.bf16.msra.mxu0 %v5072
        %6157 = vmatpush.bf16.msra.mxu0 %v5071
        %6158 = vmatmul.bf16.gmra.mxu0 %v2974
        %v6159 = vpop.f32.mrf.mxu0
        %v6160 = vadd.f32 %v6071, %v6159
        %v6161 = vpop.f32.mrf.mxu0
        %v6162 = vadd.f32 %v6073, %v6161
        %6163 = vmatmul.bf16.gmra.mxu0 %v3006
        %v6164 = vpop.f32.mrf.mxu0
        %v6165 = vadd.f32 %v6076, %v6164
        %v6166 = vpop.f32.mrf.mxu0
        %v6167 = vadd.f32 %v6078, %v6166
        %6168 = vmatmul.bf16.gmra.mxu0 %v3038
        %v6169 = vpop.f32.mrf.mxu0
        %v6170 = vadd.f32 %v6081, %v6169
        %v6171 = vpop.f32.mrf.mxu0
        %v6172 = vadd.f32 %v6083, %v6171
        %6173 = vmatmul.bf16.gmra.mxu0 %v3070
        %v6174 = vpop.f32.mrf.mxu0
        %v6175 = vadd.f32 %v6086, %v6174
        %v6176 = vpop.f32.mrf.mxu0
        %v6177 = vadd.f32 %v6088, %v6176
        %6178 = vmatmul.bf16.gmra.mxu0 %v3102
        %v6179 = vpop.f32.mrf.mxu0
        %v6180 = vadd.f32 %v6091, %v6179
        %v6181 = vpop.f32.mrf.mxu0
        %v6182 = vadd.f32 %v6093, %v6181
        %6183 = vmatmul.bf16.gmra.mxu0 %v3134
        %v6184 = vpop.f32.mrf.mxu0
        %v6185 = vadd.f32 %v6096, %v6184
        %v6186 = vpop.f32.mrf.mxu0
        %v6187 = vadd.f32 %v6098, %v6186
        %6188 = vmatmul.bf16.gmra.mxu0 %v3166
        %v6189 = vpop.f32.mrf.mxu0
        %v6190 = vadd.f32 %v6101, %v6189
        %v6191 = vpop.f32.mrf.mxu0
        %v6192 = vadd.f32 %v6103, %v6191
        %6193 = vmatmul.bf16.gmra.mxu0 %v3198
        %v6194 = vpop.f32.mrf.mxu0
        %v6195 = vadd.f32 %v6106, %v6194
        %v6196 = vpop.f32.mrf.mxu0
        %v6197 = vadd.f32 %v6108, %v6196
        %6198 = vmatmul.bf16.gmra.mxu0 %v3230
        %v6199 = vpop.f32.mrf.mxu0
        %v6200 = vadd.f32 %v6111, %v6199
        %v6201 = vpop.f32.mrf.mxu0
        %v6202 = vadd.f32 %v6113, %v6201
        %6203 = vmatmul.bf16.gmra.mxu0 %v3262
        %v6204 = vpop.f32.mrf.mxu0
        %v6205 = vadd.f32 %v6116, %v6204
        %v6206 = vpop.f32.mrf.mxu0
        %v6207 = vadd.f32 %v6118, %v6206
        %6208 = vmatmul.bf16.gmra.mxu0 %v3294
        %v6209 = vpop.f32.mrf.mxu0
        %v6210 = vadd.f32 %v6121, %v6209
        %v6211 = vpop.f32.mrf.mxu0
        %v6212 = vadd.f32 %v6123, %v6211
        %6213 = vmatmul.bf16.gmra.mxu0 %v3326
        %v6214 = vpop.f32.mrf.mxu0
        %v6215 = vadd.f32 %v6126, %v6214
        %v6216 = vpop.f32.mrf.mxu0
        %v6217 = vadd.f32 %v6128, %v6216
        %6218 = vmatmul.bf16.gmra.mxu0 %v3358
        %v6219 = vpop.f32.mrf.mxu0
        %v6220 = vadd.f32 %v6131, %v6219
        %v6221 = vpop.f32.mrf.mxu0
        %v6222 = vadd.f32 %v6133, %v6221
        %6223 = vmatmul.bf16.gmra.mxu0 %v3390
        %v6224 = vpop.f32.mrf.mxu0
        %v6225 = vadd.f32 %v6136, %v6224
        %v6226 = vpop.f32.mrf.mxu0
        %v6227 = vadd.f32 %v6138, %v6226
        %6228 = vmatmul.bf16.gmra.mxu0 %v3422
        %v6229 = vpop.f32.mrf.mxu0
        %v6230 = vadd.f32 %v6141, %v6229
        %v6231 = vpop.f32.mrf.mxu0
        %v6232 = vadd.f32 %v6143, %v6231
        %6233 = vmatmul.bf16.gmra.mxu0 %v3454
        %v6234 = vpop.f32.mrf.mxu0
        %v6235 = vadd.f32 %v6146, %v6234
        %v6236 = vpop.f32.mrf.mxu0
        %v6237 = vadd.f32 %v6148, %v6236
        %6238 = vdwg.mxu0
        %6239 = vmatpush.bf16.msra.mxu0 %v5086
        %6240 = vmatpush.bf16.msra.mxu0 %v5085
        %6241 = vmatpush.bf16.msra.mxu0 %v5084
        %6242 = vmatpush.bf16.msra.mxu0 %v5083
        %6243 = vmatpush.bf16.msra.mxu0 %v5082
        %6244 = vmatpush.bf16.msra.mxu0 %v5081
        %6245 = vmatpush.bf16.msra.mxu0 %v5080
        %6246 = vmatpush.bf16.msra.mxu0 %v5079
        %6247 = vmatmul.bf16.gmra.mxu0 %v2975
        %v6248 = vpop.f32.mrf.mxu0
        %v6249 = vadd.f32 %v6160, %v6248
        %v6250 = vpop.f32.mrf.mxu0
        %v6251 = vadd.f32 %v6162, %v6250
        %6252 = vmatmul.bf16.gmra.mxu0 %v3007
        %v6253 = vpop.f32.mrf.mxu0
        %v6254 = vadd.f32 %v6165, %v6253
        %v6255 = vpop.f32.mrf.mxu0
        %v6256 = vadd.f32 %v6167, %v6255
        %6257 = vmatmul.bf16.gmra.mxu0 %v3039
        %v6258 = vpop.f32.mrf.mxu0
        %v6259 = vadd.f32 %v6170, %v6258
        %v6260 = vpop.f32.mrf.mxu0
        %v6261 = vadd.f32 %v6172, %v6260
        %6262 = vmatmul.bf16.gmra.mxu0 %v3071
        %v6263 = vpop.f32.mrf.mxu0
        %v6264 = vadd.f32 %v6175, %v6263
        %v6265 = vpop.f32.mrf.mxu0
        %v6266 = vadd.f32 %v6177, %v6265
        %6267 = vmatmul.bf16.gmra.mxu0 %v3103
        %v6268 = vpop.f32.mrf.mxu0
        %v6269 = vadd.f32 %v6180, %v6268
        %v6270 = vpop.f32.mrf.mxu0
        %v6271 = vadd.f32 %v6182, %v6270
        %6272 = vmatmul.bf16.gmra.mxu0 %v3135
        %v6273 = vpop.f32.mrf.mxu0
        %v6274 = vadd.f32 %v6185, %v6273
        %v6275 = vpop.f32.mrf.mxu0
        %v6276 = vadd.f32 %v6187, %v6275
        %6277 = vmatmul.bf16.gmra.mxu0 %v3167
        %v6278 = vpop.f32.mrf.mxu0
        %v6279 = vadd.f32 %v6190, %v6278
        %v6280 = vpop.f32.mrf.mxu0
        %v6281 = vadd.f32 %v6192, %v6280
        %6282 = vmatmul.bf16.gmra.mxu0 %v3199
        %v6283 = vpop.f32.mrf.mxu0
        %v6284 = vadd.f32 %v6195, %v6283
        %v6285 = vpop.f32.mrf.mxu0
        %v6286 = vadd.f32 %v6197, %v6285
        %6287 = vmatmul.bf16.gmra.mxu0 %v3231
        %v6288 = vpop.f32.mrf.mxu0
        %v6289 = vadd.f32 %v6200, %v6288
        %v6290 = vpop.f32.mrf.mxu0
        %v6291 = vadd.f32 %v6202, %v6290
        %6292 = vmatmul.bf16.gmra.mxu0 %v3263
        %v6293 = vpop.f32.mrf.mxu0
        %v6294 = vadd.f32 %v6205, %v6293
        %v6295 = vpop.f32.mrf.mxu0
        %v6296 = vadd.f32 %v6207, %v6295
        %6297 = vmatmul.bf16.gmra.mxu0 %v3295
        %v6298 = vpop.f32.mrf.mxu0
        %v6299 = vadd.f32 %v6210, %v6298
        %v6300 = vpop.f32.mrf.mxu0
        %v6301 = vadd.f32 %v6212, %v6300
        %6302 = vmatmul.bf16.gmra.mxu0 %v3327
        %v6303 = vpop.f32.mrf.mxu0
        %v6304 = vadd.f32 %v6215, %v6303
        %v6305 = vpop.f32.mrf.mxu0
        %v6306 = vadd.f32 %v6217, %v6305
        %6307 = vmatmul.bf16.gmra.mxu0 %v3359
        %v6308 = vpop.f32.mrf.mxu0
        %v6309 = vadd.f32 %v6220, %v6308
        %v6310 = vpop.f32.mrf.mxu0
        %v6311 = vadd.f32 %v6222, %v6310
        %6312 = vmatmul.bf16.gmra.mxu0 %v3391
        %v6313 = vpop.f32.mrf.mxu0
        %v6314 = vadd.f32 %v6225, %v6313
        %v6315 = vpop.f32.mrf.mxu0
        %v6316 = vadd.f32 %v6227, %v6315
        %6317 = vmatmul.bf16.gmra.mxu0 %v3423
        %v6318 = vpop.f32.mrf.mxu0
        %v6319 = vadd.f32 %v6230, %v6318
        %v6320 = vpop.f32.mrf.mxu0
        %v6321 = vadd.f32 %v6232, %v6320
        %6322 = vmatmul.bf16.gmra.mxu0 %v3455
        %v6323 = vpop.f32.mrf.mxu0
        %v6324 = vadd.f32 %v6235, %v6323
        %v6325 = vpop.f32.mrf.mxu0
        %v6326 = vadd.f32 %v6237, %v6325
        %6327 = vdwg.mxu0
        %6328 = vmatpush.bf16.msra.mxu0 %v5094
        %6329 = vmatpush.bf16.msra.mxu0 %v5093
        %6330 = vmatpush.bf16.msra.mxu0 %v5092
        %6331 = vmatpush.bf16.msra.mxu0 %v5091
        %6332 = vmatpush.bf16.msra.mxu0 %v5090
        %6333 = vmatpush.bf16.msra.mxu0 %v5089
        %6334 = vmatpush.bf16.msra.mxu0 %v5088
        %6335 = vmatpush.bf16.msra.mxu0 %v5087
        %6336 = vmatmul.bf16.gmra.mxu0 %v2976
        %v6337 = vpop.f32.mrf.mxu0
        %v6338 = vadd.f32 %v6249, %v6337
        %v6339 = vpop.f32.mrf.mxu0
        %v6340 = vadd.f32 %v6251, %v6339
        %6341 = vmatmul.bf16.gmra.mxu0 %v3008
        %v6342 = vpop.f32.mrf.mxu0
        %v6343 = vadd.f32 %v6254, %v6342
        %v6344 = vpop.f32.mrf.mxu0
        %v6345 = vadd.f32 %v6256, %v6344
        %6346 = vmatmul.bf16.gmra.mxu0 %v3040
        %v6347 = vpop.f32.mrf.mxu0
        %v6348 = vadd.f32 %v6259, %v6347
        %v6349 = vpop.f32.mrf.mxu0
        %v6350 = vadd.f32 %v6261, %v6349
        %6351 = vmatmul.bf16.gmra.mxu0 %v3072
        %v6352 = vpop.f32.mrf.mxu0
        %v6353 = vadd.f32 %v6264, %v6352
        %v6354 = vpop.f32.mrf.mxu0
        %v6355 = vadd.f32 %v6266, %v6354
        %6356 = vmatmul.bf16.gmra.mxu0 %v3104
        %v6357 = vpop.f32.mrf.mxu0
        %v6358 = vadd.f32 %v6269, %v6357
        %v6359 = vpop.f32.mrf.mxu0
        %v6360 = vadd.f32 %v6271, %v6359
        %6361 = vmatmul.bf16.gmra.mxu0 %v3136
        %v6362 = vpop.f32.mrf.mxu0
        %v6363 = vadd.f32 %v6274, %v6362
        %v6364 = vpop.f32.mrf.mxu0
        %v6365 = vadd.f32 %v6276, %v6364
        %6366 = vmatmul.bf16.gmra.mxu0 %v3168
        %v6367 = vpop.f32.mrf.mxu0
        %v6368 = vadd.f32 %v6279, %v6367
        %v6369 = vpop.f32.mrf.mxu0
        %v6370 = vadd.f32 %v6281, %v6369
        %6371 = vmatmul.bf16.gmra.mxu0 %v3200
        %v6372 = vpop.f32.mrf.mxu0
        %v6373 = vadd.f32 %v6284, %v6372
        %v6374 = vpop.f32.mrf.mxu0
        %v6375 = vadd.f32 %v6286, %v6374
        %6376 = vmatmul.bf16.gmra.mxu0 %v3232
        %v6377 = vpop.f32.mrf.mxu0
        %v6378 = vadd.f32 %v6289, %v6377
        %v6379 = vpop.f32.mrf.mxu0
        %v6380 = vadd.f32 %v6291, %v6379
        %6381 = vmatmul.bf16.gmra.mxu0 %v3264
        %v6382 = vpop.f32.mrf.mxu0
        %v6383 = vadd.f32 %v6294, %v6382
        %v6384 = vpop.f32.mrf.mxu0
        %v6385 = vadd.f32 %v6296, %v6384
        %6386 = vmatmul.bf16.gmra.mxu0 %v3296
        %v6387 = vpop.f32.mrf.mxu0
        %v6388 = vadd.f32 %v6299, %v6387
        %v6389 = vpop.f32.mrf.mxu0
        %v6390 = vadd.f32 %v6301, %v6389
        %6391 = vmatmul.bf16.gmra.mxu0 %v3328
        %v6392 = vpop.f32.mrf.mxu0
        %v6393 = vadd.f32 %v6304, %v6392
        %v6394 = vpop.f32.mrf.mxu0
        %v6395 = vadd.f32 %v6306, %v6394
        %6396 = vmatmul.bf16.gmra.mxu0 %v3360
        %v6397 = vpop.f32.mrf.mxu0
        %v6398 = vadd.f32 %v6309, %v6397
        %v6399 = vpop.f32.mrf.mxu0
        %v6400 = vadd.f32 %v6311, %v6399
        %6401 = vmatmul.bf16.gmra.mxu0 %v3392
        %v6402 = vpop.f32.mrf.mxu0
        %v6403 = vadd.f32 %v6314, %v6402
        %v6404 = vpop.f32.mrf.mxu0
        %v6405 = vadd.f32 %v6316, %v6404
        %6406 = vmatmul.bf16.gmra.mxu0 %v3424
        %v6407 = vpop.f32.mrf.mxu0
        %v6408 = vadd.f32 %v6319, %v6407
        %v6409 = vpop.f32.mrf.mxu0
        %v6410 = vadd.f32 %v6321, %v6409
        %6411 = vmatmul.bf16.gmra.mxu0 %v3456
        %v6412 = vpop.f32.mrf.mxu0
        %v6413 = vadd.f32 %v6324, %v6412
        %v6414 = vpop.f32.mrf.mxu0
        %v6415 = vadd.f32 %v6326, %v6414
        %6416 = vdwg.mxu0
        %6417 = vmatpush.bf16.msra.mxu0 %v5102
        %6418 = vmatpush.bf16.msra.mxu0 %v5101
        %6419 = vmatpush.bf16.msra.mxu0 %v5100
        %6420 = vmatpush.bf16.msra.mxu0 %v5099
        %6421 = vmatpush.bf16.msra.mxu0 %v5098
        %6422 = vmatpush.bf16.msra.mxu0 %v5097
        %6423 = vmatpush.bf16.msra.mxu0 %v5096
        %6424 = vmatpush.bf16.msra.mxu0 %v5095
        %6425 = vmatmul.bf16.gmra.mxu0 %v2977
        %v6426 = vpop.f32.mrf.mxu0
        %v6427 = vadd.f32 %v6338, %v6426
        %v6428 = vpop.f32.mrf.mxu0
        %v6429 = vadd.f32 %v6340, %v6428
        %6430 = vmatmul.bf16.gmra.mxu0 %v3009
        %v6431 = vpop.f32.mrf.mxu0
        %v6432 = vadd.f32 %v6343, %v6431
        %v6433 = vpop.f32.mrf.mxu0
        %v6434 = vadd.f32 %v6345, %v6433
        %6435 = vmatmul.bf16.gmra.mxu0 %v3041
        %v6436 = vpop.f32.mrf.mxu0
        %v6437 = vadd.f32 %v6348, %v6436
        %v6438 = vpop.f32.mrf.mxu0
        %v6439 = vadd.f32 %v6350, %v6438
        %6440 = vmatmul.bf16.gmra.mxu0 %v3073
        %v6441 = vpop.f32.mrf.mxu0
        %v6442 = vadd.f32 %v6353, %v6441
        %v6443 = vpop.f32.mrf.mxu0
        %v6444 = vadd.f32 %v6355, %v6443
        %6445 = vmatmul.bf16.gmra.mxu0 %v3105
        %v6446 = vpop.f32.mrf.mxu0
        %v6447 = vadd.f32 %v6358, %v6446
        %v6448 = vpop.f32.mrf.mxu0
        %v6449 = vadd.f32 %v6360, %v6448
        %6450 = vmatmul.bf16.gmra.mxu0 %v3137
        %v6451 = vpop.f32.mrf.mxu0
        %v6452 = vadd.f32 %v6363, %v6451
        %v6453 = vpop.f32.mrf.mxu0
        %v6454 = vadd.f32 %v6365, %v6453
        %6455 = vmatmul.bf16.gmra.mxu0 %v3169
        %v6456 = vpop.f32.mrf.mxu0
        %v6457 = vadd.f32 %v6368, %v6456
        %v6458 = vpop.f32.mrf.mxu0
        %v6459 = vadd.f32 %v6370, %v6458
        %6460 = vmatmul.bf16.gmra.mxu0 %v3201
        %v6461 = vpop.f32.mrf.mxu0
        %v6462 = vadd.f32 %v6373, %v6461
        %v6463 = vpop.f32.mrf.mxu0
        %v6464 = vadd.f32 %v6375, %v6463
        %6465 = vmatmul.bf16.gmra.mxu0 %v3233
        %v6466 = vpop.f32.mrf.mxu0
        %v6467 = vadd.f32 %v6378, %v6466
        %v6468 = vpop.f32.mrf.mxu0
        %v6469 = vadd.f32 %v6380, %v6468
        %6470 = vmatmul.bf16.gmra.mxu0 %v3265
        %v6471 = vpop.f32.mrf.mxu0
        %v6472 = vadd.f32 %v6383, %v6471
        %v6473 = vpop.f32.mrf.mxu0
        %v6474 = vadd.f32 %v6385, %v6473
        %6475 = vmatmul.bf16.gmra.mxu0 %v3297
        %v6476 = vpop.f32.mrf.mxu0
        %v6477 = vadd.f32 %v6388, %v6476
        %v6478 = vpop.f32.mrf.mxu0
        %v6479 = vadd.f32 %v6390, %v6478
        %6480 = vmatmul.bf16.gmra.mxu0 %v3329
        %v6481 = vpop.f32.mrf.mxu0
        %v6482 = vadd.f32 %v6393, %v6481
        %v6483 = vpop.f32.mrf.mxu0
        %v6484 = vadd.f32 %v6395, %v6483
        %6485 = vmatmul.bf16.gmra.mxu0 %v3361
        %v6486 = vpop.f32.mrf.mxu0
        %v6487 = vadd.f32 %v6398, %v6486
        %v6488 = vpop.f32.mrf.mxu0
        %v6489 = vadd.f32 %v6400, %v6488
        %6490 = vmatmul.bf16.gmra.mxu0 %v3393
        %v6491 = vpop.f32.mrf.mxu0
        %v6492 = vadd.f32 %v6403, %v6491
        %v6493 = vpop.f32.mrf.mxu0
        %v6494 = vadd.f32 %v6405, %v6493
        %6495 = vmatmul.bf16.gmra.mxu0 %v3425
        %v6496 = vpop.f32.mrf.mxu0
        %v6497 = vadd.f32 %v6408, %v6496
        %v6498 = vpop.f32.mrf.mxu0
        %v6499 = vadd.f32 %v6410, %v6498
        %6500 = vmatmul.bf16.gmra.mxu0 %v3457
        %v6501 = vpop.f32.mrf.mxu0
        %v6502 = vadd.f32 %v6413, %v6501
        %v6503 = vpop.f32.mrf.mxu0
        %v6504 = vadd.f32 %v6415, %v6503
        %6505 = vdwg.mxu0
        %6506 = vmatpush.bf16.msra.mxu0 %v5110
        %6507 = vmatpush.bf16.msra.mxu0 %v5109
        %6508 = vmatpush.bf16.msra.mxu0 %v5108
        %6509 = vmatpush.bf16.msra.mxu0 %v5107
        %6510 = vmatpush.bf16.msra.mxu0 %v5106
        %6511 = vmatpush.bf16.msra.mxu0 %v5105
        %6512 = vmatpush.bf16.msra.mxu0 %v5104
        %6513 = vmatpush.bf16.msra.mxu0 %v5103
        %6514 = vmatmul.bf16.gmra.mxu0 %v2978
        %v6515 = vpop.f32.mrf.mxu0
        %v6516 = vadd.f32 %v6427, %v6515
        %v6517 = vpop.f32.mrf.mxu0
        %v6518 = vadd.f32 %v6429, %v6517
        %6519 = vmatmul.bf16.gmra.mxu0 %v3010
        %v6520 = vpop.f32.mrf.mxu0
        %v6521 = vadd.f32 %v6432, %v6520
        %v6522 = vpop.f32.mrf.mxu0
        %v6523 = vadd.f32 %v6434, %v6522
        %6524 = vmatmul.bf16.gmra.mxu0 %v3042
        %v6525 = vpop.f32.mrf.mxu0
        %v6526 = vadd.f32 %v6437, %v6525
        %v6527 = vpop.f32.mrf.mxu0
        %v6528 = vadd.f32 %v6439, %v6527
        %6529 = vmatmul.bf16.gmra.mxu0 %v3074
        %v6530 = vpop.f32.mrf.mxu0
        %v6531 = vadd.f32 %v6442, %v6530
        %v6532 = vpop.f32.mrf.mxu0
        %v6533 = vadd.f32 %v6444, %v6532
        %6534 = vmatmul.bf16.gmra.mxu0 %v3106
        %v6535 = vpop.f32.mrf.mxu0
        %v6536 = vadd.f32 %v6447, %v6535
        %v6537 = vpop.f32.mrf.mxu0
        %v6538 = vadd.f32 %v6449, %v6537
        %6539 = vmatmul.bf16.gmra.mxu0 %v3138
        %v6540 = vpop.f32.mrf.mxu0
        %v6541 = vadd.f32 %v6452, %v6540
        %v6542 = vpop.f32.mrf.mxu0
        %v6543 = vadd.f32 %v6454, %v6542
        %6544 = vmatmul.bf16.gmra.mxu0 %v3170
        %v6545 = vpop.f32.mrf.mxu0
        %v6546 = vadd.f32 %v6457, %v6545
        %v6547 = vpop.f32.mrf.mxu0
        %v6548 = vadd.f32 %v6459, %v6547
        %6549 = vmatmul.bf16.gmra.mxu0 %v3202
        %v6550 = vpop.f32.mrf.mxu0
        %v6551 = vadd.f32 %v6462, %v6550
        %v6552 = vpop.f32.mrf.mxu0
        %v6553 = vadd.f32 %v6464, %v6552
        %6554 = vmatmul.bf16.gmra.mxu0 %v3234
        %v6555 = vpop.f32.mrf.mxu0
        %v6556 = vadd.f32 %v6467, %v6555
        %v6557 = vpop.f32.mrf.mxu0
        %v6558 = vadd.f32 %v6469, %v6557
        %6559 = vmatmul.bf16.gmra.mxu0 %v3266
        %v6560 = vpop.f32.mrf.mxu0
        %v6561 = vadd.f32 %v6472, %v6560
        %v6562 = vpop.f32.mrf.mxu0
        %v6563 = vadd.f32 %v6474, %v6562
        %6564 = vmatmul.bf16.gmra.mxu0 %v3298
        %v6565 = vpop.f32.mrf.mxu0
        %v6566 = vadd.f32 %v6477, %v6565
        %v6567 = vpop.f32.mrf.mxu0
        %v6568 = vadd.f32 %v6479, %v6567
        %6569 = vmatmul.bf16.gmra.mxu0 %v3330
        %v6570 = vpop.f32.mrf.mxu0
        %v6571 = vadd.f32 %v6482, %v6570
        %v6572 = vpop.f32.mrf.mxu0
        %v6573 = vadd.f32 %v6484, %v6572
        %6574 = vmatmul.bf16.gmra.mxu0 %v3362
        %v6575 = vpop.f32.mrf.mxu0
        %v6576 = vadd.f32 %v6487, %v6575
        %v6577 = vpop.f32.mrf.mxu0
        %v6578 = vadd.f32 %v6489, %v6577
        %6579 = vmatmul.bf16.gmra.mxu0 %v3394
        %v6580 = vpop.f32.mrf.mxu0
        %v6581 = vadd.f32 %v6492, %v6580
        %v6582 = vpop.f32.mrf.mxu0
        %v6583 = vadd.f32 %v6494, %v6582
        %6584 = vmatmul.bf16.gmra.mxu0 %v3426
        %v6585 = vpop.f32.mrf.mxu0
        %v6586 = vadd.f32 %v6497, %v6585
        %v6587 = vpop.f32.mrf.mxu0
        %v6588 = vadd.f32 %v6499, %v6587
        %6589 = vmatmul.bf16.gmra.mxu0 %v3458
        %v6590 = vpop.f32.mrf.mxu0
        %v6591 = vadd.f32 %v6502, %v6590
        %v6592 = vpop.f32.mrf.mxu0
        %v6593 = vadd.f32 %v6504, %v6592
        %6594 = vdwg.mxu0
        %6595 = vmatpush.bf16.msra.mxu0 %v5118
        %6596 = vmatpush.bf16.msra.mxu0 %v5117
        %6597 = vmatpush.bf16.msra.mxu0 %v5116
        %6598 = vmatpush.bf16.msra.mxu0 %v5115
        %6599 = vmatpush.bf16.msra.mxu0 %v5114
        %6600 = vmatpush.bf16.msra.mxu0 %v5113
        %6601 = vmatpush.bf16.msra.mxu0 %v5112
        %6602 = vmatpush.bf16.msra.mxu0 %v5111
        %6603 = vmatmul.bf16.gmra.mxu0 %v2979
        %v6604 = vpop.f32.mrf.mxu0
        %v6605 = vadd.f32 %v6516, %v6604
        %v6606 = vpop.f32.mrf.mxu0
        %v6607 = vadd.f32 %v6518, %v6606
        %6608 = vmatmul.bf16.gmra.mxu0 %v3011
        %v6609 = vpop.f32.mrf.mxu0
        %v6610 = vadd.f32 %v6521, %v6609
        %v6611 = vpop.f32.mrf.mxu0
        %v6612 = vadd.f32 %v6523, %v6611
        %6613 = vmatmul.bf16.gmra.mxu0 %v3043
        %v6614 = vpop.f32.mrf.mxu0
        %v6615 = vadd.f32 %v6526, %v6614
        %v6616 = vpop.f32.mrf.mxu0
        %v6617 = vadd.f32 %v6528, %v6616
        %6618 = vmatmul.bf16.gmra.mxu0 %v3075
        %v6619 = vpop.f32.mrf.mxu0
        %v6620 = vadd.f32 %v6531, %v6619
        %v6621 = vpop.f32.mrf.mxu0
        %v6622 = vadd.f32 %v6533, %v6621
        %6623 = vmatmul.bf16.gmra.mxu0 %v3107
        %v6624 = vpop.f32.mrf.mxu0
        %v6625 = vadd.f32 %v6536, %v6624
        %v6626 = vpop.f32.mrf.mxu0
        %v6627 = vadd.f32 %v6538, %v6626
        %6628 = vmatmul.bf16.gmra.mxu0 %v3139
        %v6629 = vpop.f32.mrf.mxu0
        %v6630 = vadd.f32 %v6541, %v6629
        %v6631 = vpop.f32.mrf.mxu0
        %v6632 = vadd.f32 %v6543, %v6631
        %6633 = vmatmul.bf16.gmra.mxu0 %v3171
        %v6634 = vpop.f32.mrf.mxu0
        %v6635 = vadd.f32 %v6546, %v6634
        %v6636 = vpop.f32.mrf.mxu0
        %v6637 = vadd.f32 %v6548, %v6636
        %6638 = vmatmul.bf16.gmra.mxu0 %v3203
        %v6639 = vpop.f32.mrf.mxu0
        %v6640 = vadd.f32 %v6551, %v6639
        %v6641 = vpop.f32.mrf.mxu0
        %v6642 = vadd.f32 %v6553, %v6641
        %6643 = vmatmul.bf16.gmra.mxu0 %v3235
        %v6644 = vpop.f32.mrf.mxu0
        %v6645 = vadd.f32 %v6556, %v6644
        %v6646 = vpop.f32.mrf.mxu0
        %v6647 = vadd.f32 %v6558, %v6646
        %6648 = vmatmul.bf16.gmra.mxu0 %v3267
        %v6649 = vpop.f32.mrf.mxu0
        %v6650 = vadd.f32 %v6561, %v6649
        %v6651 = vpop.f32.mrf.mxu0
        %v6652 = vadd.f32 %v6563, %v6651
        %6653 = vmatmul.bf16.gmra.mxu0 %v3299
        %v6654 = vpop.f32.mrf.mxu0
        %v6655 = vadd.f32 %v6566, %v6654
        %v6656 = vpop.f32.mrf.mxu0
        %v6657 = vadd.f32 %v6568, %v6656
        %6658 = vmatmul.bf16.gmra.mxu0 %v3331
        %v6659 = vpop.f32.mrf.mxu0
        %v6660 = vadd.f32 %v6571, %v6659
        %v6661 = vpop.f32.mrf.mxu0
        %v6662 = vadd.f32 %v6573, %v6661
        %6663 = vmatmul.bf16.gmra.mxu0 %v3363
        %v6664 = vpop.f32.mrf.mxu0
        %v6665 = vadd.f32 %v6576, %v6664
        %v6666 = vpop.f32.mrf.mxu0
        %v6667 = vadd.f32 %v6578, %v6666
        %6668 = vmatmul.bf16.gmra.mxu0 %v3395
        %v6669 = vpop.f32.mrf.mxu0
        %v6670 = vadd.f32 %v6581, %v6669
        %v6671 = vpop.f32.mrf.mxu0
        %v6672 = vadd.f32 %v6583, %v6671
        %6673 = vmatmul.bf16.gmra.mxu0 %v3427
        %v6674 = vpop.f32.mrf.mxu0
        %v6675 = vadd.f32 %v6586, %v6674
        %v6676 = vpop.f32.mrf.mxu0
        %v6677 = vadd.f32 %v6588, %v6676
        %6678 = vmatmul.bf16.gmra.mxu0 %v3459
        %v6679 = vpop.f32.mrf.mxu0
        %v6680 = vadd.f32 %v6591, %v6679
        %v6681 = vpop.f32.mrf.mxu0
        %v6682 = vadd.f32 %v6593, %v6681
        %6683 = vdwg.mxu0
        %6684 = vmatpush.bf16.msra.mxu0 %v5126
        %6685 = vmatpush.bf16.msra.mxu0 %v5125
        %6686 = vmatpush.bf16.msra.mxu0 %v5124
        %6687 = vmatpush.bf16.msra.mxu0 %v5123
        %6688 = vmatpush.bf16.msra.mxu0 %v5122
        %6689 = vmatpush.bf16.msra.mxu0 %v5121
        %6690 = vmatpush.bf16.msra.mxu0 %v5120
        %6691 = vmatpush.bf16.msra.mxu0 %v5119
        %6692 = vmatmul.bf16.gmra.mxu0 %v2980
        %v6693 = vpop.f32.mrf.mxu0
        %v6694 = vadd.f32 %v6605, %v6693
        %v6695 = vpop.f32.mrf.mxu0
        %v6696 = vadd.f32 %v6607, %v6695
        %6697 = vmatmul.bf16.gmra.mxu0 %v3012
        %v6698 = vpop.f32.mrf.mxu0
        %v6699 = vadd.f32 %v6610, %v6698
        %v6700 = vpop.f32.mrf.mxu0
        %v6701 = vadd.f32 %v6612, %v6700
        %6702 = vmatmul.bf16.gmra.mxu0 %v3044
        %v6703 = vpop.f32.mrf.mxu0
        %v6704 = vadd.f32 %v6615, %v6703
        %v6705 = vpop.f32.mrf.mxu0
        %v6706 = vadd.f32 %v6617, %v6705
        %6707 = vmatmul.bf16.gmra.mxu0 %v3076
        %v6708 = vpop.f32.mrf.mxu0
        %v6709 = vadd.f32 %v6620, %v6708
        %v6710 = vpop.f32.mrf.mxu0
        %v6711 = vadd.f32 %v6622, %v6710
        %6712 = vmatmul.bf16.gmra.mxu0 %v3108
        %v6713 = vpop.f32.mrf.mxu0
        %v6714 = vadd.f32 %v6625, %v6713
        %v6715 = vpop.f32.mrf.mxu0
        %v6716 = vadd.f32 %v6627, %v6715
        %6717 = vmatmul.bf16.gmra.mxu0 %v3140
        %v6718 = vpop.f32.mrf.mxu0
        %v6719 = vadd.f32 %v6630, %v6718
        %v6720 = vpop.f32.mrf.mxu0
        %v6721 = vadd.f32 %v6632, %v6720
        %6722 = vmatmul.bf16.gmra.mxu0 %v3172
        %v6723 = vpop.f32.mrf.mxu0
        %v6724 = vadd.f32 %v6635, %v6723
        %v6725 = vpop.f32.mrf.mxu0
        %v6726 = vadd.f32 %v6637, %v6725
        %6727 = vmatmul.bf16.gmra.mxu0 %v3204
        %v6728 = vpop.f32.mrf.mxu0
        %v6729 = vadd.f32 %v6640, %v6728
        %v6730 = vpop.f32.mrf.mxu0
        %v6731 = vadd.f32 %v6642, %v6730
        %6732 = vmatmul.bf16.gmra.mxu0 %v3236
        %v6733 = vpop.f32.mrf.mxu0
        %v6734 = vadd.f32 %v6645, %v6733
        %v6735 = vpop.f32.mrf.mxu0
        %v6736 = vadd.f32 %v6647, %v6735
        %6737 = vmatmul.bf16.gmra.mxu0 %v3268
        %v6738 = vpop.f32.mrf.mxu0
        %v6739 = vadd.f32 %v6650, %v6738
        %v6740 = vpop.f32.mrf.mxu0
        %v6741 = vadd.f32 %v6652, %v6740
        %6742 = vmatmul.bf16.gmra.mxu0 %v3300
        %v6743 = vpop.f32.mrf.mxu0
        %v6744 = vadd.f32 %v6655, %v6743
        %v6745 = vpop.f32.mrf.mxu0
        %v6746 = vadd.f32 %v6657, %v6745
        %6747 = vmatmul.bf16.gmra.mxu0 %v3332
        %v6748 = vpop.f32.mrf.mxu0
        %v6749 = vadd.f32 %v6660, %v6748
        %v6750 = vpop.f32.mrf.mxu0
        %v6751 = vadd.f32 %v6662, %v6750
        %6752 = vmatmul.bf16.gmra.mxu0 %v3364
        %v6753 = vpop.f32.mrf.mxu0
        %v6754 = vadd.f32 %v6665, %v6753
        %v6755 = vpop.f32.mrf.mxu0
        %v6756 = vadd.f32 %v6667, %v6755
        %6757 = vmatmul.bf16.gmra.mxu0 %v3396
        %v6758 = vpop.f32.mrf.mxu0
        %v6759 = vadd.f32 %v6670, %v6758
        %v6760 = vpop.f32.mrf.mxu0
        %v6761 = vadd.f32 %v6672, %v6760
        %6762 = vmatmul.bf16.gmra.mxu0 %v3428
        %v6763 = vpop.f32.mrf.mxu0
        %v6764 = vadd.f32 %v6675, %v6763
        %v6765 = vpop.f32.mrf.mxu0
        %v6766 = vadd.f32 %v6677, %v6765
        %6767 = vmatmul.bf16.gmra.mxu0 %v3460
        %v6768 = vpop.f32.mrf.mxu0
        %v6769 = vadd.f32 %v6680, %v6768
        %v6770 = vpop.f32.mrf.mxu0
        %v6771 = vadd.f32 %v6682, %v6770
        %6772 = vdwg.mxu0
        %6773 = vmatpush.bf16.msra.mxu0 %v5134
        %6774 = vmatpush.bf16.msra.mxu0 %v5133
        %6775 = vmatpush.bf16.msra.mxu0 %v5132
        %6776 = vmatpush.bf16.msra.mxu0 %v5131
        %6777 = vmatpush.bf16.msra.mxu0 %v5130
        %6778 = vmatpush.bf16.msra.mxu0 %v5129
        %6779 = vmatpush.bf16.msra.mxu0 %v5128
        %6780 = vmatpush.bf16.msra.mxu0 %v5127
        %6781 = vmatmul.bf16.gmra.mxu0 %v2981
        %v6782 = vpop.f32.mrf.mxu0
        %v6783 = vadd.f32 %v6694, %v6782
        %v6784 = vpop.f32.mrf.mxu0
        %v6785 = vadd.f32 %v6696, %v6784
        %6786 = vmatmul.bf16.gmra.mxu0 %v3013
        %v6787 = vpop.f32.mrf.mxu0
        %v6788 = vadd.f32 %v6699, %v6787
        %v6789 = vpop.f32.mrf.mxu0
        %v6790 = vadd.f32 %v6701, %v6789
        %6791 = vmatmul.bf16.gmra.mxu0 %v3045
        %v6792 = vpop.f32.mrf.mxu0
        %v6793 = vadd.f32 %v6704, %v6792
        %v6794 = vpop.f32.mrf.mxu0
        %v6795 = vadd.f32 %v6706, %v6794
        %6796 = vmatmul.bf16.gmra.mxu0 %v3077
        %v6797 = vpop.f32.mrf.mxu0
        %v6798 = vadd.f32 %v6709, %v6797
        %v6799 = vpop.f32.mrf.mxu0
        %v6800 = vadd.f32 %v6711, %v6799
        %6801 = vmatmul.bf16.gmra.mxu0 %v3109
        %v6802 = vpop.f32.mrf.mxu0
        %v6803 = vadd.f32 %v6714, %v6802
        %v6804 = vpop.f32.mrf.mxu0
        %v6805 = vadd.f32 %v6716, %v6804
        %6806 = vmatmul.bf16.gmra.mxu0 %v3141
        %v6807 = vpop.f32.mrf.mxu0
        %v6808 = vadd.f32 %v6719, %v6807
        %v6809 = vpop.f32.mrf.mxu0
        %v6810 = vadd.f32 %v6721, %v6809
        %6811 = vmatmul.bf16.gmra.mxu0 %v3173
        %v6812 = vpop.f32.mrf.mxu0
        %v6813 = vadd.f32 %v6724, %v6812
        %v6814 = vpop.f32.mrf.mxu0
        %v6815 = vadd.f32 %v6726, %v6814
        %6816 = vmatmul.bf16.gmra.mxu0 %v3205
        %v6817 = vpop.f32.mrf.mxu0
        %v6818 = vadd.f32 %v6729, %v6817
        %v6819 = vpop.f32.mrf.mxu0
        %v6820 = vadd.f32 %v6731, %v6819
        %6821 = vmatmul.bf16.gmra.mxu0 %v3237
        %v6822 = vpop.f32.mrf.mxu0
        %v6823 = vadd.f32 %v6734, %v6822
        %v6824 = vpop.f32.mrf.mxu0
        %v6825 = vadd.f32 %v6736, %v6824
        %6826 = vmatmul.bf16.gmra.mxu0 %v3269
        %v6827 = vpop.f32.mrf.mxu0
        %v6828 = vadd.f32 %v6739, %v6827
        %v6829 = vpop.f32.mrf.mxu0
        %v6830 = vadd.f32 %v6741, %v6829
        %6831 = vmatmul.bf16.gmra.mxu0 %v3301
        %v6832 = vpop.f32.mrf.mxu0
        %v6833 = vadd.f32 %v6744, %v6832
        %v6834 = vpop.f32.mrf.mxu0
        %v6835 = vadd.f32 %v6746, %v6834
        %6836 = vmatmul.bf16.gmra.mxu0 %v3333
        %v6837 = vpop.f32.mrf.mxu0
        %v6838 = vadd.f32 %v6749, %v6837
        %v6839 = vpop.f32.mrf.mxu0
        %v6840 = vadd.f32 %v6751, %v6839
        %6841 = vmatmul.bf16.gmra.mxu0 %v3365
        %v6842 = vpop.f32.mrf.mxu0
        %v6843 = vadd.f32 %v6754, %v6842
        %v6844 = vpop.f32.mrf.mxu0
        %v6845 = vadd.f32 %v6756, %v6844
        %6846 = vmatmul.bf16.gmra.mxu0 %v3397
        %v6847 = vpop.f32.mrf.mxu0
        %v6848 = vadd.f32 %v6759, %v6847
        %v6849 = vpop.f32.mrf.mxu0
        %v6850 = vadd.f32 %v6761, %v6849
        %6851 = vmatmul.bf16.gmra.mxu0 %v3429
        %v6852 = vpop.f32.mrf.mxu0
        %v6853 = vadd.f32 %v6764, %v6852
        %v6854 = vpop.f32.mrf.mxu0
        %v6855 = vadd.f32 %v6766, %v6854
        %6856 = vmatmul.bf16.gmra.mxu0 %v3461
        %v6857 = vpop.f32.mrf.mxu0
        %v6858 = vadd.f32 %v6769, %v6857
        %v6859 = vpop.f32.mrf.mxu0
        %v6860 = vadd.f32 %v6771, %v6859
        %6861 = vdwg.mxu0
        %6862 = vmatpush.bf16.msra.mxu0 %v5142
        %6863 = vmatpush.bf16.msra.mxu0 %v5141
        %6864 = vmatpush.bf16.msra.mxu0 %v5140
        %6865 = vmatpush.bf16.msra.mxu0 %v5139
        %6866 = vmatpush.bf16.msra.mxu0 %v5138
        %6867 = vmatpush.bf16.msra.mxu0 %v5137
        %6868 = vmatpush.bf16.msra.mxu0 %v5136
        %6869 = vmatpush.bf16.msra.mxu0 %v5135
        %6870 = vmatmul.bf16.gmra.mxu0 %v2982
        %v6871 = vpop.f32.mrf.mxu0
        %v6872 = vadd.f32 %v6783, %v6871
        %v6873 = vpop.f32.mrf.mxu0
        %v6874 = vadd.f32 %v6785, %v6873
        %6875 = vmatmul.bf16.gmra.mxu0 %v3014
        %v6876 = vpop.f32.mrf.mxu0
        %v6877 = vadd.f32 %v6788, %v6876
        %v6878 = vpop.f32.mrf.mxu0
        %v6879 = vadd.f32 %v6790, %v6878
        %6880 = vmatmul.bf16.gmra.mxu0 %v3046
        %v6881 = vpop.f32.mrf.mxu0
        %v6882 = vadd.f32 %v6793, %v6881
        %v6883 = vpop.f32.mrf.mxu0
        %v6884 = vadd.f32 %v6795, %v6883
        %6885 = vmatmul.bf16.gmra.mxu0 %v3078
        %v6886 = vpop.f32.mrf.mxu0
        %v6887 = vadd.f32 %v6798, %v6886
        %v6888 = vpop.f32.mrf.mxu0
        %v6889 = vadd.f32 %v6800, %v6888
        %6890 = vmatmul.bf16.gmra.mxu0 %v3110
        %v6891 = vpop.f32.mrf.mxu0
        %v6892 = vadd.f32 %v6803, %v6891
        %v6893 = vpop.f32.mrf.mxu0
        %v6894 = vadd.f32 %v6805, %v6893
        %6895 = vmatmul.bf16.gmra.mxu0 %v3142
        %v6896 = vpop.f32.mrf.mxu0
        %v6897 = vadd.f32 %v6808, %v6896
        %v6898 = vpop.f32.mrf.mxu0
        %v6899 = vadd.f32 %v6810, %v6898
        %6900 = vmatmul.bf16.gmra.mxu0 %v3174
        %v6901 = vpop.f32.mrf.mxu0
        %v6902 = vadd.f32 %v6813, %v6901
        %v6903 = vpop.f32.mrf.mxu0
        %v6904 = vadd.f32 %v6815, %v6903
        %6905 = vmatmul.bf16.gmra.mxu0 %v3206
        %v6906 = vpop.f32.mrf.mxu0
        %v6907 = vadd.f32 %v6818, %v6906
        %v6908 = vpop.f32.mrf.mxu0
        %v6909 = vadd.f32 %v6820, %v6908
        %6910 = vmatmul.bf16.gmra.mxu0 %v3238
        %v6911 = vpop.f32.mrf.mxu0
        %v6912 = vadd.f32 %v6823, %v6911
        %v6913 = vpop.f32.mrf.mxu0
        %v6914 = vadd.f32 %v6825, %v6913
        %6915 = vmatmul.bf16.gmra.mxu0 %v3270
        %v6916 = vpop.f32.mrf.mxu0
        %v6917 = vadd.f32 %v6828, %v6916
        %v6918 = vpop.f32.mrf.mxu0
        %v6919 = vadd.f32 %v6830, %v6918
        %6920 = vmatmul.bf16.gmra.mxu0 %v3302
        %v6921 = vpop.f32.mrf.mxu0
        %v6922 = vadd.f32 %v6833, %v6921
        %v6923 = vpop.f32.mrf.mxu0
        %v6924 = vadd.f32 %v6835, %v6923
        %6925 = vmatmul.bf16.gmra.mxu0 %v3334
        %v6926 = vpop.f32.mrf.mxu0
        %v6927 = vadd.f32 %v6838, %v6926
        %v6928 = vpop.f32.mrf.mxu0
        %v6929 = vadd.f32 %v6840, %v6928
        %6930 = vmatmul.bf16.gmra.mxu0 %v3366
        %v6931 = vpop.f32.mrf.mxu0
        %v6932 = vadd.f32 %v6843, %v6931
        %v6933 = vpop.f32.mrf.mxu0
        %v6934 = vadd.f32 %v6845, %v6933
        %6935 = vmatmul.bf16.gmra.mxu0 %v3398
        %v6936 = vpop.f32.mrf.mxu0
        %v6937 = vadd.f32 %v6848, %v6936
        %v6938 = vpop.f32.mrf.mxu0
        %v6939 = vadd.f32 %v6850, %v6938
        %6940 = vmatmul.bf16.gmra.mxu0 %v3430
        %v6941 = vpop.f32.mrf.mxu0
        %v6942 = vadd.f32 %v6853, %v6941
        %v6943 = vpop.f32.mrf.mxu0
        %v6944 = vadd.f32 %v6855, %v6943
        %6945 = vmatmul.bf16.gmra.mxu0 %v3462
        %v6946 = vpop.f32.mrf.mxu0
        %v6947 = vadd.f32 %v6858, %v6946
        %v6948 = vpop.f32.mrf.mxu0
        %v6949 = vadd.f32 %v6860, %v6948
        %6950 = vdwg.mxu0
        %6951 = vmatpush.bf16.msra.mxu0 %v5150
        %6952 = vmatpush.bf16.msra.mxu0 %v5149
        %6953 = vmatpush.bf16.msra.mxu0 %v5148
        %6954 = vmatpush.bf16.msra.mxu0 %v5147
        %6955 = vmatpush.bf16.msra.mxu0 %v5146
        %6956 = vmatpush.bf16.msra.mxu0 %v5145
        %6957 = vmatpush.bf16.msra.mxu0 %v5144
        %6958 = vmatpush.bf16.msra.mxu0 %v5143
        %6959 = vmatmul.bf16.gmra.mxu0 %v2983
        %v6960 = vpop.f32.mrf.mxu0
        %v6961 = vadd.f32 %v6872, %v6960
        %v6962 = vpop.f32.mrf.mxu0
        %v6963 = vadd.f32 %v6874, %v6962
        %6964 = vmatmul.bf16.gmra.mxu0 %v3015
        %v6965 = vpop.f32.mrf.mxu0
        %v6966 = vadd.f32 %v6877, %v6965
        %v6967 = vpop.f32.mrf.mxu0
        %v6968 = vadd.f32 %v6879, %v6967
        %6969 = vmatmul.bf16.gmra.mxu0 %v3047
        %v6970 = vpop.f32.mrf.mxu0
        %v6971 = vadd.f32 %v6882, %v6970
        %v6972 = vpop.f32.mrf.mxu0
        %v6973 = vadd.f32 %v6884, %v6972
        %6974 = vmatmul.bf16.gmra.mxu0 %v3079
        %v6975 = vpop.f32.mrf.mxu0
        %v6976 = vadd.f32 %v6887, %v6975
        %v6977 = vpop.f32.mrf.mxu0
        %v6978 = vadd.f32 %v6889, %v6977
        %6979 = vmatmul.bf16.gmra.mxu0 %v3111
        %v6980 = vpop.f32.mrf.mxu0
        %v6981 = vadd.f32 %v6892, %v6980
        %v6982 = vpop.f32.mrf.mxu0
        %v6983 = vadd.f32 %v6894, %v6982
        %6984 = vmatmul.bf16.gmra.mxu0 %v3143
        %v6985 = vpop.f32.mrf.mxu0
        %v6986 = vadd.f32 %v6897, %v6985
        %v6987 = vpop.f32.mrf.mxu0
        %v6988 = vadd.f32 %v6899, %v6987
        %6989 = vmatmul.bf16.gmra.mxu0 %v3175
        %v6990 = vpop.f32.mrf.mxu0
        %v6991 = vadd.f32 %v6902, %v6990
        %v6992 = vpop.f32.mrf.mxu0
        %v6993 = vadd.f32 %v6904, %v6992
        %6994 = vmatmul.bf16.gmra.mxu0 %v3207
        %v6995 = vpop.f32.mrf.mxu0
        %v6996 = vadd.f32 %v6907, %v6995
        %v6997 = vpop.f32.mrf.mxu0
        %v6998 = vadd.f32 %v6909, %v6997
        %6999 = vmatmul.bf16.gmra.mxu0 %v3239
        %v7000 = vpop.f32.mrf.mxu0
        %v7001 = vadd.f32 %v6912, %v7000
        %v7002 = vpop.f32.mrf.mxu0
        %v7003 = vadd.f32 %v6914, %v7002
        %7004 = vmatmul.bf16.gmra.mxu0 %v3271
        %v7005 = vpop.f32.mrf.mxu0
        %v7006 = vadd.f32 %v6917, %v7005
        %v7007 = vpop.f32.mrf.mxu0
        %v7008 = vadd.f32 %v6919, %v7007
        %7009 = vmatmul.bf16.gmra.mxu0 %v3303
        %v7010 = vpop.f32.mrf.mxu0
        %v7011 = vadd.f32 %v6922, %v7010
        %v7012 = vpop.f32.mrf.mxu0
        %v7013 = vadd.f32 %v6924, %v7012
        %7014 = vmatmul.bf16.gmra.mxu0 %v3335
        %v7015 = vpop.f32.mrf.mxu0
        %v7016 = vadd.f32 %v6927, %v7015
        %v7017 = vpop.f32.mrf.mxu0
        %v7018 = vadd.f32 %v6929, %v7017
        %7019 = vmatmul.bf16.gmra.mxu0 %v3367
        %v7020 = vpop.f32.mrf.mxu0
        %v7021 = vadd.f32 %v6932, %v7020
        %v7022 = vpop.f32.mrf.mxu0
        %v7023 = vadd.f32 %v6934, %v7022
        %7024 = vmatmul.bf16.gmra.mxu0 %v3399
        %v7025 = vpop.f32.mrf.mxu0
        %v7026 = vadd.f32 %v6937, %v7025
        %v7027 = vpop.f32.mrf.mxu0
        %v7028 = vadd.f32 %v6939, %v7027
        %7029 = vmatmul.bf16.gmra.mxu0 %v3431
        %v7030 = vpop.f32.mrf.mxu0
        %v7031 = vadd.f32 %v6942, %v7030
        %v7032 = vpop.f32.mrf.mxu0
        %v7033 = vadd.f32 %v6944, %v7032
        %7034 = vmatmul.bf16.gmra.mxu0 %v3463
        %v7035 = vpop.f32.mrf.mxu0
        %v7036 = vadd.f32 %v6947, %v7035
        %v7037 = vpop.f32.mrf.mxu0
        %v7038 = vadd.f32 %v6949, %v7037
        %7039 = vdwg.mxu0
        %7040 = vmatpush.bf16.msra.mxu0 %v5158
        %7041 = vmatpush.bf16.msra.mxu0 %v5157
        %7042 = vmatpush.bf16.msra.mxu0 %v5156
        %7043 = vmatpush.bf16.msra.mxu0 %v5155
        %7044 = vmatpush.bf16.msra.mxu0 %v5154
        %7045 = vmatpush.bf16.msra.mxu0 %v5153
        %7046 = vmatpush.bf16.msra.mxu0 %v5152
        %7047 = vmatpush.bf16.msra.mxu0 %v5151
        %7048 = vmatmul.bf16.gmra.mxu0 %v2984
        %v7049 = vpop.f32.mrf.mxu0
        %v7050 = vadd.f32 %v6961, %v7049
        %v7051 = vpop.f32.mrf.mxu0
        %v7052 = vadd.f32 %v6963, %v7051
        %7053 = vmatmul.bf16.gmra.mxu0 %v3016
        %v7054 = vpop.f32.mrf.mxu0
        %v7055 = vadd.f32 %v6966, %v7054
        %v7056 = vpop.f32.mrf.mxu0
        %v7057 = vadd.f32 %v6968, %v7056
        %7058 = vmatmul.bf16.gmra.mxu0 %v3048
        %v7059 = vpop.f32.mrf.mxu0
        %v7060 = vadd.f32 %v6971, %v7059
        %v7061 = vpop.f32.mrf.mxu0
        %v7062 = vadd.f32 %v6973, %v7061
        %7063 = vmatmul.bf16.gmra.mxu0 %v3080
        %v7064 = vpop.f32.mrf.mxu0
        %v7065 = vadd.f32 %v6976, %v7064
        %v7066 = vpop.f32.mrf.mxu0
        %v7067 = vadd.f32 %v6978, %v7066
        %7068 = vmatmul.bf16.gmra.mxu0 %v3112
        %v7069 = vpop.f32.mrf.mxu0
        %v7070 = vadd.f32 %v6981, %v7069
        %v7071 = vpop.f32.mrf.mxu0
        %v7072 = vadd.f32 %v6983, %v7071
        %7073 = vmatmul.bf16.gmra.mxu0 %v3144
        %v7074 = vpop.f32.mrf.mxu0
        %v7075 = vadd.f32 %v6986, %v7074
        %v7076 = vpop.f32.mrf.mxu0
        %v7077 = vadd.f32 %v6988, %v7076
        %7078 = vmatmul.bf16.gmra.mxu0 %v3176
        %v7079 = vpop.f32.mrf.mxu0
        %v7080 = vadd.f32 %v6991, %v7079
        %v7081 = vpop.f32.mrf.mxu0
        %v7082 = vadd.f32 %v6993, %v7081
        %7083 = vmatmul.bf16.gmra.mxu0 %v3208
        %v7084 = vpop.f32.mrf.mxu0
        %v7085 = vadd.f32 %v6996, %v7084
        %v7086 = vpop.f32.mrf.mxu0
        %v7087 = vadd.f32 %v6998, %v7086
        %7088 = vmatmul.bf16.gmra.mxu0 %v3240
        %v7089 = vpop.f32.mrf.mxu0
        %v7090 = vadd.f32 %v7001, %v7089
        %v7091 = vpop.f32.mrf.mxu0
        %v7092 = vadd.f32 %v7003, %v7091
        %7093 = vmatmul.bf16.gmra.mxu0 %v3272
        %v7094 = vpop.f32.mrf.mxu0
        %v7095 = vadd.f32 %v7006, %v7094
        %v7096 = vpop.f32.mrf.mxu0
        %v7097 = vadd.f32 %v7008, %v7096
        %7098 = vmatmul.bf16.gmra.mxu0 %v3304
        %v7099 = vpop.f32.mrf.mxu0
        %v7100 = vadd.f32 %v7011, %v7099
        %v7101 = vpop.f32.mrf.mxu0
        %v7102 = vadd.f32 %v7013, %v7101
        %7103 = vmatmul.bf16.gmra.mxu0 %v3336
        %v7104 = vpop.f32.mrf.mxu0
        %v7105 = vadd.f32 %v7016, %v7104
        %v7106 = vpop.f32.mrf.mxu0
        %v7107 = vadd.f32 %v7018, %v7106
        %7108 = vmatmul.bf16.gmra.mxu0 %v3368
        %v7109 = vpop.f32.mrf.mxu0
        %v7110 = vadd.f32 %v7021, %v7109
        %v7111 = vpop.f32.mrf.mxu0
        %v7112 = vadd.f32 %v7023, %v7111
        %7113 = vmatmul.bf16.gmra.mxu0 %v3400
        %v7114 = vpop.f32.mrf.mxu0
        %v7115 = vadd.f32 %v7026, %v7114
        %v7116 = vpop.f32.mrf.mxu0
        %v7117 = vadd.f32 %v7028, %v7116
        %7118 = vmatmul.bf16.gmra.mxu0 %v3432
        %v7119 = vpop.f32.mrf.mxu0
        %v7120 = vadd.f32 %v7031, %v7119
        %v7121 = vpop.f32.mrf.mxu0
        %v7122 = vadd.f32 %v7033, %v7121
        %7123 = vmatmul.bf16.gmra.mxu0 %v3464
        %v7124 = vpop.f32.mrf.mxu0
        %v7125 = vadd.f32 %v7036, %v7124
        %v7126 = vpop.f32.mrf.mxu0
        %v7127 = vadd.f32 %v7038, %v7126
        %7128 = vdwg.mxu0
        %7129 = vmatpush.bf16.msra.mxu0 %v5166
        %7130 = vmatpush.bf16.msra.mxu0 %v5165
        %7131 = vmatpush.bf16.msra.mxu0 %v5164
        %7132 = vmatpush.bf16.msra.mxu0 %v5163
        %7133 = vmatpush.bf16.msra.mxu0 %v5162
        %7134 = vmatpush.bf16.msra.mxu0 %v5161
        %7135 = vmatpush.bf16.msra.mxu0 %v5160
        %7136 = vmatpush.bf16.msra.mxu0 %v5159
        %7137 = vmatmul.bf16.gmra.mxu0 %v2985
        %v7138 = vpop.f32.mrf.mxu0
        %v7139 = vadd.f32 %v7050, %v7138
        %v7140 = vpop.f32.mrf.mxu0
        %v7141 = vadd.f32 %v7052, %v7140
        %7142 = vmatmul.bf16.gmra.mxu0 %v3017
        %v7143 = vpop.f32.mrf.mxu0
        %v7144 = vadd.f32 %v7055, %v7143
        %v7145 = vpop.f32.mrf.mxu0
        %v7146 = vadd.f32 %v7057, %v7145
        %7147 = vmatmul.bf16.gmra.mxu0 %v3049
        %v7148 = vpop.f32.mrf.mxu0
        %v7149 = vadd.f32 %v7060, %v7148
        %v7150 = vpop.f32.mrf.mxu0
        %v7151 = vadd.f32 %v7062, %v7150
        %7152 = vmatmul.bf16.gmra.mxu0 %v3081
        %v7153 = vpop.f32.mrf.mxu0
        %v7154 = vadd.f32 %v7065, %v7153
        %v7155 = vpop.f32.mrf.mxu0
        %v7156 = vadd.f32 %v7067, %v7155
        %7157 = vmatmul.bf16.gmra.mxu0 %v3113
        %v7158 = vpop.f32.mrf.mxu0
        %v7159 = vadd.f32 %v7070, %v7158
        %v7160 = vpop.f32.mrf.mxu0
        %v7161 = vadd.f32 %v7072, %v7160
        %7162 = vmatmul.bf16.gmra.mxu0 %v3145
        %v7163 = vpop.f32.mrf.mxu0
        %v7164 = vadd.f32 %v7075, %v7163
        %v7165 = vpop.f32.mrf.mxu0
        %v7166 = vadd.f32 %v7077, %v7165
        %7167 = vmatmul.bf16.gmra.mxu0 %v3177
        %v7168 = vpop.f32.mrf.mxu0
        %v7169 = vadd.f32 %v7080, %v7168
        %v7170 = vpop.f32.mrf.mxu0
        %v7171 = vadd.f32 %v7082, %v7170
        %7172 = vmatmul.bf16.gmra.mxu0 %v3209
        %v7173 = vpop.f32.mrf.mxu0
        %v7174 = vadd.f32 %v7085, %v7173
        %v7175 = vpop.f32.mrf.mxu0
        %v7176 = vadd.f32 %v7087, %v7175
        %7177 = vmatmul.bf16.gmra.mxu0 %v3241
        %v7178 = vpop.f32.mrf.mxu0
        %v7179 = vadd.f32 %v7090, %v7178
        %v7180 = vpop.f32.mrf.mxu0
        %v7181 = vadd.f32 %v7092, %v7180
        %7182 = vmatmul.bf16.gmra.mxu0 %v3273
        %v7183 = vpop.f32.mrf.mxu0
        %v7184 = vadd.f32 %v7095, %v7183
        %v7185 = vpop.f32.mrf.mxu0
        %v7186 = vadd.f32 %v7097, %v7185
        %7187 = vmatmul.bf16.gmra.mxu0 %v3305
        %v7188 = vpop.f32.mrf.mxu0
        %v7189 = vadd.f32 %v7100, %v7188
        %v7190 = vpop.f32.mrf.mxu0
        %v7191 = vadd.f32 %v7102, %v7190
        %7192 = vmatmul.bf16.gmra.mxu0 %v3337
        %v7193 = vpop.f32.mrf.mxu0
        %v7194 = vadd.f32 %v7105, %v7193
        %v7195 = vpop.f32.mrf.mxu0
        %v7196 = vadd.f32 %v7107, %v7195
        %7197 = vmatmul.bf16.gmra.mxu0 %v3369
        %v7198 = vpop.f32.mrf.mxu0
        %v7199 = vadd.f32 %v7110, %v7198
        %v7200 = vpop.f32.mrf.mxu0
        %v7201 = vadd.f32 %v7112, %v7200
        %7202 = vmatmul.bf16.gmra.mxu0 %v3401
        %v7203 = vpop.f32.mrf.mxu0
        %v7204 = vadd.f32 %v7115, %v7203
        %v7205 = vpop.f32.mrf.mxu0
        %v7206 = vadd.f32 %v7117, %v7205
        %7207 = vmatmul.bf16.gmra.mxu0 %v3433
        %v7208 = vpop.f32.mrf.mxu0
        %v7209 = vadd.f32 %v7120, %v7208
        %v7210 = vpop.f32.mrf.mxu0
        %v7211 = vadd.f32 %v7122, %v7210
        %7212 = vmatmul.bf16.gmra.mxu0 %v3465
        %v7213 = vpop.f32.mrf.mxu0
        %v7214 = vadd.f32 %v7125, %v7213
        %v7215 = vpop.f32.mrf.mxu0
        %v7216 = vadd.f32 %v7127, %v7215
        %7217 = vdwg.mxu0
        %7218 = vmatpush.bf16.msra.mxu0 %v5174
        %7219 = vmatpush.bf16.msra.mxu0 %v5173
        %7220 = vmatpush.bf16.msra.mxu0 %v5172
        %7221 = vmatpush.bf16.msra.mxu0 %v5171
        %7222 = vmatpush.bf16.msra.mxu0 %v5170
        %7223 = vmatpush.bf16.msra.mxu0 %v5169
        %7224 = vmatpush.bf16.msra.mxu0 %v5168
        %7225 = vmatpush.bf16.msra.mxu0 %v5167
        %7226 = vmatmul.bf16.gmra.mxu0 %v2986
        %v7227 = vpop.f32.mrf.mxu0
        %v7228 = vadd.f32 %v7139, %v7227
        %v7229 = vpop.f32.mrf.mxu0
        %v7230 = vadd.f32 %v7141, %v7229
        %7231 = vmatmul.bf16.gmra.mxu0 %v3018
        %v7232 = vpop.f32.mrf.mxu0
        %v7233 = vadd.f32 %v7144, %v7232
        %v7234 = vpop.f32.mrf.mxu0
        %v7235 = vadd.f32 %v7146, %v7234
        %7236 = vmatmul.bf16.gmra.mxu0 %v3050
        %v7237 = vpop.f32.mrf.mxu0
        %v7238 = vadd.f32 %v7149, %v7237
        %v7239 = vpop.f32.mrf.mxu0
        %v7240 = vadd.f32 %v7151, %v7239
        %7241 = vmatmul.bf16.gmra.mxu0 %v3082
        %v7242 = vpop.f32.mrf.mxu0
        %v7243 = vadd.f32 %v7154, %v7242
        %v7244 = vpop.f32.mrf.mxu0
        %v7245 = vadd.f32 %v7156, %v7244
        %7246 = vmatmul.bf16.gmra.mxu0 %v3114
        %v7247 = vpop.f32.mrf.mxu0
        %v7248 = vadd.f32 %v7159, %v7247
        %v7249 = vpop.f32.mrf.mxu0
        %v7250 = vadd.f32 %v7161, %v7249
        %7251 = vmatmul.bf16.gmra.mxu0 %v3146
        %v7252 = vpop.f32.mrf.mxu0
        %v7253 = vadd.f32 %v7164, %v7252
        %v7254 = vpop.f32.mrf.mxu0
        %v7255 = vadd.f32 %v7166, %v7254
        %7256 = vmatmul.bf16.gmra.mxu0 %v3178
        %v7257 = vpop.f32.mrf.mxu0
        %v7258 = vadd.f32 %v7169, %v7257
        %v7259 = vpop.f32.mrf.mxu0
        %v7260 = vadd.f32 %v7171, %v7259
        %7261 = vmatmul.bf16.gmra.mxu0 %v3210
        %v7262 = vpop.f32.mrf.mxu0
        %v7263 = vadd.f32 %v7174, %v7262
        %v7264 = vpop.f32.mrf.mxu0
        %v7265 = vadd.f32 %v7176, %v7264
        %7266 = vmatmul.bf16.gmra.mxu0 %v3242
        %v7267 = vpop.f32.mrf.mxu0
        %v7268 = vadd.f32 %v7179, %v7267
        %v7269 = vpop.f32.mrf.mxu0
        %v7270 = vadd.f32 %v7181, %v7269
        %7271 = vmatmul.bf16.gmra.mxu0 %v3274
        %v7272 = vpop.f32.mrf.mxu0
        %v7273 = vadd.f32 %v7184, %v7272
        %v7274 = vpop.f32.mrf.mxu0
        %v7275 = vadd.f32 %v7186, %v7274
        %7276 = vmatmul.bf16.gmra.mxu0 %v3306
        %v7277 = vpop.f32.mrf.mxu0
        %v7278 = vadd.f32 %v7189, %v7277
        %v7279 = vpop.f32.mrf.mxu0
        %v7280 = vadd.f32 %v7191, %v7279
        %7281 = vmatmul.bf16.gmra.mxu0 %v3338
        %v7282 = vpop.f32.mrf.mxu0
        %v7283 = vadd.f32 %v7194, %v7282
        %v7284 = vpop.f32.mrf.mxu0
        %v7285 = vadd.f32 %v7196, %v7284
        %7286 = vmatmul.bf16.gmra.mxu0 %v3370
        %v7287 = vpop.f32.mrf.mxu0
        %v7288 = vadd.f32 %v7199, %v7287
        %v7289 = vpop.f32.mrf.mxu0
        %v7290 = vadd.f32 %v7201, %v7289
        %7291 = vmatmul.bf16.gmra.mxu0 %v3402
        %v7292 = vpop.f32.mrf.mxu0
        %v7293 = vadd.f32 %v7204, %v7292
        %v7294 = vpop.f32.mrf.mxu0
        %v7295 = vadd.f32 %v7206, %v7294
        %7296 = vmatmul.bf16.gmra.mxu0 %v3434
        %v7297 = vpop.f32.mrf.mxu0
        %v7298 = vadd.f32 %v7209, %v7297
        %v7299 = vpop.f32.mrf.mxu0
        %v7300 = vadd.f32 %v7211, %v7299
        %7301 = vmatmul.bf16.gmra.mxu0 %v3466
        %v7302 = vpop.f32.mrf.mxu0
        %v7303 = vadd.f32 %v7214, %v7302
        %v7304 = vpop.f32.mrf.mxu0
        %v7305 = vadd.f32 %v7216, %v7304
        %7306 = vdwg.mxu0
        %7307 = vmatpush.bf16.msra.mxu0 %v5182
        %7308 = vmatpush.bf16.msra.mxu0 %v5181
        %7309 = vmatpush.bf16.msra.mxu0 %v5180
        %7310 = vmatpush.bf16.msra.mxu0 %v5179
        %7311 = vmatpush.bf16.msra.mxu0 %v5178
        %7312 = vmatpush.bf16.msra.mxu0 %v5177
        %7313 = vmatpush.bf16.msra.mxu0 %v5176
        %7314 = vmatpush.bf16.msra.mxu0 %v5175
        %7315 = vmatmul.bf16.gmra.mxu0 %v2987
        %v7316 = vpop.f32.mrf.mxu0
        %v7317 = vadd.f32 %v7228, %v7316
        %v7318 = vpop.f32.mrf.mxu0
        %v7319 = vadd.f32 %v7230, %v7318
        %7320 = vmatmul.bf16.gmra.mxu0 %v3019
        %v7321 = vpop.f32.mrf.mxu0
        %v7322 = vadd.f32 %v7233, %v7321
        %v7323 = vpop.f32.mrf.mxu0
        %v7324 = vadd.f32 %v7235, %v7323
        %7325 = vmatmul.bf16.gmra.mxu0 %v3051
        %v7326 = vpop.f32.mrf.mxu0
        %v7327 = vadd.f32 %v7238, %v7326
        %v7328 = vpop.f32.mrf.mxu0
        %v7329 = vadd.f32 %v7240, %v7328
        %7330 = vmatmul.bf16.gmra.mxu0 %v3083
        %v7331 = vpop.f32.mrf.mxu0
        %v7332 = vadd.f32 %v7243, %v7331
        %v7333 = vpop.f32.mrf.mxu0
        %v7334 = vadd.f32 %v7245, %v7333
        %7335 = vmatmul.bf16.gmra.mxu0 %v3115
        %v7336 = vpop.f32.mrf.mxu0
        %v7337 = vadd.f32 %v7248, %v7336
        %v7338 = vpop.f32.mrf.mxu0
        %v7339 = vadd.f32 %v7250, %v7338
        %7340 = vmatmul.bf16.gmra.mxu0 %v3147
        %v7341 = vpop.f32.mrf.mxu0
        %v7342 = vadd.f32 %v7253, %v7341
        %v7343 = vpop.f32.mrf.mxu0
        %v7344 = vadd.f32 %v7255, %v7343
        %7345 = vmatmul.bf16.gmra.mxu0 %v3179
        %v7346 = vpop.f32.mrf.mxu0
        %v7347 = vadd.f32 %v7258, %v7346
        %v7348 = vpop.f32.mrf.mxu0
        %v7349 = vadd.f32 %v7260, %v7348
        %7350 = vmatmul.bf16.gmra.mxu0 %v3211
        %v7351 = vpop.f32.mrf.mxu0
        %v7352 = vadd.f32 %v7263, %v7351
        %v7353 = vpop.f32.mrf.mxu0
        %v7354 = vadd.f32 %v7265, %v7353
        %7355 = vmatmul.bf16.gmra.mxu0 %v3243
        %v7356 = vpop.f32.mrf.mxu0
        %v7357 = vadd.f32 %v7268, %v7356
        %v7358 = vpop.f32.mrf.mxu0
        %v7359 = vadd.f32 %v7270, %v7358
        %7360 = vmatmul.bf16.gmra.mxu0 %v3275
        %v7361 = vpop.f32.mrf.mxu0
        %v7362 = vadd.f32 %v7273, %v7361
        %v7363 = vpop.f32.mrf.mxu0
        %v7364 = vadd.f32 %v7275, %v7363
        %7365 = vmatmul.bf16.gmra.mxu0 %v3307
        %v7366 = vpop.f32.mrf.mxu0
        %v7367 = vadd.f32 %v7278, %v7366
        %v7368 = vpop.f32.mrf.mxu0
        %v7369 = vadd.f32 %v7280, %v7368
        %7370 = vmatmul.bf16.gmra.mxu0 %v3339
        %v7371 = vpop.f32.mrf.mxu0
        %v7372 = vadd.f32 %v7283, %v7371
        %v7373 = vpop.f32.mrf.mxu0
        %v7374 = vadd.f32 %v7285, %v7373
        %7375 = vmatmul.bf16.gmra.mxu0 %v3371
        %v7376 = vpop.f32.mrf.mxu0
        %v7377 = vadd.f32 %v7288, %v7376
        %v7378 = vpop.f32.mrf.mxu0
        %v7379 = vadd.f32 %v7290, %v7378
        %7380 = vmatmul.bf16.gmra.mxu0 %v3403
        %v7381 = vpop.f32.mrf.mxu0
        %v7382 = vadd.f32 %v7293, %v7381
        %v7383 = vpop.f32.mrf.mxu0
        %v7384 = vadd.f32 %v7295, %v7383
        %7385 = vmatmul.bf16.gmra.mxu0 %v3435
        %v7386 = vpop.f32.mrf.mxu0
        %v7387 = vadd.f32 %v7298, %v7386
        %v7388 = vpop.f32.mrf.mxu0
        %v7389 = vadd.f32 %v7300, %v7388
        %7390 = vmatmul.bf16.gmra.mxu0 %v3467
        %v7391 = vpop.f32.mrf.mxu0
        %v7392 = vadd.f32 %v7303, %v7391
        %v7393 = vpop.f32.mrf.mxu0
        %v7394 = vadd.f32 %v7305, %v7393
        %7395 = vdwg.mxu0
        %7396 = vmatpush.bf16.msra.mxu0 %v5190
        %7397 = vmatpush.bf16.msra.mxu0 %v5189
        %7398 = vmatpush.bf16.msra.mxu0 %v5188
        %7399 = vmatpush.bf16.msra.mxu0 %v5187
        %7400 = vmatpush.bf16.msra.mxu0 %v5186
        %7401 = vmatpush.bf16.msra.mxu0 %v5185
        %7402 = vmatpush.bf16.msra.mxu0 %v5184
        %7403 = vmatpush.bf16.msra.mxu0 %v5183
        %7404 = vmatmul.bf16.gmra.mxu0 %v2988
        %v7405 = vpop.f32.mrf.mxu0
        %v7406 = vadd.f32 %v7317, %v7405
        %v7407 = vpop.f32.mrf.mxu0
        %v7408 = vadd.f32 %v7319, %v7407
        %7409 = vmatmul.bf16.gmra.mxu0 %v3020
        %v7410 = vpop.f32.mrf.mxu0
        %v7411 = vadd.f32 %v7322, %v7410
        %v7412 = vpop.f32.mrf.mxu0
        %v7413 = vadd.f32 %v7324, %v7412
        %7414 = vmatmul.bf16.gmra.mxu0 %v3052
        %v7415 = vpop.f32.mrf.mxu0
        %v7416 = vadd.f32 %v7327, %v7415
        %v7417 = vpop.f32.mrf.mxu0
        %v7418 = vadd.f32 %v7329, %v7417
        %7419 = vmatmul.bf16.gmra.mxu0 %v3084
        %v7420 = vpop.f32.mrf.mxu0
        %v7421 = vadd.f32 %v7332, %v7420
        %v7422 = vpop.f32.mrf.mxu0
        %v7423 = vadd.f32 %v7334, %v7422
        %7424 = vmatmul.bf16.gmra.mxu0 %v3116
        %v7425 = vpop.f32.mrf.mxu0
        %v7426 = vadd.f32 %v7337, %v7425
        %v7427 = vpop.f32.mrf.mxu0
        %v7428 = vadd.f32 %v7339, %v7427
        %7429 = vmatmul.bf16.gmra.mxu0 %v3148
        %v7430 = vpop.f32.mrf.mxu0
        %v7431 = vadd.f32 %v7342, %v7430
        %v7432 = vpop.f32.mrf.mxu0
        %v7433 = vadd.f32 %v7344, %v7432
        %7434 = vmatmul.bf16.gmra.mxu0 %v3180
        %v7435 = vpop.f32.mrf.mxu0
        %v7436 = vadd.f32 %v7347, %v7435
        %v7437 = vpop.f32.mrf.mxu0
        %v7438 = vadd.f32 %v7349, %v7437
        %7439 = vmatmul.bf16.gmra.mxu0 %v3212
        %v7440 = vpop.f32.mrf.mxu0
        %v7441 = vadd.f32 %v7352, %v7440
        %v7442 = vpop.f32.mrf.mxu0
        %v7443 = vadd.f32 %v7354, %v7442
        %7444 = vmatmul.bf16.gmra.mxu0 %v3244
        %v7445 = vpop.f32.mrf.mxu0
        %v7446 = vadd.f32 %v7357, %v7445
        %v7447 = vpop.f32.mrf.mxu0
        %v7448 = vadd.f32 %v7359, %v7447
        %7449 = vmatmul.bf16.gmra.mxu0 %v3276
        %v7450 = vpop.f32.mrf.mxu0
        %v7451 = vadd.f32 %v7362, %v7450
        %v7452 = vpop.f32.mrf.mxu0
        %v7453 = vadd.f32 %v7364, %v7452
        %7454 = vmatmul.bf16.gmra.mxu0 %v3308
        %v7455 = vpop.f32.mrf.mxu0
        %v7456 = vadd.f32 %v7367, %v7455
        %v7457 = vpop.f32.mrf.mxu0
        %v7458 = vadd.f32 %v7369, %v7457
        %7459 = vmatmul.bf16.gmra.mxu0 %v3340
        %v7460 = vpop.f32.mrf.mxu0
        %v7461 = vadd.f32 %v7372, %v7460
        %v7462 = vpop.f32.mrf.mxu0
        %v7463 = vadd.f32 %v7374, %v7462
        %7464 = vmatmul.bf16.gmra.mxu0 %v3372
        %v7465 = vpop.f32.mrf.mxu0
        %v7466 = vadd.f32 %v7377, %v7465
        %v7467 = vpop.f32.mrf.mxu0
        %v7468 = vadd.f32 %v7379, %v7467
        %7469 = vmatmul.bf16.gmra.mxu0 %v3404
        %v7470 = vpop.f32.mrf.mxu0
        %v7471 = vadd.f32 %v7382, %v7470
        %v7472 = vpop.f32.mrf.mxu0
        %v7473 = vadd.f32 %v7384, %v7472
        %7474 = vmatmul.bf16.gmra.mxu0 %v3436
        %v7475 = vpop.f32.mrf.mxu0
        %v7476 = vadd.f32 %v7387, %v7475
        %v7477 = vpop.f32.mrf.mxu0
        %v7478 = vadd.f32 %v7389, %v7477
        %7479 = vmatmul.bf16.gmra.mxu0 %v3468
        %v7480 = vpop.f32.mrf.mxu0
        %v7481 = vadd.f32 %v7392, %v7480
        %v7482 = vpop.f32.mrf.mxu0
        %v7483 = vadd.f32 %v7394, %v7482
        %7484 = vdwg.mxu0
        %7485 = vmatpush.bf16.msra.mxu0 %v5198
        %7486 = vmatpush.bf16.msra.mxu0 %v5197
        %7487 = vmatpush.bf16.msra.mxu0 %v5196
        %7488 = vmatpush.bf16.msra.mxu0 %v5195
        %7489 = vmatpush.bf16.msra.mxu0 %v5194
        %7490 = vmatpush.bf16.msra.mxu0 %v5193
        %7491 = vmatpush.bf16.msra.mxu0 %v5192
        %7492 = vmatpush.bf16.msra.mxu0 %v5191
        %7493 = vmatmul.bf16.gmra.mxu0 %v2989
        %v7494 = vpop.f32.mrf.mxu0
        %v7495 = vadd.f32 %v7406, %v7494
        %v7496 = vpop.f32.mrf.mxu0
        %v7497 = vadd.f32 %v7408, %v7496
        %7498 = vmatmul.bf16.gmra.mxu0 %v3021
        %v7499 = vpop.f32.mrf.mxu0
        %v7500 = vadd.f32 %v7411, %v7499
        %v7501 = vpop.f32.mrf.mxu0
        %v7502 = vadd.f32 %v7413, %v7501
        %7503 = vmatmul.bf16.gmra.mxu0 %v3053
        %v7504 = vpop.f32.mrf.mxu0
        %v7505 = vadd.f32 %v7416, %v7504
        %v7506 = vpop.f32.mrf.mxu0
        %v7507 = vadd.f32 %v7418, %v7506
        %7508 = vmatmul.bf16.gmra.mxu0 %v3085
        %v7509 = vpop.f32.mrf.mxu0
        %v7510 = vadd.f32 %v7421, %v7509
        %v7511 = vpop.f32.mrf.mxu0
        %v7512 = vadd.f32 %v7423, %v7511
        %7513 = vmatmul.bf16.gmra.mxu0 %v3117
        %v7514 = vpop.f32.mrf.mxu0
        %v7515 = vadd.f32 %v7426, %v7514
        %v7516 = vpop.f32.mrf.mxu0
        %v7517 = vadd.f32 %v7428, %v7516
        %7518 = vmatmul.bf16.gmra.mxu0 %v3149
        %v7519 = vpop.f32.mrf.mxu0
        %v7520 = vadd.f32 %v7431, %v7519
        %v7521 = vpop.f32.mrf.mxu0
        %v7522 = vadd.f32 %v7433, %v7521
        %7523 = vmatmul.bf16.gmra.mxu0 %v3181
        %v7524 = vpop.f32.mrf.mxu0
        %v7525 = vadd.f32 %v7436, %v7524
        %v7526 = vpop.f32.mrf.mxu0
        %v7527 = vadd.f32 %v7438, %v7526
        %7528 = vmatmul.bf16.gmra.mxu0 %v3213
        %v7529 = vpop.f32.mrf.mxu0
        %v7530 = vadd.f32 %v7441, %v7529
        %v7531 = vpop.f32.mrf.mxu0
        %v7532 = vadd.f32 %v7443, %v7531
        %7533 = vmatmul.bf16.gmra.mxu0 %v3245
        %v7534 = vpop.f32.mrf.mxu0
        %v7535 = vadd.f32 %v7446, %v7534
        %v7536 = vpop.f32.mrf.mxu0
        %v7537 = vadd.f32 %v7448, %v7536
        %7538 = vmatmul.bf16.gmra.mxu0 %v3277
        %v7539 = vpop.f32.mrf.mxu0
        %v7540 = vadd.f32 %v7451, %v7539
        %v7541 = vpop.f32.mrf.mxu0
        %v7542 = vadd.f32 %v7453, %v7541
        %7543 = vmatmul.bf16.gmra.mxu0 %v3309
        %v7544 = vpop.f32.mrf.mxu0
        %v7545 = vadd.f32 %v7456, %v7544
        %v7546 = vpop.f32.mrf.mxu0
        %v7547 = vadd.f32 %v7458, %v7546
        %7548 = vmatmul.bf16.gmra.mxu0 %v3341
        %v7549 = vpop.f32.mrf.mxu0
        %v7550 = vadd.f32 %v7461, %v7549
        %v7551 = vpop.f32.mrf.mxu0
        %v7552 = vadd.f32 %v7463, %v7551
        %7553 = vmatmul.bf16.gmra.mxu0 %v3373
        %v7554 = vpop.f32.mrf.mxu0
        %v7555 = vadd.f32 %v7466, %v7554
        %v7556 = vpop.f32.mrf.mxu0
        %v7557 = vadd.f32 %v7468, %v7556
        %7558 = vmatmul.bf16.gmra.mxu0 %v3405
        %v7559 = vpop.f32.mrf.mxu0
        %v7560 = vadd.f32 %v7471, %v7559
        %v7561 = vpop.f32.mrf.mxu0
        %v7562 = vadd.f32 %v7473, %v7561
        %7563 = vmatmul.bf16.gmra.mxu0 %v3437
        %v7564 = vpop.f32.mrf.mxu0
        %v7565 = vadd.f32 %v7476, %v7564
        %v7566 = vpop.f32.mrf.mxu0
        %v7567 = vadd.f32 %v7478, %v7566
        %7568 = vmatmul.bf16.gmra.mxu0 %v3469
        %v7569 = vpop.f32.mrf.mxu0
        %v7570 = vadd.f32 %v7481, %v7569
        %v7571 = vpop.f32.mrf.mxu0
        %v7572 = vadd.f32 %v7483, %v7571
        %7573 = vdwg.mxu0
        %7574 = vmatpush.bf16.msra.mxu0 %v5206
        %7575 = vmatpush.bf16.msra.mxu0 %v5205
        %7576 = vmatpush.bf16.msra.mxu0 %v5204
        %7577 = vmatpush.bf16.msra.mxu0 %v5203
        %7578 = vmatpush.bf16.msra.mxu0 %v5202
        %7579 = vmatpush.bf16.msra.mxu0 %v5201
        %7580 = vmatpush.bf16.msra.mxu0 %v5200
        %7581 = vmatpush.bf16.msra.mxu0 %v5199
        %7582 = vmatmul.bf16.gmra.mxu0 %v2990
        %v7583 = vpop.f32.mrf.mxu0
        %v7584 = vadd.f32 %v7495, %v7583
        %v7585 = vpop.f32.mrf.mxu0
        %v7586 = vadd.f32 %v7497, %v7585
        %7587 = vmatmul.bf16.gmra.mxu0 %v3022
        %v7588 = vpop.f32.mrf.mxu0
        %v7589 = vadd.f32 %v7500, %v7588
        %v7590 = vpop.f32.mrf.mxu0
        %v7591 = vadd.f32 %v7502, %v7590
        %7592 = vmatmul.bf16.gmra.mxu0 %v3054
        %v7593 = vpop.f32.mrf.mxu0
        %v7594 = vadd.f32 %v7505, %v7593
        %v7595 = vpop.f32.mrf.mxu0
        %v7596 = vadd.f32 %v7507, %v7595
        %7597 = vmatmul.bf16.gmra.mxu0 %v3086
        %v7598 = vpop.f32.mrf.mxu0
        %v7599 = vadd.f32 %v7510, %v7598
        %v7600 = vpop.f32.mrf.mxu0
        %v7601 = vadd.f32 %v7512, %v7600
        %7602 = vmatmul.bf16.gmra.mxu0 %v3118
        %v7603 = vpop.f32.mrf.mxu0
        %v7604 = vadd.f32 %v7515, %v7603
        %v7605 = vpop.f32.mrf.mxu0
        %v7606 = vadd.f32 %v7517, %v7605
        %7607 = vmatmul.bf16.gmra.mxu0 %v3150
        %v7608 = vpop.f32.mrf.mxu0
        %v7609 = vadd.f32 %v7520, %v7608
        %v7610 = vpop.f32.mrf.mxu0
        %v7611 = vadd.f32 %v7522, %v7610
        %7612 = vmatmul.bf16.gmra.mxu0 %v3182
        %v7613 = vpop.f32.mrf.mxu0
        %v7614 = vadd.f32 %v7525, %v7613
        %v7615 = vpop.f32.mrf.mxu0
        %v7616 = vadd.f32 %v7527, %v7615
        %7617 = vmatmul.bf16.gmra.mxu0 %v3214
        %v7618 = vpop.f32.mrf.mxu0
        %v7619 = vadd.f32 %v7530, %v7618
        %v7620 = vpop.f32.mrf.mxu0
        %v7621 = vadd.f32 %v7532, %v7620
        %7622 = vmatmul.bf16.gmra.mxu0 %v3246
        %v7623 = vpop.f32.mrf.mxu0
        %v7624 = vadd.f32 %v7535, %v7623
        %v7625 = vpop.f32.mrf.mxu0
        %v7626 = vadd.f32 %v7537, %v7625
        %7627 = vmatmul.bf16.gmra.mxu0 %v3278
        %v7628 = vpop.f32.mrf.mxu0
        %v7629 = vadd.f32 %v7540, %v7628
        %v7630 = vpop.f32.mrf.mxu0
        %v7631 = vadd.f32 %v7542, %v7630
        %7632 = vmatmul.bf16.gmra.mxu0 %v3310
        %v7633 = vpop.f32.mrf.mxu0
        %v7634 = vadd.f32 %v7545, %v7633
        %v7635 = vpop.f32.mrf.mxu0
        %v7636 = vadd.f32 %v7547, %v7635
        %7637 = vmatmul.bf16.gmra.mxu0 %v3342
        %v7638 = vpop.f32.mrf.mxu0
        %v7639 = vadd.f32 %v7550, %v7638
        %v7640 = vpop.f32.mrf.mxu0
        %v7641 = vadd.f32 %v7552, %v7640
        %7642 = vmatmul.bf16.gmra.mxu0 %v3374
        %v7643 = vpop.f32.mrf.mxu0
        %v7644 = vadd.f32 %v7555, %v7643
        %v7645 = vpop.f32.mrf.mxu0
        %v7646 = vadd.f32 %v7557, %v7645
        %7647 = vmatmul.bf16.gmra.mxu0 %v3406
        %v7648 = vpop.f32.mrf.mxu0
        %v7649 = vadd.f32 %v7560, %v7648
        %v7650 = vpop.f32.mrf.mxu0
        %v7651 = vadd.f32 %v7562, %v7650
        %7652 = vmatmul.bf16.gmra.mxu0 %v3438
        %v7653 = vpop.f32.mrf.mxu0
        %v7654 = vadd.f32 %v7565, %v7653
        %v7655 = vpop.f32.mrf.mxu0
        %v7656 = vadd.f32 %v7567, %v7655
        %7657 = vmatmul.bf16.gmra.mxu0 %v3470
        %v7658 = vpop.f32.mrf.mxu0
        %v7659 = vadd.f32 %v7570, %v7658
        %v7660 = vpop.f32.mrf.mxu0
        %v7661 = vadd.f32 %v7572, %v7660
        %7662 = vdwg.mxu0
        %7663 = vmatpush.bf16.msra.mxu0 %v5214
        %7664 = vmatpush.bf16.msra.mxu0 %v5213
        %7665 = vmatpush.bf16.msra.mxu0 %v5212
        %7666 = vmatpush.bf16.msra.mxu0 %v5211
        %7667 = vmatpush.bf16.msra.mxu0 %v5210
        %7668 = vmatpush.bf16.msra.mxu0 %v5209
        %7669 = vmatpush.bf16.msra.mxu0 %v5208
        %7670 = vmatpush.bf16.msra.mxu0 %v5207
        %7671 = vmatmul.bf16.gmra.mxu0 %v2991
        %v7672 = vpop.f32.mrf.mxu0
        %v7673 = vadd.f32 %v7584, %v7672
        %v7674 = vpop.f32.mrf.mxu0
        %v7675 = vadd.f32 %v7586, %v7674
        %7676 = vmatmul.bf16.gmra.mxu0 %v3023
        %v7677 = vpop.f32.mrf.mxu0
        %v7678 = vadd.f32 %v7589, %v7677
        %v7679 = vpop.f32.mrf.mxu0
        %v7680 = vadd.f32 %v7591, %v7679
        %7681 = vmatmul.bf16.gmra.mxu0 %v3055
        %v7682 = vpop.f32.mrf.mxu0
        %v7683 = vadd.f32 %v7594, %v7682
        %v7684 = vpop.f32.mrf.mxu0
        %v7685 = vadd.f32 %v7596, %v7684
        %7686 = vmatmul.bf16.gmra.mxu0 %v3087
        %v7687 = vpop.f32.mrf.mxu0
        %v7688 = vadd.f32 %v7599, %v7687
        %v7689 = vpop.f32.mrf.mxu0
        %v7690 = vadd.f32 %v7601, %v7689
        %7691 = vmatmul.bf16.gmra.mxu0 %v3119
        %v7692 = vpop.f32.mrf.mxu0
        %v7693 = vadd.f32 %v7604, %v7692
        %v7694 = vpop.f32.mrf.mxu0
        %v7695 = vadd.f32 %v7606, %v7694
        %7696 = vmatmul.bf16.gmra.mxu0 %v3151
        %v7697 = vpop.f32.mrf.mxu0
        %v7698 = vadd.f32 %v7609, %v7697
        %v7699 = vpop.f32.mrf.mxu0
        %v7700 = vadd.f32 %v7611, %v7699
        %7701 = vmatmul.bf16.gmra.mxu0 %v3183
        %v7702 = vpop.f32.mrf.mxu0
        %v7703 = vadd.f32 %v7614, %v7702
        %v7704 = vpop.f32.mrf.mxu0
        %v7705 = vadd.f32 %v7616, %v7704
        %7706 = vmatmul.bf16.gmra.mxu0 %v3215
        %v7707 = vpop.f32.mrf.mxu0
        %v7708 = vadd.f32 %v7619, %v7707
        %v7709 = vpop.f32.mrf.mxu0
        %v7710 = vadd.f32 %v7621, %v7709
        %7711 = vmatmul.bf16.gmra.mxu0 %v3247
        %v7712 = vpop.f32.mrf.mxu0
        %v7713 = vadd.f32 %v7624, %v7712
        %v7714 = vpop.f32.mrf.mxu0
        %v7715 = vadd.f32 %v7626, %v7714
        %7716 = vmatmul.bf16.gmra.mxu0 %v3279
        %v7717 = vpop.f32.mrf.mxu0
        %v7718 = vadd.f32 %v7629, %v7717
        %v7719 = vpop.f32.mrf.mxu0
        %v7720 = vadd.f32 %v7631, %v7719
        %7721 = vmatmul.bf16.gmra.mxu0 %v3311
        %v7722 = vpop.f32.mrf.mxu0
        %v7723 = vadd.f32 %v7634, %v7722
        %v7724 = vpop.f32.mrf.mxu0
        %v7725 = vadd.f32 %v7636, %v7724
        %7726 = vmatmul.bf16.gmra.mxu0 %v3343
        %v7727 = vpop.f32.mrf.mxu0
        %v7728 = vadd.f32 %v7639, %v7727
        %v7729 = vpop.f32.mrf.mxu0
        %v7730 = vadd.f32 %v7641, %v7729
        %7731 = vmatmul.bf16.gmra.mxu0 %v3375
        %v7732 = vpop.f32.mrf.mxu0
        %v7733 = vadd.f32 %v7644, %v7732
        %v7734 = vpop.f32.mrf.mxu0
        %v7735 = vadd.f32 %v7646, %v7734
        %7736 = vmatmul.bf16.gmra.mxu0 %v3407
        %v7737 = vpop.f32.mrf.mxu0
        %v7738 = vadd.f32 %v7649, %v7737
        %v7739 = vpop.f32.mrf.mxu0
        %v7740 = vadd.f32 %v7651, %v7739
        %7741 = vmatmul.bf16.gmra.mxu0 %v3439
        %v7742 = vpop.f32.mrf.mxu0
        %v7743 = vadd.f32 %v7654, %v7742
        %v7744 = vpop.f32.mrf.mxu0
        %v7745 = vadd.f32 %v7656, %v7744
        %7746 = vmatmul.bf16.gmra.mxu0 %v3471
        %v7747 = vpop.f32.mrf.mxu0
        %v7748 = vadd.f32 %v7659, %v7747
        %v7749 = vpop.f32.mrf.mxu0
        %v7750 = vadd.f32 %v7661, %v7749
        %7751 = vdwg.mxu0
        %7752 = vmatpush.bf16.msra.mxu0 %v5222
        %7753 = vmatpush.bf16.msra.mxu0 %v5221
        %7754 = vmatpush.bf16.msra.mxu0 %v5220
        %7755 = vmatpush.bf16.msra.mxu0 %v5219
        %7756 = vmatpush.bf16.msra.mxu0 %v5218
        %7757 = vmatpush.bf16.msra.mxu0 %v5217
        %7758 = vmatpush.bf16.msra.mxu0 %v5216
        %7759 = vmatpush.bf16.msra.mxu0 %v5215
        %7760 = vmatmul.bf16.gmra.mxu0 %v2992
        %v7761 = vpop.f32.mrf.mxu0
        %v7762 = vadd.f32 %v7673, %v7761
        %v7763 = vpop.f32.mrf.mxu0
        %v7764 = vadd.f32 %v7675, %v7763
        %7765 = vmatmul.bf16.gmra.mxu0 %v3024
        %v7766 = vpop.f32.mrf.mxu0
        %v7767 = vadd.f32 %v7678, %v7766
        %v7768 = vpop.f32.mrf.mxu0
        %v7769 = vadd.f32 %v7680, %v7768
        %7770 = vmatmul.bf16.gmra.mxu0 %v3056
        %v7771 = vpop.f32.mrf.mxu0
        %v7772 = vadd.f32 %v7683, %v7771
        %v7773 = vpop.f32.mrf.mxu0
        %v7774 = vadd.f32 %v7685, %v7773
        %7775 = vmatmul.bf16.gmra.mxu0 %v3088
        %v7776 = vpop.f32.mrf.mxu0
        %v7777 = vadd.f32 %v7688, %v7776
        %v7778 = vpop.f32.mrf.mxu0
        %v7779 = vadd.f32 %v7690, %v7778
        %7780 = vmatmul.bf16.gmra.mxu0 %v3120
        %v7781 = vpop.f32.mrf.mxu0
        %v7782 = vadd.f32 %v7693, %v7781
        %v7783 = vpop.f32.mrf.mxu0
        %v7784 = vadd.f32 %v7695, %v7783
        %7785 = vmatmul.bf16.gmra.mxu0 %v3152
        %v7786 = vpop.f32.mrf.mxu0
        %v7787 = vadd.f32 %v7698, %v7786
        %v7788 = vpop.f32.mrf.mxu0
        %v7789 = vadd.f32 %v7700, %v7788
        %7790 = vmatmul.bf16.gmra.mxu0 %v3184
        %v7791 = vpop.f32.mrf.mxu0
        %v7792 = vadd.f32 %v7703, %v7791
        %v7793 = vpop.f32.mrf.mxu0
        %v7794 = vadd.f32 %v7705, %v7793
        %7795 = vmatmul.bf16.gmra.mxu0 %v3216
        %v7796 = vpop.f32.mrf.mxu0
        %v7797 = vadd.f32 %v7708, %v7796
        %v7798 = vpop.f32.mrf.mxu0
        %v7799 = vadd.f32 %v7710, %v7798
        %7800 = vmatmul.bf16.gmra.mxu0 %v3248
        %v7801 = vpop.f32.mrf.mxu0
        %v7802 = vadd.f32 %v7713, %v7801
        %v7803 = vpop.f32.mrf.mxu0
        %v7804 = vadd.f32 %v7715, %v7803
        %7805 = vmatmul.bf16.gmra.mxu0 %v3280
        %v7806 = vpop.f32.mrf.mxu0
        %v7807 = vadd.f32 %v7718, %v7806
        %v7808 = vpop.f32.mrf.mxu0
        %v7809 = vadd.f32 %v7720, %v7808
        %7810 = vmatmul.bf16.gmra.mxu0 %v3312
        %v7811 = vpop.f32.mrf.mxu0
        %v7812 = vadd.f32 %v7723, %v7811
        %v7813 = vpop.f32.mrf.mxu0
        %v7814 = vadd.f32 %v7725, %v7813
        %7815 = vmatmul.bf16.gmra.mxu0 %v3344
        %v7816 = vpop.f32.mrf.mxu0
        %v7817 = vadd.f32 %v7728, %v7816
        %v7818 = vpop.f32.mrf.mxu0
        %v7819 = vadd.f32 %v7730, %v7818
        %7820 = vmatmul.bf16.gmra.mxu0 %v3376
        %v7821 = vpop.f32.mrf.mxu0
        %v7822 = vadd.f32 %v7733, %v7821
        %v7823 = vpop.f32.mrf.mxu0
        %v7824 = vadd.f32 %v7735, %v7823
        %7825 = vmatmul.bf16.gmra.mxu0 %v3408
        %v7826 = vpop.f32.mrf.mxu0
        %v7827 = vadd.f32 %v7738, %v7826
        %v7828 = vpop.f32.mrf.mxu0
        %v7829 = vadd.f32 %v7740, %v7828
        %7830 = vmatmul.bf16.gmra.mxu0 %v3440
        %v7831 = vpop.f32.mrf.mxu0
        %v7832 = vadd.f32 %v7743, %v7831
        %v7833 = vpop.f32.mrf.mxu0
        %v7834 = vadd.f32 %v7745, %v7833
        %7835 = vmatmul.bf16.gmra.mxu0 %v3472
        %v7836 = vpop.f32.mrf.mxu0
        %v7837 = vadd.f32 %v7748, %v7836
        %v7838 = vpop.f32.mrf.mxu0
        %v7839 = vadd.f32 %v7750, %v7838
        %7840 = vdwg.mxu0
        %7841 = vmatpush.bf16.msra.mxu0 %v5230
        %7842 = vmatpush.bf16.msra.mxu0 %v5229
        %7843 = vmatpush.bf16.msra.mxu0 %v5228
        %7844 = vmatpush.bf16.msra.mxu0 %v5227
        %7845 = vmatpush.bf16.msra.mxu0 %v5226
        %7846 = vmatpush.bf16.msra.mxu0 %v5225
        %7847 = vmatpush.bf16.msra.mxu0 %v5224
        %7848 = vmatpush.bf16.msra.mxu0 %v5223
        %7849 = vmatmul.bf16.gmra.mxu0 %v2993
        %v7850 = vpop.f32.mrf.mxu0
        %v7851 = vadd.f32 %v7762, %v7850
        %v7852 = vpop.f32.mrf.mxu0
        %v7853 = vadd.f32 %v7764, %v7852
        %7854 = vmatmul.bf16.gmra.mxu0 %v3025
        %v7855 = vpop.f32.mrf.mxu0
        %v7856 = vadd.f32 %v7767, %v7855
        %v7857 = vpop.f32.mrf.mxu0
        %v7858 = vadd.f32 %v7769, %v7857
        %7859 = vmatmul.bf16.gmra.mxu0 %v3057
        %v7860 = vpop.f32.mrf.mxu0
        %v7861 = vadd.f32 %v7772, %v7860
        %v7862 = vpop.f32.mrf.mxu0
        %v7863 = vadd.f32 %v7774, %v7862
        %7864 = vmatmul.bf16.gmra.mxu0 %v3089
        %v7865 = vpop.f32.mrf.mxu0
        %v7866 = vadd.f32 %v7777, %v7865
        %v7867 = vpop.f32.mrf.mxu0
        %v7868 = vadd.f32 %v7779, %v7867
        %7869 = vmatmul.bf16.gmra.mxu0 %v3121
        %v7870 = vpop.f32.mrf.mxu0
        %v7871 = vadd.f32 %v7782, %v7870
        %v7872 = vpop.f32.mrf.mxu0
        %v7873 = vadd.f32 %v7784, %v7872
        %7874 = vmatmul.bf16.gmra.mxu0 %v3153
        %v7875 = vpop.f32.mrf.mxu0
        %v7876 = vadd.f32 %v7787, %v7875
        %v7877 = vpop.f32.mrf.mxu0
        %v7878 = vadd.f32 %v7789, %v7877
        %7879 = vmatmul.bf16.gmra.mxu0 %v3185
        %v7880 = vpop.f32.mrf.mxu0
        %v7881 = vadd.f32 %v7792, %v7880
        %v7882 = vpop.f32.mrf.mxu0
        %v7883 = vadd.f32 %v7794, %v7882
        %7884 = vmatmul.bf16.gmra.mxu0 %v3217
        %v7885 = vpop.f32.mrf.mxu0
        %v7886 = vadd.f32 %v7797, %v7885
        %v7887 = vpop.f32.mrf.mxu0
        %v7888 = vadd.f32 %v7799, %v7887
        %7889 = vmatmul.bf16.gmra.mxu0 %v3249
        %v7890 = vpop.f32.mrf.mxu0
        %v7891 = vadd.f32 %v7802, %v7890
        %v7892 = vpop.f32.mrf.mxu0
        %v7893 = vadd.f32 %v7804, %v7892
        %7894 = vmatmul.bf16.gmra.mxu0 %v3281
        %v7895 = vpop.f32.mrf.mxu0
        %v7896 = vadd.f32 %v7807, %v7895
        %v7897 = vpop.f32.mrf.mxu0
        %v7898 = vadd.f32 %v7809, %v7897
        %7899 = vmatmul.bf16.gmra.mxu0 %v3313
        %v7900 = vpop.f32.mrf.mxu0
        %v7901 = vadd.f32 %v7812, %v7900
        %v7902 = vpop.f32.mrf.mxu0
        %v7903 = vadd.f32 %v7814, %v7902
        %7904 = vmatmul.bf16.gmra.mxu0 %v3345
        %v7905 = vpop.f32.mrf.mxu0
        %v7906 = vadd.f32 %v7817, %v7905
        %v7907 = vpop.f32.mrf.mxu0
        %v7908 = vadd.f32 %v7819, %v7907
        %7909 = vmatmul.bf16.gmra.mxu0 %v3377
        %v7910 = vpop.f32.mrf.mxu0
        %v7911 = vadd.f32 %v7822, %v7910
        %v7912 = vpop.f32.mrf.mxu0
        %v7913 = vadd.f32 %v7824, %v7912
        %7914 = vmatmul.bf16.gmra.mxu0 %v3409
        %v7915 = vpop.f32.mrf.mxu0
        %v7916 = vadd.f32 %v7827, %v7915
        %v7917 = vpop.f32.mrf.mxu0
        %v7918 = vadd.f32 %v7829, %v7917
        %7919 = vmatmul.bf16.gmra.mxu0 %v3441
        %v7920 = vpop.f32.mrf.mxu0
        %v7921 = vadd.f32 %v7832, %v7920
        %v7922 = vpop.f32.mrf.mxu0
        %v7923 = vadd.f32 %v7834, %v7922
        %7924 = vmatmul.bf16.gmra.mxu0 %v3473
        %v7925 = vpop.f32.mrf.mxu0
        %v7926 = vadd.f32 %v7837, %v7925
        %v7927 = vpop.f32.mrf.mxu0
        %v7928 = vadd.f32 %v7839, %v7927
        %7929 = vdwg.mxu0
        %7930 = vmatpush.bf16.msra.mxu0 %v5238
        %7931 = vmatpush.bf16.msra.mxu0 %v5237
        %7932 = vmatpush.bf16.msra.mxu0 %v5236
        %7933 = vmatpush.bf16.msra.mxu0 %v5235
        %7934 = vmatpush.bf16.msra.mxu0 %v5234
        %7935 = vmatpush.bf16.msra.mxu0 %v5233
        %7936 = vmatpush.bf16.msra.mxu0 %v5232
        %7937 = vmatpush.bf16.msra.mxu0 %v5231
        %7938 = vmatmul.bf16.gmra.mxu0 %v2994
        %v7939 = vpop.f32.mrf.mxu0
        %v7940 = vadd.f32 %v7851, %v7939
        %v7941 = vpop.f32.mrf.mxu0
        %v7942 = vadd.f32 %v7853, %v7941
        %7943 = vmatmul.bf16.gmra.mxu0 %v3026
        %v7944 = vpop.f32.mrf.mxu0
        %v7945 = vadd.f32 %v7856, %v7944
        %v7946 = vpop.f32.mrf.mxu0
        %v7947 = vadd.f32 %v7858, %v7946
        %7948 = vmatmul.bf16.gmra.mxu0 %v3058
        %v7949 = vpop.f32.mrf.mxu0
        %v7950 = vadd.f32 %v7861, %v7949
        %v7951 = vpop.f32.mrf.mxu0
        %v7952 = vadd.f32 %v7863, %v7951
        %7953 = vmatmul.bf16.gmra.mxu0 %v3090
        %v7954 = vpop.f32.mrf.mxu0
        %v7955 = vadd.f32 %v7866, %v7954
        %v7956 = vpop.f32.mrf.mxu0
        %v7957 = vadd.f32 %v7868, %v7956
        %7958 = vmatmul.bf16.gmra.mxu0 %v3122
        %v7959 = vpop.f32.mrf.mxu0
        %v7960 = vadd.f32 %v7871, %v7959
        %v7961 = vpop.f32.mrf.mxu0
        %v7962 = vadd.f32 %v7873, %v7961
        %7963 = vmatmul.bf16.gmra.mxu0 %v3154
        %v7964 = vpop.f32.mrf.mxu0
        %v7965 = vadd.f32 %v7876, %v7964
        %v7966 = vpop.f32.mrf.mxu0
        %v7967 = vadd.f32 %v7878, %v7966
        %7968 = vmatmul.bf16.gmra.mxu0 %v3186
        %v7969 = vpop.f32.mrf.mxu0
        %v7970 = vadd.f32 %v7881, %v7969
        %v7971 = vpop.f32.mrf.mxu0
        %v7972 = vadd.f32 %v7883, %v7971
        %7973 = vmatmul.bf16.gmra.mxu0 %v3218
        %v7974 = vpop.f32.mrf.mxu0
        %v7975 = vadd.f32 %v7886, %v7974
        %v7976 = vpop.f32.mrf.mxu0
        %v7977 = vadd.f32 %v7888, %v7976
        %7978 = vmatmul.bf16.gmra.mxu0 %v3250
        %v7979 = vpop.f32.mrf.mxu0
        %v7980 = vadd.f32 %v7891, %v7979
        %v7981 = vpop.f32.mrf.mxu0
        %v7982 = vadd.f32 %v7893, %v7981
        %7983 = vmatmul.bf16.gmra.mxu0 %v3282
        %v7984 = vpop.f32.mrf.mxu0
        %v7985 = vadd.f32 %v7896, %v7984
        %v7986 = vpop.f32.mrf.mxu0
        %v7987 = vadd.f32 %v7898, %v7986
        %7988 = vmatmul.bf16.gmra.mxu0 %v3314
        %v7989 = vpop.f32.mrf.mxu0
        %v7990 = vadd.f32 %v7901, %v7989
        %v7991 = vpop.f32.mrf.mxu0
        %v7992 = vadd.f32 %v7903, %v7991
        %7993 = vmatmul.bf16.gmra.mxu0 %v3346
        %v7994 = vpop.f32.mrf.mxu0
        %v7995 = vadd.f32 %v7906, %v7994
        %v7996 = vpop.f32.mrf.mxu0
        %v7997 = vadd.f32 %v7908, %v7996
        %7998 = vmatmul.bf16.gmra.mxu0 %v3378
        %v7999 = vpop.f32.mrf.mxu0
        %v8000 = vadd.f32 %v7911, %v7999
        %v8001 = vpop.f32.mrf.mxu0
        %v8002 = vadd.f32 %v7913, %v8001
        %8003 = vmatmul.bf16.gmra.mxu0 %v3410
        %v8004 = vpop.f32.mrf.mxu0
        %v8005 = vadd.f32 %v7916, %v8004
        %v8006 = vpop.f32.mrf.mxu0
        %v8007 = vadd.f32 %v7918, %v8006
        %8008 = vmatmul.bf16.gmra.mxu0 %v3442
        %v8009 = vpop.f32.mrf.mxu0
        %v8010 = vadd.f32 %v7921, %v8009
        %v8011 = vpop.f32.mrf.mxu0
        %v8012 = vadd.f32 %v7923, %v8011
        %8013 = vmatmul.bf16.gmra.mxu0 %v3474
        %v8014 = vpop.f32.mrf.mxu0
        %v8015 = vadd.f32 %v7926, %v8014
        %v8016 = vpop.f32.mrf.mxu0
        %v8017 = vadd.f32 %v7928, %v8016
        %8018 = vdwg.mxu0
        %8019 = vmatpush.bf16.msra.mxu0 %v5246
        %8020 = vmatpush.bf16.msra.mxu0 %v5245
        %8021 = vmatpush.bf16.msra.mxu0 %v5244
        %8022 = vmatpush.bf16.msra.mxu0 %v5243
        %8023 = vmatpush.bf16.msra.mxu0 %v5242
        %8024 = vmatpush.bf16.msra.mxu0 %v5241
        %8025 = vmatpush.bf16.msra.mxu0 %v5240
        %8026 = vmatpush.bf16.msra.mxu0 %v5239
        %8027 = vmatmul.bf16.gmra.mxu0 %v2995
        %v8028 = vpop.f32.mrf.mxu0
        %v8029 = vadd.f32 %v7940, %v8028
        %v8030 = vpop.f32.mrf.mxu0
        %v8031 = vadd.f32 %v7942, %v8030
        %8032 = vmatmul.bf16.gmra.mxu0 %v3027
        %v8033 = vpop.f32.mrf.mxu0
        %v8034 = vadd.f32 %v7945, %v8033
        %v8035 = vpop.f32.mrf.mxu0
        %v8036 = vadd.f32 %v7947, %v8035
        %8037 = vmatmul.bf16.gmra.mxu0 %v3059
        %v8038 = vpop.f32.mrf.mxu0
        %v8039 = vadd.f32 %v7950, %v8038
        %v8040 = vpop.f32.mrf.mxu0
        %v8041 = vadd.f32 %v7952, %v8040
        %8042 = vmatmul.bf16.gmra.mxu0 %v3091
        %v8043 = vpop.f32.mrf.mxu0
        %v8044 = vadd.f32 %v7955, %v8043
        %v8045 = vpop.f32.mrf.mxu0
        %v8046 = vadd.f32 %v7957, %v8045
        %8047 = vmatmul.bf16.gmra.mxu0 %v3123
        %v8048 = vpop.f32.mrf.mxu0
        %v8049 = vadd.f32 %v7960, %v8048
        %v8050 = vpop.f32.mrf.mxu0
        %v8051 = vadd.f32 %v7962, %v8050
        %8052 = vmatmul.bf16.gmra.mxu0 %v3155
        %v8053 = vpop.f32.mrf.mxu0
        %v8054 = vadd.f32 %v7965, %v8053
        %v8055 = vpop.f32.mrf.mxu0
        %v8056 = vadd.f32 %v7967, %v8055
        %8057 = vmatmul.bf16.gmra.mxu0 %v3187
        %v8058 = vpop.f32.mrf.mxu0
        %v8059 = vadd.f32 %v7970, %v8058
        %v8060 = vpop.f32.mrf.mxu0
        %v8061 = vadd.f32 %v7972, %v8060
        %8062 = vmatmul.bf16.gmra.mxu0 %v3219
        %v8063 = vpop.f32.mrf.mxu0
        %v8064 = vadd.f32 %v7975, %v8063
        %v8065 = vpop.f32.mrf.mxu0
        %v8066 = vadd.f32 %v7977, %v8065
        %8067 = vmatmul.bf16.gmra.mxu0 %v3251
        %v8068 = vpop.f32.mrf.mxu0
        %v8069 = vadd.f32 %v7980, %v8068
        %v8070 = vpop.f32.mrf.mxu0
        %v8071 = vadd.f32 %v7982, %v8070
        %8072 = vmatmul.bf16.gmra.mxu0 %v3283
        %v8073 = vpop.f32.mrf.mxu0
        %v8074 = vadd.f32 %v7985, %v8073
        %v8075 = vpop.f32.mrf.mxu0
        %v8076 = vadd.f32 %v7987, %v8075
        %8077 = vmatmul.bf16.gmra.mxu0 %v3315
        %v8078 = vpop.f32.mrf.mxu0
        %v8079 = vadd.f32 %v7990, %v8078
        %v8080 = vpop.f32.mrf.mxu0
        %v8081 = vadd.f32 %v7992, %v8080
        %8082 = vmatmul.bf16.gmra.mxu0 %v3347
        %v8083 = vpop.f32.mrf.mxu0
        %v8084 = vadd.f32 %v7995, %v8083
        %v8085 = vpop.f32.mrf.mxu0
        %v8086 = vadd.f32 %v7997, %v8085
        %8087 = vmatmul.bf16.gmra.mxu0 %v3379
        %v8088 = vpop.f32.mrf.mxu0
        %v8089 = vadd.f32 %v8000, %v8088
        %v8090 = vpop.f32.mrf.mxu0
        %v8091 = vadd.f32 %v8002, %v8090
        %8092 = vmatmul.bf16.gmra.mxu0 %v3411
        %v8093 = vpop.f32.mrf.mxu0
        %v8094 = vadd.f32 %v8005, %v8093
        %v8095 = vpop.f32.mrf.mxu0
        %v8096 = vadd.f32 %v8007, %v8095
        %8097 = vmatmul.bf16.gmra.mxu0 %v3443
        %v8098 = vpop.f32.mrf.mxu0
        %v8099 = vadd.f32 %v8010, %v8098
        %v8100 = vpop.f32.mrf.mxu0
        %v8101 = vadd.f32 %v8012, %v8100
        %8102 = vmatmul.bf16.gmra.mxu0 %v3475
        %v8103 = vpop.f32.mrf.mxu0
        %v8104 = vadd.f32 %v8015, %v8103
        %v8105 = vpop.f32.mrf.mxu0
        %v8106 = vadd.f32 %v8017, %v8105
        %8107 = vdwg.mxu0
        %8108 = vmatpush.bf16.msra.mxu0 %v5254
        %8109 = vmatpush.bf16.msra.mxu0 %v5253
        %8110 = vmatpush.bf16.msra.mxu0 %v5252
        %8111 = vmatpush.bf16.msra.mxu0 %v5251
        %8112 = vmatpush.bf16.msra.mxu0 %v5250
        %8113 = vmatpush.bf16.msra.mxu0 %v5249
        %8114 = vmatpush.bf16.msra.mxu0 %v5248
        %8115 = vmatpush.bf16.msra.mxu0 %v5247
        %8116 = vmatmul.bf16.gmra.mxu0 %v2996
        %v8117 = vpop.f32.mrf.mxu0
        %v8118 = vadd.f32 %v8029, %v8117
        %v8119 = vpop.f32.mrf.mxu0
        %v8120 = vadd.f32 %v8031, %v8119
        %8121 = vmatmul.bf16.gmra.mxu0 %v3028
        %v8122 = vpop.f32.mrf.mxu0
        %v8123 = vadd.f32 %v8034, %v8122
        %v8124 = vpop.f32.mrf.mxu0
        %v8125 = vadd.f32 %v8036, %v8124
        %8126 = vmatmul.bf16.gmra.mxu0 %v3060
        %v8127 = vpop.f32.mrf.mxu0
        %v8128 = vadd.f32 %v8039, %v8127
        %v8129 = vpop.f32.mrf.mxu0
        %v8130 = vadd.f32 %v8041, %v8129
        %8131 = vmatmul.bf16.gmra.mxu0 %v3092
        %v8132 = vpop.f32.mrf.mxu0
        %v8133 = vadd.f32 %v8044, %v8132
        %v8134 = vpop.f32.mrf.mxu0
        %v8135 = vadd.f32 %v8046, %v8134
        %8136 = vmatmul.bf16.gmra.mxu0 %v3124
        %v8137 = vpop.f32.mrf.mxu0
        %v8138 = vadd.f32 %v8049, %v8137
        %v8139 = vpop.f32.mrf.mxu0
        %v8140 = vadd.f32 %v8051, %v8139
        %8141 = vmatmul.bf16.gmra.mxu0 %v3156
        %v8142 = vpop.f32.mrf.mxu0
        %v8143 = vadd.f32 %v8054, %v8142
        %v8144 = vpop.f32.mrf.mxu0
        %v8145 = vadd.f32 %v8056, %v8144
        %8146 = vmatmul.bf16.gmra.mxu0 %v3188
        %v8147 = vpop.f32.mrf.mxu0
        %v8148 = vadd.f32 %v8059, %v8147
        %v8149 = vpop.f32.mrf.mxu0
        %v8150 = vadd.f32 %v8061, %v8149
        %8151 = vmatmul.bf16.gmra.mxu0 %v3220
        %v8152 = vpop.f32.mrf.mxu0
        %v8153 = vadd.f32 %v8064, %v8152
        %v8154 = vpop.f32.mrf.mxu0
        %v8155 = vadd.f32 %v8066, %v8154
        %8156 = vmatmul.bf16.gmra.mxu0 %v3252
        %v8157 = vpop.f32.mrf.mxu0
        %v8158 = vadd.f32 %v8069, %v8157
        %v8159 = vpop.f32.mrf.mxu0
        %v8160 = vadd.f32 %v8071, %v8159
        %8161 = vmatmul.bf16.gmra.mxu0 %v3284
        %v8162 = vpop.f32.mrf.mxu0
        %v8163 = vadd.f32 %v8074, %v8162
        %v8164 = vpop.f32.mrf.mxu0
        %v8165 = vadd.f32 %v8076, %v8164
        %8166 = vmatmul.bf16.gmra.mxu0 %v3316
        %v8167 = vpop.f32.mrf.mxu0
        %v8168 = vadd.f32 %v8079, %v8167
        %v8169 = vpop.f32.mrf.mxu0
        %v8170 = vadd.f32 %v8081, %v8169
        %8171 = vmatmul.bf16.gmra.mxu0 %v3348
        %v8172 = vpop.f32.mrf.mxu0
        %v8173 = vadd.f32 %v8084, %v8172
        %v8174 = vpop.f32.mrf.mxu0
        %v8175 = vadd.f32 %v8086, %v8174
        %8176 = vmatmul.bf16.gmra.mxu0 %v3380
        %v8177 = vpop.f32.mrf.mxu0
        %v8178 = vadd.f32 %v8089, %v8177
        %v8179 = vpop.f32.mrf.mxu0
        %v8180 = vadd.f32 %v8091, %v8179
        %8181 = vmatmul.bf16.gmra.mxu0 %v3412
        %v8182 = vpop.f32.mrf.mxu0
        %v8183 = vadd.f32 %v8094, %v8182
        %v8184 = vpop.f32.mrf.mxu0
        %v8185 = vadd.f32 %v8096, %v8184
        %8186 = vmatmul.bf16.gmra.mxu0 %v3444
        %v8187 = vpop.f32.mrf.mxu0
        %v8188 = vadd.f32 %v8099, %v8187
        %v8189 = vpop.f32.mrf.mxu0
        %v8190 = vadd.f32 %v8101, %v8189
        %8191 = vmatmul.bf16.gmra.mxu0 %v3476
        %v8192 = vpop.f32.mrf.mxu0
        %v8193 = vadd.f32 %v8104, %v8192
        %v8194 = vpop.f32.mrf.mxu0
        %v8195 = vadd.f32 %v8106, %v8194
        %8196 = vdwg.mxu0
        %8197 = vmatpush.bf16.msra.mxu0 %v5262
        %8198 = vmatpush.bf16.msra.mxu0 %v5261
        %8199 = vmatpush.bf16.msra.mxu0 %v5260
        %8200 = vmatpush.bf16.msra.mxu0 %v5259
        %8201 = vmatpush.bf16.msra.mxu0 %v5258
        %8202 = vmatpush.bf16.msra.mxu0 %v5257
        %8203 = vmatpush.bf16.msra.mxu0 %v5256
        %8204 = vmatpush.bf16.msra.mxu0 %v5255
        %8205 = vmatmul.bf16.gmra.mxu0 %v2997
        %v8206 = vpop.f32.mrf.mxu0
        %v8207 = vadd.f32 %v8118, %v8206
        %v8208 = vpop.f32.mrf.mxu0
        %v8209 = vadd.f32 %v8120, %v8208
        %8210 = vmatmul.bf16.gmra.mxu0 %v3029
        %v8211 = vpop.f32.mrf.mxu0
        %v8212 = vadd.f32 %v8123, %v8211
        %v8213 = vpop.f32.mrf.mxu0
        %v8214 = vadd.f32 %v8125, %v8213
        %8215 = vmatmul.bf16.gmra.mxu0 %v3061
        %v8216 = vpop.f32.mrf.mxu0
        %v8217 = vadd.f32 %v8128, %v8216
        %v8218 = vpop.f32.mrf.mxu0
        %v8219 = vadd.f32 %v8130, %v8218
        %8220 = vmatmul.bf16.gmra.mxu0 %v3093
        %v8221 = vpop.f32.mrf.mxu0
        %v8222 = vadd.f32 %v8133, %v8221
        %v8223 = vpop.f32.mrf.mxu0
        %v8224 = vadd.f32 %v8135, %v8223
        %8225 = vmatmul.bf16.gmra.mxu0 %v3125
        %v8226 = vpop.f32.mrf.mxu0
        %v8227 = vadd.f32 %v8138, %v8226
        %v8228 = vpop.f32.mrf.mxu0
        %v8229 = vadd.f32 %v8140, %v8228
        %8230 = vmatmul.bf16.gmra.mxu0 %v3157
        %v8231 = vpop.f32.mrf.mxu0
        %v8232 = vadd.f32 %v8143, %v8231
        %v8233 = vpop.f32.mrf.mxu0
        %v8234 = vadd.f32 %v8145, %v8233
        %8235 = vmatmul.bf16.gmra.mxu0 %v3189
        %v8236 = vpop.f32.mrf.mxu0
        %v8237 = vadd.f32 %v8148, %v8236
        %v8238 = vpop.f32.mrf.mxu0
        %v8239 = vadd.f32 %v8150, %v8238
        %8240 = vmatmul.bf16.gmra.mxu0 %v3221
        %v8241 = vpop.f32.mrf.mxu0
        %v8242 = vadd.f32 %v8153, %v8241
        %v8243 = vpop.f32.mrf.mxu0
        %v8244 = vadd.f32 %v8155, %v8243
        %8245 = vmatmul.bf16.gmra.mxu0 %v3253
        %v8246 = vpop.f32.mrf.mxu0
        %v8247 = vadd.f32 %v8158, %v8246
        %v8248 = vpop.f32.mrf.mxu0
        %v8249 = vadd.f32 %v8160, %v8248
        %8250 = vmatmul.bf16.gmra.mxu0 %v3285
        %v8251 = vpop.f32.mrf.mxu0
        %v8252 = vadd.f32 %v8163, %v8251
        %v8253 = vpop.f32.mrf.mxu0
        %v8254 = vadd.f32 %v8165, %v8253
        %8255 = vmatmul.bf16.gmra.mxu0 %v3317
        %v8256 = vpop.f32.mrf.mxu0
        %v8257 = vadd.f32 %v8168, %v8256
        %v8258 = vpop.f32.mrf.mxu0
        %v8259 = vadd.f32 %v8170, %v8258
        %8260 = vmatmul.bf16.gmra.mxu0 %v3349
        %v8261 = vpop.f32.mrf.mxu0
        %v8262 = vadd.f32 %v8173, %v8261
        %v8263 = vpop.f32.mrf.mxu0
        %v8264 = vadd.f32 %v8175, %v8263
        %8265 = vmatmul.bf16.gmra.mxu0 %v3381
        %v8266 = vpop.f32.mrf.mxu0
        %v8267 = vadd.f32 %v8178, %v8266
        %v8268 = vpop.f32.mrf.mxu0
        %v8269 = vadd.f32 %v8180, %v8268
        %8270 = vmatmul.bf16.gmra.mxu0 %v3413
        %v8271 = vpop.f32.mrf.mxu0
        %v8272 = vadd.f32 %v8183, %v8271
        %v8273 = vpop.f32.mrf.mxu0
        %v8274 = vadd.f32 %v8185, %v8273
        %8275 = vmatmul.bf16.gmra.mxu0 %v3445
        %v8276 = vpop.f32.mrf.mxu0
        %v8277 = vadd.f32 %v8188, %v8276
        %v8278 = vpop.f32.mrf.mxu0
        %v8279 = vadd.f32 %v8190, %v8278
        %8280 = vmatmul.bf16.gmra.mxu0 %v3477
        %v8281 = vpop.f32.mrf.mxu0
        %v8282 = vadd.f32 %v8193, %v8281
        %v8283 = vpop.f32.mrf.mxu0
        %v8284 = vadd.f32 %v8195, %v8283
        %8285 = vdwg.mxu0
        %8286 = vmatpush.bf16.msra.mxu0 %v5270
        %8287 = vmatpush.bf16.msra.mxu0 %v5269
        %8288 = vmatpush.bf16.msra.mxu0 %v5268
        %8289 = vmatpush.bf16.msra.mxu0 %v5267
        %8290 = vmatpush.bf16.msra.mxu0 %v5266
        %8291 = vmatpush.bf16.msra.mxu0 %v5265
        %8292 = vmatpush.bf16.msra.mxu0 %v5264
        %8293 = vmatpush.bf16.msra.mxu0 %v5263
        %8294 = vmatmul.bf16.gmra.mxu0 %v2998
        %v8295 = vpop.f32.mrf.mxu0
        %v8296 = vadd.f32 %v8207, %v8295
        %v8297 = vpop.f32.mrf.mxu0
        %v8298 = vadd.f32 %v8209, %v8297
        %8299 = vmatmul.bf16.gmra.mxu0 %v3030
        %v8300 = vpop.f32.mrf.mxu0
        %v8301 = vadd.f32 %v8212, %v8300
        %v8302 = vpop.f32.mrf.mxu0
        %v8303 = vadd.f32 %v8214, %v8302
        %8304 = vmatmul.bf16.gmra.mxu0 %v3062
        %v8305 = vpop.f32.mrf.mxu0
        %v8306 = vadd.f32 %v8217, %v8305
        %v8307 = vpop.f32.mrf.mxu0
        %v8308 = vadd.f32 %v8219, %v8307
        %8309 = vmatmul.bf16.gmra.mxu0 %v3094
        %v8310 = vpop.f32.mrf.mxu0
        %v8311 = vadd.f32 %v8222, %v8310
        %v8312 = vpop.f32.mrf.mxu0
        %v8313 = vadd.f32 %v8224, %v8312
        %8314 = vmatmul.bf16.gmra.mxu0 %v3126
        %v8315 = vpop.f32.mrf.mxu0
        %v8316 = vadd.f32 %v8227, %v8315
        %v8317 = vpop.f32.mrf.mxu0
        %v8318 = vadd.f32 %v8229, %v8317
        %8319 = vmatmul.bf16.gmra.mxu0 %v3158
        %v8320 = vpop.f32.mrf.mxu0
        %v8321 = vadd.f32 %v8232, %v8320
        %v8322 = vpop.f32.mrf.mxu0
        %v8323 = vadd.f32 %v8234, %v8322
        %8324 = vmatmul.bf16.gmra.mxu0 %v3190
        %v8325 = vpop.f32.mrf.mxu0
        %v8326 = vadd.f32 %v8237, %v8325
        %v8327 = vpop.f32.mrf.mxu0
        %v8328 = vadd.f32 %v8239, %v8327
        %8329 = vmatmul.bf16.gmra.mxu0 %v3222
        %v8330 = vpop.f32.mrf.mxu0
        %v8331 = vadd.f32 %v8242, %v8330
        %v8332 = vpop.f32.mrf.mxu0
        %v8333 = vadd.f32 %v8244, %v8332
        %8334 = vmatmul.bf16.gmra.mxu0 %v3254
        %v8335 = vpop.f32.mrf.mxu0
        %v8336 = vadd.f32 %v8247, %v8335
        %v8337 = vpop.f32.mrf.mxu0
        %v8338 = vadd.f32 %v8249, %v8337
        %8339 = vmatmul.bf16.gmra.mxu0 %v3286
        %v8340 = vpop.f32.mrf.mxu0
        %v8341 = vadd.f32 %v8252, %v8340
        %v8342 = vpop.f32.mrf.mxu0
        %v8343 = vadd.f32 %v8254, %v8342
        %8344 = vmatmul.bf16.gmra.mxu0 %v3318
        %v8345 = vpop.f32.mrf.mxu0
        %v8346 = vadd.f32 %v8257, %v8345
        %v8347 = vpop.f32.mrf.mxu0
        %v8348 = vadd.f32 %v8259, %v8347
        %8349 = vmatmul.bf16.gmra.mxu0 %v3350
        %v8350 = vpop.f32.mrf.mxu0
        %v8351 = vadd.f32 %v8262, %v8350
        %v8352 = vpop.f32.mrf.mxu0
        %v8353 = vadd.f32 %v8264, %v8352
        %8354 = vmatmul.bf16.gmra.mxu0 %v3382
        %v8355 = vpop.f32.mrf.mxu0
        %v8356 = vadd.f32 %v8267, %v8355
        %v8357 = vpop.f32.mrf.mxu0
        %v8358 = vadd.f32 %v8269, %v8357
        %8359 = vmatmul.bf16.gmra.mxu0 %v3414
        %v8360 = vpop.f32.mrf.mxu0
        %v8361 = vadd.f32 %v8272, %v8360
        %v8362 = vpop.f32.mrf.mxu0
        %v8363 = vadd.f32 %v8274, %v8362
        %8364 = vmatmul.bf16.gmra.mxu0 %v3446
        %v8365 = vpop.f32.mrf.mxu0
        %v8366 = vadd.f32 %v8277, %v8365
        %v8367 = vpop.f32.mrf.mxu0
        %v8368 = vadd.f32 %v8279, %v8367
        %8369 = vmatmul.bf16.gmra.mxu0 %v3478
        %v8370 = vpop.f32.mrf.mxu0
        %v8371 = vadd.f32 %v8282, %v8370
        %v8372 = vpop.f32.mrf.mxu0
        %v8373 = vadd.f32 %v8284, %v8372
        %8374 = vdwg.mxu0
        %v8375 = vadd.f32 %v375, %v8296
        %v8376 = vadd.f32 %v376, %v8298
        %v8377 = vadd.f32 %v377, %v8301
        %v8378 = vadd.f32 %v378, %v8303
        %v8379 = vadd.f32 %v379, %v8306
        %v8380 = vadd.f32 %v380, %v8308
        %v8381 = vadd.f32 %v381, %v8311
        %v8382 = vadd.f32 %v382, %v8313
        %v8383 = vadd.f32 %v383, %v8316
        %v8384 = vadd.f32 %v384, %v8318
        %v8385 = vadd.f32 %v385, %v8321
        %v8386 = vadd.f32 %v386, %v8323
        %v8387 = vadd.f32 %v387, %v8326
        %v8388 = vadd.f32 %v388, %v8328
        %v8389 = vadd.f32 %v389, %v8331
        %v8390 = vadd.f32 %v390, %v8333
        %v8391 = vadd.f32 %v391, %v8336
        %v8392 = vadd.f32 %v392, %v8338
        %v8393 = vadd.f32 %v393, %v8341
        %v8394 = vadd.f32 %v394, %v8343
        %v8395 = vadd.f32 %v395, %v8346
        %v8396 = vadd.f32 %v396, %v8348
        %v8397 = vadd.f32 %v397, %v8351
        %v8398 = vadd.f32 %v398, %v8353
        %v8399 = vadd.f32 %v399, %v8356
        %v8400 = vadd.f32 %v400, %v8358
        %v8401 = vadd.f32 %v401, %v8361
        %v8402 = vadd.f32 %v402, %v8363
        %v8403 = vadd.f32 %v403, %v8366
        %v8404 = vadd.f32 %v404, %v8368
        %v8405 = vadd.f32 %v405, %v8371
        %v8406 = vadd.f32 %v406, %v8373
        %8407 = vst [vmem:[#allocation2] sm:$0xff] %v8375
        %8408 = vst [vmem:[#allocation2 + $0x8] sm:$0xff] %v8376
        %8409 = vst [vmem:[#allocation2 + $0x10] sm:$0xff] %v8377
        %8410 = vst [vmem:[#allocation2 + $0x18] sm:$0xff] %v8378
        %8411 = vst [vmem:[#allocation2 + $0x20] sm:$0xff] %v8379
        %8412 = vst [vmem:[#allocation2 + $0x28] sm:$0xff] %v8380
        %8413 = vst [vmem:[#allocation2 + $0x30] sm:$0xff] %v8381
        %8414 = vst [vmem:[#allocation2 + $0x38] sm:$0xff] %v8382
        %8415 = vst [vmem:[#allocation2 + $0x40] sm:$0xff] %v8383
        %8416 = vst [vmem:[#allocation2 + $0x48] sm:$0xff] %v8384
        %8417 = vst [vmem:[#allocation2 + $0x50] sm:$0xff] %v8385
        %8418 = vst [vmem:[#allocation2 + $0x58] sm:$0xff] %v8386
        %8419 = vst [vmem:[#allocation2 + $0x60] sm:$0xff] %v8387
        %8420 = vst [vmem:[#allocation2 + $0x68] sm:$0xff] %v8388
        %8421 = vst [vmem:[#allocation2 + $0x70] sm:$0xff] %v8389
        %8422 = vst [vmem:[#allocation2 + $0x78] sm:$0xff] %v8390
        %8423 = vst [vmem:[#allocation2 + $0x80] sm:$0xff] %v8391
        %8424 = vst [vmem:[#allocation2 + $0x88] sm:$0xff] %v8392
        %8425 = vst [vmem:[#allocation2 + $0x90] sm:$0xff] %v8393
        %8426 = vst [vmem:[#allocation2 + $0x98] sm:$0xff] %v8394
        %8427 = vst [vmem:[#allocation2 + $0xa0] sm:$0xff] %v8395
        %8428 = vst [vmem:[#allocation2 + $0xa8] sm:$0xff] %v8396
        %8429 = vst [vmem:[#allocation2 + $0xb0] sm:$0xff] %v8397
        %8430 = vst [vmem:[#allocation2 + $0xb8] sm:$0xff] %v8398
        %8431 = vst [vmem:[#allocation2 + $0xc0] sm:$0xff] %v8399
        %8432 = vst [vmem:[#allocation2 + $0xc8] sm:$0xff] %v8400
        %8433 = vst [vmem:[#allocation2 + $0xd0] sm:$0xff] %v8401
        %8434 = vst [vmem:[#allocation2 + $0xd8] sm:$0xff] %v8402
        %8435 = vst [vmem:[#allocation2 + $0xe0] sm:$0xff] %v8403
        %8436 = vst [vmem:[#allocation2 + $0xe8] sm:$0xff] %v8404
        %8437 = vst [vmem:[#allocation2 + $0xf0] sm:$0xff] %v8405
        %8438 = vst [vmem:[#allocation2 + $0xf8] sm:$0xff] %v8406
        %p8439 = scmp.eq.s32.totalorder %s35, 1
        // Predicated region
        $region49: #{tpu_custom_call.1} parent=31 // pred_check
          %p8440 = pneg %p8439
        $region50: #{tpu_custom_call.1} parent=31 // pred_check_branch
          %8442 = sbr.rel (%p8440) target = $region52
        $region51: #{tpu_custom_call.1} parent=31 // pred_region
          %v8443 = vld [vmem:[#allocation2] sm:$0xff]
          %v8444 = vld [vmem:[#allocation2 + $0x8] sm:$0xff]
          %v8445 = vld [vmem:[#allocation2 + $0x10] sm:$0xff]
          %v8446 = vld [vmem:[#allocation2 + $0x18] sm:$0xff]
          %v8447 = vld [vmem:[#allocation2 + $0x20] sm:$0xff]
          %v8448 = vld [vmem:[#allocation2 + $0x28] sm:$0xff]
          %v8449 = vld [vmem:[#allocation2 + $0x30] sm:$0xff]
          %v8450 = vld [vmem:[#allocation2 + $0x38] sm:$0xff]
          %v8451 = vld [vmem:[#allocation2 + $0x40] sm:$0xff]
          %v8452 = vld [vmem:[#allocation2 + $0x48] sm:$0xff]
          %v8453 = vld [vmem:[#allocation2 + $0x50] sm:$0xff]
          %v8454 = vld [vmem:[#allocation2 + $0x58] sm:$0xff]
          %v8455 = vld [vmem:[#allocation2 + $0x60] sm:$0xff]
          %v8456 = vld [vmem:[#allocation2 + $0x68] sm:$0xff]
          %v8457 = vld [vmem:[#allocation2 + $0x70] sm:$0xff]
          %v8458 = vld [vmem:[#allocation2 + $0x78] sm:$0xff]
          %v8459 = vld [vmem:[#allocation2 + $0x80] sm:$0xff]
          %v8460 = vld [vmem:[#allocation2 + $0x88] sm:$0xff]
          %v8461 = vld [vmem:[#allocation2 + $0x90] sm:$0xff]
          %v8462 = vld [vmem:[#allocation2 + $0x98] sm:$0xff]
          %v8463 = vld [vmem:[#allocation2 + $0xa0] sm:$0xff]
          %v8464 = vld [vmem:[#allocation2 + $0xa8] sm:$0xff]
          %v8465 = vld [vmem:[#allocation2 + $0xb0] sm:$0xff]
          %v8466 = vld [vmem:[#allocation2 + $0xb8] sm:$0xff]
          %v8467 = vld [vmem:[#allocation2 + $0xc0] sm:$0xff]
          %v8468 = vld [vmem:[#allocation2 + $0xc8] sm:$0xff]
          %v8469 = vld [vmem:[#allocation2 + $0xd0] sm:$0xff]
          %v8470 = vld [vmem:[#allocation2 + $0xd8] sm:$0xff]
          %v8471 = vld [vmem:[#allocation2 + $0xe0] sm:$0xff]
          %v8472 = vld [vmem:[#allocation2 + $0xe8] sm:$0xff]
          %v8473 = vld [vmem:[#allocation2 + $0xf0] sm:$0xff]
          %v8474 = vld [vmem:[#allocation2 + $0xf8] sm:$0xff]
          %v8475 = vld [vmem:[%s295] sm:$0x1]
          %v8477 = vperm.slane %v8475, 0
          %v8479 = vadd.f32 %v8443, %v8477
          %v8480 = vadd.f32 %v8444, %v8477
          %v8481 = vadd.f32 %v8445, %v8477
          %v8482 = vadd.f32 %v8446, %v8477
          %v8483 = vadd.f32 %v8447, %v8477
          %v8484 = vadd.f32 %v8448, %v8477
          %v8485 = vadd.f32 %v8449, %v8477
          %v8486 = vadd.f32 %v8450, %v8477
          %v8487 = vadd.f32 %v8451, %v8477
          %v8488 = vadd.f32 %v8452, %v8477
          %v8489 = vadd.f32 %v8453, %v8477
          %v8490 = vadd.f32 %v8454, %v8477
          %v8491 = vadd.f32 %v8455, %v8477
          %v8492 = vadd.f32 %v8456, %v8477
          %v8493 = vadd.f32 %v8457, %v8477
          %v8494 = vadd.f32 %v8458, %v8477
          %v8495 = vadd.f32 %v8459, %v8477
          %v8496 = vadd.f32 %v8460, %v8477
          %v8497 = vadd.f32 %v8461, %v8477
          %v8498 = vadd.f32 %v8462, %v8477
          %v8499 = vadd.f32 %v8463, %v8477
          %v8500 = vadd.f32 %v8464, %v8477
          %v8501 = vadd.f32 %v8465, %v8477
          %v8502 = vadd.f32 %v8466, %v8477
          %v8503 = vadd.f32 %v8467, %v8477
          %v8504 = vadd.f32 %v8468, %v8477
          %v8505 = vadd.f32 %v8469, %v8477
          %v8506 = vadd.f32 %v8470, %v8477
          %v8507 = vadd.f32 %v8471, %v8477
          %v8508 = vadd.f32 %v8472, %v8477
          %v8509 = vadd.f32 %v8473, %v8477
          %v8510 = vadd.f32 %v8474, %v8477
          %8511 = vst [vmem:[%s334] sm:$0xff] 0.0
          %v8512 = vadd.f32 %v8479, %v8480
          %v8513 = vadd.f32 %v8512, %v8481
          %v8514 = vadd.f32 %v8513, %v8482
          %v8515 = vadd.f32 %v8514, %v8483
          %v8516 = vadd.f32 %v8515, %v8484
          %v8517 = vadd.f32 %v8516, %v8485
          %v8518 = vadd.f32 %v8517, %v8486
          %v8519 = vadd.f32 %v8518, %v8487
          %v8520 = vadd.f32 %v8519, %v8488
          %v8521 = vadd.f32 %v8520, %v8489
          %v8522 = vadd.f32 %v8521, %v8490
          %v8523 = vadd.f32 %v8522, %v8491
          %v8524 = vadd.f32 %v8523, %v8492
          %v8525 = vadd.f32 %v8524, %v8493
          %v8526 = vadd.f32 %v8525, %v8494
          %v8527 = vadd.f32 %v8526, %v8495
          %v8528 = vadd.f32 %v8527, %v8496
          %v8529 = vadd.f32 %v8528, %v8497
          %v8530 = vadd.f32 %v8529, %v8498
          %v8531 = vadd.f32 %v8530, %v8499
          %v8532 = vadd.f32 %v8531, %v8500
          %v8533 = vadd.f32 %v8532, %v8501
          %v8534 = vadd.f32 %v8533, %v8502
          %v8535 = vadd.f32 %v8534, %v8503
          %v8536 = vadd.f32 %v8535, %v8504
          %v8537 = vadd.f32 %v8536, %v8505
          %v8538 = vadd.f32 %v8537, %v8506
          %v8539 = vadd.f32 %v8538, %v8507
          %v8540 = vadd.f32 %v8539, %v8508
          %v8541 = vadd.f32 %v8540, %v8509
          %v8542 = vadd.f32 %v8541, %v8510
          %v8543 = vrot.slane %v8542, 4
          %v8544 = vadd.f32 %v8542, %v8543
          %v8545 = vrot.slane %v8544, 2
          %v8546 = vadd.f32 %v8544, %v8545
          %v8547 = vrot.slane %v8546, 1
          %v8548 = vadd.f32 %v8546, %v8547
          %8549 = vst [vmem:[%s334] sm:$0x1] %v8548
          %v8550 = vmul.f32 %v8479, %v8479
          %v8551 = vmul.f32 %v8480, %v8480
          %v8552 = vmul.f32 %v8481, %v8481
          %v8553 = vmul.f32 %v8482, %v8482
          %v8554 = vmul.f32 %v8483, %v8483
          %v8555 = vmul.f32 %v8484, %v8484
          %v8556 = vmul.f32 %v8485, %v8485
          %v8557 = vmul.f32 %v8486, %v8486
          %v8558 = vmul.f32 %v8487, %v8487
          %v8559 = vmul.f32 %v8488, %v8488
          %v8560 = vmul.f32 %v8489, %v8489
          %v8561 = vmul.f32 %v8490, %v8490
          %v8562 = vmul.f32 %v8491, %v8491
          %v8563 = vmul.f32 %v8492, %v8492
          %v8564 = vmul.f32 %v8493, %v8493
          %v8565 = vmul.f32 %v8494, %v8494
          %v8566 = vmul.f32 %v8495, %v8495
          %v8567 = vmul.f32 %v8496, %v8496
          %v8568 = vmul.f32 %v8497, %v8497
          %v8569 = vmul.f32 %v8498, %v8498
          %v8570 = vmul.f32 %v8499, %v8499
          %v8571 = vmul.f32 %v8500, %v8500
          %v8572 = vmul.f32 %v8501, %v8501
          %v8573 = vmul.f32 %v8502, %v8502
          %v8574 = vmul.f32 %v8503, %v8503
          %v8575 = vmul.f32 %v8504, %v8504
          %v8576 = vmul.f32 %v8505, %v8505
          %v8577 = vmul.f32 %v8506, %v8506
          %v8578 = vmul.f32 %v8507, %v8507
          %v8579 = vmul.f32 %v8508, %v8508
          %v8580 = vmul.f32 %v8509, %v8509
          %v8581 = vmul.f32 %v8510, %v8510
          %v8582 = vadd.f32 %v8550, %v8551
          %v8583 = vadd.f32 %v8582, %v8552
          %v8584 = vadd.f32 %v8583, %v8553
          %v8585 = vadd.f32 %v8584, %v8554
          %v8586 = vadd.f32 %v8585, %v8555
          %v8587 = vadd.f32 %v8586, %v8556
          %v8588 = vadd.f32 %v8587, %v8557
          %v8589 = vadd.f32 %v8588, %v8558
          %v8590 = vadd.f32 %v8589, %v8559
          %v8591 = vadd.f32 %v8590, %v8560
          %v8592 = vadd.f32 %v8591, %v8561
          %v8593 = vadd.f32 %v8592, %v8562
          %v8594 = vadd.f32 %v8593, %v8563
          %v8595 = vadd.f32 %v8594, %v8564
          %v8596 = vadd.f32 %v8595, %v8565
          %v8597 = vadd.f32 %v8596, %v8566
          %v8598 = vadd.f32 %v8597, %v8567
          %v8599 = vadd.f32 %v8598, %v8568
          %v8600 = vadd.f32 %v8599, %v8569
          %v8601 = vadd.f32 %v8600, %v8570
          %v8602 = vadd.f32 %v8601, %v8571
          %v8603 = vadd.f32 %v8602, %v8572
          %v8604 = vadd.f32 %v8603, %v8573
          %v8605 = vadd.f32 %v8604, %v8574
          %v8606 = vadd.f32 %v8605, %v8575
          %v8607 = vadd.f32 %v8606, %v8576
          %v8608 = vadd.f32 %v8607, %v8577
          %v8609 = vadd.f32 %v8608, %v8578
          %v8610 = vadd.f32 %v8609, %v8579
          %v8611 = vadd.f32 %v8610, %v8580
          %v8612 = vadd.f32 %v8611, %v8581
          %v8613 = vrot.slane %v8612, 4
          %v8614 = vadd.f32 %v8612, %v8613
          %v8615 = vrot.slane %v8614, 2
          %v8616 = vadd.f32 %v8614, %v8615
          %v8617 = vrot.slane %v8616, 1
          %v8618 = vadd.f32 %v8616, %v8617
          %8619 = vst [vmem:[%s334 + $0x1] sm:$0x1] %v8618
          %8620 = vst [vmem:[%s327] sm:$0xff] %v8479
          %8621 = vst [vmem:[%s327 + $0x8] sm:$0xff] %v8480
          %8622 = vst [vmem:[%s327 + $0x10] sm:$0xff] %v8481
          %8623 = vst [vmem:[%s327 + $0x18] sm:$0xff] %v8482
          %8624 = vst [vmem:[%s327 + $0x20] sm:$0xff] %v8483
          %8625 = vst [vmem:[%s327 + $0x28] sm:$0xff] %v8484
          %8626 = vst [vmem:[%s327 + $0x30] sm:$0xff] %v8485
          %8627 = vst [vmem:[%s327 + $0x38] sm:$0xff] %v8486
          %8628 = vst [vmem:[%s327 + $0x40] sm:$0xff] %v8487
          %8629 = vst [vmem:[%s327 + $0x48] sm:$0xff] %v8488
          %8630 = vst [vmem:[%s327 + $0x50] sm:$0xff] %v8489
          %8631 = vst [vmem:[%s327 + $0x58] sm:$0xff] %v8490
          %8632 = vst [vmem:[%s327 + $0x60] sm:$0xff] %v8491
          %8633 = vst [vmem:[%s327 + $0x68] sm:$0xff] %v8492
          %8634 = vst [vmem:[%s327 + $0x70] sm:$0xff] %v8493
          %8635 = vst [vmem:[%s327 + $0x78] sm:$0xff] %v8494
          %8636 = vst [vmem:[%s327 + $0x80] sm:$0xff] %v8495
          %8637 = vst [vmem:[%s327 + $0x88] sm:$0xff] %v8496
          %8638 = vst [vmem:[%s327 + $0x90] sm:$0xff] %v8497
          %8639 = vst [vmem:[%s327 + $0x98] sm:$0xff] %v8498
          %8640 = vst [vmem:[%s327 + $0xa0] sm:$0xff] %v8499
          %8641 = vst [vmem:[%s327 + $0xa8] sm:$0xff] %v8500
          %8642 = vst [vmem:[%s327 + $0xb0] sm:$0xff] %v8501
          %8643 = vst [vmem:[%s327 + $0xb8] sm:$0xff] %v8502
          %8644 = vst [vmem:[%s327 + $0xc0] sm:$0xff] %v8503
          %8645 = vst [vmem:[%s327 + $0xc8] sm:$0xff] %v8504
          %8646 = vst [vmem:[%s327 + $0xd0] sm:$0xff] %v8505
          %8647 = vst [vmem:[%s327 + $0xd8] sm:$0xff] %v8506
          %8648 = vst [vmem:[%s327 + $0xe0] sm:$0xff] %v8507
          %8649 = vst [vmem:[%s327 + $0xe8] sm:$0xff] %v8508
          %8650 = vst [vmem:[%s327 + $0xf0] sm:$0xff] %v8509
          %8651 = vst [vmem:[%s327 + $0xf8] sm:$0xff] %v8510
        $region52: #{tpu_custom_call.1} parent=31 // pred_fallthru
          _
        %s8652 = sand.u32 %s139, 1
        %s8653 = scalar_lea.sflag [#allocation5], %s8652
        %s8654 = sand.u32 %s139, 1
        %s8655 = smul.addr %s8654, 256
        %s8656 = scalar_lea.vmem [#allocation9], %s8655
        %s8657 = sand.u32 %s167, 1
        %s8658 = scalar_lea.sflag [#allocation11], %s8657
        %s8659 = sand.u32 %s167, 1
        %s8660 = smul.addr %s8659, 8
        %s8661 = scalar_lea.vmem [#allocation10], %s8660
        // Predicated region
        $region53: #{tpu_custom_call.1} parent=31 // pred_check
          %p8662 = pneg %p149
        $region54: #{tpu_custom_call.1} parent=31 // pred_check_branch
          %8664 = sbr.rel (%p8662) target = $region56
        $region55: #{tpu_custom_call.1} parent=31 // pred_region
          %s8665 = smul.u32 32, %s33
          %8667 = vsyncadd %s8653, 0
          %s8668 = smul.addr %s8665, 3
          %s8669 = sadd.s32 %s34, %s8668
          %s8670 = smul.addr %s8669, 8
          %s8671 = scalar_lea.hbm %s3, %s8670
          %s8672 = sshll.u32 %s8656, 4
          %s8673 = int_to_ptr.vmem [resolvable:$true] %s8672
          %s8674 = sshll.u32 %s8671, 4
          %s8675 = int_to_ptr.hbm [resolvable:$true] %s8674
          %8680 = dma.vmem_to_hbm [thread:$0]  %s8673, 4096, %s8675, %s8653, 128, 384, 8
        $region56: #{tpu_custom_call.1} parent=31 // pred_fallthru
          _
        // Predicated region
        $region57: #{tpu_custom_call.1} parent=31 // pred_check
          %p8681 = pneg %p177
        $region58: #{tpu_custom_call.1} parent=31 // pred_check_branch
          %8683 = sbr.rel (%p8681) target = $region60
        $region59: #{tpu_custom_call.1} parent=31 // pred_region
          %8685 = vsyncadd %s8658, 0
          %s8686 = smul.addr %s33, 3
          %s8687 = sadd.s32 %s34, %s8686
          %s8688 = smul.addr %s8687, 8
          %s8689 = scalar_lea.hbm %s4, %s8688
          %s8691 = sshll.u32 %s8661, 4
          %s8692 = int_to_ptr.vmem [resolvable:$true] %s8691
          %s8693 = sshll.u32 %s8689, 4
          %s8694 = int_to_ptr.hbm [resolvable:$true] %s8693
          %8696 = dma.vmem_to_hbm [thread:$0]  %s8692, 128, %s8694, %s8658
        $region60: #{tpu_custom_call.1} parent=31 // pred_fallthru
          _
      $region32: #{tpu_custom_call.1} parent=5 // pred_fallthru
        _
      %p8697 = scmp.le.s32.totalorder 2, %s23
      // Predicated region
      $region61: #{tpu_custom_call.1} parent=5 // pred_check
        %p8698 = pneg %p8697
      $region62: #{tpu_custom_call.1} parent=5 // pred_check_branch
        %8700 = sbr.rel (%p8698) target = $region64
      $region63: #{tpu_custom_call.1} parent=5 // pred_region
        %s8701 = ssub.s32 %s23, 2
        // Predicated region
        $region65: #{tpu_custom_call.1} parent=63 // pred_check
          %p8702 = pneg %p155
        $region66: #{tpu_custom_call.1} parent=63 // pred_check_branch
          %8704 = sbr.rel (%p8702) target = $region68
        $region67: #{tpu_custom_call.1} parent=63 // pred_region
          %s8705 = sand.u32 %s140, 1
          %s8706 = scalar_lea.sflag [#allocation5], %s8705
          %s8707 = sand.u32 %s140, 1
          %s8708 = smul.addr %s8707, 256
          %s8709 = scalar_lea.vmem [#allocation9], %s8708
          %8711 = dma.done %s8706, 4096
        $region68: #{tpu_custom_call.1} parent=63 // pred_fallthru
          _
        // Predicated region
        $region69: #{tpu_custom_call.1} parent=63 // pred_check
          %p8712 = pneg %p183
        $region70: #{tpu_custom_call.1} parent=63 // pred_check_branch
          %8714 = sbr.rel (%p8712) target = $region72
        $region71: #{tpu_custom_call.1} parent=63 // pred_region
          %s8715 = sand.u32 %s168, 1
          %s8716 = scalar_lea.sflag [#allocation11], %s8715
          %s8717 = sand.u32 %s168, 1
          %s8718 = smul.addr %s8717, 8
          %s8719 = scalar_lea.vmem [#allocation10], %s8718
          %8721 = dma.done %s8716, 128
        $region72: #{tpu_custom_call.1} parent=63 // pred_fallthru
          _
      $region64: #{tpu_custom_call.1} parent=5 // pred_fallthru
        _
    $region6: #{tpu_custom_call.1} parent=1 // loop_footer
      %s27 = sadd.s32 1, %s23
    $region7: #{tpu_custom_call.1} parent=1 // loop_footer_branch
      %22 = sbr.rel target = $region3
    $region8: #{tpu_custom_call.1} parent=1 // loop_exit
      _
    %8722 = vsyncpa [#allocation4], 1
    %s8723 = scalar_lea.sflag [#allocation4], 1
    %8724 = vsyncpa %s8723, 1
    %8725 = vsyncpa [#allocation7], 1
    %s8726 = scalar_lea.sflag [#allocation7], 1
    %8727 = vsyncpa %s8726, 1
    %8728 = vsyncpa [#allocation5], 1
    %s8729 = scalar_lea.sflag [#allocation5], 1
    %8730 = vsyncpa %s8729, 1
    %8731 = vsyncpa [#allocation11], 1
    %s8732 = scalar_lea.sflag [#allocation11], 1
    %8733 = vsyncpa %s8732, 1

</llo_original>
